<compile_context>
chip_gen: v5e
topology: v5e:2x2
jax: 0.10.0
libtpu: 0.0.40
codegen_flags: <defaults>
</compile_context>

<pallas_src>
import jax
import jax.numpy as jnp
import numpy as np
from jax.experimental import pallas as pl
from jax.experimental.pallas import tpu as pltpu

_NEG_BIG = -1e30  # behaves as -inf for the max-pool padding


def _round_up(x, m):
    return ((x + m - 1) // m) * m


# ----------------------------------------------------------------------------
# Fused inception block (single Pallas kernel)
# ----------------------------------------------------------------------------
def inception_block(x_nchw, params, compute_dtype=jnp.float32):
    """GoogLeNet Inception block forward.  x: (N, Cin, H, W) -> (N, C_total, H, W)."""
    N, Cin, H, W = x_nchw.shape
    f32 = jnp.float32
    cdt = compute_dtype

    w1, b1 = params["b1"]            # (C1, Cin, 1, 1)
    w2r, b2r = params["b2_reduce"]   # (R3, Cin, 1, 1)
    w2c, b2c = params["b2_conv"]     # (O3, R3, 3, 3)
    w3r, b3r = params["b3_reduce"]   # (R5, Cin, 1, 1)
    w3c, b3c = params["b3_conv"]     # (O5, R5, 5, 5)
    w4, b4 = params["b4_conv"]       # (OP, Cin, 1, 1)

    C1, R3, R5 = w1.shape[0], w2r.shape[0], w3r.shape[0]
    O3, O5, OP = w2c.shape[0], w3c.shape[0], w4.shape[0]
    CT = C1 + O3 + O5 + OP           # total output channels (concat order: b1,b2,b3,b4)
    CPT = C1 + R3 + R5               # fused 1x1 output width

    P = 2                            # max spatial padding among branches (5x5 conv)
    Hp, Wp = H + 2 * P, W + 2 * P
    S = Hp * Wp                      # flat size of one padded image
    Gx = _round_up(Wp + 1, 8)        # x halo: only the 3x3 max-pool reads shifted x
    Gr = _round_up(2 * Wp + 2, 8)    # reduce-scratch halo: 5x5 conv reach
    Sx = S + 2 * Gx
    Sr = S + 2 * Gr

    # ---- input: NCHW -> NHWC -> pad spatially (-BIG) -> flatten -> halo pad ----
    x = jnp.transpose(x_nchw, (0, 2, 3, 1))
    xp = jnp.pad(x, ((0, 0), (P, P), (P, P), (0, 0)), constant_values=_NEG_BIG)
    xf = xp.reshape(N, S, Cin)
    xf = jnp.pad(xf, ((0, 0), (Gx, Gx), (0, 0)), constant_values=_NEG_BIG).astype(cdt)

    # ---- validity mask over the flat padded layout (1.0 on real pixels) ----
    idx = jnp.arange(S)
    hh, ww = idx // Wp, idx % Wp
    valid = (hh >= P) & (hh < P + H) & (ww >= P) & (ww < P + W)
    mask = valid.astype(f32).reshape(S, 1)

    # ---- weights: fuse the three 1x1s reading x; KxK -> flat (K*K*In, Out) ----
    def pw(w):                       # (O, I, 1, 1) -> (I, O)
        return jnp.transpose(w[:, :, 0, 0], (1, 0))

    def kxk_flat(w):                 # (O, I, K, K) -> (K*K*I, O), tap-major / ch-minor
        O, I, K, _ = w.shape
        return jnp.transpose(w, (2, 3, 1, 0)).reshape(K * K * I, O)

    wpt = jnp.concatenate([pw(w1), pw(w2r), pw(w3r)], axis=1).astype(cdt)  # (Cin, CPT)
    bpt = jnp.concatenate([b1, b2r, b3r]).reshape(1, CPT).astype(f32)
    w3f = kxk_flat(w2c).astype(cdt)  # (9*R3, O3)
    b3f = b2c.reshape(1, O3).astype(f32)
    w5f = kxk_flat(w3c).astype(cdt)  # (25*R5, O5)
    b5f = b3c.reshape(1, O5).astype(f32)
    wp4 = pw(w4).astype(cdt)         # (Cin, OP)
    bp4 = b4.reshape(1, OP).astype(f32)

    # static flat-shift offsets for the 3x3 and 5x5 neighborhoods
    off3 = [(i - 1) * Wp + (j - 1) for i in range(3) for j in range(3)]
    off5 = [(i - 2) * Wp + (j - 2) for i in range(5) for j in range(5)]

    def kernel(x_ref, m_ref, wpt_ref, bpt_ref, w3_ref, b3_ref, w5_ref, b5_ref,
               wp_ref, bp_ref, o_ref, s3_ref, s5_ref):
        mask_b = m_ref[...] > 0.5                        # (S, 1) bool
        x_win = x_ref[0, pl.ds(Gx, S), :]                # (S, Cin); pads hold -BIG
        x_cln = jnp.where(mask_b, x_win, 0.0)            # zero-padded view for convs

        # fused 1x1 convs: branch-1 + 3x3-reduce + 5x5-reduce in one MXU pass
        z = jnp.dot(x_cln, wpt_ref[...], preferred_element_type=jnp.float32)
        z = z + bpt_ref[...]
        o1 = z[:, 0:C1]
        red3 = jnp.where(mask_b, z[:, C1:C1 + R3], 0.0)
        red5 = jnp.where(mask_b, z[:, C1 + R3:CPT], 0.0)

        # stage masked reduce features in haloed VMEM scratch for shifted reads;
        # only the halo rows need zeroing (the body is fully overwritten)
        s3_ref[pl.ds(0, Gr), :] = jnp.zeros((Gr, R3), s3_ref.dtype)
        s3_ref[pl.ds(Gr + S, Gr), :] = jnp.zeros((Gr, R3), s3_ref.dtype)
        s5_ref[pl.ds(0, Gr), :] = jnp.zeros((Gr, R5), s5_ref.dtype)
        s5_ref[pl.ds(Gr + S, Gr), :] = jnp.zeros((Gr, R5), s5_ref.dtype)
        s3_ref[pl.ds(Gr, S), :] = red3.astype(s3_ref.dtype)
        s5_ref[pl.ds(Gr, S), :] = red5.astype(s5_ref.dtype)

        # branch 2: 3x3 conv (pad 1) as in-VMEM im2col -> ONE wide-K matmul
        col3 = jnp.concatenate([s3_ref[pl.ds(Gr + d, S), :] for d in off3], axis=-1)
        o2 = jnp.dot(col3, w3_ref[...], preferred_element_type=jnp.float32)
        o2 = o2 + b3_ref[...]

        # branch 3: 5x5 conv (pad 2) as in-VMEM im2col -> ONE wide-K matmul
        col5 = jnp.concatenate([s5_ref[pl.ds(Gr + d, S), :] for d in off5], axis=-1)
        o3 = jnp.dot(col5, w5_ref[...], preferred_element_type=jnp.float32)
        o3 = o3 + b5_ref[...]

        # branch 4: 3x3 max-pool (stride 1, pad 1, -inf pads) fused with its 1x1 conv
        taps = [x_ref[0, pl.ds(Gx + d, S), :] for d in off3]
        while len(taps) > 1:                              # balanced max tree
            nxt = []
            for k in range(0, len(taps) - 1, 2):
                nxt.append(jnp.maximum(taps[k], taps[k + 1]))
            if len(taps) % 2:
                nxt.append(taps[-1])
            taps = nxt
        o4 = jnp.dot(taps[0], wp_ref[...], preferred_element_type=jnp.float32)
        o4 = o4 + bp_ref[...]

        # single channel-concatenated store (no extra HBM concat pass)
        out = jnp.concatenate([o1, o2, o3, o4], axis=-1)
        o_ref[0, :, :] = out.astype(o_ref.dtype)

    out_flat = pl.pallas_call(
        kernel,
        out_shape=jax.ShapeDtypeStruct((N, S, CT), x_nchw.dtype),
        grid=(N,),
        in_specs=[
            pl.BlockSpec((1, Sx, Cin), lambda n: (n, 0, 0)),   # padded flat image
            pl.BlockSpec((S, 1), lambda n: (0, 0)),            # validity mask
            pl.BlockSpec((Cin, CPT), lambda n: (0, 0)),        # fused 1x1 weights
            pl.BlockSpec((1, CPT), lambda n: (0, 0)),
            pl.BlockSpec((9 * R3, O3), lambda n: (0, 0)),      # 3x3 weights (flat K)
            pl.BlockSpec((1, O3), lambda n: (0, 0)),
            pl.BlockSpec((25 * R5, O5), lambda n: (0, 0)),     # 5x5 weights (flat K)
            pl.BlockSpec((1, O5), lambda n: (0, 0)),
            pl.BlockSpec((Cin, OP), lambda n: (0, 0)),         # pool-branch 1x1
            pl.BlockSpec((1, OP), lambda n: (0, 0)),
        ],
        out_specs=pl.BlockSpec((1, S, CT), lambda n: (n, 0, 0)),
        scratch_shapes=[
            pltpu.VMEM((Sr, R3), cdt),
            pltpu.VMEM((Sr, R5), cdt),
        ],
        compiler_params=pltpu.CompilerParams(
            dimension_semantics=("parallel",)),
    )(xf, mask, wpt, bpt, w3f, b3f, w5f, b5f, wp4, bp4)

    # crop the spatial padding, back to NCHW (module contract)
    out = out_flat.reshape(N, Hp, Wp, CT)[:, P:P + H, P:P + W, :]
    return jnp.transpose(out, (0, 3, 1, 2))


# ----------------------------------------------------------------------------
# Parameter init (matches the PyTorch module's conv shapes)
# ----------------------------------------------------------------------------
def init_inception_params(key, in_ch, out_1x1, red_3x3, out_3x3, red_5x5, out_5x5, pool_out):
    ks = jax.random.split(key, 12)

    def conv_p(kw, kb, cout, cin, K):
        w = jax.random.normal(kw, (cout, cin, K, K), jnp.float32) * 0.1
        b = jax.random.normal(kb, (cout,), jnp.float32) * 0.1
        return w, b

    return {
        "b1": conv_p(ks[0], ks[1], out_1x1, in_ch, 1),
        "b2_reduce": conv_p(ks[2], ks[3], red_3x3, in_ch, 1),
        "b2_conv": conv_p(ks[4], ks[5], out_3x3, red_3x3, 3),
        "b3_reduce": conv_p(ks[6], ks[7], red_5x5, in_ch, 1),
        "b3_conv": conv_p(ks[8], ks[9], out_5x5, red_5x5, 5),
        "b4_conv": conv_p(ks[10], ks[11], pool_out, in_ch, 1),
    }


# ----------------------------------------------------------------------------
# Pure-JAX reference (for correctness check only)
# ----------------------------------------------------------------------------
def _ref_conv(x_nchw, w, b, pad):
    y = jax.lax.conv_general_dilated(
        x_nchw, w, (1, 1), [(pad, pad), (pad, pad)],
        dimension_numbers=("NCHW", "OIHW", "NCHW"))
    return y + b[None, :, None, None]


def _ref_maxpool(x_nchw):
    return jax.lax.reduce_window(
        x_nchw, -jnp.inf, jax.lax.max,
        (1, 1, 3, 3), (1, 1, 1, 1), [(0, 0), (0, 0), (1, 1), (1, 1)])


def inception_block_ref(x_nchw, p):
    y1 = _ref_conv(x_nchw, *p["b1"], pad=0)
    y2 = _ref_conv(_ref_conv(x_nchw, *p["b2_reduce"], pad=0), *p["b2_conv"], pad=1)
    y3 = _ref_conv(_ref_conv(x_nchw, *p["b3_reduce"], pad=0), *p["b3_conv"], pad=2)
    y4 = _ref_conv(_ref_maxpool(x_nchw), *p["b4_conv"], pad=0)
    return jnp.concatenate([y1, y2, y3, y4], axis=1)


# ----------------------------------------------------------------------------
if __name__ == "__main__":
    key = jax.random.PRNGKey(0)
    kx, kp = jax.random.split(key)

    # small, module-consistent shapes
    N, C, H, W = 2, 4, 16, 16
    out_1x1, red_3x3, out_3x3, red_5x5, out_5x5, pool_out = 8, 4, 8, 4, 8, 8

    x = jax.random.normal(kx, (N, C, H, W), jnp.float32)
    params = init_inception_params(kp, C, out_1x1, red_3x3, out_3x3, red_5x5, out_5x5, pool_out)

    out = jax.jit(inception_block)(x, params)
    out = jax.block_until_ready(out)

    expected_channels = out_1x1 + out_3x3 + out_5x5 + pool_out
    assert out.shape == (N, expected_channels, H, W), out.shape

    ref = jax.block_until_ready(inception_block_ref(x, params))
    np.testing.assert_allclose(np.asarray(out), np.asarray(ref), rtol=1e-4, atol=1e-4)

    print("KERNEL_OK")
</pallas_src>

<mosaic_0001>
module attributes {stable_mosaic.version = 11 : i64} {
  func.func @kernel(%arg0: i32, %arg1: memref<1x448x4xf32, #tpu.memory_space<vmem>>, %arg2: memref<400x1xf32, #tpu.memory_space<vmem>>, %arg3: memref<4x16xf32, #tpu.memory_space<vmem>>, %arg4: memref<1x16xf32, #tpu.memory_space<vmem>>, %arg5: memref<36x8xf32, #tpu.memory_space<vmem>>, %arg6: memref<1x8xf32, #tpu.memory_space<vmem>>, %arg7: memref<100x8xf32, #tpu.memory_space<vmem>>, %arg8: memref<1x8xf32, #tpu.memory_space<vmem>>, %arg9: memref<4x8xf32, #tpu.memory_space<vmem>>, %arg10: memref<1x8xf32, #tpu.memory_space<vmem>>, %arg11: memref<1x400x32xf32, #tpu.memory_space<vmem>>, %arg12: memref<496x4xf32, #tpu.memory_space<vmem>>, %arg13: memref<496x4xf32, #tpu.memory_space<vmem>>) attributes {dimension_semantics = [#tpu.dimension_semantics<parallel>], iteration_bounds = array<i64: 2>, scalar_prefetch = 0 : i64, scratch_operands = 2 : i64, tpu.core_type = #tpu.core_type<tc>, window_params = [{transform_indices = @transform_0, window_bounds = array<i64: 1, 448, 4>}, {pipeline_mode = #tpu.pipeline_mode<synchronous>, transform_indices = @transform_1, window_bounds = array<i64: 400, 1>}, {pipeline_mode = #tpu.pipeline_mode<synchronous>, transform_indices = @transform_2, window_bounds = array<i64: 4, 16>}, {pipeline_mode = #tpu.pipeline_mode<synchronous>, transform_indices = @transform_3, window_bounds = array<i64: 1, 16>}, {pipeline_mode = #tpu.pipeline_mode<synchronous>, transform_indices = @transform_4, window_bounds = array<i64: 36, 8>}, {pipeline_mode = #tpu.pipeline_mode<synchronous>, transform_indices = @transform_5, window_bounds = array<i64: 1, 8>}, {pipeline_mode = #tpu.pipeline_mode<synchronous>, transform_indices = @transform_6, window_bounds = array<i64: 100, 8>}, {pipeline_mode = #tpu.pipeline_mode<synchronous>, transform_indices = @transform_7, window_bounds = array<i64: 1, 8>}, {pipeline_mode = #tpu.pipeline_mode<synchronous>, transform_indices = @transform_8, window_bounds = array<i64: 4, 8>}, {pipeline_mode = #tpu.pipeline_mode<synchronous>, transform_indices = @transform_9, window_bounds = array<i64: 1, 8>}, {transform_indices = @transform_10, window_bounds = array<i64: 1, 400, 32>}]} {
    %c0 = arith.constant 0 : index
    %c0_0 = arith.constant 0 : index
    %0 = vector.load %arg2[%c0, %c0_0] : memref<400x1xf32, #tpu.memory_space<vmem>>, vector<400x1xf32>
    %cst = arith.constant 5.000000e-01 : f32
    %1 = vector.broadcast %cst : f32 to vector<400x1xf32>
    %2 = arith.cmpf ogt, %0, %1 : vector<400x1xf32>
    %c0_1 = arith.constant 0 : index
    %c24 = arith.constant 24 : index
    %c0_2 = arith.constant 0 : index
    %3 = vector.load %arg1[%c0_1, %c24, %c0_2] : memref<1x448x4xf32, #tpu.memory_space<vmem>>, vector<1x400x4xf32>
    %4 = vector.shape_cast %3 : vector<1x400x4xf32> to vector<400x4xf32>
    %cst_3 = arith.constant 0.000000e+00 : f32
    %5 = vector.shape_cast %2 : vector<400x1xi1> to vector<400x1xi1>
    %6 = vector.broadcast %5 : vector<400x1xi1> to vector<400x4xi1>
    %7 = vector.broadcast %cst_3 : f32 to vector<400x4xf32>
    %8 = arith.select %6, %4, %7 : vector<400x4xi1>, vector<400x4xf32>
    %c0_4 = arith.constant 0 : index
    %c0_5 = arith.constant 0 : index
    %9 = vector.load %arg3[%c0_4, %c0_5] : memref<4x16xf32, #tpu.memory_space<vmem>>, vector<4x16xf32>
    %cst_6 = arith.constant dense<0.000000e+00> : vector<400x16xf32>
    %10 = tpu.matmul %8, %9, %cst_6 {dimension_numbers = #tpu.dot_dimension_numbers<[1], [0], [0], [1], [0, 0, 1, 1], [], []>} : vector<400x4xf32>, vector<4x16xf32>, vector<400x16xf32> -> vector<400x16xf32>
    %c0_7 = arith.constant 0 : index
    %c0_8 = arith.constant 0 : index
    %11 = vector.load %arg4[%c0_7, %c0_8] : memref<1x16xf32, #tpu.memory_space<vmem>>, vector<1x16xf32>
    %12 = vector.broadcast %11 : vector<1x16xf32> to vector<400x16xf32>
    %13 = arith.addf %10, %12 : vector<400x16xf32>
    %14 = vector.extract_strided_slice %13 {offsets = [0, 0], sizes = [400, 8], strides = [1, 1]} : vector<400x16xf32> to vector<400x8xf32>
    %15 = vector.extract_strided_slice %13 {offsets = [0, 8], sizes = [400, 4], strides = [1, 1]} : vector<400x16xf32> to vector<400x4xf32>
    %cst_9 = arith.constant 0.000000e+00 : f32
    %16 = vector.shape_cast %2 : vector<400x1xi1> to vector<400x1xi1>
    %17 = vector.broadcast %16 : vector<400x1xi1> to vector<400x4xi1>
    %18 = vector.broadcast %cst_9 : f32 to vector<400x4xf32>
    %19 = arith.select %17, %15, %18 : vector<400x4xi1>, vector<400x4xf32>
    %20 = vector.extract_strided_slice %13 {offsets = [0, 12], sizes = [400, 4], strides = [1, 1]} : vector<400x16xf32> to vector<400x4xf32>
    %cst_10 = arith.constant 0.000000e+00 : f32
    %21 = vector.shape_cast %2 : vector<400x1xi1> to vector<400x1xi1>
    %22 = vector.broadcast %21 : vector<400x1xi1> to vector<400x4xi1>
    %23 = vector.broadcast %cst_10 : f32 to vector<400x4xf32>
    %24 = arith.select %22, %20, %23 : vector<400x4xi1>, vector<400x4xf32>
    %cst_11 = arith.constant 0.000000e+00 : f32
    %25 = vector.broadcast %cst_11 : f32 to vector<48x4xf32>
    %c0_12 = arith.constant 0 : index
    %c0_13 = arith.constant 0 : index
    %26 = vector.load %arg12[%c0_12, %c0_13] : memref<496x4xf32, #tpu.memory_space<vmem>>, vector<48x4xf32>
    tpu.vector_store %arg12[%c0_12, %c0_13], %25 {strides = array<i32>} : memref<496x4xf32, #tpu.memory_space<vmem>>, vector<48x4xf32>,
    %cst_14 = arith.constant 0.000000e+00 : f32
    %27 = vector.broadcast %cst_14 : f32 to vector<48x4xf32>
    %c448 = arith.constant 448 : index
    %c0_15 = arith.constant 0 : index
    %28 = vector.load %arg12[%c448, %c0_15] : memref<496x4xf32, #tpu.memory_space<vmem>>, vector<48x4xf32>
    tpu.vector_store %arg12[%c448, %c0_15], %27 {strides = array<i32>} : memref<496x4xf32, #tpu.memory_space<vmem>>, vector<48x4xf32>,
    %cst_16 = arith.constant 0.000000e+00 : f32
    %29 = vector.broadcast %cst_16 : f32 to vector<48x4xf32>
    %c0_17 = arith.constant 0 : index
    %c0_18 = arith.constant 0 : index
    %30 = vector.load %arg13[%c0_17, %c0_18] : memref<496x4xf32, #tpu.memory_space<vmem>>, vector<48x4xf32>
    tpu.vector_store %arg13[%c0_17, %c0_18], %29 {strides = array<i32>} : memref<496x4xf32, #tpu.memory_space<vmem>>, vector<48x4xf32>,
    %cst_19 = arith.constant 0.000000e+00 : f32
    %31 = vector.broadcast %cst_19 : f32 to vector<48x4xf32>
    %c448_20 = arith.constant 448 : index
    %c0_21 = arith.constant 0 : index
    %32 = vector.load %arg13[%c448_20, %c0_21] : memref<496x4xf32, #tpu.memory_space<vmem>>, vector<48x4xf32>
    tpu.vector_store %arg13[%c448_20, %c0_21], %31 {strides = array<i32>} : memref<496x4xf32, #tpu.memory_space<vmem>>, vector<48x4xf32>,
    %c48 = arith.constant 48 : index
    %c0_22 = arith.constant 0 : index
    %33 = vector.load %arg12[%c48, %c0_22] : memref<496x4xf32, #tpu.memory_space<vmem>>, vector<400x4xf32>
    tpu.vector_store %arg12[%c48, %c0_22], %19 {strides = array<i32>} : memref<496x4xf32, #tpu.memory_space<vmem>>, vector<400x4xf32>,
    %c48_23 = arith.constant 48 : index
    %c0_24 = arith.constant 0 : index
    %34 = vector.load %arg13[%c48_23, %c0_24] : memref<496x4xf32, #tpu.memory_space<vmem>>, vector<400x4xf32>
    tpu.vector_store %arg13[%c48_23, %c0_24], %24 {strides = array<i32>} : memref<496x4xf32, #tpu.memory_space<vmem>>, vector<400x4xf32>,
    %c27 = arith.constant 27 : index
    %c0_25 = arith.constant 0 : index
    %35 = vector.load %arg12[%c27, %c0_25] : memref<496x4xf32, #tpu.memory_space<vmem>>, vector<400x4xf32>
    %c28 = arith.constant 28 : index
    %c0_26 = arith.constant 0 : index
    %36 = vector.load %arg12[%c28, %c0_26] : memref<496x4xf32, #tpu.memory_space<vmem>>, vector<400x4xf32>
    %c29 = arith.constant 29 : index
    %c0_27 = arith.constant 0 : index
    %37 = vector.load %arg12[%c29, %c0_27] : memref<496x4xf32, #tpu.memory_space<vmem>>, vector<400x4xf32>
    %c47 = arith.constant 47 : index
    %c0_28 = arith.constant 0 : index
    %38 = vector.load %arg12[%c47, %c0_28] : memref<496x4xf32, #tpu.memory_space<vmem>>, vector<400x4xf32>
    %c48_29 = arith.constant 48 : index
    %c0_30 = arith.constant 0 : index
    %39 = vector.load %arg12[%c48_29, %c0_30] : memref<496x4xf32, #tpu.memory_space<vmem>>, vector<400x4xf32>
    %c49 = arith.constant 49 : index
    %c0_31 = arith.constant 0 : index
    %40 = vector.load %arg12[%c49, %c0_31] : memref<496x4xf32, #tpu.memory_space<vmem>>, vector<400x4xf32>
    %c67 = arith.constant 67 : index
    %c0_32 = arith.constant 0 : index
    %41 = vector.load %arg12[%c67, %c0_32] : memref<496x4xf32, #tpu.memory_space<vmem>>, vector<400x4xf32>
    %c68 = arith.constant 68 : index
    %c0_33 = arith.constant 0 : index
    %42 = vector.load %arg12[%c68, %c0_33] : memref<496x4xf32, #tpu.memory_space<vmem>>, vector<400x4xf32>
    %c69 = arith.constant 69 : index
    %c0_34 = arith.constant 0 : index
    %43 = vector.load %arg12[%c69, %c0_34] : memref<496x4xf32, #tpu.memory_space<vmem>>, vector<400x4xf32>
    %44 = tpu.concatenate %35, %36, %37, %38, %39, %40, %41, %42, %43 in 1 : vector<400x4xf32>, vector<400x4xf32>, vector<400x4xf32>, vector<400x4xf32>, vector<400x4xf32>, vector<400x4xf32>, vector<400x4xf32>, vector<400x4xf32>, vector<400x4xf32> -> vector<400x36xf32>
    %c0_35 = arith.constant 0 : index
    %c0_36 = arith.constant 0 : index
    %45 = vector.load %arg5[%c0_35, %c0_36] : memref<36x8xf32, #tpu.memory_space<vmem>>, vector<36x8xf32>
    %cst_37 = arith.constant dense<0.000000e+00> : vector<400x8xf32>
    %46 = tpu.matmul %44, %45, %cst_37 {dimension_numbers = #tpu.dot_dimension_numbers<[1], [0], [0], [1], [0, 0, 1, 1], [], []>} : vector<400x36xf32>, vector<36x8xf32>, vector<400x8xf32> -> vector<400x8xf32>
    %c0_38 = arith.constant 0 : index
    %c0_39 = arith.constant 0 : index
    %47 = vector.load %arg6[%c0_38, %c0_39] : memref<1x8xf32, #tpu.memory_space<vmem>>, vector<1x8xf32>
    %48 = vector.broadcast %47 : vector<1x8xf32> to vector<400x8xf32>
    %49 = arith.addf %46, %48 : vector<400x8xf32>
    %c6 = arith.constant 6 : index
    %c0_40 = arith.constant 0 : index
    %50 = vector.load %arg13[%c6, %c0_40] : memref<496x4xf32, #tpu.memory_space<vmem>>, vector<400x4xf32>
    %c7 = arith.constant 7 : index
    %c0_41 = arith.constant 0 : index
    %51 = vector.load %arg13[%c7, %c0_41] : memref<496x4xf32, #tpu.memory_space<vmem>>, vector<400x4xf32>
    %c8 = arith.constant 8 : index
    %c0_42 = arith.constant 0 : index
    %52 = vector.load %arg13[%c8, %c0_42] : memref<496x4xf32, #tpu.memory_space<vmem>>, vector<400x4xf32>
    %c9 = arith.constant 9 : index
    %c0_43 = arith.constant 0 : index
    %53 = vector.load %arg13[%c9, %c0_43] : memref<496x4xf32, #tpu.memory_space<vmem>>, vector<400x4xf32>
    %c10 = arith.constant 10 : index
    %c0_44 = arith.constant 0 : index
    %54 = vector.load %arg13[%c10, %c0_44] : memref<496x4xf32, #tpu.memory_space<vmem>>, vector<400x4xf32>
    %c26 = arith.constant 26 : index
    %c0_45 = arith.constant 0 : index
    %55 = vector.load %arg13[%c26, %c0_45] : memref<496x4xf32, #tpu.memory_space<vmem>>, vector<400x4xf32>
    %c27_46 = arith.constant 27 : index
    %c0_47 = arith.constant 0 : index
    %56 = vector.load %arg13[%c27_46, %c0_47] : memref<496x4xf32, #tpu.memory_space<vmem>>, vector<400x4xf32>
    %c28_48 = arith.constant 28 : index
    %c0_49 = arith.constant 0 : index
    %57 = vector.load %arg13[%c28_48, %c0_49] : memref<496x4xf32, #tpu.memory_space<vmem>>, vector<400x4xf32>
    %c29_50 = arith.constant 29 : index
    %c0_51 = arith.constant 0 : index
    %58 = vector.load %arg13[%c29_50, %c0_51] : memref<496x4xf32, #tpu.memory_space<vmem>>, vector<400x4xf32>
    %c30 = arith.constant 30 : index
    %c0_52 = arith.constant 0 : index
    %59 = vector.load %arg13[%c30, %c0_52] : memref<496x4xf32, #tpu.memory_space<vmem>>, vector<400x4xf32>
    %c46 = arith.constant 46 : index
    %c0_53 = arith.constant 0 : index
    %60 = vector.load %arg13[%c46, %c0_53] : memref<496x4xf32, #tpu.memory_space<vmem>>, vector<400x4xf32>
    %c47_54 = arith.constant 47 : index
    %c0_55 = arith.constant 0 : index
    %61 = vector.load %arg13[%c47_54, %c0_55] : memref<496x4xf32, #tpu.memory_space<vmem>>, vector<400x4xf32>
    %c48_56 = arith.constant 48 : index
    %c0_57 = arith.constant 0 : index
    %62 = vector.load %arg13[%c48_56, %c0_57] : memref<496x4xf32, #tpu.memory_space<vmem>>, vector<400x4xf32>
    %c49_58 = arith.constant 49 : index
    %c0_59 = arith.constant 0 : index
    %63 = vector.load %arg13[%c49_58, %c0_59] : memref<496x4xf32, #tpu.memory_space<vmem>>, vector<400x4xf32>
    %c50 = arith.constant 50 : index
    %c0_60 = arith.constant 0 : index
    %64 = vector.load %arg13[%c50, %c0_60] : memref<496x4xf32, #tpu.memory_space<vmem>>, vector<400x4xf32>
    %c66 = arith.constant 66 : index
    %c0_61 = arith.constant 0 : index
    %65 = vector.load %arg13[%c66, %c0_61] : memref<496x4xf32, #tpu.memory_space<vmem>>, vector<400x4xf32>
    %c67_62 = arith.constant 67 : index
    %c0_63 = arith.constant 0 : index
    %66 = vector.load %arg13[%c67_62, %c0_63] : memref<496x4xf32, #tpu.memory_space<vmem>>, vector<400x4xf32>
    %c68_64 = arith.constant 68 : index
    %c0_65 = arith.constant 0 : index
    %67 = vector.load %arg13[%c68_64, %c0_65] : memref<496x4xf32, #tpu.memory_space<vmem>>, vector<400x4xf32>
    %c69_66 = arith.constant 69 : index
    %c0_67 = arith.constant 0 : index
    %68 = vector.load %arg13[%c69_66, %c0_67] : memref<496x4xf32, #tpu.memory_space<vmem>>, vector<400x4xf32>
    %c70 = arith.constant 70 : index
    %c0_68 = arith.constant 0 : index
    %69 = vector.load %arg13[%c70, %c0_68] : memref<496x4xf32, #tpu.memory_space<vmem>>, vector<400x4xf32>
    %c86 = arith.constant 86 : index
    %c0_69 = arith.constant 0 : index
    %70 = vector.load %arg13[%c86, %c0_69] : memref<496x4xf32, #tpu.memory_space<vmem>>, vector<400x4xf32>
    %c87 = arith.constant 87 : index
    %c0_70 = arith.constant 0 : index
    %71 = vector.load %arg13[%c87, %c0_70] : memref<496x4xf32, #tpu.memory_space<vmem>>, vector<400x4xf32>
    %c88 = arith.constant 88 : index
    %c0_71 = arith.constant 0 : index
    %72 = vector.load %arg13[%c88, %c0_71] : memref<496x4xf32, #tpu.memory_space<vmem>>, vector<400x4xf32>
    %c89 = arith.constant 89 : index
    %c0_72 = arith.constant 0 : index
    %73 = vector.load %arg13[%c89, %c0_72] : memref<496x4xf32, #tpu.memory_space<vmem>>, vector<400x4xf32>
    %c90 = arith.constant 90 : index
    %c0_73 = arith.constant 0 : index
    %74 = vector.load %arg13[%c90, %c0_73] : memref<496x4xf32, #tpu.memory_space<vmem>>, vector<400x4xf32>
    %75 = tpu.concatenate %50, %51, %52, %53, %54, %55, %56, %57, %58, %59, %60, %61, %62, %63, %64, %65 in 1 : vector<400x4xf32>, vector<400x4xf32>, vector<400x4xf32>, vector<400x4xf32>, vector<400x4xf32>, vector<400x4xf32>, vector<400x4xf32>, vector<400x4xf32>, vector<400x4xf32>, vector<400x4xf32>, vector<400x4xf32>, vector<400x4xf32>, vector<400x4xf32>, vector<400x4xf32>, vector<400x4xf32>, vector<400x4xf32> -> vector<400x64xf32>
    %76 = tpu.concatenate %66, %67, %68, %69, %70, %71, %72, %73, %74 in 1 : vector<400x4xf32>, vector<400x4xf32>, vector<400x4xf32>, vector<400x4xf32>, vector<400x4xf32>, vector<400x4xf32>, vector<400x4xf32>, vector<400x4xf32>, vector<400x4xf32> -> vector<400x36xf32>
    %77 = tpu.concatenate %75, %76 in 1 : vector<400x64xf32>, vector<400x36xf32> -> vector<400x100xf32>
    %c0_74 = arith.constant 0 : index
    %c0_75 = arith.constant 0 : index
    %78 = vector.load %arg7[%c0_74, %c0_75] : memref<100x8xf32, #tpu.memory_space<vmem>>, vector<100x8xf32>
    %cst_76 = arith.constant dense<0.000000e+00> : vector<400x8xf32>
    %79 = tpu.matmul %77, %78, %cst_76 {dimension_numbers = #tpu.dot_dimension_numbers<[1], [0], [0], [1], [0, 0, 1, 1], [], []>} : vector<400x100xf32>, vector<100x8xf32>, vector<400x8xf32> -> vector<400x8xf32>
    %c0_77 = arith.constant 0 : index
    %c0_78 = arith.constant 0 : index
    %80 = vector.load %arg8[%c0_77, %c0_78] : memref<1x8xf32, #tpu.memory_space<vmem>>, vector<1x8xf32>
    %81 = vector.broadcast %80 : vector<1x8xf32> to vector<400x8xf32>
    %82 = arith.addf %79, %81 : vector<400x8xf32>
    %c0_79 = arith.constant 0 : index
    %c3 = arith.constant 3 : index
    %c0_80 = arith.constant 0 : index
    %83 = vector.load %arg1[%c0_79, %c3, %c0_80] : memref<1x448x4xf32, #tpu.memory_space<vmem>>, vector<1x400x4xf32>
    %84 = vector.shape_cast %83 : vector<1x400x4xf32> to vector<400x4xf32>
    %c0_81 = arith.constant 0 : index
    %c4 = arith.constant 4 : index
    %c0_82 = arith.constant 0 : index
    %85 = vector.load %arg1[%c0_81, %c4, %c0_82] : memref<1x448x4xf32, #tpu.memory_space<vmem>>, vector<1x400x4xf32>
    %86 = vector.shape_cast %85 : vector<1x400x4xf32> to vector<400x4xf32>
    %c0_83 = arith.constant 0 : index
    %c5 = arith.constant 5 : index
    %c0_84 = arith.constant 0 : index
    %87 = vector.load %arg1[%c0_83, %c5, %c0_84] : memref<1x448x4xf32, #tpu.memory_space<vmem>>, vector<1x400x4xf32>
    %88 = vector.shape_cast %87 : vector<1x400x4xf32> to vector<400x4xf32>
    %c0_85 = arith.constant 0 : index
    %c23 = arith.constant 23 : index
    %c0_86 = arith.constant 0 : index
    %89 = vector.load %arg1[%c0_85, %c23, %c0_86] : memref<1x448x4xf32, #tpu.memory_space<vmem>>, vector<1x400x4xf32>
    %90 = vector.shape_cast %89 : vector<1x400x4xf32> to vector<400x4xf32>
    %c0_87 = arith.constant 0 : index
    %c24_88 = arith.constant 24 : index
    %c0_89 = arith.constant 0 : index
    %91 = vector.load %arg1[%c0_87, %c24_88, %c0_89] : memref<1x448x4xf32, #tpu.memory_space<vmem>>, vector<1x400x4xf32>
    %92 = vector.shape_cast %91 : vector<1x400x4xf32> to vector<400x4xf32>
    %c0_90 = arith.constant 0 : index
    %c25 = arith.constant 25 : index
    %c0_91 = arith.constant 0 : index
    %93 = vector.load %arg1[%c0_90, %c25, %c0_91] : memref<1x448x4xf32, #tpu.memory_space<vmem>>, vector<1x400x4xf32>
    %94 = vector.shape_cast %93 : vector<1x400x4xf32> to vector<400x4xf32>
    %c0_92 = arith.constant 0 : index
    %c43 = arith.constant 43 : index
    %c0_93 = arith.constant 0 : index
    %95 = vector.load %arg1[%c0_92, %c43, %c0_93] : memref<1x448x4xf32, #tpu.memory_space<vmem>>, vector<1x400x4xf32>
    %96 = vector.shape_cast %95 : vector<1x400x4xf32> to vector<400x4xf32>
    %c0_94 = arith.constant 0 : index
    %c44 = arith.constant 44 : index
    %c0_95 = arith.constant 0 : index
    %97 = vector.load %arg1[%c0_94, %c44, %c0_95] : memref<1x448x4xf32, #tpu.memory_space<vmem>>, vector<1x400x4xf32>
    %98 = vector.shape_cast %97 : vector<1x400x4xf32> to vector<400x4xf32>
    %c0_96 = arith.constant 0 : index
    %c45 = arith.constant 45 : index
    %c0_97 = arith.constant 0 : index
    %99 = vector.load %arg1[%c0_96, %c45, %c0_97] : memref<1x448x4xf32, #tpu.memory_space<vmem>>, vector<1x400x4xf32>
    %100 = vector.shape_cast %99 : vector<1x400x4xf32> to vector<400x4xf32>
    %101 = arith.maximumf %84, %86 : vector<400x4xf32>
    %102 = arith.maximumf %88, %90 : vector<400x4xf32>
    %103 = arith.maximumf %92, %94 : vector<400x4xf32>
    %104 = arith.maximumf %96, %98 : vector<400x4xf32>
    %105 = arith.maximumf %101, %102 : vector<400x4xf32>
    %106 = arith.maximumf %103, %104 : vector<400x4xf32>
    %107 = arith.maximumf %105, %106 : vector<400x4xf32>
    %108 = arith.maximumf %107, %100 : vector<400x4xf32>
    %c0_98 = arith.constant 0 : index
    %c0_99 = arith.constant 0 : index
    %109 = vector.load %arg9[%c0_98, %c0_99] : memref<4x8xf32, #tpu.memory_space<vmem>>, vector<4x8xf32>
    %cst_100 = arith.constant dense<0.000000e+00> : vector<400x8xf32>
    %110 = tpu.matmul %108, %109, %cst_100 {dimension_numbers = #tpu.dot_dimension_numbers<[1], [0], [0], [1], [0, 0, 1, 1], [], []>} : vector<400x4xf32>, vector<4x8xf32>, vector<400x8xf32> -> vector<400x8xf32>
    %c0_101 = arith.constant 0 : index
    %c0_102 = arith.constant 0 : index
    %111 = vector.load %arg10[%c0_101, %c0_102] : memref<1x8xf32, #tpu.memory_space<vmem>>, vector<1x8xf32>
    %112 = vector.broadcast %111 : vector<1x8xf32> to vector<400x8xf32>
    %113 = arith.addf %110, %112 : vector<400x8xf32>
    %114 = tpu.concatenate %14, %49, %82, %113 in 1 : vector<400x8xf32>, vector<400x8xf32>, vector<400x8xf32>, vector<400x8xf32> -> vector<400x32xf32>
    %c0_103 = arith.constant 0 : index
    %c0_104 = arith.constant 0 : index
    %c0_105 = arith.constant 0 : index
    %115 = vector.load %arg11[%c0_103, %c0_104, %c0_105] : memref<1x400x32xf32, #tpu.memory_space<vmem>>, vector<1x400x32xf32>
    %116 = vector.shape_cast %115 : vector<1x400x32xf32> to vector<400x32xf32>
    %117 = vector.shape_cast %114 : vector<400x32xf32> to vector<1x400x32xf32>
    tpu.vector_store %arg11[%c0_103, %c0_104, %c0_105], %117 {strides = array<i32>} : memref<1x400x32xf32, #tpu.memory_space<vmem>>, vector<1x400x32xf32>,
    return
  }
  func.func @transform_0(%arg0: i32) -> (i32, i32, i32) {
    %c0_i32 = arith.constant 0 : i32
    %c0_i32_0 = arith.constant 0 : i32
    %c0_i32_1 = arith.constant 0 : i32
    return %arg0, %c0_i32, %c0_i32_0 : i32, i32, i32
  }
  func.func @transform_1(%arg0: i32) -> (i32, i32) {
    %c0_i32 = arith.constant 0 : i32
    %c0_i32_0 = arith.constant 0 : i32
    %c0_i32_1 = arith.constant 0 : i32
    return %c0_i32, %c0_i32_0 : i32, i32
  }
  func.func @transform_2(%arg0: i32) -> (i32, i32) {
    %c0_i32 = arith.constant 0 : i32
    %c0_i32_0 = arith.constant 0 : i32
    %c0_i32_1 = arith.constant 0 : i32
    return %c0_i32, %c0_i32_0 : i32, i32
  }
  func.func @transform_3(%arg0: i32) -> (i32, i32) {
    %c0_i32 = arith.constant 0 : i32
    %c0_i32_0 = arith.constant 0 : i32
    %c0_i32_1 = arith.constant 0 : i32
    return %c0_i32, %c0_i32_0 : i32, i32
  }
  func.func @transform_4(%arg0: i32) -> (i32, i32) {
    %c0_i32 = arith.constant 0 : i32
    %c0_i32_0 = arith.constant 0 : i32
    %c0_i32_1 = arith.constant 0 : i32
    return %c0_i32, %c0_i32_0 : i32, i32
  }
  func.func @transform_5(%arg0: i32) -> (i32, i32) {
    %c0_i32 = arith.constant 0 : i32
    %c0_i32_0 = arith.constant 0 : i32
    %c0_i32_1 = arith.constant 0 : i32
    return %c0_i32, %c0_i32_0 : i32, i32
  }
  func.func @transform_6(%arg0: i32) -> (i32, i32) {
    %c0_i32 = arith.constant 0 : i32
    %c0_i32_0 = arith.constant 0 : i32
    %c0_i32_1 = arith.constant 0 : i32
    return %c0_i32, %c0_i32_0 : i32, i32
  }
  func.func @transform_7(%arg0: i32) -> (i32, i32) {
    %c0_i32 = arith.constant 0 : i32
    %c0_i32_0 = arith.constant 0 : i32
    %c0_i32_1 = arith.constant 0 : i32
    return %c0_i32, %c0_i32_0 : i32, i32
  }
  func.func @transform_8(%arg0: i32) -> (i32, i32) {
    %c0_i32 = arith.constant 0 : i32
    %c0_i32_0 = arith.constant 0 : i32
    %c0_i32_1 = arith.constant 0 : i32
    return %c0_i32, %c0_i32_0 : i32, i32
  }
  func.func @transform_9(%arg0: i32) -> (i32, i32) {
    %c0_i32 = arith.constant 0 : i32
    %c0_i32_0 = arith.constant 0 : i32
    %c0_i32_1 = arith.constant 0 : i32
    return %c0_i32, %c0_i32_0 : i32, i32
  }
  func.func @transform_10(%arg0: i32) -> (i32, i32, i32) {
    %c0_i32 = arith.constant 0 : i32
    %c0_i32_0 = arith.constant 0 : i32
    %c0_i32_1 = arith.constant 0 : i32
    return %arg0, %c0_i32, %c0_i32_0 : i32, i32, i32
  }
}

</mosaic_0001>

<llo_original>
// kernel: inception_block.1
$region0: #{inception_block.1}
  #allocation0 [shape = 'u32[]', space=smem, size = 0x4, offset = 0x4, fixed_abs, tag = 'smem constant byte address 0x4 - core index']
  #allocation1 [shape = 'u32[72,128]{1,0:T(1,128)}', space=vmem, size = 0x9000, scoped, tag = 'internal scratch']
  #allocation2 [shape = 'f32[496,4]{1,0:T(8,128)}', space=vmem, size = 0x3e000, scoped, tag = 'scratch operand']
  #allocation3 [shape = 'f32[496,4]{1,0:T(8,128)}', space=vmem, size = 0x3e000, scoped, tag = 'scratch operand']
  %s0 = inlined_call_operand.vmem [shape: f32[2,448,4], index: 0, kind: input, shape index: {}]
  %s1 = inlined_call_operand.vmem [shape: f32[400,1], index: 1, kind: input, shape index: {}]
  %s2 = inlined_call_operand.vmem [shape: f32[4,16], index: 2, kind: input, shape index: {}]
  %s3 = inlined_call_operand.vmem [shape: f32[1,16], index: 3, kind: input, shape index: {}]
  %s4 = inlined_call_operand.vmem [shape: f32[36,8], index: 4, kind: input, shape index: {}]
  %s5 = inlined_call_operand.vmem [shape: f32[1,8], index: 5, kind: input, shape index: {}]
  %s6 = inlined_call_operand.vmem [shape: f32[100,8], index: 6, kind: input, shape index: {}]
  %s7 = inlined_call_operand.vmem [shape: f32[1,8], index: 7, kind: input, shape index: {}]
  %s8 = inlined_call_operand.vmem [shape: f32[4,8], index: 8, kind: input, shape index: {}]
  %s9 = inlined_call_operand.vmem [shape: f32[1,8], index: 9, kind: input, shape index: {}]
  %s10 = inlined_call_operand.vmem [shape: f32[2,400,32], index: 10, kind: output, shape index: {}]
  %s11 = sld [smem:[#allocation0]]
  $region73: #{inception_block.1} parent=0
    _
  %s13 = ssub.s32 1, %s11
  %s14 = scalar_select 0, %s13, %s11
  loop: start=0, step=1, limit=4
  $region2: #{inception_block.1} parent=0 // loop_pre_header
    _
  $region3: #{inception_block.1} parent=0 // loop_header
    %s16 = sphi 0, %s20
    %p17 = scmp.ge.s32.totalorder %s16, 4
    %s26 = sphi 0, %s28
    %s29 = sphi 0, %s26
    %s30 = sphi 0, %s29
    %s46 = sphi 0, %s30
    %s50 = sphi 0, %s50
    %s52 = sphi 0, %s50
    %s53 = sphi 0, %s52
    %s67 = sphi 0, %s53
    %s71 = sphi 0, %s71
    %s73 = sphi 0, %s71
    %s74 = sphi 0, %s73
    %s88 = sphi 0, %s74
    %s92 = sphi 0, %s92
    %s94 = sphi 0, %s92
    %s95 = sphi 0, %s94
    %s109 = sphi 0, %s95
    %s113 = sphi 0, %s113
    %s115 = sphi 0, %s113
    %s116 = sphi 0, %s115
    %s130 = sphi 0, %s116
    %s134 = sphi 0, %s134
    %s136 = sphi 0, %s134
    %s137 = sphi 0, %s136
    %s151 = sphi 0, %s137
    %s155 = sphi 0, %s155
    %s157 = sphi 0, %s155
    %s158 = sphi 0, %s157
    %s172 = sphi 0, %s158
    %s176 = sphi 0, %s176
    %s178 = sphi 0, %s176
    %s179 = sphi 0, %s178
    %s193 = sphi 0, %s179
    %s197 = sphi 0, %s197
    %s199 = sphi 0, %s197
    %s200 = sphi 0, %s199
    %s214 = sphi 0, %s200
    %s218 = sphi 0, %s218
    %s220 = sphi 0, %s218
    %s221 = sphi 0, %s220
    %s235 = sphi 0, %s221
    %s241 = sphi 0, %s243
    %s244 = sphi 0, %s241
    %s245 = sphi 0, %s244
    %s261 = sphi 0, %s245
  $region4: #{inception_block.1} parent=0 // loop_header_branch
    %19 = sbr.rel (%p17) target = $region8
  $region5: #{inception_block.1} parent=0 // loop_body
    %s21 = ssub.s32 %s16, 1
    %s22 = ssub.s32 %s16, 2
    %s23 = sadd.s32 %s16, 1
    %s24 = ssub.s32 %s16, %s23
    %p25 = scmp.eq.s32.totalorder %s24, 0
    %s27 = sadd.s32 %s26, 1
    %s28 = scalar_select %p25, %s26, %s27
    %p31 = pneg %p25
    %p32 = scmp.eq.s32.totalorder %s16, 1
    %p33 = por %p31, %p32
    %p34 = scmp.ne.s32.totalorder %s26, %s29
    %p35 = scmp.eq.s32.totalorder %s16, 0
    %p36 = por %p34, %p35
    %p37 = scmp.ne.s32.totalorder %s26, %s29
    %p38 = scmp.eq.s32.totalorder %s21, 1
    %p39 = por %p37, %p38
    %p40 = scmp.ne.s32.totalorder %s29, %s30
    %p41 = scmp.eq.s32.totalorder %s21, 0
    %p42 = por %p40, %p41
    %p43 = scmp.ne.s32.totalorder %s29, %s30
    %p44 = scmp.eq.s32.totalorder %s22, 1
    %p45 = por %p43, %p44
    %p47 = scmp.ne.s32.totalorder %s30, %s46
    %p48 = scmp.eq.s32.totalorder %s22, 0
    %p49 = por %p47, %p48
    %s51 = sadd.s32 %s50, 1
    %p54 = scmp.eq.s32.totalorder %s16, 1
    %p55 = scmp.ne.s32.totalorder %s50, %s52
    %p56 = scmp.eq.s32.totalorder %s16, 0
    %p57 = por %p55, %p56
    %p58 = scmp.ne.s32.totalorder %s50, %s52
    %p59 = scmp.eq.s32.totalorder %s21, 1
    %p60 = por %p58, %p59
    %p61 = scmp.ne.s32.totalorder %s52, %s53
    %p62 = scmp.eq.s32.totalorder %s21, 0
    %p63 = por %p61, %p62
    %p64 = scmp.ne.s32.totalorder %s52, %s53
    %p65 = scmp.eq.s32.totalorder %s22, 1
    %p66 = por %p64, %p65
    %p68 = scmp.ne.s32.totalorder %s53, %s67
    %p69 = scmp.eq.s32.totalorder %s22, 0
    %p70 = por %p68, %p69
    %s72 = sadd.s32 %s71, 1
    %p75 = scmp.eq.s32.totalorder %s16, 1
    %p76 = scmp.ne.s32.totalorder %s71, %s73
    %p77 = scmp.eq.s32.totalorder %s16, 0
    %p78 = por %p76, %p77
    %p79 = scmp.ne.s32.totalorder %s71, %s73
    %p80 = scmp.eq.s32.totalorder %s21, 1
    %p81 = por %p79, %p80
    %p82 = scmp.ne.s32.totalorder %s73, %s74
    %p83 = scmp.eq.s32.totalorder %s21, 0
    %p84 = por %p82, %p83
    %p85 = scmp.ne.s32.totalorder %s73, %s74
    %p86 = scmp.eq.s32.totalorder %s22, 1
    %p87 = por %p85, %p86
    %p89 = scmp.ne.s32.totalorder %s74, %s88
    %p90 = scmp.eq.s32.totalorder %s22, 0
    %p91 = por %p89, %p90
    %s93 = sadd.s32 %s92, 1
    %p96 = scmp.eq.s32.totalorder %s16, 1
    %p97 = scmp.ne.s32.totalorder %s92, %s94
    %p98 = scmp.eq.s32.totalorder %s16, 0
    %p99 = por %p97, %p98
    %p100 = scmp.ne.s32.totalorder %s92, %s94
    %p101 = scmp.eq.s32.totalorder %s21, 1
    %p102 = por %p100, %p101
    %p103 = scmp.ne.s32.totalorder %s94, %s95
    %p104 = scmp.eq.s32.totalorder %s21, 0
    %p105 = por %p103, %p104
    %p106 = scmp.ne.s32.totalorder %s94, %s95
    %p107 = scmp.eq.s32.totalorder %s22, 1
    %p108 = por %p106, %p107
    %p110 = scmp.ne.s32.totalorder %s95, %s109
    %p111 = scmp.eq.s32.totalorder %s22, 0
    %p112 = por %p110, %p111
    %s114 = sadd.s32 %s113, 1
    %p117 = scmp.eq.s32.totalorder %s16, 1
    %p118 = scmp.ne.s32.totalorder %s113, %s115
    %p119 = scmp.eq.s32.totalorder %s16, 0
    %p120 = por %p118, %p119
    %p121 = scmp.ne.s32.totalorder %s113, %s115
    %p122 = scmp.eq.s32.totalorder %s21, 1
    %p123 = por %p121, %p122
    %p124 = scmp.ne.s32.totalorder %s115, %s116
    %p125 = scmp.eq.s32.totalorder %s21, 0
    %p126 = por %p124, %p125
    %p127 = scmp.ne.s32.totalorder %s115, %s116
    %p128 = scmp.eq.s32.totalorder %s22, 1
    %p129 = por %p127, %p128
    %p131 = scmp.ne.s32.totalorder %s116, %s130
    %p132 = scmp.eq.s32.totalorder %s22, 0
    %p133 = por %p131, %p132
    %s135 = sadd.s32 %s134, 1
    %p138 = scmp.eq.s32.totalorder %s16, 1
    %p139 = scmp.ne.s32.totalorder %s134, %s136
    %p140 = scmp.eq.s32.totalorder %s16, 0
    %p141 = por %p139, %p140
    %p142 = scmp.ne.s32.totalorder %s134, %s136
    %p143 = scmp.eq.s32.totalorder %s21, 1
    %p144 = por %p142, %p143
    %p145 = scmp.ne.s32.totalorder %s136, %s137
    %p146 = scmp.eq.s32.totalorder %s21, 0
    %p147 = por %p145, %p146
    %p148 = scmp.ne.s32.totalorder %s136, %s137
    %p149 = scmp.eq.s32.totalorder %s22, 1
    %p150 = por %p148, %p149
    %p152 = scmp.ne.s32.totalorder %s137, %s151
    %p153 = scmp.eq.s32.totalorder %s22, 0
    %p154 = por %p152, %p153
    %s156 = sadd.s32 %s155, 1
    %p159 = scmp.eq.s32.totalorder %s16, 1
    %p160 = scmp.ne.s32.totalorder %s155, %s157
    %p161 = scmp.eq.s32.totalorder %s16, 0
    %p162 = por %p160, %p161
    %p163 = scmp.ne.s32.totalorder %s155, %s157
    %p164 = scmp.eq.s32.totalorder %s21, 1
    %p165 = por %p163, %p164
    %p166 = scmp.ne.s32.totalorder %s157, %s158
    %p167 = scmp.eq.s32.totalorder %s21, 0
    %p168 = por %p166, %p167
    %p169 = scmp.ne.s32.totalorder %s157, %s158
    %p170 = scmp.eq.s32.totalorder %s22, 1
    %p171 = por %p169, %p170
    %p173 = scmp.ne.s32.totalorder %s158, %s172
    %p174 = scmp.eq.s32.totalorder %s22, 0
    %p175 = por %p173, %p174
    %s177 = sadd.s32 %s176, 1
    %p180 = scmp.eq.s32.totalorder %s16, 1
    %p181 = scmp.ne.s32.totalorder %s176, %s178
    %p182 = scmp.eq.s32.totalorder %s16, 0
    %p183 = por %p181, %p182
    %p184 = scmp.ne.s32.totalorder %s176, %s178
    %p185 = scmp.eq.s32.totalorder %s21, 1
    %p186 = por %p184, %p185
    %p187 = scmp.ne.s32.totalorder %s178, %s179
    %p188 = scmp.eq.s32.totalorder %s21, 0
    %p189 = por %p187, %p188
    %p190 = scmp.ne.s32.totalorder %s178, %s179
    %p191 = scmp.eq.s32.totalorder %s22, 1
    %p192 = por %p190, %p191
    %p194 = scmp.ne.s32.totalorder %s179, %s193
    %p195 = scmp.eq.s32.totalorder %s22, 0
    %p196 = por %p194, %p195
    %s198 = sadd.s32 %s197, 1
    %p201 = scmp.eq.s32.totalorder %s16, 1
    %p202 = scmp.ne.s32.totalorder %s197, %s199
    %p203 = scmp.eq.s32.totalorder %s16, 0
    %p204 = por %p202, %p203
    %p205 = scmp.ne.s32.totalorder %s197, %s199
    %p206 = scmp.eq.s32.totalorder %s21, 1
    %p207 = por %p205, %p206
    %p208 = scmp.ne.s32.totalorder %s199, %s200
    %p209 = scmp.eq.s32.totalorder %s21, 0
    %p210 = por %p208, %p209
    %p211 = scmp.ne.s32.totalorder %s199, %s200
    %p212 = scmp.eq.s32.totalorder %s22, 1
    %p213 = por %p211, %p212
    %p215 = scmp.ne.s32.totalorder %s200, %s214
    %p216 = scmp.eq.s32.totalorder %s22, 0
    %p217 = por %p215, %p216
    %s219 = sadd.s32 %s218, 1
    %p222 = scmp.eq.s32.totalorder %s16, 1
    %p223 = scmp.ne.s32.totalorder %s218, %s220
    %p224 = scmp.eq.s32.totalorder %s16, 0
    %p225 = por %p223, %p224
    %p226 = scmp.ne.s32.totalorder %s218, %s220
    %p227 = scmp.eq.s32.totalorder %s21, 1
    %p228 = por %p226, %p227
    %p229 = scmp.ne.s32.totalorder %s220, %s221
    %p230 = scmp.eq.s32.totalorder %s21, 0
    %p231 = por %p229, %p230
    %p232 = scmp.ne.s32.totalorder %s220, %s221
    %p233 = scmp.eq.s32.totalorder %s22, 1
    %p234 = por %p232, %p233
    %p236 = scmp.ne.s32.totalorder %s221, %s235
    %p237 = scmp.eq.s32.totalorder %s22, 0
    %p238 = por %p236, %p237
    %s239 = ssub.s32 %s16, %s23
    %p240 = scmp.eq.s32.totalorder %s239, 0
    %s242 = sadd.s32 %s241, 1
    %s243 = scalar_select %p240, %s241, %s242
    %p246 = pneg %p240
    %p247 = scmp.eq.s32.totalorder %s16, 1
    %p248 = por %p246, %p247
    %p249 = scmp.ne.s32.totalorder %s241, %s244
    %p250 = scmp.eq.s32.totalorder %s16, 0
    %p251 = por %p249, %p250
    %p252 = scmp.ne.s32.totalorder %s241, %s244
    %p253 = scmp.eq.s32.totalorder %s21, 1
    %p254 = por %p252, %p253
    %p255 = scmp.ne.s32.totalorder %s244, %s245
    %p256 = scmp.eq.s32.totalorder %s21, 0
    %p257 = por %p255, %p256
    %p258 = scmp.ne.s32.totalorder %s244, %s245
    %p259 = scmp.eq.s32.totalorder %s22, 1
    %p260 = por %p258, %p259
    %p262 = scmp.ne.s32.totalorder %s245, %s261
    %p263 = scmp.eq.s32.totalorder %s22, 0
    %p264 = por %p262, %p263
    %p265 = scmp.le.s32.totalorder 1, %s16
    %p266 = scmp.lt.s32.totalorder %s16, 3
    %p267 = pnand %p265, %p266
    %p268 = pneg %p267
    // Predicated region
    $region9: #{inception_block.1} parent=5 // pred_check
      _
    $region10: #{inception_block.1} parent=5 // pred_check_branch
      %270 = sbr.rel (%p267) target = $region12
    $region11: #{inception_block.1} parent=5 // pred_region
      %s271 = ssub.s32 %s16, 1
      // Predicated region
      $region13: #{inception_block.1} parent=11 // pred_check
        %p272 = pneg %p63
      $region14: #{inception_block.1} parent=11 // pred_check_branch
        %274 = sbr.rel (%p272) target = $region16
      $region15: #{inception_block.1} parent=11 // pred_region
        _
      $region16: #{inception_block.1} parent=11 // pred_fallthru
        _
      // Predicated region
      $region17: #{inception_block.1} parent=11 // pred_check
        %p275 = pneg %p84
      $region18: #{inception_block.1} parent=11 // pred_check_branch
        %277 = sbr.rel (%p275) target = $region20
      $region19: #{inception_block.1} parent=11 // pred_region
        _
      $region20: #{inception_block.1} parent=11 // pred_fallthru
        _
      // Predicated region
      $region21: #{inception_block.1} parent=11 // pred_check
        %p278 = pneg %p105
      $region22: #{inception_block.1} parent=11 // pred_check_branch
        %280 = sbr.rel (%p278) target = $region24
      $region23: #{inception_block.1} parent=11 // pred_region
        _
      $region24: #{inception_block.1} parent=11 // pred_fallthru
        _
      // Predicated region
      $region25: #{inception_block.1} parent=11 // pred_check
        %p281 = pneg %p126
      $region26: #{inception_block.1} parent=11 // pred_check_branch
        %283 = sbr.rel (%p281) target = $region28
      $region27: #{inception_block.1} parent=11 // pred_region
        _
      $region28: #{inception_block.1} parent=11 // pred_fallthru
        _
      // Predicated region
      $region29: #{inception_block.1} parent=11 // pred_check
        %p284 = pneg %p147
      $region30: #{inception_block.1} parent=11 // pred_check_branch
        %286 = sbr.rel (%p284) target = $region32
      $region31: #{inception_block.1} parent=11 // pred_region
        _
      $region32: #{inception_block.1} parent=11 // pred_fallthru
        _
      // Predicated region
      $region33: #{inception_block.1} parent=11 // pred_check
        %p287 = pneg %p168
      $region34: #{inception_block.1} parent=11 // pred_check_branch
        %289 = sbr.rel (%p287) target = $region36
      $region35: #{inception_block.1} parent=11 // pred_region
        _
      $region36: #{inception_block.1} parent=11 // pred_fallthru
        _
      // Predicated region
      $region37: #{inception_block.1} parent=11 // pred_check
        %p290 = pneg %p189
      $region38: #{inception_block.1} parent=11 // pred_check_branch
        %292 = sbr.rel (%p290) target = $region40
      $region39: #{inception_block.1} parent=11 // pred_region
        _
      $region40: #{inception_block.1} parent=11 // pred_fallthru
        _
      // Predicated region
      $region41: #{inception_block.1} parent=11 // pred_check
        %p293 = pneg %p210
      $region42: #{inception_block.1} parent=11 // pred_check_branch
        %295 = sbr.rel (%p293) target = $region44
      $region43: #{inception_block.1} parent=11 // pred_region
        _
      $region44: #{inception_block.1} parent=11 // pred_fallthru
        _
      // Predicated region
      $region45: #{inception_block.1} parent=11 // pred_check
        %p296 = pneg %p231
      $region46: #{inception_block.1} parent=11 // pred_check_branch
        %298 = sbr.rel (%p296) target = $region48
      $region47: #{inception_block.1} parent=11 // pred_region
        _
      $region48: #{inception_block.1} parent=11 // pred_fallthru
        _
    $region12: #{inception_block.1} parent=5 // pred_fallthru
      _
    %p299 = scmp.lt.s32.totalorder %s16, 2
    // Predicated region
    $region49: #{inception_block.1} parent=5 // pred_check
      %p300 = pneg %p299
    $region50: #{inception_block.1} parent=5 // pred_check_branch
      %302 = sbr.rel (%p300) target = $region52
    $region51: #{inception_block.1} parent=5 // pred_region
      // Predicated region
      $region53: #{inception_block.1} parent=51 // pred_check
        %p303 = pneg %p36
      $region54: #{inception_block.1} parent=51 // pred_check_branch
        %305 = sbr.rel (%p303) target = $region56
      $region55: #{inception_block.1} parent=51 // pred_region
        %p306 = scmp.lt.s32.totalorder %s16, 1
        %s307 = scalar_select %p306, %s16, 1
        %s308 = smul.addr %s307, 56
        %s309 = smul.addr %s308, 8
        %s310 = scalar_lea.vmem %s0, %s309
      $region56: #{inception_block.1} parent=51 // pred_fallthru
        _
    $region52: #{inception_block.1} parent=5 // pred_fallthru
      _
    %p311 = scmp.le.s32.totalorder 1, %s16
    %p312 = scmp.lt.s32.totalorder %s16, 3
    %p313 = pnand %p311, %p312
    %p314 = pneg %p313
    // Predicated region
    $region57: #{inception_block.1} parent=5 // pred_check
      _
    $region58: #{inception_block.1} parent=5 // pred_check_branch
      %316 = sbr.rel (%p313) target = $region60
    $region59: #{inception_block.1} parent=5 // pred_region
      %s317 = ssub.s32 %s16, 1
      %p318 = scmp.lt.s32.totalorder %s21, 1
      %s319 = scalar_select %p318, %s21, 1
      %s320 = smul.addr %s319, 56
      %s321 = smul.addr %s320, 8
      %s322 = scalar_lea.vmem %s0, %s321
      %p323 = pneg %p42
      %p324 = pneg %p39
      %p325 = pneg %p63
      %p326 = pneg %p60
      %p327 = pneg %p84
      %p328 = pneg %p81
      %p329 = pneg %p105
      %p330 = pneg %p102
      %p331 = pneg %p126
      %p332 = pneg %p123
      %p333 = pneg %p147
      %p334 = pneg %p144
      %p335 = pneg %p168
      %p336 = pneg %p165
      %p337 = pneg %p189
      %p338 = pneg %p186
      %p339 = pneg %p210
      %p340 = pneg %p207
      %p341 = pneg %p231
      %p342 = pneg %p228
      %p343 = pneg %p257
      %p344 = pneg %p254
      %p345 = scmp.lt.s32.totalorder %s21, 1
      %s346 = scalar_select %p345, %s21, 1
      %s347 = smul.addr %s346, 50
      %s348 = smul.addr %s347, 8
      %s349 = scalar_lea.vmem %s10, %s348
      %p350 = scmp.lt.s32.totalorder %s21, 1
      %s351 = scalar_select %p350, %s21, 1
      %s352 = smul.addr %s351, 56
      %s353 = smul.addr %s352, 8
      %s354 = scalar_lea.vmem %s0, %s353
      %p355 = scmp.lt.s32.totalorder %s21, 1
      %s356 = scalar_select %p355, %s21, 1
      %s357 = smul.addr %s356, 50
      %s358 = smul.addr %s357, 8
      %s359 = scalar_lea.vmem %s10, %s358
      %v360 = vld [vmem:[%s1] sm:$0xff]
      %v361 = vld [vmem:[%s1 + $0x8] sm:$0xff]
      %v362 = vld [vmem:[%s1 + $0x10] sm:$0xff]
      %v363 = vld [vmem:[%s1 + $0x18] sm:$0xff]
      %v364 = vld [vmem:[%s1 + $0x20] sm:$0xff]
      %v365 = vld [vmem:[%s1 + $0x28] sm:$0xff]
      %v366 = vld [vmem:[%s1 + $0x30] sm:$0xff]
      %v367 = vld [vmem:[%s1 + $0x38] sm:$0xff]
      %v368 = vld [vmem:[%s1 + $0x40] sm:$0xff]
      %v369 = vld [vmem:[%s1 + $0x48] sm:$0xff]
      %v370 = vld [vmem:[%s1 + $0x50] sm:$0xff]
      %v371 = vld [vmem:[%s1 + $0x58] sm:$0xff]
      %v372 = vld [vmem:[%s1 + $0x60] sm:$0xff]
      %v373 = vld [vmem:[%s1 + $0x68] sm:$0xff]
      %v374 = vld [vmem:[%s1 + $0x70] sm:$0xff]
      %v375 = vld [vmem:[%s1 + $0x78] sm:$0xff]
      %v376 = vld [vmem:[%s1 + $0x80] sm:$0xff]
      %v377 = vld [vmem:[%s1 + $0x88] sm:$0xff]
      %v378 = vld [vmem:[%s1 + $0x90] sm:$0xff]
      %v379 = vld [vmem:[%s1 + $0x98] sm:$0xff]
      %v380 = vld [vmem:[%s1 + $0xa0] sm:$0xff]
      %v381 = vld [vmem:[%s1 + $0xa8] sm:$0xff]
      %v382 = vld [vmem:[%s1 + $0xb0] sm:$0xff]
      %v383 = vld [vmem:[%s1 + $0xb8] sm:$0xff]
      %v384 = vld [vmem:[%s1 + $0xc0] sm:$0xff]
      %v385 = vld [vmem:[%s1 + $0xc8] sm:$0xff]
      %v386 = vld [vmem:[%s1 + $0xd0] sm:$0xff]
      %v387 = vld [vmem:[%s1 + $0xd8] sm:$0xff]
      %v388 = vld [vmem:[%s1 + $0xe0] sm:$0xff]
      %v389 = vld [vmem:[%s1 + $0xe8] sm:$0xff]
      %v390 = vld [vmem:[%s1 + $0xf0] sm:$0xff]
      %v391 = vld [vmem:[%s1 + $0xf8] sm:$0xff]
      %v392 = vld [vmem:[%s1 + $0x100] sm:$0xff]
      %v393 = vld [vmem:[%s1 + $0x108] sm:$0xff]
      %v394 = vld [vmem:[%s1 + $0x110] sm:$0xff]
      %v395 = vld [vmem:[%s1 + $0x118] sm:$0xff]
      %v396 = vld [vmem:[%s1 + $0x120] sm:$0xff]
      %v397 = vld [vmem:[%s1 + $0x128] sm:$0xff]
      %v398 = vld [vmem:[%s1 + $0x130] sm:$0xff]
      %v399 = vld [vmem:[%s1 + $0x138] sm:$0xff]
      %v400 = vld [vmem:[%s1 + $0x140] sm:$0xff]
      %v401 = vld [vmem:[%s1 + $0x148] sm:$0xff]
      %v402 = vld [vmem:[%s1 + $0x150] sm:$0xff]
      %v403 = vld [vmem:[%s1 + $0x158] sm:$0xff]
      %v404 = vld [vmem:[%s1 + $0x160] sm:$0xff]
      %v405 = vld [vmem:[%s1 + $0x168] sm:$0xff]
      %v406 = vld [vmem:[%s1 + $0x170] sm:$0xff]
      %v407 = vld [vmem:[%s1 + $0x178] sm:$0xff]
      %v408 = vld [vmem:[%s1 + $0x180] sm:$0xff]
      %v409 = vld [vmem:[%s1 + $0x188] sm:$0xff]
      %vm410 = vcmp.gt.f32.partialorder %v360, 0.5
      %vm411 = vcmp.gt.f32.partialorder %v361, 0.5
      %vm412 = vcmp.gt.f32.partialorder %v362, 0.5
      %vm413 = vcmp.gt.f32.partialorder %v363, 0.5
      %vm414 = vcmp.gt.f32.partialorder %v364, 0.5
      %vm415 = vcmp.gt.f32.partialorder %v365, 0.5
      %vm416 = vcmp.gt.f32.partialorder %v366, 0.5
      %vm417 = vcmp.gt.f32.partialorder %v367, 0.5
      %vm418 = vcmp.gt.f32.partialorder %v368, 0.5
      %vm419 = vcmp.gt.f32.partialorder %v369, 0.5
      %vm420 = vcmp.gt.f32.partialorder %v370, 0.5
      %vm421 = vcmp.gt.f32.partialorder %v371, 0.5
      %vm422 = vcmp.gt.f32.partialorder %v372, 0.5
      %vm423 = vcmp.gt.f32.partialorder %v373, 0.5
      %vm424 = vcmp.gt.f32.partialorder %v374, 0.5
      %vm425 = vcmp.gt.f32.partialorder %v375, 0.5
      %vm426 = vcmp.gt.f32.partialorder %v376, 0.5
      %vm427 = vcmp.gt.f32.partialorder %v377, 0.5
      %vm428 = vcmp.gt.f32.partialorder %v378, 0.5
      %vm429 = vcmp.gt.f32.partialorder %v379, 0.5
      %vm430 = vcmp.gt.f32.partialorder %v380, 0.5
      %vm431 = vcmp.gt.f32.partialorder %v381, 0.5
      %vm432 = vcmp.gt.f32.partialorder %v382, 0.5
      %vm433 = vcmp.gt.f32.partialorder %v383, 0.5
      %vm434 = vcmp.gt.f32.partialorder %v384, 0.5
      %vm435 = vcmp.gt.f32.partialorder %v385, 0.5
      %vm436 = vcmp.gt.f32.partialorder %v386, 0.5
      %vm437 = vcmp.gt.f32.partialorder %v387, 0.5
      %vm438 = vcmp.gt.f32.partialorder %v388, 0.5
      %vm439 = vcmp.gt.f32.partialorder %v389, 0.5
      %vm440 = vcmp.gt.f32.partialorder %v390, 0.5
      %vm441 = vcmp.gt.f32.partialorder %v391, 0.5
      %vm442 = vcmp.gt.f32.partialorder %v392, 0.5
      %vm443 = vcmp.gt.f32.partialorder %v393, 0.5
      %vm444 = vcmp.gt.f32.partialorder %v394, 0.5
      %vm445 = vcmp.gt.f32.partialorder %v395, 0.5
      %vm446 = vcmp.gt.f32.partialorder %v396, 0.5
      %vm447 = vcmp.gt.f32.partialorder %v397, 0.5
      %vm448 = vcmp.gt.f32.partialorder %v398, 0.5
      %vm449 = vcmp.gt.f32.partialorder %v399, 0.5
      %vm450 = vcmp.gt.f32.partialorder %v400, 0.5
      %vm451 = vcmp.gt.f32.partialorder %v401, 0.5
      %vm452 = vcmp.gt.f32.partialorder %v402, 0.5
      %vm453 = vcmp.gt.f32.partialorder %v403, 0.5
      %vm454 = vcmp.gt.f32.partialorder %v404, 0.5
      %vm455 = vcmp.gt.f32.partialorder %v405, 0.5
      %vm456 = vcmp.gt.f32.partialorder %v406, 0.5
      %vm457 = vcmp.gt.f32.partialorder %v407, 0.5
      %vm458 = vcmp.gt.f32.partialorder %v408, 0.5
      %vm459 = vcmp.gt.f32.partialorder %v409, 0.5
      %v460 = vld [vmem:[%s354 + $0x18] sm:$0xff]
      %v461 = vld [vmem:[%s354 + $0x20] sm:$0xff]
      %v462 = vld [vmem:[%s354 + $0x28] sm:$0xff]
      %v463 = vld [vmem:[%s354 + $0x30] sm:$0xff]
      %v464 = vld [vmem:[%s354 + $0x38] sm:$0xff]
      %v465 = vld [vmem:[%s354 + $0x40] sm:$0xff]
      %v466 = vld [vmem:[%s354 + $0x48] sm:$0xff]
      %v467 = vld [vmem:[%s354 + $0x50] sm:$0xff]
      %v468 = vld [vmem:[%s354 + $0x58] sm:$0xff]
      %v469 = vld [vmem:[%s354 + $0x60] sm:$0xff]
      %v470 = vld [vmem:[%s354 + $0x68] sm:$0xff]
      %v471 = vld [vmem:[%s354 + $0x70] sm:$0xff]
      %v472 = vld [vmem:[%s354 + $0x78] sm:$0xff]
      %v473 = vld [vmem:[%s354 + $0x80] sm:$0xff]
      %v474 = vld [vmem:[%s354 + $0x88] sm:$0xff]
      %v475 = vld [vmem:[%s354 + $0x90] sm:$0xff]
      %v476 = vld [vmem:[%s354 + $0x98] sm:$0xff]
      %v477 = vld [vmem:[%s354 + $0xa0] sm:$0xff]
      %v478 = vld [vmem:[%s354 + $0xa8] sm:$0xff]
      %v479 = vld [vmem:[%s354 + $0xb0] sm:$0xff]
      %v480 = vld [vmem:[%s354 + $0xb8] sm:$0xff]
      %v481 = vld [vmem:[%s354 + $0xc0] sm:$0xff]
      %v482 = vld [vmem:[%s354 + $0xc8] sm:$0xff]
      %v483 = vld [vmem:[%s354 + $0xd0] sm:$0xff]
      %v484 = vld [vmem:[%s354 + $0xd8] sm:$0xff]
      %v485 = vld [vmem:[%s354 + $0xe0] sm:$0xff]
      %v486 = vld [vmem:[%s354 + $0xe8] sm:$0xff]
      %v487 = vld [vmem:[%s354 + $0xf0] sm:$0xff]
      %v488 = vld [vmem:[%s354 + $0xf8] sm:$0xff]
      %v489 = vld [vmem:[%s354 + $0x100] sm:$0xff]
      %v490 = vld [vmem:[%s354 + $0x108] sm:$0xff]
      %v491 = vld [vmem:[%s354 + $0x110] sm:$0xff]
      %v492 = vld [vmem:[%s354 + $0x118] sm:$0xff]
      %v493 = vld [vmem:[%s354 + $0x120] sm:$0xff]
      %v494 = vld [vmem:[%s354 + $0x128] sm:$0xff]
      %v495 = vld [vmem:[%s354 + $0x130] sm:$0xff]
      %v496 = vld [vmem:[%s354 + $0x138] sm:$0xff]
      %v497 = vld [vmem:[%s354 + $0x140] sm:$0xff]
      %v498 = vld [vmem:[%s354 + $0x148] sm:$0xff]
      %v499 = vld [vmem:[%s354 + $0x150] sm:$0xff]
      %v500 = vld [vmem:[%s354 + $0x158] sm:$0xff]
      %v501 = vld [vmem:[%s354 + $0x160] sm:$0xff]
      %v502 = vld [vmem:[%s354 + $0x168] sm:$0xff]
      %v503 = vld [vmem:[%s354 + $0x170] sm:$0xff]
      %v504 = vld [vmem:[%s354 + $0x178] sm:$0xff]
      %v505 = vld [vmem:[%s354 + $0x180] sm:$0xff]
      %v506 = vld [vmem:[%s354 + $0x188] sm:$0xff]
      %v507 = vld [vmem:[%s354 + $0x190] sm:$0xff]
      %v508 = vld [vmem:[%s354 + $0x198] sm:$0xff]
      %v509 = vld [vmem:[%s354 + $0x1a0] sm:$0xff]
      %v510 = vsel %vm410, 1, 0
      %v511 = vsel %vm411, 1, 0
      %v512 = vsel %vm412, 1, 0
      %v513 = vsel %vm413, 1, 0
      %v514 = vsel %vm414, 1, 0
      %v515 = vsel %vm415, 1, 0
      %v516 = vsel %vm416, 1, 0
      %v517 = vsel %vm417, 1, 0
      %v518 = vsel %vm418, 1, 0
      %v519 = vsel %vm419, 1, 0
      %v520 = vsel %vm420, 1, 0
      %v521 = vsel %vm421, 1, 0
      %v522 = vsel %vm422, 1, 0
      %v523 = vsel %vm423, 1, 0
      %v524 = vsel %vm424, 1, 0
      %v525 = vsel %vm425, 1, 0
      %v526 = vsel %vm426, 1, 0
      %v527 = vsel %vm427, 1, 0
      %v528 = vsel %vm428, 1, 0
      %v529 = vsel %vm429, 1, 0
      %v530 = vsel %vm430, 1, 0
      %v531 = vsel %vm431, 1, 0
      %v532 = vsel %vm432, 1, 0
      %v533 = vsel %vm433, 1, 0
      %v534 = vsel %vm434, 1, 0
      %v535 = vsel %vm435, 1, 0
      %v536 = vsel %vm436, 1, 0
      %v537 = vsel %vm437, 1, 0
      %v538 = vsel %vm438, 1, 0
      %v539 = vsel %vm439, 1, 0
      %v540 = vsel %vm440, 1, 0
      %v541 = vsel %vm441, 1, 0
      %v542 = vsel %vm442, 1, 0
      %v543 = vsel %vm443, 1, 0
      %v544 = vsel %vm444, 1, 0
      %v545 = vsel %vm445, 1, 0
      %v546 = vsel %vm446, 1, 0
      %v547 = vsel %vm447, 1, 0
      %v548 = vsel %vm448, 1, 0
      %v549 = vsel %vm449, 1, 0
      %v550 = vsel %vm450, 1, 0
      %v551 = vsel %vm451, 1, 0
      %v552 = vsel %vm452, 1, 0
      %v553 = vsel %vm453, 1, 0
      %v554 = vsel %vm454, 1, 0
      %v555 = vsel %vm455, 1, 0
      %v556 = vsel %vm456, 1, 0
      %v557 = vsel %vm457, 1, 0
      %v558 = vsel %vm458, 1, 0
      %v559 = vsel %vm459, 1, 0
      %560 = vset.pattern.permute.xlu0 0
      %561 = vperm.xlu0 %560, %v510
      %v562 = vpop.permute.xlu0 %561
      %563 = vset.pattern.permute.xlu0 0
      %564 = vperm.xlu0 %563, %v511
      %v565 = vpop.permute.xlu0 %564
      %566 = vset.pattern.permute.xlu0 0
      %567 = vperm.xlu0 %566, %v512
      %v568 = vpop.permute.xlu0 %567
      %569 = vset.pattern.permute.xlu0 0
      %570 = vperm.xlu0 %569, %v513
      %v571 = vpop.permute.xlu0 %570
      %572 = vset.pattern.permute.xlu0 0
      %573 = vperm.xlu0 %572, %v514
      %v574 = vpop.permute.xlu0 %573
      %575 = vset.pattern.permute.xlu0 0
      %576 = vperm.xlu0 %575, %v515
      %v577 = vpop.permute.xlu0 %576
      %578 = vset.pattern.permute.xlu0 0
      %579 = vperm.xlu0 %578, %v516
      %v580 = vpop.permute.xlu0 %579
      %581 = vset.pattern.permute.xlu0 0
      %582 = vperm.xlu0 %581, %v517
      %v583 = vpop.permute.xlu0 %582
      %584 = vset.pattern.permute.xlu0 0
      %585 = vperm.xlu0 %584, %v518
      %v586 = vpop.permute.xlu0 %585
      %587 = vset.pattern.permute.xlu0 0
      %588 = vperm.xlu0 %587, %v519
      %v589 = vpop.permute.xlu0 %588
      %590 = vset.pattern.permute.xlu0 0
      %591 = vperm.xlu0 %590, %v520
      %v592 = vpop.permute.xlu0 %591
      %593 = vset.pattern.permute.xlu0 0
      %594 = vperm.xlu0 %593, %v521
      %v595 = vpop.permute.xlu0 %594
      %596 = vset.pattern.permute.xlu0 0
      %597 = vperm.xlu0 %596, %v522
      %v598 = vpop.permute.xlu0 %597
      %599 = vset.pattern.permute.xlu0 0
      %600 = vperm.xlu0 %599, %v523
      %v601 = vpop.permute.xlu0 %600
      %602 = vset.pattern.permute.xlu0 0
      %603 = vperm.xlu0 %602, %v524
      %v604 = vpop.permute.xlu0 %603
      %605 = vset.pattern.permute.xlu0 0
      %606 = vperm.xlu0 %605, %v525
      %v607 = vpop.permute.xlu0 %606
      %608 = vset.pattern.permute.xlu0 0
      %609 = vperm.xlu0 %608, %v526
      %v610 = vpop.permute.xlu0 %609
      %611 = vset.pattern.permute.xlu0 0
      %612 = vperm.xlu0 %611, %v527
      %v613 = vpop.permute.xlu0 %612
      %614 = vset.pattern.permute.xlu0 0
      %615 = vperm.xlu0 %614, %v528
      %v616 = vpop.permute.xlu0 %615
      %617 = vset.pattern.permute.xlu0 0
      %618 = vperm.xlu0 %617, %v529
      %v619 = vpop.permute.xlu0 %618
      %620 = vset.pattern.permute.xlu0 0
      %621 = vperm.xlu0 %620, %v530
      %v622 = vpop.permute.xlu0 %621
      %623 = vset.pattern.permute.xlu0 0
      %624 = vperm.xlu0 %623, %v531
      %v625 = vpop.permute.xlu0 %624
      %626 = vset.pattern.permute.xlu0 0
      %627 = vperm.xlu0 %626, %v532
      %v628 = vpop.permute.xlu0 %627
      %629 = vset.pattern.permute.xlu0 0
      %630 = vperm.xlu0 %629, %v533
      %v631 = vpop.permute.xlu0 %630
      %632 = vset.pattern.permute.xlu0 0
      %633 = vperm.xlu0 %632, %v534
      %v634 = vpop.permute.xlu0 %633
      %635 = vset.pattern.permute.xlu0 0
      %636 = vperm.xlu0 %635, %v535
      %v637 = vpop.permute.xlu0 %636
      %638 = vset.pattern.permute.xlu0 0
      %639 = vperm.xlu0 %638, %v536
      %v640 = vpop.permute.xlu0 %639
      %641 = vset.pattern.permute.xlu0 0
      %642 = vperm.xlu0 %641, %v537
      %v643 = vpop.permute.xlu0 %642
      %644 = vset.pattern.permute.xlu0 0
      %645 = vperm.xlu0 %644, %v538
      %v646 = vpop.permute.xlu0 %645
      %647 = vset.pattern.permute.xlu0 0
      %648 = vperm.xlu0 %647, %v539
      %v649 = vpop.permute.xlu0 %648
      %650 = vset.pattern.permute.xlu0 0
      %651 = vperm.xlu0 %650, %v540
      %v652 = vpop.permute.xlu0 %651
      %653 = vset.pattern.permute.xlu0 0
      %654 = vperm.xlu0 %653, %v541
      %v655 = vpop.permute.xlu0 %654
      %656 = vset.pattern.permute.xlu0 0
      %657 = vperm.xlu0 %656, %v542
      %v658 = vpop.permute.xlu0 %657
      %659 = vset.pattern.permute.xlu0 0
      %660 = vperm.xlu0 %659, %v543
      %v661 = vpop.permute.xlu0 %660
      %662 = vset.pattern.permute.xlu0 0
      %663 = vperm.xlu0 %662, %v544
      %v664 = vpop.permute.xlu0 %663
      %665 = vset.pattern.permute.xlu0 0
      %666 = vperm.xlu0 %665, %v545
      %v667 = vpop.permute.xlu0 %666
      %668 = vset.pattern.permute.xlu0 0
      %669 = vperm.xlu0 %668, %v546
      %v670 = vpop.permute.xlu0 %669
      %671 = vset.pattern.permute.xlu0 0
      %672 = vperm.xlu0 %671, %v547
      %v673 = vpop.permute.xlu0 %672
      %674 = vset.pattern.permute.xlu0 0
      %675 = vperm.xlu0 %674, %v548
      %v676 = vpop.permute.xlu0 %675
      %677 = vset.pattern.permute.xlu0 0
      %678 = vperm.xlu0 %677, %v549
      %v679 = vpop.permute.xlu0 %678
      %680 = vset.pattern.permute.xlu0 0
      %681 = vperm.xlu0 %680, %v550
      %v682 = vpop.permute.xlu0 %681
      %683 = vset.pattern.permute.xlu0 0
      %684 = vperm.xlu0 %683, %v551
      %v685 = vpop.permute.xlu0 %684
      %686 = vset.pattern.permute.xlu0 0
      %687 = vperm.xlu0 %686, %v552
      %v688 = vpop.permute.xlu0 %687
      %689 = vset.pattern.permute.xlu0 0
      %690 = vperm.xlu0 %689, %v553
      %v691 = vpop.permute.xlu0 %690
      %692 = vset.pattern.permute.xlu0 0
      %693 = vperm.xlu0 %692, %v554
      %v694 = vpop.permute.xlu0 %693
      %695 = vset.pattern.permute.xlu0 0
      %696 = vperm.xlu0 %695, %v555
      %v697 = vpop.permute.xlu0 %696
      %698 = vset.pattern.permute.xlu0 0
      %699 = vperm.xlu0 %698, %v556
      %v700 = vpop.permute.xlu0 %699
      %701 = vset.pattern.permute.xlu0 0
      %702 = vperm.xlu0 %701, %v557
      %v703 = vpop.permute.xlu0 %702
      %704 = vset.pattern.permute.xlu0 0
      %705 = vperm.xlu0 %704, %v558
      %v706 = vpop.permute.xlu0 %705
      %707 = vset.pattern.permute.xlu0 0
      %708 = vperm.xlu0 %707, %v559
      %v709 = vpop.permute.xlu0 %708
      %vm710 = vcmp.eq.s32.totalorder %v562, 1
      %vm711 = vcmp.eq.s32.totalorder %v565, 1
      %vm712 = vcmp.eq.s32.totalorder %v568, 1
      %vm713 = vcmp.eq.s32.totalorder %v571, 1
      %vm714 = vcmp.eq.s32.totalorder %v574, 1
      %vm715 = vcmp.eq.s32.totalorder %v577, 1
      %vm716 = vcmp.eq.s32.totalorder %v580, 1
      %vm717 = vcmp.eq.s32.totalorder %v583, 1
      %vm718 = vcmp.eq.s32.totalorder %v586, 1
      %vm719 = vcmp.eq.s32.totalorder %v589, 1
      %vm720 = vcmp.eq.s32.totalorder %v592, 1
      %vm721 = vcmp.eq.s32.totalorder %v595, 1
      %vm722 = vcmp.eq.s32.totalorder %v598, 1
      %vm723 = vcmp.eq.s32.totalorder %v601, 1
      %vm724 = vcmp.eq.s32.totalorder %v604, 1
      %vm725 = vcmp.eq.s32.totalorder %v607, 1
      %vm726 = vcmp.eq.s32.totalorder %v610, 1
      %vm727 = vcmp.eq.s32.totalorder %v613, 1
      %vm728 = vcmp.eq.s32.totalorder %v616, 1
      %vm729 = vcmp.eq.s32.totalorder %v619, 1
      %vm730 = vcmp.eq.s32.totalorder %v622, 1
      %vm731 = vcmp.eq.s32.totalorder %v625, 1
      %vm732 = vcmp.eq.s32.totalorder %v628, 1
      %vm733 = vcmp.eq.s32.totalorder %v631, 1
      %vm734 = vcmp.eq.s32.totalorder %v634, 1
      %vm735 = vcmp.eq.s32.totalorder %v637, 1
      %vm736 = vcmp.eq.s32.totalorder %v640, 1
      %vm737 = vcmp.eq.s32.totalorder %v643, 1
      %vm738 = vcmp.eq.s32.totalorder %v646, 1
      %vm739 = vcmp.eq.s32.totalorder %v649, 1
      %vm740 = vcmp.eq.s32.totalorder %v652, 1
      %vm741 = vcmp.eq.s32.totalorder %v655, 1
      %vm742 = vcmp.eq.s32.totalorder %v658, 1
      %vm743 = vcmp.eq.s32.totalorder %v661, 1
      %vm744 = vcmp.eq.s32.totalorder %v664, 1
      %vm745 = vcmp.eq.s32.totalorder %v667, 1
      %vm746 = vcmp.eq.s32.totalorder %v670, 1
      %vm747 = vcmp.eq.s32.totalorder %v673, 1
      %vm748 = vcmp.eq.s32.totalorder %v676, 1
      %vm749 = vcmp.eq.s32.totalorder %v679, 1
      %vm750 = vcmp.eq.s32.totalorder %v682, 1
      %vm751 = vcmp.eq.s32.totalorder %v685, 1
      %vm752 = vcmp.eq.s32.totalorder %v688, 1
      %vm753 = vcmp.eq.s32.totalorder %v691, 1
      %vm754 = vcmp.eq.s32.totalorder %v694, 1
      %vm755 = vcmp.eq.s32.totalorder %v697, 1
      %vm756 = vcmp.eq.s32.totalorder %v700, 1
      %vm757 = vcmp.eq.s32.totalorder %v703, 1
      %vm758 = vcmp.eq.s32.totalorder %v706, 1
      %vm759 = vcmp.eq.s32.totalorder %v709, 1
      %v760 = vsel %vm710, %v460, 0.0
      %v761 = vsel %vm711, %v461, 0.0
      %v762 = vsel %vm712, %v462, 0.0
      %v763 = vsel %vm713, %v463, 0.0
      %v764 = vsel %vm714, %v464, 0.0
      %v765 = vsel %vm715, %v465, 0.0
      %v766 = vsel %vm716, %v466, 0.0
      %v767 = vsel %vm717, %v467, 0.0
      %v768 = vsel %vm718, %v468, 0.0
      %v769 = vsel %vm719, %v469, 0.0
      %v770 = vsel %vm720, %v470, 0.0
      %v771 = vsel %vm721, %v471, 0.0
      %v772 = vsel %vm722, %v472, 0.0
      %v773 = vsel %vm723, %v473, 0.0
      %v774 = vsel %vm724, %v474, 0.0
      %v775 = vsel %vm725, %v475, 0.0
      %v776 = vsel %vm726, %v476, 0.0
      %v777 = vsel %vm727, %v477, 0.0
      %v778 = vsel %vm728, %v478, 0.0
      %v779 = vsel %vm729, %v479, 0.0
      %v780 = vsel %vm730, %v480, 0.0
      %v781 = vsel %vm731, %v481, 0.0
      %v782 = vsel %vm732, %v482, 0.0
      %v783 = vsel %vm733, %v483, 0.0
      %v784 = vsel %vm734, %v484, 0.0
      %v785 = vsel %vm735, %v485, 0.0
      %v786 = vsel %vm736, %v486, 0.0
      %v787 = vsel %vm737, %v487, 0.0
      %v788 = vsel %vm738, %v488, 0.0
      %v789 = vsel %vm739, %v489, 0.0
      %v790 = vsel %vm740, %v490, 0.0
      %v791 = vsel %vm741, %v491, 0.0
      %v792 = vsel %vm742, %v492, 0.0
      %v793 = vsel %vm743, %v493, 0.0
      %v794 = vsel %vm744, %v494, 0.0
      %v795 = vsel %vm745, %v495, 0.0
      %v796 = vsel %vm746, %v496, 0.0
      %v797 = vsel %vm747, %v497, 0.0
      %v798 = vsel %vm748, %v498, 0.0
      %v799 = vsel %vm749, %v499, 0.0
      %v800 = vsel %vm750, %v500, 0.0
      %v801 = vsel %vm751, %v501, 0.0
      %v802 = vsel %vm752, %v502, 0.0
      %v803 = vsel %vm753, %v503, 0.0
      %v804 = vsel %vm754, %v504, 0.0
      %v805 = vsel %vm755, %v505, 0.0
      %v806 = vsel %vm756, %v506, 0.0
      %v807 = vsel %vm757, %v507, 0.0
      %v808 = vsel %vm758, %v508, 0.0
      %v809 = vsel %vm759, %v509, 0.0
      %v810 = vld [vmem:[%s2] sm:$0xf]
      %v811 = vld [vmem:[%s3] sm:$0x1]
      %v813 = vperm.slane %v811, 0
      %vm815 = vcmask 31744
      %v817 = vsel %vm815, %v760, 0
      %v820 = vsel %vm815, %v761, 0
      %v823 = vsel %vm815, %v762, 0
      %v826 = vsel %vm815, %v763, 0
      %v829 = vsel %vm815, %v764, 0
      %v832 = vsel %vm815, %v765, 0
      %v835 = vsel %vm815, %v766, 0
      %v838 = vsel %vm815, %v767, 0
      %v841 = vsel %vm815, %v768, 0
      %v844 = vsel %vm815, %v769, 0
      %v847 = vsel %vm815, %v770, 0
      %v850 = vsel %vm815, %v771, 0
      %v853 = vsel %vm815, %v772, 0
      %v856 = vsel %vm815, %v773, 0
      %v859 = vsel %vm815, %v774, 0
      %v862 = vsel %vm815, %v775, 0
      %v865 = vsel %vm815, %v776, 0
      %v868 = vsel %vm815, %v777, 0
      %v871 = vsel %vm815, %v778, 0
      %v874 = vsel %vm815, %v779, 0
      %v877 = vsel %vm815, %v780, 0
      %v880 = vsel %vm815, %v781, 0
      %v883 = vsel %vm815, %v782, 0
      %v886 = vsel %vm815, %v783, 0
      %v889 = vsel %vm815, %v784, 0
      %v892 = vsel %vm815, %v785, 0
      %v895 = vsel %vm815, %v786, 0
      %v898 = vsel %vm815, %v787, 0
      %v901 = vsel %vm815, %v788, 0
      %v904 = vsel %vm815, %v789, 0
      %v907 = vsel %vm815, %v790, 0
      %v910 = vsel %vm815, %v791, 0
      %v913 = vsel %vm815, %v792, 0
      %v916 = vsel %vm815, %v793, 0
      %v919 = vsel %vm815, %v794, 0
      %v922 = vsel %vm815, %v795, 0
      %v925 = vsel %vm815, %v796, 0
      %v928 = vsel %vm815, %v797, 0
      %v931 = vsel %vm815, %v798, 0
      %v934 = vsel %vm815, %v799, 0
      %v937 = vsel %vm815, %v800, 0
      %v940 = vsel %vm815, %v801, 0
      %v943 = vsel %vm815, %v802, 0
      %v946 = vsel %vm815, %v803, 0
      %v949 = vsel %vm815, %v804, 0
      %v952 = vsel %vm815, %v805, 0
      %v955 = vsel %vm815, %v806, 0
      %v958 = vsel %vm815, %v807, 0
      %v961 = vsel %vm815, %v808, 0
      %v964 = vsel %vm815, %v809, 0
      %vm966 = vcmask 1043456
      %v968 = vsel %vm966, %v810, 0
      %970 = vmatpush.msra.mxu0 0.0
      %971 = vmatpush.msra.mxu0 0.0
      %972 = vmatpush.msra.mxu0 0.0
      %973 = vmatpush.msra.mxu0 0.0
      %974 = vmatpush.msra.mxu0 0.0
      %975 = vmatpush.msra.mxu0 0.0
      %976 = vmatpush.msra.mxu0 0.0
      %977 = vmatpush.msra.mxu0 0.0
      %978 = vmatpush.msra.mxu0 0.0
      %979 = vmatpush.msra.mxu0 0.0
      %980 = vmatpush.msra.mxu0 0.0
      %981 = vmatpush.msra.mxu0 0.0
      %982 = vmatpush.msra.mxu0 0.0
      %983 = vmatpush.msra.mxu0 0.0
      %984 = vmatpush.msra.mxu0 0.0
      %985 = vmatpush.msra.mxu0 %v968
      %986 = vmatmul.f32.gmra.mxu0 %v817
      %v987 = vpop.f32.mrf.mxu0
      %v988 = vadd.f32 %v813, %v987
      %989 = vmatmul.f32.gmra.mxu0 %v820
      %v990 = vpop.f32.mrf.mxu0
      %v991 = vadd.f32 %v813, %v990
      %992 = vmatmul.f32.gmra.mxu0 %v823
      %v993 = vpop.f32.mrf.mxu0
      %v994 = vadd.f32 %v813, %v993
      %995 = vmatmul.f32.gmra.mxu0 %v826
      %v996 = vpop.f32.mrf.mxu0
      %v997 = vadd.f32 %v813, %v996
      %998 = vmatmul.f32.gmra.mxu0 %v829
      %v999 = vpop.f32.mrf.mxu0
      %v1000 = vadd.f32 %v813, %v999
      %1001 = vmatmul.f32.gmra.mxu0 %v832
      %v1002 = vpop.f32.mrf.mxu0
      %v1003 = vadd.f32 %v813, %v1002
      %1004 = vmatmul.f32.gmra.mxu0 %v835
      %v1005 = vpop.f32.mrf.mxu0
      %v1006 = vadd.f32 %v813, %v1005
      %1007 = vmatmul.f32.gmra.mxu0 %v838
      %v1008 = vpop.f32.mrf.mxu0
      %v1009 = vadd.f32 %v813, %v1008
      %1010 = vmatmul.f32.gmra.mxu0 %v841
      %v1011 = vpop.f32.mrf.mxu0
      %v1012 = vadd.f32 %v813, %v1011
      %1013 = vmatmul.f32.gmra.mxu0 %v844
      %v1014 = vpop.f32.mrf.mxu0
      %v1015 = vadd.f32 %v813, %v1014
      %1016 = vmatmul.f32.gmra.mxu0 %v847
      %v1017 = vpop.f32.mrf.mxu0
      %v1018 = vadd.f32 %v813, %v1017
      %1019 = vmatmul.f32.gmra.mxu0 %v850
      %v1020 = vpop.f32.mrf.mxu0
      %v1021 = vadd.f32 %v813, %v1020
      %1022 = vmatmul.f32.gmra.mxu0 %v853
      %v1023 = vpop.f32.mrf.mxu0
      %v1024 = vadd.f32 %v813, %v1023
      %1025 = vmatmul.f32.gmra.mxu0 %v856
      %v1026 = vpop.f32.mrf.mxu0
      %v1027 = vadd.f32 %v813, %v1026
      %1028 = vmatmul.f32.gmra.mxu0 %v859
      %v1029 = vpop.f32.mrf.mxu0
      %v1030 = vadd.f32 %v813, %v1029
      %1031 = vmatmul.f32.gmra.mxu0 %v862
      %v1032 = vpop.f32.mrf.mxu0
      %v1033 = vadd.f32 %v813, %v1032
      %1034 = vmatmul.f32.gmra.mxu0 %v865
      %v1035 = vpop.f32.mrf.mxu0
      %v1036 = vadd.f32 %v813, %v1035
      %1037 = vmatmul.f32.gmra.mxu0 %v868
      %v1038 = vpop.f32.mrf.mxu0
      %v1039 = vadd.f32 %v813, %v1038
      %1040 = vmatmul.f32.gmra.mxu0 %v871
      %v1041 = vpop.f32.mrf.mxu0
      %v1042 = vadd.f32 %v813, %v1041
      %1043 = vmatmul.f32.gmra.mxu0 %v874
      %v1044 = vpop.f32.mrf.mxu0
      %v1045 = vadd.f32 %v813, %v1044
      %1046 = vmatmul.f32.gmra.mxu0 %v877
      %v1047 = vpop.f32.mrf.mxu0
      %v1048 = vadd.f32 %v813, %v1047
      %1049 = vmatmul.f32.gmra.mxu0 %v880
      %v1050 = vpop.f32.mrf.mxu0
      %v1051 = vadd.f32 %v813, %v1050
      %1052 = vmatmul.f32.gmra.mxu0 %v883
      %v1053 = vpop.f32.mrf.mxu0
      %v1054 = vadd.f32 %v813, %v1053
      %1055 = vmatmul.f32.gmra.mxu0 %v886
      %v1056 = vpop.f32.mrf.mxu0
      %v1057 = vadd.f32 %v813, %v1056
      %1058 = vmatmul.f32.gmra.mxu0 %v889
      %v1059 = vpop.f32.mrf.mxu0
      %v1060 = vadd.f32 %v813, %v1059
      %1061 = vmatmul.f32.gmra.mxu0 %v892
      %v1062 = vpop.f32.mrf.mxu0
      %v1063 = vadd.f32 %v813, %v1062
      %1064 = vmatmul.f32.gmra.mxu0 %v895
      %v1065 = vpop.f32.mrf.mxu0
      %v1066 = vadd.f32 %v813, %v1065
      %1067 = vmatmul.f32.gmra.mxu0 %v898
      %v1068 = vpop.f32.mrf.mxu0
      %v1069 = vadd.f32 %v813, %v1068
      %1070 = vmatmul.f32.gmra.mxu0 %v901
      %v1071 = vpop.f32.mrf.mxu0
      %v1072 = vadd.f32 %v813, %v1071
      %1073 = vmatmul.f32.gmra.mxu0 %v904
      %v1074 = vpop.f32.mrf.mxu0
      %v1075 = vadd.f32 %v813, %v1074
      %1076 = vmatmul.f32.gmra.mxu0 %v907
      %v1077 = vpop.f32.mrf.mxu0
      %v1078 = vadd.f32 %v813, %v1077
      %1079 = vmatmul.f32.gmra.mxu0 %v910
      %v1080 = vpop.f32.mrf.mxu0
      %v1081 = vadd.f32 %v813, %v1080
      %1082 = vmatmul.f32.gmra.mxu0 %v913
      %v1083 = vpop.f32.mrf.mxu0
      %v1084 = vadd.f32 %v813, %v1083
      %1085 = vmatmul.f32.gmra.mxu0 %v916
      %v1086 = vpop.f32.mrf.mxu0
      %v1087 = vadd.f32 %v813, %v1086
      %1088 = vmatmul.f32.gmra.mxu0 %v919
      %v1089 = vpop.f32.mrf.mxu0
      %v1090 = vadd.f32 %v813, %v1089
      %1091 = vmatmul.f32.gmra.mxu0 %v922
      %v1092 = vpop.f32.mrf.mxu0
      %v1093 = vadd.f32 %v813, %v1092
      %1094 = vmatmul.f32.gmra.mxu0 %v925
      %v1095 = vpop.f32.mrf.mxu0
      %v1096 = vadd.f32 %v813, %v1095
      %1097 = vmatmul.f32.gmra.mxu0 %v928
      %v1098 = vpop.f32.mrf.mxu0
      %v1099 = vadd.f32 %v813, %v1098
      %1100 = vmatmul.f32.gmra.mxu0 %v931
      %v1101 = vpop.f32.mrf.mxu0
      %v1102 = vadd.f32 %v813, %v1101
      %1103 = vmatmul.f32.gmra.mxu0 %v934
      %v1104 = vpop.f32.mrf.mxu0
      %v1105 = vadd.f32 %v813, %v1104
      %1106 = vmatmul.f32.gmra.mxu0 %v937
      %v1107 = vpop.f32.mrf.mxu0
      %v1108 = vadd.f32 %v813, %v1107
      %1109 = vmatmul.f32.gmra.mxu0 %v940
      %v1110 = vpop.f32.mrf.mxu0
      %v1111 = vadd.f32 %v813, %v1110
      %1112 = vmatmul.f32.gmra.mxu0 %v943
      %v1113 = vpop.f32.mrf.mxu0
      %v1114 = vadd.f32 %v813, %v1113
      %1115 = vmatmul.f32.gmra.mxu0 %v946
      %v1116 = vpop.f32.mrf.mxu0
      %v1117 = vadd.f32 %v813, %v1116
      %1118 = vmatmul.f32.gmra.mxu0 %v949
      %v1119 = vpop.f32.mrf.mxu0
      %v1120 = vadd.f32 %v813, %v1119
      %1121 = vmatmul.f32.gmra.mxu0 %v952
      %v1122 = vpop.f32.mrf.mxu0
      %v1123 = vadd.f32 %v813, %v1122
      %1124 = vmatmul.f32.gmra.mxu0 %v955
      %v1125 = vpop.f32.mrf.mxu0
      %v1126 = vadd.f32 %v813, %v1125
      %1127 = vmatmul.f32.gmra.mxu0 %v958
      %v1128 = vpop.f32.mrf.mxu0
      %v1129 = vadd.f32 %v813, %v1128
      %1130 = vmatmul.f32.gmra.mxu0 %v961
      %v1131 = vpop.f32.mrf.mxu0
      %v1132 = vadd.f32 %v813, %v1131
      %1133 = vmatmul.f32.gmra.mxu0 %v964
      %v1134 = vpop.f32.mrf.mxu0
      %v1135 = vadd.f32 %v813, %v1134
      %1136 = vdwg.mxu0
      %v1137 = vsel %vm710, %v988, 0.0
      %v1138 = vsel %vm711, %v991, 0.0
      %v1139 = vsel %vm712, %v994, 0.0
      %v1140 = vsel %vm713, %v997, 0.0
      %v1141 = vsel %vm714, %v1000, 0.0
      %v1142 = vsel %vm715, %v1003, 0.0
      %v1143 = vsel %vm716, %v1006, 0.0
      %v1144 = vsel %vm717, %v1009, 0.0
      %v1145 = vsel %vm718, %v1012, 0.0
      %v1146 = vsel %vm719, %v1015, 0.0
      %v1147 = vsel %vm720, %v1018, 0.0
      %v1148 = vsel %vm721, %v1021, 0.0
      %v1149 = vsel %vm722, %v1024, 0.0
      %v1150 = vsel %vm723, %v1027, 0.0
      %v1151 = vsel %vm724, %v1030, 0.0
      %v1152 = vsel %vm725, %v1033, 0.0
      %v1153 = vsel %vm726, %v1036, 0.0
      %v1154 = vsel %vm727, %v1039, 0.0
      %v1155 = vsel %vm728, %v1042, 0.0
      %v1156 = vsel %vm729, %v1045, 0.0
      %v1157 = vsel %vm730, %v1048, 0.0
      %v1158 = vsel %vm731, %v1051, 0.0
      %v1159 = vsel %vm732, %v1054, 0.0
      %v1160 = vsel %vm733, %v1057, 0.0
      %v1161 = vsel %vm734, %v1060, 0.0
      %v1162 = vsel %vm735, %v1063, 0.0
      %v1163 = vsel %vm736, %v1066, 0.0
      %v1164 = vsel %vm737, %v1069, 0.0
      %v1165 = vsel %vm738, %v1072, 0.0
      %v1166 = vsel %vm739, %v1075, 0.0
      %v1167 = vsel %vm740, %v1078, 0.0
      %v1168 = vsel %vm741, %v1081, 0.0
      %v1169 = vsel %vm742, %v1084, 0.0
      %v1170 = vsel %vm743, %v1087, 0.0
      %v1171 = vsel %vm744, %v1090, 0.0
      %v1172 = vsel %vm745, %v1093, 0.0
      %v1173 = vsel %vm746, %v1096, 0.0
      %v1174 = vsel %vm747, %v1099, 0.0
      %v1175 = vsel %vm748, %v1102, 0.0
      %v1176 = vsel %vm749, %v1105, 0.0
      %v1177 = vsel %vm750, %v1108, 0.0
      %v1178 = vsel %vm751, %v1111, 0.0
      %v1179 = vsel %vm752, %v1114, 0.0
      %v1180 = vsel %vm753, %v1117, 0.0
      %v1181 = vsel %vm754, %v1120, 0.0
      %v1182 = vsel %vm755, %v1123, 0.0
      %v1183 = vsel %vm756, %v1126, 0.0
      %v1184 = vsel %vm757, %v1129, 0.0
      %v1185 = vsel %vm758, %v1132, 0.0
      %v1186 = vsel %vm759, %v1135, 0.0
      %1187 = vst.msk [vmem:[#allocation2] sm:$0xff] %vm815, 0.0
      %1188 = vst.msk [vmem:[#allocation2 + $0x8] sm:$0xff] %vm815, 0.0
      %1189 = vst.msk [vmem:[#allocation2 + $0x10] sm:$0xff] %vm815, 0.0
      %1190 = vst.msk [vmem:[#allocation2 + $0x18] sm:$0xff] %vm815, 0.0
      %1191 = vst.msk [vmem:[#allocation2 + $0x20] sm:$0xff] %vm815, 0.0
      %1192 = vst.msk [vmem:[#allocation2 + $0x28] sm:$0xff] %vm815, 0.0
      %1193 = vst.msk [vmem:[#allocation2 + $0x1c0] sm:$0xff] %vm815, 0.0
      %1194 = vst.msk [vmem:[#allocation2 + $0x1c8] sm:$0xff] %vm815, 0.0
      %1195 = vst.msk [vmem:[#allocation2 + $0x1d0] sm:$0xff] %vm815, 0.0
      %1196 = vst.msk [vmem:[#allocation2 + $0x1d8] sm:$0xff] %vm815, 0.0
      %1197 = vst.msk [vmem:[#allocation2 + $0x1e0] sm:$0xff] %vm815, 0.0
      %1198 = vst.msk [vmem:[#allocation2 + $0x1e8] sm:$0xff] %vm815, 0.0
      %1199 = vst.msk [vmem:[#allocation3] sm:$0xff] %vm815, 0.0
      %1200 = vst.msk [vmem:[#allocation3 + $0x8] sm:$0xff] %vm815, 0.0
      %1201 = vst.msk [vmem:[#allocation3 + $0x10] sm:$0xff] %vm815, 0.0
      %1202 = vst.msk [vmem:[#allocation3 + $0x18] sm:$0xff] %vm815, 0.0
      %1203 = vst.msk [vmem:[#allocation3 + $0x20] sm:$0xff] %vm815, 0.0
      %1204 = vst.msk [vmem:[#allocation3 + $0x28] sm:$0xff] %vm815, 0.0
      %1205 = vst.msk [vmem:[#allocation3 + $0x1c0] sm:$0xff] %vm815, 0.0
      %1206 = vst.msk [vmem:[#allocation3 + $0x1c8] sm:$0xff] %vm815, 0.0
      %1207 = vst.msk [vmem:[#allocation3 + $0x1d0] sm:$0xff] %vm815, 0.0
      %1208 = vst.msk [vmem:[#allocation3 + $0x1d8] sm:$0xff] %vm815, 0.0
      %1209 = vst.msk [vmem:[#allocation3 + $0x1e0] sm:$0xff] %vm815, 0.0
      %1210 = vst.msk [vmem:[#allocation3 + $0x1e8] sm:$0xff] %vm815, 0.0
      %1261 = vrot.lane.b32.xlu0 %v1137, 120
      %v1262 = vpop.permute.xlu0 %1261
      %1263 = vrot.lane.b32.xlu0 %v1138, 120
      %v1264 = vpop.permute.xlu0 %1263
      %1265 = vrot.lane.b32.xlu0 %v1139, 120
      %v1266 = vpop.permute.xlu0 %1265
      %1267 = vrot.lane.b32.xlu0 %v1140, 120
      %v1268 = vpop.permute.xlu0 %1267
      %1269 = vrot.lane.b32.xlu0 %v1141, 120
      %v1270 = vpop.permute.xlu0 %1269
      %1271 = vrot.lane.b32.xlu0 %v1142, 120
      %v1272 = vpop.permute.xlu0 %1271
      %1273 = vrot.lane.b32.xlu0 %v1143, 120
      %v1274 = vpop.permute.xlu0 %1273
      %1275 = vrot.lane.b32.xlu0 %v1144, 120
      %v1276 = vpop.permute.xlu0 %1275
      %1277 = vrot.lane.b32.xlu0 %v1145, 120
      %v1278 = vpop.permute.xlu0 %1277
      %1279 = vrot.lane.b32.xlu0 %v1146, 120
      %v1280 = vpop.permute.xlu0 %1279
      %1281 = vrot.lane.b32.xlu0 %v1147, 120
      %v1282 = vpop.permute.xlu0 %1281
      %1283 = vrot.lane.b32.xlu0 %v1148, 120
      %v1284 = vpop.permute.xlu0 %1283
      %1285 = vrot.lane.b32.xlu0 %v1149, 120
      %v1286 = vpop.permute.xlu0 %1285
      %1287 = vrot.lane.b32.xlu0 %v1150, 120
      %v1288 = vpop.permute.xlu0 %1287
      %1289 = vrot.lane.b32.xlu0 %v1151, 120
      %v1290 = vpop.permute.xlu0 %1289
      %1291 = vrot.lane.b32.xlu0 %v1152, 120
      %v1292 = vpop.permute.xlu0 %1291
      %1293 = vrot.lane.b32.xlu0 %v1153, 120
      %v1294 = vpop.permute.xlu0 %1293
      %1295 = vrot.lane.b32.xlu0 %v1154, 120
      %v1296 = vpop.permute.xlu0 %1295
      %1297 = vrot.lane.b32.xlu0 %v1155, 120
      %v1298 = vpop.permute.xlu0 %1297
      %1299 = vrot.lane.b32.xlu0 %v1156, 120
      %v1300 = vpop.permute.xlu0 %1299
      %1301 = vrot.lane.b32.xlu0 %v1157, 120
      %v1302 = vpop.permute.xlu0 %1301
      %1303 = vrot.lane.b32.xlu0 %v1158, 120
      %v1304 = vpop.permute.xlu0 %1303
      %1305 = vrot.lane.b32.xlu0 %v1159, 120
      %v1306 = vpop.permute.xlu0 %1305
      %1307 = vrot.lane.b32.xlu0 %v1160, 120
      %v1308 = vpop.permute.xlu0 %1307
      %1309 = vrot.lane.b32.xlu0 %v1161, 120
      %v1310 = vpop.permute.xlu0 %1309
      %1311 = vrot.lane.b32.xlu0 %v1162, 120
      %v1312 = vpop.permute.xlu0 %1311
      %1313 = vrot.lane.b32.xlu0 %v1163, 120
      %v1314 = vpop.permute.xlu0 %1313
      %1315 = vrot.lane.b32.xlu0 %v1164, 120
      %v1316 = vpop.permute.xlu0 %1315
      %1317 = vrot.lane.b32.xlu0 %v1165, 120
      %v1318 = vpop.permute.xlu0 %1317
      %1319 = vrot.lane.b32.xlu0 %v1166, 120
      %v1320 = vpop.permute.xlu0 %1319
      %1321 = vrot.lane.b32.xlu0 %v1167, 120
      %v1322 = vpop.permute.xlu0 %1321
      %1323 = vrot.lane.b32.xlu0 %v1168, 120
      %v1324 = vpop.permute.xlu0 %1323
      %1325 = vrot.lane.b32.xlu0 %v1169, 120
      %v1326 = vpop.permute.xlu0 %1325
      %1327 = vrot.lane.b32.xlu0 %v1170, 120
      %v1328 = vpop.permute.xlu0 %1327
      %1329 = vrot.lane.b32.xlu0 %v1171, 120
      %v1330 = vpop.permute.xlu0 %1329
      %1331 = vrot.lane.b32.xlu0 %v1172, 120
      %v1332 = vpop.permute.xlu0 %1331
      %1333 = vrot.lane.b32.xlu0 %v1173, 120
      %v1334 = vpop.permute.xlu0 %1333
      %1335 = vrot.lane.b32.xlu0 %v1174, 120
      %v1336 = vpop.permute.xlu0 %1335
      %1337 = vrot.lane.b32.xlu0 %v1175, 120
      %v1338 = vpop.permute.xlu0 %1337
      %1339 = vrot.lane.b32.xlu0 %v1176, 120
      %v1340 = vpop.permute.xlu0 %1339
      %1341 = vrot.lane.b32.xlu0 %v1177, 120
      %v1342 = vpop.permute.xlu0 %1341
      %1343 = vrot.lane.b32.xlu0 %v1178, 120
      %v1344 = vpop.permute.xlu0 %1343
      %1345 = vrot.lane.b32.xlu0 %v1179, 120
      %v1346 = vpop.permute.xlu0 %1345
      %1347 = vrot.lane.b32.xlu0 %v1180, 120
      %v1348 = vpop.permute.xlu0 %1347
      %1349 = vrot.lane.b32.xlu0 %v1181, 120
      %v1350 = vpop.permute.xlu0 %1349
      %1351 = vrot.lane.b32.xlu0 %v1182, 120
      %v1352 = vpop.permute.xlu0 %1351
      %1353 = vrot.lane.b32.xlu0 %v1183, 120
      %v1354 = vpop.permute.xlu0 %1353
      %1355 = vrot.lane.b32.xlu0 %v1184, 120
      %v1356 = vpop.permute.xlu0 %1355
      %1357 = vrot.lane.b32.xlu0 %v1185, 120
      %v1358 = vpop.permute.xlu0 %1357
      %1359 = vrot.lane.b32.xlu0 %v1186, 120
      %v1360 = vpop.permute.xlu0 %1359
      %1411 = vst.msk [vmem:[#allocation2 + $0x30] sm:$0xff] %vm815, %v1262
      %1412 = vst.msk [vmem:[#allocation2 + $0x38] sm:$0xff] %vm815, %v1264
      %1413 = vst.msk [vmem:[#allocation2 + $0x40] sm:$0xff] %vm815, %v1266
      %1414 = vst.msk [vmem:[#allocation2 + $0x48] sm:$0xff] %vm815, %v1268
      %1415 = vst.msk [vmem:[#allocation2 + $0x50] sm:$0xff] %vm815, %v1270
      %1416 = vst.msk [vmem:[#allocation2 + $0x58] sm:$0xff] %vm815, %v1272
      %1417 = vst.msk [vmem:[#allocation2 + $0x60] sm:$0xff] %vm815, %v1274
      %1418 = vst.msk [vmem:[#allocation2 + $0x68] sm:$0xff] %vm815, %v1276
      %1419 = vst.msk [vmem:[#allocation2 + $0x70] sm:$0xff] %vm815, %v1278
      %1420 = vst.msk [vmem:[#allocation2 + $0x78] sm:$0xff] %vm815, %v1280
      %1421 = vst.msk [vmem:[#allocation2 + $0x80] sm:$0xff] %vm815, %v1282
      %1422 = vst.msk [vmem:[#allocation2 + $0x88] sm:$0xff] %vm815, %v1284
      %1423 = vst.msk [vmem:[#allocation2 + $0x90] sm:$0xff] %vm815, %v1286
      %1424 = vst.msk [vmem:[#allocation2 + $0x98] sm:$0xff] %vm815, %v1288
      %1425 = vst.msk [vmem:[#allocation2 + $0xa0] sm:$0xff] %vm815, %v1290
      %1426 = vst.msk [vmem:[#allocation2 + $0xa8] sm:$0xff] %vm815, %v1292
      %1427 = vst.msk [vmem:[#allocation2 + $0xb0] sm:$0xff] %vm815, %v1294
      %1428 = vst.msk [vmem:[#allocation2 + $0xb8] sm:$0xff] %vm815, %v1296
      %1429 = vst.msk [vmem:[#allocation2 + $0xc0] sm:$0xff] %vm815, %v1298
      %1430 = vst.msk [vmem:[#allocation2 + $0xc8] sm:$0xff] %vm815, %v1300
      %1431 = vst.msk [vmem:[#allocation2 + $0xd0] sm:$0xff] %vm815, %v1302
      %1432 = vst.msk [vmem:[#allocation2 + $0xd8] sm:$0xff] %vm815, %v1304
      %1433 = vst.msk [vmem:[#allocation2 + $0xe0] sm:$0xff] %vm815, %v1306
      %1434 = vst.msk [vmem:[#allocation2 + $0xe8] sm:$0xff] %vm815, %v1308
      %1435 = vst.msk [vmem:[#allocation2 + $0xf0] sm:$0xff] %vm815, %v1310
      %1436 = vst.msk [vmem:[#allocation2 + $0xf8] sm:$0xff] %vm815, %v1312
      %1437 = vst.msk [vmem:[#allocation2 + $0x100] sm:$0xff] %vm815, %v1314
      %1438 = vst.msk [vmem:[#allocation2 + $0x108] sm:$0xff] %vm815, %v1316
      %1439 = vst.msk [vmem:[#allocation2 + $0x110] sm:$0xff] %vm815, %v1318
      %1440 = vst.msk [vmem:[#allocation2 + $0x118] sm:$0xff] %vm815, %v1320
      %1441 = vst.msk [vmem:[#allocation2 + $0x120] sm:$0xff] %vm815, %v1322
      %1442 = vst.msk [vmem:[#allocation2 + $0x128] sm:$0xff] %vm815, %v1324
      %1443 = vst.msk [vmem:[#allocation2 + $0x130] sm:$0xff] %vm815, %v1326
      %1444 = vst.msk [vmem:[#allocation2 + $0x138] sm:$0xff] %vm815, %v1328
      %1445 = vst.msk [vmem:[#allocation2 + $0x140] sm:$0xff] %vm815, %v1330
      %1446 = vst.msk [vmem:[#allocation2 + $0x148] sm:$0xff] %vm815, %v1332
      %1447 = vst.msk [vmem:[#allocation2 + $0x150] sm:$0xff] %vm815, %v1334
      %1448 = vst.msk [vmem:[#allocation2 + $0x158] sm:$0xff] %vm815, %v1336
      %1449 = vst.msk [vmem:[#allocation2 + $0x160] sm:$0xff] %vm815, %v1338
      %1450 = vst.msk [vmem:[#allocation2 + $0x168] sm:$0xff] %vm815, %v1340
      %1451 = vst.msk [vmem:[#allocation2 + $0x170] sm:$0xff] %vm815, %v1342
      %1452 = vst.msk [vmem:[#allocation2 + $0x178] sm:$0xff] %vm815, %v1344
      %1453 = vst.msk [vmem:[#allocation2 + $0x180] sm:$0xff] %vm815, %v1346
      %1454 = vst.msk [vmem:[#allocation2 + $0x188] sm:$0xff] %vm815, %v1348
      %1455 = vst.msk [vmem:[#allocation2 + $0x190] sm:$0xff] %vm815, %v1350
      %1456 = vst.msk [vmem:[#allocation2 + $0x198] sm:$0xff] %vm815, %v1352
      %1457 = vst.msk [vmem:[#allocation2 + $0x1a0] sm:$0xff] %vm815, %v1354
      %1458 = vst.msk [vmem:[#allocation2 + $0x1a8] sm:$0xff] %vm815, %v1356
      %1459 = vst.msk [vmem:[#allocation2 + $0x1b0] sm:$0xff] %vm815, %v1358
      %1460 = vst.msk [vmem:[#allocation2 + $0x1b8] sm:$0xff] %vm815, %v1360
      %1461 = vrot.lane.b32.xlu0 %v1137, 116
      %v1462 = vpop.permute.xlu0 %1461
      %1463 = vrot.lane.b32.xlu0 %v1138, 116
      %v1464 = vpop.permute.xlu0 %1463
      %1465 = vrot.lane.b32.xlu0 %v1139, 116
      %v1466 = vpop.permute.xlu0 %1465
      %1467 = vrot.lane.b32.xlu0 %v1140, 116
      %v1468 = vpop.permute.xlu0 %1467
      %1469 = vrot.lane.b32.xlu0 %v1141, 116
      %v1470 = vpop.permute.xlu0 %1469
      %1471 = vrot.lane.b32.xlu0 %v1142, 116
      %v1472 = vpop.permute.xlu0 %1471
      %1473 = vrot.lane.b32.xlu0 %v1143, 116
      %v1474 = vpop.permute.xlu0 %1473
      %1475 = vrot.lane.b32.xlu0 %v1144, 116
      %v1476 = vpop.permute.xlu0 %1475
      %1477 = vrot.lane.b32.xlu0 %v1145, 116
      %v1478 = vpop.permute.xlu0 %1477
      %1479 = vrot.lane.b32.xlu0 %v1146, 116
      %v1480 = vpop.permute.xlu0 %1479
      %1481 = vrot.lane.b32.xlu0 %v1147, 116
      %v1482 = vpop.permute.xlu0 %1481
      %1483 = vrot.lane.b32.xlu0 %v1148, 116
      %v1484 = vpop.permute.xlu0 %1483
      %1485 = vrot.lane.b32.xlu0 %v1149, 116
      %v1486 = vpop.permute.xlu0 %1485
      %1487 = vrot.lane.b32.xlu0 %v1150, 116
      %v1488 = vpop.permute.xlu0 %1487
      %1489 = vrot.lane.b32.xlu0 %v1151, 116
      %v1490 = vpop.permute.xlu0 %1489
      %1491 = vrot.lane.b32.xlu0 %v1152, 116
      %v1492 = vpop.permute.xlu0 %1491
      %1493 = vrot.lane.b32.xlu0 %v1153, 116
      %v1494 = vpop.permute.xlu0 %1493
      %1495 = vrot.lane.b32.xlu0 %v1154, 116
      %v1496 = vpop.permute.xlu0 %1495
      %1497 = vrot.lane.b32.xlu0 %v1155, 116
      %v1498 = vpop.permute.xlu0 %1497
      %1499 = vrot.lane.b32.xlu0 %v1156, 116
      %v1500 = vpop.permute.xlu0 %1499
      %1501 = vrot.lane.b32.xlu0 %v1157, 116
      %v1502 = vpop.permute.xlu0 %1501
      %1503 = vrot.lane.b32.xlu0 %v1158, 116
      %v1504 = vpop.permute.xlu0 %1503
      %1505 = vrot.lane.b32.xlu0 %v1159, 116
      %v1506 = vpop.permute.xlu0 %1505
      %1507 = vrot.lane.b32.xlu0 %v1160, 116
      %v1508 = vpop.permute.xlu0 %1507
      %1509 = vrot.lane.b32.xlu0 %v1161, 116
      %v1510 = vpop.permute.xlu0 %1509
      %1511 = vrot.lane.b32.xlu0 %v1162, 116
      %v1512 = vpop.permute.xlu0 %1511
      %1513 = vrot.lane.b32.xlu0 %v1163, 116
      %v1514 = vpop.permute.xlu0 %1513
      %1515 = vrot.lane.b32.xlu0 %v1164, 116
      %v1516 = vpop.permute.xlu0 %1515
      %1517 = vrot.lane.b32.xlu0 %v1165, 116
      %v1518 = vpop.permute.xlu0 %1517
      %1519 = vrot.lane.b32.xlu0 %v1166, 116
      %v1520 = vpop.permute.xlu0 %1519
      %1521 = vrot.lane.b32.xlu0 %v1167, 116
      %v1522 = vpop.permute.xlu0 %1521
      %1523 = vrot.lane.b32.xlu0 %v1168, 116
      %v1524 = vpop.permute.xlu0 %1523
      %1525 = vrot.lane.b32.xlu0 %v1169, 116
      %v1526 = vpop.permute.xlu0 %1525
      %1527 = vrot.lane.b32.xlu0 %v1170, 116
      %v1528 = vpop.permute.xlu0 %1527
      %1529 = vrot.lane.b32.xlu0 %v1171, 116
      %v1530 = vpop.permute.xlu0 %1529
      %1531 = vrot.lane.b32.xlu0 %v1172, 116
      %v1532 = vpop.permute.xlu0 %1531
      %1533 = vrot.lane.b32.xlu0 %v1173, 116
      %v1534 = vpop.permute.xlu0 %1533
      %1535 = vrot.lane.b32.xlu0 %v1174, 116
      %v1536 = vpop.permute.xlu0 %1535
      %1537 = vrot.lane.b32.xlu0 %v1175, 116
      %v1538 = vpop.permute.xlu0 %1537
      %1539 = vrot.lane.b32.xlu0 %v1176, 116
      %v1540 = vpop.permute.xlu0 %1539
      %1541 = vrot.lane.b32.xlu0 %v1177, 116
      %v1542 = vpop.permute.xlu0 %1541
      %1543 = vrot.lane.b32.xlu0 %v1178, 116
      %v1544 = vpop.permute.xlu0 %1543
      %1545 = vrot.lane.b32.xlu0 %v1179, 116
      %v1546 = vpop.permute.xlu0 %1545
      %1547 = vrot.lane.b32.xlu0 %v1180, 116
      %v1548 = vpop.permute.xlu0 %1547
      %1549 = vrot.lane.b32.xlu0 %v1181, 116
      %v1550 = vpop.permute.xlu0 %1549
      %1551 = vrot.lane.b32.xlu0 %v1182, 116
      %v1552 = vpop.permute.xlu0 %1551
      %1553 = vrot.lane.b32.xlu0 %v1183, 116
      %v1554 = vpop.permute.xlu0 %1553
      %1555 = vrot.lane.b32.xlu0 %v1184, 116
      %v1556 = vpop.permute.xlu0 %1555
      %1557 = vrot.lane.b32.xlu0 %v1185, 116
      %v1558 = vpop.permute.xlu0 %1557
      %1559 = vrot.lane.b32.xlu0 %v1186, 116
      %v1560 = vpop.permute.xlu0 %1559
      %1611 = vst.msk [vmem:[#allocation3 + $0x30] sm:$0xff] %vm815, %v1462
      %1612 = vst.msk [vmem:[#allocation3 + $0x38] sm:$0xff] %vm815, %v1464
      %1613 = vst.msk [vmem:[#allocation3 + $0x40] sm:$0xff] %vm815, %v1466
      %1614 = vst.msk [vmem:[#allocation3 + $0x48] sm:$0xff] %vm815, %v1468
      %1615 = vst.msk [vmem:[#allocation3 + $0x50] sm:$0xff] %vm815, %v1470
      %1616 = vst.msk [vmem:[#allocation3 + $0x58] sm:$0xff] %vm815, %v1472
      %1617 = vst.msk [vmem:[#allocation3 + $0x60] sm:$0xff] %vm815, %v1474
      %1618 = vst.msk [vmem:[#allocation3 + $0x68] sm:$0xff] %vm815, %v1476
      %1619 = vst.msk [vmem:[#allocation3 + $0x70] sm:$0xff] %vm815, %v1478
      %1620 = vst.msk [vmem:[#allocation3 + $0x78] sm:$0xff] %vm815, %v1480
      %1621 = vst.msk [vmem:[#allocation3 + $0x80] sm:$0xff] %vm815, %v1482
      %1622 = vst.msk [vmem:[#allocation3 + $0x88] sm:$0xff] %vm815, %v1484
      %1623 = vst.msk [vmem:[#allocation3 + $0x90] sm:$0xff] %vm815, %v1486
      %1624 = vst.msk [vmem:[#allocation3 + $0x98] sm:$0xff] %vm815, %v1488
      %1625 = vst.msk [vmem:[#allocation3 + $0xa0] sm:$0xff] %vm815, %v1490
      %1626 = vst.msk [vmem:[#allocation3 + $0xa8] sm:$0xff] %vm815, %v1492
      %1627 = vst.msk [vmem:[#allocation3 + $0xb0] sm:$0xff] %vm815, %v1494
      %1628 = vst.msk [vmem:[#allocation3 + $0xb8] sm:$0xff] %vm815, %v1496
      %1629 = vst.msk [vmem:[#allocation3 + $0xc0] sm:$0xff] %vm815, %v1498
      %1630 = vst.msk [vmem:[#allocation3 + $0xc8] sm:$0xff] %vm815, %v1500
      %1631 = vst.msk [vmem:[#allocation3 + $0xd0] sm:$0xff] %vm815, %v1502
      %1632 = vst.msk [vmem:[#allocation3 + $0xd8] sm:$0xff] %vm815, %v1504
      %1633 = vst.msk [vmem:[#allocation3 + $0xe0] sm:$0xff] %vm815, %v1506
      %1634 = vst.msk [vmem:[#allocation3 + $0xe8] sm:$0xff] %vm815, %v1508
      %1635 = vst.msk [vmem:[#allocation3 + $0xf0] sm:$0xff] %vm815, %v1510
      %1636 = vst.msk [vmem:[#allocation3 + $0xf8] sm:$0xff] %vm815, %v1512
      %1637 = vst.msk [vmem:[#allocation3 + $0x100] sm:$0xff] %vm815, %v1514
      %1638 = vst.msk [vmem:[#allocation3 + $0x108] sm:$0xff] %vm815, %v1516
      %1639 = vst.msk [vmem:[#allocation3 + $0x110] sm:$0xff] %vm815, %v1518
      %1640 = vst.msk [vmem:[#allocation3 + $0x118] sm:$0xff] %vm815, %v1520
      %1641 = vst.msk [vmem:[#allocation3 + $0x120] sm:$0xff] %vm815, %v1522
      %1642 = vst.msk [vmem:[#allocation3 + $0x128] sm:$0xff] %vm815, %v1524
      %1643 = vst.msk [vmem:[#allocation3 + $0x130] sm:$0xff] %vm815, %v1526
      %1644 = vst.msk [vmem:[#allocation3 + $0x138] sm:$0xff] %vm815, %v1528
      %1645 = vst.msk [vmem:[#allocation3 + $0x140] sm:$0xff] %vm815, %v1530
      %1646 = vst.msk [vmem:[#allocation3 + $0x148] sm:$0xff] %vm815, %v1532
      %1647 = vst.msk [vmem:[#allocation3 + $0x150] sm:$0xff] %vm815, %v1534
      %1648 = vst.msk [vmem:[#allocation3 + $0x158] sm:$0xff] %vm815, %v1536
      %1649 = vst.msk [vmem:[#allocation3 + $0x160] sm:$0xff] %vm815, %v1538
      %1650 = vst.msk [vmem:[#allocation3 + $0x168] sm:$0xff] %vm815, %v1540
      %1651 = vst.msk [vmem:[#allocation3 + $0x170] sm:$0xff] %vm815, %v1542
      %1652 = vst.msk [vmem:[#allocation3 + $0x178] sm:$0xff] %vm815, %v1544
      %1653 = vst.msk [vmem:[#allocation3 + $0x180] sm:$0xff] %vm815, %v1546
      %1654 = vst.msk [vmem:[#allocation3 + $0x188] sm:$0xff] %vm815, %v1548
      %1655 = vst.msk [vmem:[#allocation3 + $0x190] sm:$0xff] %vm815, %v1550
      %1656 = vst.msk [vmem:[#allocation3 + $0x198] sm:$0xff] %vm815, %v1552
      %1657 = vst.msk [vmem:[#allocation3 + $0x1a0] sm:$0xff] %vm815, %v1554
      %1658 = vst.msk [vmem:[#allocation3 + $0x1a8] sm:$0xff] %vm815, %v1556
      %1659 = vst.msk [vmem:[#allocation3 + $0x1b0] sm:$0xff] %vm815, %v1558
      %1660 = vst.msk [vmem:[#allocation3 + $0x1b8] sm:$0xff] %vm815, %v1560
      %v1661 = vld [vmem:[#allocation2 + $0x1b] sm:$0xff]
      %v1662 = vld [vmem:[#allocation2 + $0x23] sm:$0xff]
      %v1663 = vld [vmem:[#allocation2 + $0x2b] sm:$0xff]
      %v1664 = vld [vmem:[#allocation2 + $0x33] sm:$0xff]
      %v1665 = vld [vmem:[#allocation2 + $0x3b] sm:$0xff]
      %v1666 = vld [vmem:[#allocation2 + $0x43] sm:$0xff]
      %v1667 = vld [vmem:[#allocation2 + $0x4b] sm:$0xff]
      %v1668 = vld [vmem:[#allocation2 + $0x53] sm:$0xff]
      %v1669 = vld [vmem:[#allocation2 + $0x5b] sm:$0xff]
      %v1670 = vld [vmem:[#allocation2 + $0x63] sm:$0xff]
      %v1671 = vld [vmem:[#allocation2 + $0x6b] sm:$0xff]
      %v1672 = vld [vmem:[#allocation2 + $0x73] sm:$0xff]
      %v1673 = vld [vmem:[#allocation2 + $0x7b] sm:$0xff]
      %v1674 = vld [vmem:[#allocation2 + $0x83] sm:$0xff]
      %v1675 = vld [vmem:[#allocation2 + $0x8b] sm:$0xff]
      %v1676 = vld [vmem:[#allocation2 + $0x93] sm:$0xff]
      %v1677 = vld [vmem:[#allocation2 + $0x9b] sm:$0xff]
      %v1678 = vld [vmem:[#allocation2 + $0xa3] sm:$0xff]
      %v1679 = vld [vmem:[#allocation2 + $0xab] sm:$0xff]
      %v1680 = vld [vmem:[#allocation2 + $0xb3] sm:$0xff]
      %v1681 = vld [vmem:[#allocation2 + $0xbb] sm:$0xff]
      %v1682 = vld [vmem:[#allocation2 + $0xc3] sm:$0xff]
      %v1683 = vld [vmem:[#allocation2 + $0xcb] sm:$0xff]
      %v1684 = vld [vmem:[#allocation2 + $0xd3] sm:$0xff]
      %v1685 = vld [vmem:[#allocation2 + $0xdb] sm:$0xff]
      %v1686 = vld [vmem:[#allocation2 + $0xe3] sm:$0xff]
      %v1687 = vld [vmem:[#allocation2 + $0xeb] sm:$0xff]
      %v1688 = vld [vmem:[#allocation2 + $0xf3] sm:$0xff]
      %v1689 = vld [vmem:[#allocation2 + $0xfb] sm:$0xff]
      %v1690 = vld [vmem:[#allocation2 + $0x103] sm:$0xff]
      %v1691 = vld [vmem:[#allocation2 + $0x10b] sm:$0xff]
      %v1692 = vld [vmem:[#allocation2 + $0x113] sm:$0xff]
      %v1693 = vld [vmem:[#allocation2 + $0x11b] sm:$0xff]
      %v1694 = vld [vmem:[#allocation2 + $0x123] sm:$0xff]
      %v1695 = vld [vmem:[#allocation2 + $0x12b] sm:$0xff]
      %v1696 = vld [vmem:[#allocation2 + $0x133] sm:$0xff]
      %v1697 = vld [vmem:[#allocation2 + $0x13b] sm:$0xff]
      %v1698 = vld [vmem:[#allocation2 + $0x143] sm:$0xff]
      %v1699 = vld [vmem:[#allocation2 + $0x14b] sm:$0xff]
      %v1700 = vld [vmem:[#allocation2 + $0x153] sm:$0xff]
      %v1701 = vld [vmem:[#allocation2 + $0x15b] sm:$0xff]
      %v1702 = vld [vmem:[#allocation2 + $0x163] sm:$0xff]
      %v1703 = vld [vmem:[#allocation2 + $0x16b] sm:$0xff]
      %v1704 = vld [vmem:[#allocation2 + $0x173] sm:$0xff]
      %v1705 = vld [vmem:[#allocation2 + $0x17b] sm:$0xff]
      %v1706 = vld [vmem:[#allocation2 + $0x183] sm:$0xff]
      %v1707 = vld [vmem:[#allocation2 + $0x18b] sm:$0xff]
      %v1708 = vld [vmem:[#allocation2 + $0x193] sm:$0xff]
      %v1709 = vld [vmem:[#allocation2 + $0x19b] sm:$0xff]
      %v1710 = vld [vmem:[#allocation2 + $0x1a3] sm:$0xff]
      %v1711 = vld [vmem:[#allocation2 + $0x1c] sm:$0xff]
      %v1712 = vld [vmem:[#allocation2 + $0x24] sm:$0xff]
      %v1713 = vld [vmem:[#allocation2 + $0x2c] sm:$0xff]
      %v1714 = vld [vmem:[#allocation2 + $0x34] sm:$0xff]
      %v1715 = vld [vmem:[#allocation2 + $0x3c] sm:$0xff]
      %v1716 = vld [vmem:[#allocation2 + $0x44] sm:$0xff]
      %v1717 = vld [vmem:[#allocation2 + $0x4c] sm:$0xff]
      %v1718 = vld [vmem:[#allocation2 + $0x54] sm:$0xff]
      %v1719 = vld [vmem:[#allocation2 + $0x5c] sm:$0xff]
      %v1720 = vld [vmem:[#allocation2 + $0x64] sm:$0xff]
      %v1721 = vld [vmem:[#allocation2 + $0x6c] sm:$0xff]
      %v1722 = vld [vmem:[#allocation2 + $0x74] sm:$0xff]
      %v1723 = vld [vmem:[#allocation2 + $0x7c] sm:$0xff]
      %v1724 = vld [vmem:[#allocation2 + $0x84] sm:$0xff]
      %v1725 = vld [vmem:[#allocation2 + $0x8c] sm:$0xff]
      %v1726 = vld [vmem:[#allocation2 + $0x94] sm:$0xff]
      %v1727 = vld [vmem:[#allocation2 + $0x9c] sm:$0xff]
      %v1728 = vld [vmem:[#allocation2 + $0xa4] sm:$0xff]
      %v1729 = vld [vmem:[#allocation2 + $0xac] sm:$0xff]
      %v1730 = vld [vmem:[#allocation2 + $0xb4] sm:$0xff]
      %v1731 = vld [vmem:[#allocation2 + $0xbc] sm:$0xff]
      %v1732 = vld [vmem:[#allocation2 + $0xc4] sm:$0xff]
      %v1733 = vld [vmem:[#allocation2 + $0xcc] sm:$0xff]
      %v1734 = vld [vmem:[#allocation2 + $0xd4] sm:$0xff]
      %v1735 = vld [vmem:[#allocation2 + $0xdc] sm:$0xff]
      %v1736 = vld [vmem:[#allocation2 + $0xe4] sm:$0xff]
      %v1737 = vld [vmem:[#allocation2 + $0xec] sm:$0xff]
      %v1738 = vld [vmem:[#allocation2 + $0xf4] sm:$0xff]
      %v1739 = vld [vmem:[#allocation2 + $0xfc] sm:$0xff]
      %v1740 = vld [vmem:[#allocation2 + $0x104] sm:$0xff]
      %v1741 = vld [vmem:[#allocation2 + $0x10c] sm:$0xff]
      %v1742 = vld [vmem:[#allocation2 + $0x114] sm:$0xff]
      %v1743 = vld [vmem:[#allocation2 + $0x11c] sm:$0xff]
      %v1744 = vld [vmem:[#allocation2 + $0x124] sm:$0xff]
      %v1745 = vld [vmem:[#allocation2 + $0x12c] sm:$0xff]
      %v1746 = vld [vmem:[#allocation2 + $0x134] sm:$0xff]
      %v1747 = vld [vmem:[#allocation2 + $0x13c] sm:$0xff]
      %v1748 = vld [vmem:[#allocation2 + $0x144] sm:$0xff]
      %v1749 = vld [vmem:[#allocation2 + $0x14c] sm:$0xff]
      %v1750 = vld [vmem:[#allocation2 + $0x154] sm:$0xff]
      %v1751 = vld [vmem:[#allocation2 + $0x15c] sm:$0xff]
      %v1752 = vld [vmem:[#allocation2 + $0x164] sm:$0xff]
      %v1753 = vld [vmem:[#allocation2 + $0x16c] sm:$0xff]
      %v1754 = vld [vmem:[#allocation2 + $0x174] sm:$0xff]
      %v1755 = vld [vmem:[#allocation2 + $0x17c] sm:$0xff]
      %v1756 = vld [vmem:[#allocation2 + $0x184] sm:$0xff]
      %v1757 = vld [vmem:[#allocation2 + $0x18c] sm:$0xff]
      %v1758 = vld [vmem:[#allocation2 + $0x194] sm:$0xff]
      %v1759 = vld [vmem:[#allocation2 + $0x19c] sm:$0xff]
      %v1760 = vld [vmem:[#allocation2 + $0x1a4] sm:$0xff]
      %v1761 = vld [vmem:[#allocation2 + $0x1d] sm:$0xff]
      %v1762 = vld [vmem:[#allocation2 + $0x25] sm:$0xff]
      %v1763 = vld [vmem:[#allocation2 + $0x2d] sm:$0xff]
      %v1764 = vld [vmem:[#allocation2 + $0x35] sm:$0xff]
      %v1765 = vld [vmem:[#allocation2 + $0x3d] sm:$0xff]
      %v1766 = vld [vmem:[#allocation2 + $0x45] sm:$0xff]
      %v1767 = vld [vmem:[#allocation2 + $0x4d] sm:$0xff]
      %v1768 = vld [vmem:[#allocation2 + $0x55] sm:$0xff]
      %v1769 = vld [vmem:[#allocation2 + $0x5d] sm:$0xff]
      %v1770 = vld [vmem:[#allocation2 + $0x65] sm:$0xff]
      %v1771 = vld [vmem:[#allocation2 + $0x6d] sm:$0xff]
      %v1772 = vld [vmem:[#allocation2 + $0x75] sm:$0xff]
      %v1773 = vld [vmem:[#allocation2 + $0x7d] sm:$0xff]
      %v1774 = vld [vmem:[#allocation2 + $0x85] sm:$0xff]
      %v1775 = vld [vmem:[#allocation2 + $0x8d] sm:$0xff]
      %v1776 = vld [vmem:[#allocation2 + $0x95] sm:$0xff]
      %v1777 = vld [vmem:[#allocation2 + $0x9d] sm:$0xff]
      %v1778 = vld [vmem:[#allocation2 + $0xa5] sm:$0xff]
      %v1779 = vld [vmem:[#allocation2 + $0xad] sm:$0xff]
      %v1780 = vld [vmem:[#allocation2 + $0xb5] sm:$0xff]
      %v1781 = vld [vmem:[#allocation2 + $0xbd] sm:$0xff]
      %v1782 = vld [vmem:[#allocation2 + $0xc5] sm:$0xff]
      %v1783 = vld [vmem:[#allocation2 + $0xcd] sm:$0xff]
      %v1784 = vld [vmem:[#allocation2 + $0xd5] sm:$0xff]
      %v1785 = vld [vmem:[#allocation2 + $0xdd] sm:$0xff]
      %v1786 = vld [vmem:[#allocation2 + $0xe5] sm:$0xff]
      %v1787 = vld [vmem:[#allocation2 + $0xed] sm:$0xff]
      %v1788 = vld [vmem:[#allocation2 + $0xf5] sm:$0xff]
      %v1789 = vld [vmem:[#allocation2 + $0xfd] sm:$0xff]
      %v1790 = vld [vmem:[#allocation2 + $0x105] sm:$0xff]
      %v1791 = vld [vmem:[#allocation2 + $0x10d] sm:$0xff]
      %v1792 = vld [vmem:[#allocation2 + $0x115] sm:$0xff]
      %v1793 = vld [vmem:[#allocation2 + $0x11d] sm:$0xff]
      %v1794 = vld [vmem:[#allocation2 + $0x125] sm:$0xff]
      %v1795 = vld [vmem:[#allocation2 + $0x12d] sm:$0xff]
      %v1796 = vld [vmem:[#allocation2 + $0x135] sm:$0xff]
      %v1797 = vld [vmem:[#allocation2 + $0x13d] sm:$0xff]
      %v1798 = vld [vmem:[#allocation2 + $0x145] sm:$0xff]
      %v1799 = vld [vmem:[#allocation2 + $0x14d] sm:$0xff]
      %v1800 = vld [vmem:[#allocation2 + $0x155] sm:$0xff]
      %v1801 = vld [vmem:[#allocation2 + $0x15d] sm:$0xff]
      %v1802 = vld [vmem:[#allocation2 + $0x165] sm:$0xff]
      %v1803 = vld [vmem:[#allocation2 + $0x16d] sm:$0xff]
      %v1804 = vld [vmem:[#allocation2 + $0x175] sm:$0xff]
      %v1805 = vld [vmem:[#allocation2 + $0x17d] sm:$0xff]
      %v1806 = vld [vmem:[#allocation2 + $0x185] sm:$0xff]
      %v1807 = vld [vmem:[#allocation2 + $0x18d] sm:$0xff]
      %v1808 = vld [vmem:[#allocation2 + $0x195] sm:$0xff]
      %v1809 = vld [vmem:[#allocation2 + $0x19d] sm:$0xff]
      %v1810 = vld [vmem:[#allocation2 + $0x1a5] sm:$0xff]
      %v1811 = vld [vmem:[#allocation2 + $0x2f] sm:$0xff]
      %v1812 = vld [vmem:[#allocation2 + $0x37] sm:$0xff]
      %v1813 = vld [vmem:[#allocation2 + $0x3f] sm:$0xff]
      %v1814 = vld [vmem:[#allocation2 + $0x47] sm:$0xff]
      %v1815 = vld [vmem:[#allocation2 + $0x4f] sm:$0xff]
      %v1816 = vld [vmem:[#allocation2 + $0x57] sm:$0xff]
      %v1817 = vld [vmem:[#allocation2 + $0x5f] sm:$0xff]
      %v1818 = vld [vmem:[#allocation2 + $0x67] sm:$0xff]
      %v1819 = vld [vmem:[#allocation2 + $0x6f] sm:$0xff]
      %v1820 = vld [vmem:[#allocation2 + $0x77] sm:$0xff]
      %v1821 = vld [vmem:[#allocation2 + $0x7f] sm:$0xff]
      %v1822 = vld [vmem:[#allocation2 + $0x87] sm:$0xff]
      %v1823 = vld [vmem:[#allocation2 + $0x8f] sm:$0xff]
      %v1824 = vld [vmem:[#allocation2 + $0x97] sm:$0xff]
      %v1825 = vld [vmem:[#allocation2 + $0x9f] sm:$0xff]
      %v1826 = vld [vmem:[#allocation2 + $0xa7] sm:$0xff]
      %v1827 = vld [vmem:[#allocation2 + $0xaf] sm:$0xff]
      %v1828 = vld [vmem:[#allocation2 + $0xb7] sm:$0xff]
      %v1829 = vld [vmem:[#allocation2 + $0xbf] sm:$0xff]
      %v1830 = vld [vmem:[#allocation2 + $0xc7] sm:$0xff]
      %v1831 = vld [vmem:[#allocation2 + $0xcf] sm:$0xff]
      %v1832 = vld [vmem:[#allocation2 + $0xd7] sm:$0xff]
      %v1833 = vld [vmem:[#allocation2 + $0xdf] sm:$0xff]
      %v1834 = vld [vmem:[#allocation2 + $0xe7] sm:$0xff]
      %v1835 = vld [vmem:[#allocation2 + $0xef] sm:$0xff]
      %v1836 = vld [vmem:[#allocation2 + $0xf7] sm:$0xff]
      %v1837 = vld [vmem:[#allocation2 + $0xff] sm:$0xff]
      %v1838 = vld [vmem:[#allocation2 + $0x107] sm:$0xff]
      %v1839 = vld [vmem:[#allocation2 + $0x10f] sm:$0xff]
      %v1840 = vld [vmem:[#allocation2 + $0x117] sm:$0xff]
      %v1841 = vld [vmem:[#allocation2 + $0x11f] sm:$0xff]
      %v1842 = vld [vmem:[#allocation2 + $0x127] sm:$0xff]
      %v1843 = vld [vmem:[#allocation2 + $0x12f] sm:$0xff]
      %v1844 = vld [vmem:[#allocation2 + $0x137] sm:$0xff]
      %v1845 = vld [vmem:[#allocation2 + $0x13f] sm:$0xff]
      %v1846 = vld [vmem:[#allocation2 + $0x147] sm:$0xff]
      %v1847 = vld [vmem:[#allocation2 + $0x14f] sm:$0xff]
      %v1848 = vld [vmem:[#allocation2 + $0x157] sm:$0xff]
      %v1849 = vld [vmem:[#allocation2 + $0x15f] sm:$0xff]
      %v1850 = vld [vmem:[#allocation2 + $0x167] sm:$0xff]
      %v1851 = vld [vmem:[#allocation2 + $0x16f] sm:$0xff]
      %v1852 = vld [vmem:[#allocation2 + $0x177] sm:$0xff]
      %v1853 = vld [vmem:[#allocation2 + $0x17f] sm:$0xff]
      %v1854 = vld [vmem:[#allocation2 + $0x187] sm:$0xff]
      %v1855 = vld [vmem:[#allocation2 + $0x18f] sm:$0xff]
      %v1856 = vld [vmem:[#allocation2 + $0x197] sm:$0xff]
      %v1857 = vld [vmem:[#allocation2 + $0x19f] sm:$0xff]
      %v1858 = vld [vmem:[#allocation2 + $0x1a7] sm:$0xff]
      %v1859 = vld [vmem:[#allocation2 + $0x1af] sm:$0xff]
      %v1860 = vld [vmem:[#allocation2 + $0x1b7] sm:$0xff]
      %v1861 = vld [vmem:[#allocation2 + $0x30] sm:$0xff]
      %v1862 = vld [vmem:[#allocation2 + $0x38] sm:$0xff]
      %v1863 = vld [vmem:[#allocation2 + $0x40] sm:$0xff]
      %v1864 = vld [vmem:[#allocation2 + $0x48] sm:$0xff]
      %v1865 = vld [vmem:[#allocation2 + $0x50] sm:$0xff]
      %v1866 = vld [vmem:[#allocation2 + $0x58] sm:$0xff]
      %v1867 = vld [vmem:[#allocation2 + $0x60] sm:$0xff]
      %v1868 = vld [vmem:[#allocation2 + $0x68] sm:$0xff]
      %v1869 = vld [vmem:[#allocation2 + $0x70] sm:$0xff]
      %v1870 = vld [vmem:[#allocation2 + $0x78] sm:$0xff]
      %v1871 = vld [vmem:[#allocation2 + $0x80] sm:$0xff]
      %v1872 = vld [vmem:[#allocation2 + $0x88] sm:$0xff]
      %v1873 = vld [vmem:[#allocation2 + $0x90] sm:$0xff]
      %v1874 = vld [vmem:[#allocation2 + $0x98] sm:$0xff]
      %v1875 = vld [vmem:[#allocation2 + $0xa0] sm:$0xff]
      %v1876 = vld [vmem:[#allocation2 + $0xa8] sm:$0xff]
      %v1877 = vld [vmem:[#allocation2 + $0xb0] sm:$0xff]
      %v1878 = vld [vmem:[#allocation2 + $0xb8] sm:$0xff]
      %v1879 = vld [vmem:[#allocation2 + $0xc0] sm:$0xff]
      %v1880 = vld [vmem:[#allocation2 + $0xc8] sm:$0xff]
      %v1881 = vld [vmem:[#allocation2 + $0xd0] sm:$0xff]
      %v1882 = vld [vmem:[#allocation2 + $0xd8] sm:$0xff]
      %v1883 = vld [vmem:[#allocation2 + $0xe0] sm:$0xff]
      %v1884 = vld [vmem:[#allocation2 + $0xe8] sm:$0xff]
      %v1885 = vld [vmem:[#allocation2 + $0xf0] sm:$0xff]
      %v1886 = vld [vmem:[#allocation2 + $0xf8] sm:$0xff]
      %v1887 = vld [vmem:[#allocation2 + $0x100] sm:$0xff]
      %v1888 = vld [vmem:[#allocation2 + $0x108] sm:$0xff]
      %v1889 = vld [vmem:[#allocation2 + $0x110] sm:$0xff]
      %v1890 = vld [vmem:[#allocation2 + $0x118] sm:$0xff]
      %v1891 = vld [vmem:[#allocation2 + $0x120] sm:$0xff]
      %v1892 = vld [vmem:[#allocation2 + $0x128] sm:$0xff]
      %v1893 = vld [vmem:[#allocation2 + $0x130] sm:$0xff]
      %v1894 = vld [vmem:[#allocation2 + $0x138] sm:$0xff]
      %v1895 = vld [vmem:[#allocation2 + $0x140] sm:$0xff]
      %v1896 = vld [vmem:[#allocation2 + $0x148] sm:$0xff]
      %v1897 = vld [vmem:[#allocation2 + $0x150] sm:$0xff]
      %v1898 = vld [vmem:[#allocation2 + $0x158] sm:$0xff]
      %v1899 = vld [vmem:[#allocation2 + $0x160] sm:$0xff]
      %v1900 = vld [vmem:[#allocation2 + $0x168] sm:$0xff]
      %v1901 = vld [vmem:[#allocation2 + $0x170] sm:$0xff]
      %v1902 = vld [vmem:[#allocation2 + $0x178] sm:$0xff]
      %v1903 = vld [vmem:[#allocation2 + $0x180] sm:$0xff]
      %v1904 = vld [vmem:[#allocation2 + $0x188] sm:$0xff]
      %v1905 = vld [vmem:[#allocation2 + $0x190] sm:$0xff]
      %v1906 = vld [vmem:[#allocation2 + $0x198] sm:$0xff]
      %v1907 = vld [vmem:[#allocation2 + $0x1a0] sm:$0xff]
      %v1908 = vld [vmem:[#allocation2 + $0x1a8] sm:$0xff]
      %v1909 = vld [vmem:[#allocation2 + $0x1b0] sm:$0xff]
      %v1910 = vld [vmem:[#allocation2 + $0x1b8] sm:$0xff]
      %v1911 = vld [vmem:[#allocation2 + $0x31] sm:$0xff]
      %v1912 = vld [vmem:[#allocation2 + $0x39] sm:$0xff]
      %v1913 = vld [vmem:[#allocation2 + $0x41] sm:$0xff]
      %v1914 = vld [vmem:[#allocation2 + $0x49] sm:$0xff]
      %v1915 = vld [vmem:[#allocation2 + $0x51] sm:$0xff]
      %v1916 = vld [vmem:[#allocation2 + $0x59] sm:$0xff]
      %v1917 = vld [vmem:[#allocation2 + $0x61] sm:$0xff]
      %v1918 = vld [vmem:[#allocation2 + $0x69] sm:$0xff]
      %v1919 = vld [vmem:[#allocation2 + $0x71] sm:$0xff]
      %v1920 = vld [vmem:[#allocation2 + $0x79] sm:$0xff]
      %v1921 = vld [vmem:[#allocation2 + $0x81] sm:$0xff]
      %v1922 = vld [vmem:[#allocation2 + $0x89] sm:$0xff]
      %v1923 = vld [vmem:[#allocation2 + $0x91] sm:$0xff]
      %v1924 = vld [vmem:[#allocation2 + $0x99] sm:$0xff]
      %v1925 = vld [vmem:[#allocation2 + $0xa1] sm:$0xff]
      %v1926 = vld [vmem:[#allocation2 + $0xa9] sm:$0xff]
      %v1927 = vld [vmem:[#allocation2 + $0xb1] sm:$0xff]
      %v1928 = vld [vmem:[#allocation2 + $0xb9] sm:$0xff]
      %v1929 = vld [vmem:[#allocation2 + $0xc1] sm:$0xff]
      %v1930 = vld [vmem:[#allocation2 + $0xc9] sm:$0xff]
      %v1931 = vld [vmem:[#allocation2 + $0xd1] sm:$0xff]
      %v1932 = vld [vmem:[#allocation2 + $0xd9] sm:$0xff]
      %v1933 = vld [vmem:[#allocation2 + $0xe1] sm:$0xff]
      %v1934 = vld [vmem:[#allocation2 + $0xe9] sm:$0xff]
      %v1935 = vld [vmem:[#allocation2 + $0xf1] sm:$0xff]
      %v1936 = vld [vmem:[#allocation2 + $0xf9] sm:$0xff]
      %v1937 = vld [vmem:[#allocation2 + $0x101] sm:$0xff]
      %v1938 = vld [vmem:[#allocation2 + $0x109] sm:$0xff]
      %v1939 = vld [vmem:[#allocation2 + $0x111] sm:$0xff]
      %v1940 = vld [vmem:[#allocation2 + $0x119] sm:$0xff]
      %v1941 = vld [vmem:[#allocation2 + $0x121] sm:$0xff]
      %v1942 = vld [vmem:[#allocation2 + $0x129] sm:$0xff]
      %v1943 = vld [vmem:[#allocation2 + $0x131] sm:$0xff]
      %v1944 = vld [vmem:[#allocation2 + $0x139] sm:$0xff]
      %v1945 = vld [vmem:[#allocation2 + $0x141] sm:$0xff]
      %v1946 = vld [vmem:[#allocation2 + $0x149] sm:$0xff]
      %v1947 = vld [vmem:[#allocation2 + $0x151] sm:$0xff]
      %v1948 = vld [vmem:[#allocation2 + $0x159] sm:$0xff]
      %v1949 = vld [vmem:[#allocation2 + $0x161] sm:$0xff]
      %v1950 = vld [vmem:[#allocation2 + $0x169] sm:$0xff]
      %v1951 = vld [vmem:[#allocation2 + $0x171] sm:$0xff]
      %v1952 = vld [vmem:[#allocation2 + $0x179] sm:$0xff]
      %v1953 = vld [vmem:[#allocation2 + $0x181] sm:$0xff]
      %v1954 = vld [vmem:[#allocation2 + $0x189] sm:$0xff]
      %v1955 = vld [vmem:[#allocation2 + $0x191] sm:$0xff]
      %v1956 = vld [vmem:[#allocation2 + $0x199] sm:$0xff]
      %v1957 = vld [vmem:[#allocation2 + $0x1a1] sm:$0xff]
      %v1958 = vld [vmem:[#allocation2 + $0x1a9] sm:$0xff]
      %v1959 = vld [vmem:[#allocation2 + $0x1b1] sm:$0xff]
      %v1960 = vld [vmem:[#allocation2 + $0x1b9] sm:$0xff]
      %v1961 = vld [vmem:[#allocation2 + $0x1ab] sm:$0xff]
      %v1962 = vld [vmem:[#allocation2 + $0x1b3] sm:$0xff]
      %v1963 = vld [vmem:[#allocation2 + $0x1bb] sm:$0xff]
      %v1964 = vld [vmem:[#allocation2 + $0x1c3] sm:$0xff]
      %v1965 = vld [vmem:[#allocation2 + $0x1cb] sm:$0xff]
      %v1966 = vld [vmem:[#allocation2 + $0x1ac] sm:$0xff]
      %v1967 = vld [vmem:[#allocation2 + $0x1b4] sm:$0xff]
      %v1968 = vld [vmem:[#allocation2 + $0x1bc] sm:$0xff]
      %v1969 = vld [vmem:[#allocation2 + $0x1c4] sm:$0xff]
      %v1970 = vld [vmem:[#allocation2 + $0x1cc] sm:$0xff]
      %v1971 = vld [vmem:[#allocation2 + $0x1ad] sm:$0xff]
      %v1972 = vld [vmem:[#allocation2 + $0x1b5] sm:$0xff]
      %v1973 = vld [vmem:[#allocation2 + $0x1bd] sm:$0xff]
      %v1974 = vld [vmem:[#allocation2 + $0x1c5] sm:$0xff]
      %v1975 = vld [vmem:[#allocation2 + $0x1cd] sm:$0xff]
      %2026 = vrot.lane.b32.xlu0 %v1711, 4
      %v2027 = vpop.permute.xlu0 %2026
      %2028 = vrot.lane.b32.xlu0 %v1712, 4
      %v2029 = vpop.permute.xlu0 %2028
      %2030 = vrot.lane.b32.xlu0 %v1713, 4
      %v2031 = vpop.permute.xlu0 %2030
      %2032 = vrot.lane.b32.xlu0 %v1714, 4
      %v2033 = vpop.permute.xlu0 %2032
      %2034 = vrot.lane.b32.xlu0 %v1715, 4
      %v2035 = vpop.permute.xlu0 %2034
      %2036 = vrot.lane.b32.xlu0 %v1716, 4
      %v2037 = vpop.permute.xlu0 %2036
      %2038 = vrot.lane.b32.xlu0 %v1717, 4
      %v2039 = vpop.permute.xlu0 %2038
      %2040 = vrot.lane.b32.xlu0 %v1718, 4
      %v2041 = vpop.permute.xlu0 %2040
      %2042 = vrot.lane.b32.xlu0 %v1719, 4
      %v2043 = vpop.permute.xlu0 %2042
      %2044 = vrot.lane.b32.xlu0 %v1720, 4
      %v2045 = vpop.permute.xlu0 %2044
      %2046 = vrot.lane.b32.xlu0 %v1721, 4
      %v2047 = vpop.permute.xlu0 %2046
      %2048 = vrot.lane.b32.xlu0 %v1722, 4
      %v2049 = vpop.permute.xlu0 %2048
      %2050 = vrot.lane.b32.xlu0 %v1723, 4
      %v2051 = vpop.permute.xlu0 %2050
      %2052 = vrot.lane.b32.xlu0 %v1724, 4
      %v2053 = vpop.permute.xlu0 %2052
      %2054 = vrot.lane.b32.xlu0 %v1725, 4
      %v2055 = vpop.permute.xlu0 %2054
      %2056 = vrot.lane.b32.xlu0 %v1726, 4
      %v2057 = vpop.permute.xlu0 %2056
      %2058 = vrot.lane.b32.xlu0 %v1727, 4
      %v2059 = vpop.permute.xlu0 %2058
      %2060 = vrot.lane.b32.xlu0 %v1728, 4
      %v2061 = vpop.permute.xlu0 %2060
      %2062 = vrot.lane.b32.xlu0 %v1729, 4
      %v2063 = vpop.permute.xlu0 %2062
      %2064 = vrot.lane.b32.xlu0 %v1730, 4
      %v2065 = vpop.permute.xlu0 %2064
      %2066 = vrot.lane.b32.xlu0 %v1731, 4
      %v2067 = vpop.permute.xlu0 %2066
      %2068 = vrot.lane.b32.xlu0 %v1732, 4
      %v2069 = vpop.permute.xlu0 %2068
      %2070 = vrot.lane.b32.xlu0 %v1733, 4
      %v2071 = vpop.permute.xlu0 %2070
      %2072 = vrot.lane.b32.xlu0 %v1734, 4
      %v2073 = vpop.permute.xlu0 %2072
      %2074 = vrot.lane.b32.xlu0 %v1735, 4
      %v2075 = vpop.permute.xlu0 %2074
      %2076 = vrot.lane.b32.xlu0 %v1736, 4
      %v2077 = vpop.permute.xlu0 %2076
      %2078 = vrot.lane.b32.xlu0 %v1737, 4
      %v2079 = vpop.permute.xlu0 %2078
      %2080 = vrot.lane.b32.xlu0 %v1738, 4
      %v2081 = vpop.permute.xlu0 %2080
      %2082 = vrot.lane.b32.xlu0 %v1739, 4
      %v2083 = vpop.permute.xlu0 %2082
      %2084 = vrot.lane.b32.xlu0 %v1740, 4
      %v2085 = vpop.permute.xlu0 %2084
      %2086 = vrot.lane.b32.xlu0 %v1741, 4
      %v2087 = vpop.permute.xlu0 %2086
      %2088 = vrot.lane.b32.xlu0 %v1742, 4
      %v2089 = vpop.permute.xlu0 %2088
      %2090 = vrot.lane.b32.xlu0 %v1743, 4
      %v2091 = vpop.permute.xlu0 %2090
      %2092 = vrot.lane.b32.xlu0 %v1744, 4
      %v2093 = vpop.permute.xlu0 %2092
      %2094 = vrot.lane.b32.xlu0 %v1745, 4
      %v2095 = vpop.permute.xlu0 %2094
      %2096 = vrot.lane.b32.xlu0 %v1746, 4
      %v2097 = vpop.permute.xlu0 %2096
      %2098 = vrot.lane.b32.xlu0 %v1747, 4
      %v2099 = vpop.permute.xlu0 %2098
      %2100 = vrot.lane.b32.xlu0 %v1748, 4
      %v2101 = vpop.permute.xlu0 %2100
      %2102 = vrot.lane.b32.xlu0 %v1749, 4
      %v2103 = vpop.permute.xlu0 %2102
      %2104 = vrot.lane.b32.xlu0 %v1750, 4
      %v2105 = vpop.permute.xlu0 %2104
      %2106 = vrot.lane.b32.xlu0 %v1751, 4
      %v2107 = vpop.permute.xlu0 %2106
      %2108 = vrot.lane.b32.xlu0 %v1752, 4
      %v2109 = vpop.permute.xlu0 %2108
      %2110 = vrot.lane.b32.xlu0 %v1753, 4
      %v2111 = vpop.permute.xlu0 %2110
      %2112 = vrot.lane.b32.xlu0 %v1754, 4
      %v2113 = vpop.permute.xlu0 %2112
      %2114 = vrot.lane.b32.xlu0 %v1755, 4
      %v2115 = vpop.permute.xlu0 %2114
      %2116 = vrot.lane.b32.xlu0 %v1756, 4
      %v2117 = vpop.permute.xlu0 %2116
      %2118 = vrot.lane.b32.xlu0 %v1757, 4
      %v2119 = vpop.permute.xlu0 %2118
      %2120 = vrot.lane.b32.xlu0 %v1758, 4
      %v2121 = vpop.permute.xlu0 %2120
      %2122 = vrot.lane.b32.xlu0 %v1759, 4
      %v2123 = vpop.permute.xlu0 %2122
      %2124 = vrot.lane.b32.xlu0 %v1760, 4
      %v2125 = vpop.permute.xlu0 %2124
      %2226 = vrot.lane.b32.xlu0 %v1761, 8
      %v2227 = vpop.permute.xlu0 %2226
      %2228 = vrot.lane.b32.xlu0 %v1762, 8
      %v2229 = vpop.permute.xlu0 %2228
      %2230 = vrot.lane.b32.xlu0 %v1763, 8
      %v2231 = vpop.permute.xlu0 %2230
      %2232 = vrot.lane.b32.xlu0 %v1764, 8
      %v2233 = vpop.permute.xlu0 %2232
      %2234 = vrot.lane.b32.xlu0 %v1765, 8
      %v2235 = vpop.permute.xlu0 %2234
      %2236 = vrot.lane.b32.xlu0 %v1766, 8
      %v2237 = vpop.permute.xlu0 %2236
      %2238 = vrot.lane.b32.xlu0 %v1767, 8
      %v2239 = vpop.permute.xlu0 %2238
      %2240 = vrot.lane.b32.xlu0 %v1768, 8
      %v2241 = vpop.permute.xlu0 %2240
      %2242 = vrot.lane.b32.xlu0 %v1769, 8
      %v2243 = vpop.permute.xlu0 %2242
      %2244 = vrot.lane.b32.xlu0 %v1770, 8
      %v2245 = vpop.permute.xlu0 %2244
      %2246 = vrot.lane.b32.xlu0 %v1771, 8
      %v2247 = vpop.permute.xlu0 %2246
      %2248 = vrot.lane.b32.xlu0 %v1772, 8
      %v2249 = vpop.permute.xlu0 %2248
      %2250 = vrot.lane.b32.xlu0 %v1773, 8
      %v2251 = vpop.permute.xlu0 %2250
      %2252 = vrot.lane.b32.xlu0 %v1774, 8
      %v2253 = vpop.permute.xlu0 %2252
      %2254 = vrot.lane.b32.xlu0 %v1775, 8
      %v2255 = vpop.permute.xlu0 %2254
      %2256 = vrot.lane.b32.xlu0 %v1776, 8
      %v2257 = vpop.permute.xlu0 %2256
      %2258 = vrot.lane.b32.xlu0 %v1777, 8
      %v2259 = vpop.permute.xlu0 %2258
      %2260 = vrot.lane.b32.xlu0 %v1778, 8
      %v2261 = vpop.permute.xlu0 %2260
      %2262 = vrot.lane.b32.xlu0 %v1779, 8
      %v2263 = vpop.permute.xlu0 %2262
      %2264 = vrot.lane.b32.xlu0 %v1780, 8
      %v2265 = vpop.permute.xlu0 %2264
      %2266 = vrot.lane.b32.xlu0 %v1781, 8
      %v2267 = vpop.permute.xlu0 %2266
      %2268 = vrot.lane.b32.xlu0 %v1782, 8
      %v2269 = vpop.permute.xlu0 %2268
      %2270 = vrot.lane.b32.xlu0 %v1783, 8
      %v2271 = vpop.permute.xlu0 %2270
      %2272 = vrot.lane.b32.xlu0 %v1784, 8
      %v2273 = vpop.permute.xlu0 %2272
      %2274 = vrot.lane.b32.xlu0 %v1785, 8
      %v2275 = vpop.permute.xlu0 %2274
      %2276 = vrot.lane.b32.xlu0 %v1786, 8
      %v2277 = vpop.permute.xlu0 %2276
      %2278 = vrot.lane.b32.xlu0 %v1787, 8
      %v2279 = vpop.permute.xlu0 %2278
      %2280 = vrot.lane.b32.xlu0 %v1788, 8
      %v2281 = vpop.permute.xlu0 %2280
      %2282 = vrot.lane.b32.xlu0 %v1789, 8
      %v2283 = vpop.permute.xlu0 %2282
      %2284 = vrot.lane.b32.xlu0 %v1790, 8
      %v2285 = vpop.permute.xlu0 %2284
      %2286 = vrot.lane.b32.xlu0 %v1791, 8
      %v2287 = vpop.permute.xlu0 %2286
      %2288 = vrot.lane.b32.xlu0 %v1792, 8
      %v2289 = vpop.permute.xlu0 %2288
      %2290 = vrot.lane.b32.xlu0 %v1793, 8
      %v2291 = vpop.permute.xlu0 %2290
      %2292 = vrot.lane.b32.xlu0 %v1794, 8
      %v2293 = vpop.permute.xlu0 %2292
      %2294 = vrot.lane.b32.xlu0 %v1795, 8
      %v2295 = vpop.permute.xlu0 %2294
      %2296 = vrot.lane.b32.xlu0 %v1796, 8
      %v2297 = vpop.permute.xlu0 %2296
      %2298 = vrot.lane.b32.xlu0 %v1797, 8
      %v2299 = vpop.permute.xlu0 %2298
      %2300 = vrot.lane.b32.xlu0 %v1798, 8
      %v2301 = vpop.permute.xlu0 %2300
      %2302 = vrot.lane.b32.xlu0 %v1799, 8
      %v2303 = vpop.permute.xlu0 %2302
      %2304 = vrot.lane.b32.xlu0 %v1800, 8
      %v2305 = vpop.permute.xlu0 %2304
      %2306 = vrot.lane.b32.xlu0 %v1801, 8
      %v2307 = vpop.permute.xlu0 %2306
      %2308 = vrot.lane.b32.xlu0 %v1802, 8
      %v2309 = vpop.permute.xlu0 %2308
      %2310 = vrot.lane.b32.xlu0 %v1803, 8
      %v2311 = vpop.permute.xlu0 %2310
      %2312 = vrot.lane.b32.xlu0 %v1804, 8
      %v2313 = vpop.permute.xlu0 %2312
      %2314 = vrot.lane.b32.xlu0 %v1805, 8
      %v2315 = vpop.permute.xlu0 %2314
      %2316 = vrot.lane.b32.xlu0 %v1806, 8
      %v2317 = vpop.permute.xlu0 %2316
      %2318 = vrot.lane.b32.xlu0 %v1807, 8
      %v2319 = vpop.permute.xlu0 %2318
      %2320 = vrot.lane.b32.xlu0 %v1808, 8
      %v2321 = vpop.permute.xlu0 %2320
      %2322 = vrot.lane.b32.xlu0 %v1809, 8
      %v2323 = vpop.permute.xlu0 %2322
      %2324 = vrot.lane.b32.xlu0 %v1810, 8
      %v2325 = vpop.permute.xlu0 %2324
      %2426 = vrot.lane.b32.xlu0 %v1811, 12
      %v2427 = vpop.permute.xlu0 %2426
      %2428 = vrot.lane.b32.xlu0 %v1812, 12
      %v2429 = vpop.permute.xlu0 %2428
      %2430 = vrot.lane.b32.xlu0 %v1813, 12
      %v2431 = vpop.permute.xlu0 %2430
      %2432 = vrot.lane.b32.xlu0 %v1814, 12
      %v2433 = vpop.permute.xlu0 %2432
      %2434 = vrot.lane.b32.xlu0 %v1815, 12
      %v2435 = vpop.permute.xlu0 %2434
      %2436 = vrot.lane.b32.xlu0 %v1816, 12
      %v2437 = vpop.permute.xlu0 %2436
      %2438 = vrot.lane.b32.xlu0 %v1817, 12
      %v2439 = vpop.permute.xlu0 %2438
      %2440 = vrot.lane.b32.xlu0 %v1818, 12
      %v2441 = vpop.permute.xlu0 %2440
      %2442 = vrot.lane.b32.xlu0 %v1819, 12
      %v2443 = vpop.permute.xlu0 %2442
      %2444 = vrot.lane.b32.xlu0 %v1820, 12
      %v2445 = vpop.permute.xlu0 %2444
      %2446 = vrot.lane.b32.xlu0 %v1821, 12
      %v2447 = vpop.permute.xlu0 %2446
      %2448 = vrot.lane.b32.xlu0 %v1822, 12
      %v2449 = vpop.permute.xlu0 %2448
      %2450 = vrot.lane.b32.xlu0 %v1823, 12
      %v2451 = vpop.permute.xlu0 %2450
      %2452 = vrot.lane.b32.xlu0 %v1824, 12
      %v2453 = vpop.permute.xlu0 %2452
      %2454 = vrot.lane.b32.xlu0 %v1825, 12
      %v2455 = vpop.permute.xlu0 %2454
      %2456 = vrot.lane.b32.xlu0 %v1826, 12
      %v2457 = vpop.permute.xlu0 %2456
      %2458 = vrot.lane.b32.xlu0 %v1827, 12
      %v2459 = vpop.permute.xlu0 %2458
      %2460 = vrot.lane.b32.xlu0 %v1828, 12
      %v2461 = vpop.permute.xlu0 %2460
      %2462 = vrot.lane.b32.xlu0 %v1829, 12
      %v2463 = vpop.permute.xlu0 %2462
      %2464 = vrot.lane.b32.xlu0 %v1830, 12
      %v2465 = vpop.permute.xlu0 %2464
      %2466 = vrot.lane.b32.xlu0 %v1831, 12
      %v2467 = vpop.permute.xlu0 %2466
      %2468 = vrot.lane.b32.xlu0 %v1832, 12
      %v2469 = vpop.permute.xlu0 %2468
      %2470 = vrot.lane.b32.xlu0 %v1833, 12
      %v2471 = vpop.permute.xlu0 %2470
      %2472 = vrot.lane.b32.xlu0 %v1834, 12
      %v2473 = vpop.permute.xlu0 %2472
      %2474 = vrot.lane.b32.xlu0 %v1835, 12
      %v2475 = vpop.permute.xlu0 %2474
      %2476 = vrot.lane.b32.xlu0 %v1836, 12
      %v2477 = vpop.permute.xlu0 %2476
      %2478 = vrot.lane.b32.xlu0 %v1837, 12
      %v2479 = vpop.permute.xlu0 %2478
      %2480 = vrot.lane.b32.xlu0 %v1838, 12
      %v2481 = vpop.permute.xlu0 %2480
      %2482 = vrot.lane.b32.xlu0 %v1839, 12
      %v2483 = vpop.permute.xlu0 %2482
      %2484 = vrot.lane.b32.xlu0 %v1840, 12
      %v2485 = vpop.permute.xlu0 %2484
      %2486 = vrot.lane.b32.xlu0 %v1841, 12
      %v2487 = vpop.permute.xlu0 %2486
      %2488 = vrot.lane.b32.xlu0 %v1842, 12
      %v2489 = vpop.permute.xlu0 %2488
      %2490 = vrot.lane.b32.xlu0 %v1843, 12
      %v2491 = vpop.permute.xlu0 %2490
      %2492 = vrot.lane.b32.xlu0 %v1844, 12
      %v2493 = vpop.permute.xlu0 %2492
      %2494 = vrot.lane.b32.xlu0 %v1845, 12
      %v2495 = vpop.permute.xlu0 %2494
      %2496 = vrot.lane.b32.xlu0 %v1846, 12
      %v2497 = vpop.permute.xlu0 %2496
      %2498 = vrot.lane.b32.xlu0 %v1847, 12
      %v2499 = vpop.permute.xlu0 %2498
      %2500 = vrot.lane.b32.xlu0 %v1848, 12
      %v2501 = vpop.permute.xlu0 %2500
      %2502 = vrot.lane.b32.xlu0 %v1849, 12
      %v2503 = vpop.permute.xlu0 %2502
      %2504 = vrot.lane.b32.xlu0 %v1850, 12
      %v2505 = vpop.permute.xlu0 %2504
      %2506 = vrot.lane.b32.xlu0 %v1851, 12
      %v2507 = vpop.permute.xlu0 %2506
      %2508 = vrot.lane.b32.xlu0 %v1852, 12
      %v2509 = vpop.permute.xlu0 %2508
      %2510 = vrot.lane.b32.xlu0 %v1853, 12
      %v2511 = vpop.permute.xlu0 %2510
      %2512 = vrot.lane.b32.xlu0 %v1854, 12
      %v2513 = vpop.permute.xlu0 %2512
      %2514 = vrot.lane.b32.xlu0 %v1855, 12
      %v2515 = vpop.permute.xlu0 %2514
      %2516 = vrot.lane.b32.xlu0 %v1856, 12
      %v2517 = vpop.permute.xlu0 %2516
      %2518 = vrot.lane.b32.xlu0 %v1857, 12
      %v2519 = vpop.permute.xlu0 %2518
      %2520 = vrot.lane.b32.xlu0 %v1858, 12
      %v2521 = vpop.permute.xlu0 %2520
      %2522 = vrot.lane.b32.xlu0 %v1859, 12
      %v2523 = vpop.permute.xlu0 %2522
      %2524 = vrot.lane.b32.xlu0 %v1860, 12
      %v2525 = vpop.permute.xlu0 %2524
      %2626 = vrot.lane.b32.xlu0 %v1861, 16
      %v2627 = vpop.permute.xlu0 %2626
      %2628 = vrot.lane.b32.xlu0 %v1862, 16
      %v2629 = vpop.permute.xlu0 %2628
      %2630 = vrot.lane.b32.xlu0 %v1863, 16
      %v2631 = vpop.permute.xlu0 %2630
      %2632 = vrot.lane.b32.xlu0 %v1864, 16
      %v2633 = vpop.permute.xlu0 %2632
      %2634 = vrot.lane.b32.xlu0 %v1865, 16
      %v2635 = vpop.permute.xlu0 %2634
      %2636 = vrot.lane.b32.xlu0 %v1866, 16
      %v2637 = vpop.permute.xlu0 %2636
      %2638 = vrot.lane.b32.xlu0 %v1867, 16
      %v2639 = vpop.permute.xlu0 %2638
      %2640 = vrot.lane.b32.xlu0 %v1868, 16
      %v2641 = vpop.permute.xlu0 %2640
      %2642 = vrot.lane.b32.xlu0 %v1869, 16
      %v2643 = vpop.permute.xlu0 %2642
      %2644 = vrot.lane.b32.xlu0 %v1870, 16
      %v2645 = vpop.permute.xlu0 %2644
      %2646 = vrot.lane.b32.xlu0 %v1871, 16
      %v2647 = vpop.permute.xlu0 %2646
      %2648 = vrot.lane.b32.xlu0 %v1872, 16
      %v2649 = vpop.permute.xlu0 %2648
      %2650 = vrot.lane.b32.xlu0 %v1873, 16
      %v2651 = vpop.permute.xlu0 %2650
      %2652 = vrot.lane.b32.xlu0 %v1874, 16
      %v2653 = vpop.permute.xlu0 %2652
      %2654 = vrot.lane.b32.xlu0 %v1875, 16
      %v2655 = vpop.permute.xlu0 %2654
      %2656 = vrot.lane.b32.xlu0 %v1876, 16
      %v2657 = vpop.permute.xlu0 %2656
      %2658 = vrot.lane.b32.xlu0 %v1877, 16
      %v2659 = vpop.permute.xlu0 %2658
      %2660 = vrot.lane.b32.xlu0 %v1878, 16
      %v2661 = vpop.permute.xlu0 %2660
      %2662 = vrot.lane.b32.xlu0 %v1879, 16
      %v2663 = vpop.permute.xlu0 %2662
      %2664 = vrot.lane.b32.xlu0 %v1880, 16
      %v2665 = vpop.permute.xlu0 %2664
      %2666 = vrot.lane.b32.xlu0 %v1881, 16
      %v2667 = vpop.permute.xlu0 %2666
      %2668 = vrot.lane.b32.xlu0 %v1882, 16
      %v2669 = vpop.permute.xlu0 %2668
      %2670 = vrot.lane.b32.xlu0 %v1883, 16
      %v2671 = vpop.permute.xlu0 %2670
      %2672 = vrot.lane.b32.xlu0 %v1884, 16
      %v2673 = vpop.permute.xlu0 %2672
      %2674 = vrot.lane.b32.xlu0 %v1885, 16
      %v2675 = vpop.permute.xlu0 %2674
      %2676 = vrot.lane.b32.xlu0 %v1886, 16
      %v2677 = vpop.permute.xlu0 %2676
      %2678 = vrot.lane.b32.xlu0 %v1887, 16
      %v2679 = vpop.permute.xlu0 %2678
      %2680 = vrot.lane.b32.xlu0 %v1888, 16
      %v2681 = vpop.permute.xlu0 %2680
      %2682 = vrot.lane.b32.xlu0 %v1889, 16
      %v2683 = vpop.permute.xlu0 %2682
      %2684 = vrot.lane.b32.xlu0 %v1890, 16
      %v2685 = vpop.permute.xlu0 %2684
      %2686 = vrot.lane.b32.xlu0 %v1891, 16
      %v2687 = vpop.permute.xlu0 %2686
      %2688 = vrot.lane.b32.xlu0 %v1892, 16
      %v2689 = vpop.permute.xlu0 %2688
      %2690 = vrot.lane.b32.xlu0 %v1893, 16
      %v2691 = vpop.permute.xlu0 %2690
      %2692 = vrot.lane.b32.xlu0 %v1894, 16
      %v2693 = vpop.permute.xlu0 %2692
      %2694 = vrot.lane.b32.xlu0 %v1895, 16
      %v2695 = vpop.permute.xlu0 %2694
      %2696 = vrot.lane.b32.xlu0 %v1896, 16
      %v2697 = vpop.permute.xlu0 %2696
      %2698 = vrot.lane.b32.xlu0 %v1897, 16
      %v2699 = vpop.permute.xlu0 %2698
      %2700 = vrot.lane.b32.xlu0 %v1898, 16
      %v2701 = vpop.permute.xlu0 %2700
      %2702 = vrot.lane.b32.xlu0 %v1899, 16
      %v2703 = vpop.permute.xlu0 %2702
      %2704 = vrot.lane.b32.xlu0 %v1900, 16
      %v2705 = vpop.permute.xlu0 %2704
      %2706 = vrot.lane.b32.xlu0 %v1901, 16
      %v2707 = vpop.permute.xlu0 %2706
      %2708 = vrot.lane.b32.xlu0 %v1902, 16
      %v2709 = vpop.permute.xlu0 %2708
      %2710 = vrot.lane.b32.xlu0 %v1903, 16
      %v2711 = vpop.permute.xlu0 %2710
      %2712 = vrot.lane.b32.xlu0 %v1904, 16
      %v2713 = vpop.permute.xlu0 %2712
      %2714 = vrot.lane.b32.xlu0 %v1905, 16
      %v2715 = vpop.permute.xlu0 %2714
      %2716 = vrot.lane.b32.xlu0 %v1906, 16
      %v2717 = vpop.permute.xlu0 %2716
      %2718 = vrot.lane.b32.xlu0 %v1907, 16
      %v2719 = vpop.permute.xlu0 %2718
      %2720 = vrot.lane.b32.xlu0 %v1908, 16
      %v2721 = vpop.permute.xlu0 %2720
      %2722 = vrot.lane.b32.xlu0 %v1909, 16
      %v2723 = vpop.permute.xlu0 %2722
      %2724 = vrot.lane.b32.xlu0 %v1910, 16
      %v2725 = vpop.permute.xlu0 %2724
      %2826 = vrot.lane.b32.xlu0 %v1911, 20
      %v2827 = vpop.permute.xlu0 %2826
      %2828 = vrot.lane.b32.xlu0 %v1912, 20
      %v2829 = vpop.permute.xlu0 %2828
      %2830 = vrot.lane.b32.xlu0 %v1913, 20
      %v2831 = vpop.permute.xlu0 %2830
      %2832 = vrot.lane.b32.xlu0 %v1914, 20
      %v2833 = vpop.permute.xlu0 %2832
      %2834 = vrot.lane.b32.xlu0 %v1915, 20
      %v2835 = vpop.permute.xlu0 %2834
      %2836 = vrot.lane.b32.xlu0 %v1916, 20
      %v2837 = vpop.permute.xlu0 %2836
      %2838 = vrot.lane.b32.xlu0 %v1917, 20
      %v2839 = vpop.permute.xlu0 %2838
      %2840 = vrot.lane.b32.xlu0 %v1918, 20
      %v2841 = vpop.permute.xlu0 %2840
      %2842 = vrot.lane.b32.xlu0 %v1919, 20
      %v2843 = vpop.permute.xlu0 %2842
      %2844 = vrot.lane.b32.xlu0 %v1920, 20
      %v2845 = vpop.permute.xlu0 %2844
      %2846 = vrot.lane.b32.xlu0 %v1921, 20
      %v2847 = vpop.permute.xlu0 %2846
      %2848 = vrot.lane.b32.xlu0 %v1922, 20
      %v2849 = vpop.permute.xlu0 %2848
      %2850 = vrot.lane.b32.xlu0 %v1923, 20
      %v2851 = vpop.permute.xlu0 %2850
      %2852 = vrot.lane.b32.xlu0 %v1924, 20
      %v2853 = vpop.permute.xlu0 %2852
      %2854 = vrot.lane.b32.xlu0 %v1925, 20
      %v2855 = vpop.permute.xlu0 %2854
      %2856 = vrot.lane.b32.xlu0 %v1926, 20
      %v2857 = vpop.permute.xlu0 %2856
      %2858 = vrot.lane.b32.xlu0 %v1927, 20
      %v2859 = vpop.permute.xlu0 %2858
      %2860 = vrot.lane.b32.xlu0 %v1928, 20
      %v2861 = vpop.permute.xlu0 %2860
      %2862 = vrot.lane.b32.xlu0 %v1929, 20
      %v2863 = vpop.permute.xlu0 %2862
      %2864 = vrot.lane.b32.xlu0 %v1930, 20
      %v2865 = vpop.permute.xlu0 %2864
      %2866 = vrot.lane.b32.xlu0 %v1931, 20
      %v2867 = vpop.permute.xlu0 %2866
      %2868 = vrot.lane.b32.xlu0 %v1932, 20
      %v2869 = vpop.permute.xlu0 %2868
      %2870 = vrot.lane.b32.xlu0 %v1933, 20
      %v2871 = vpop.permute.xlu0 %2870
      %2872 = vrot.lane.b32.xlu0 %v1934, 20
      %v2873 = vpop.permute.xlu0 %2872
      %2874 = vrot.lane.b32.xlu0 %v1935, 20
      %v2875 = vpop.permute.xlu0 %2874
      %2876 = vrot.lane.b32.xlu0 %v1936, 20
      %v2877 = vpop.permute.xlu0 %2876
      %2878 = vrot.lane.b32.xlu0 %v1937, 20
      %v2879 = vpop.permute.xlu0 %2878
      %2880 = vrot.lane.b32.xlu0 %v1938, 20
      %v2881 = vpop.permute.xlu0 %2880
      %2882 = vrot.lane.b32.xlu0 %v1939, 20
      %v2883 = vpop.permute.xlu0 %2882
      %2884 = vrot.lane.b32.xlu0 %v1940, 20
      %v2885 = vpop.permute.xlu0 %2884
      %2886 = vrot.lane.b32.xlu0 %v1941, 20
      %v2887 = vpop.permute.xlu0 %2886
      %2888 = vrot.lane.b32.xlu0 %v1942, 20
      %v2889 = vpop.permute.xlu0 %2888
      %2890 = vrot.lane.b32.xlu0 %v1943, 20
      %v2891 = vpop.permute.xlu0 %2890
      %2892 = vrot.lane.b32.xlu0 %v1944, 20
      %v2893 = vpop.permute.xlu0 %2892
      %2894 = vrot.lane.b32.xlu0 %v1945, 20
      %v2895 = vpop.permute.xlu0 %2894
      %2896 = vrot.lane.b32.xlu0 %v1946, 20
      %v2897 = vpop.permute.xlu0 %2896
      %2898 = vrot.lane.b32.xlu0 %v1947, 20
      %v2899 = vpop.permute.xlu0 %2898
      %2900 = vrot.lane.b32.xlu0 %v1948, 20
      %v2901 = vpop.permute.xlu0 %2900
      %2902 = vrot.lane.b32.xlu0 %v1949, 20
      %v2903 = vpop.permute.xlu0 %2902
      %2904 = vrot.lane.b32.xlu0 %v1950, 20
      %v2905 = vpop.permute.xlu0 %2904
      %2906 = vrot.lane.b32.xlu0 %v1951, 20
      %v2907 = vpop.permute.xlu0 %2906
      %2908 = vrot.lane.b32.xlu0 %v1952, 20
      %v2909 = vpop.permute.xlu0 %2908
      %2910 = vrot.lane.b32.xlu0 %v1953, 20
      %v2911 = vpop.permute.xlu0 %2910
      %2912 = vrot.lane.b32.xlu0 %v1954, 20
      %v2913 = vpop.permute.xlu0 %2912
      %2914 = vrot.lane.b32.xlu0 %v1955, 20
      %v2915 = vpop.permute.xlu0 %2914
      %2916 = vrot.lane.b32.xlu0 %v1956, 20
      %v2917 = vpop.permute.xlu0 %2916
      %2918 = vrot.lane.b32.xlu0 %v1957, 20
      %v2919 = vpop.permute.xlu0 %2918
      %2920 = vrot.lane.b32.xlu0 %v1958, 20
      %v2921 = vpop.permute.xlu0 %2920
      %2922 = vrot.lane.b32.xlu0 %v1959, 20
      %v2923 = vpop.permute.xlu0 %2922
      %2924 = vrot.lane.b32.xlu0 %v1960, 20
      %v2925 = vpop.permute.xlu0 %2924
      %3026 = vrot.lane.b32.xlu0 %v1666, 24
      %v3027 = vpop.permute.xlu0 %3026
      %3028 = vrot.lane.b32.xlu0 %v1667, 24
      %v3029 = vpop.permute.xlu0 %3028
      %3030 = vrot.lane.b32.xlu0 %v1668, 24
      %v3031 = vpop.permute.xlu0 %3030
      %3032 = vrot.lane.b32.xlu0 %v1669, 24
      %v3033 = vpop.permute.xlu0 %3032
      %3034 = vrot.lane.b32.xlu0 %v1670, 24
      %v3035 = vpop.permute.xlu0 %3034
      %3036 = vrot.lane.b32.xlu0 %v1671, 24
      %v3037 = vpop.permute.xlu0 %3036
      %3038 = vrot.lane.b32.xlu0 %v1672, 24
      %v3039 = vpop.permute.xlu0 %3038
      %3040 = vrot.lane.b32.xlu0 %v1673, 24
      %v3041 = vpop.permute.xlu0 %3040
      %3042 = vrot.lane.b32.xlu0 %v1674, 24
      %v3043 = vpop.permute.xlu0 %3042
      %3044 = vrot.lane.b32.xlu0 %v1675, 24
      %v3045 = vpop.permute.xlu0 %3044
      %3046 = vrot.lane.b32.xlu0 %v1676, 24
      %v3047 = vpop.permute.xlu0 %3046
      %3048 = vrot.lane.b32.xlu0 %v1677, 24
      %v3049 = vpop.permute.xlu0 %3048
      %3050 = vrot.lane.b32.xlu0 %v1678, 24
      %v3051 = vpop.permute.xlu0 %3050
      %3052 = vrot.lane.b32.xlu0 %v1679, 24
      %v3053 = vpop.permute.xlu0 %3052
      %3054 = vrot.lane.b32.xlu0 %v1680, 24
      %v3055 = vpop.permute.xlu0 %3054
      %3056 = vrot.lane.b32.xlu0 %v1681, 24
      %v3057 = vpop.permute.xlu0 %3056
      %3058 = vrot.lane.b32.xlu0 %v1682, 24
      %v3059 = vpop.permute.xlu0 %3058
      %3060 = vrot.lane.b32.xlu0 %v1683, 24
      %v3061 = vpop.permute.xlu0 %3060
      %3062 = vrot.lane.b32.xlu0 %v1684, 24
      %v3063 = vpop.permute.xlu0 %3062
      %3064 = vrot.lane.b32.xlu0 %v1685, 24
      %v3065 = vpop.permute.xlu0 %3064
      %3066 = vrot.lane.b32.xlu0 %v1686, 24
      %v3067 = vpop.permute.xlu0 %3066
      %3068 = vrot.lane.b32.xlu0 %v1687, 24
      %v3069 = vpop.permute.xlu0 %3068
      %3070 = vrot.lane.b32.xlu0 %v1688, 24
      %v3071 = vpop.permute.xlu0 %3070
      %3072 = vrot.lane.b32.xlu0 %v1689, 24
      %v3073 = vpop.permute.xlu0 %3072
      %3074 = vrot.lane.b32.xlu0 %v1690, 24
      %v3075 = vpop.permute.xlu0 %3074
      %3076 = vrot.lane.b32.xlu0 %v1691, 24
      %v3077 = vpop.permute.xlu0 %3076
      %3078 = vrot.lane.b32.xlu0 %v1692, 24
      %v3079 = vpop.permute.xlu0 %3078
      %3080 = vrot.lane.b32.xlu0 %v1693, 24
      %v3081 = vpop.permute.xlu0 %3080
      %3082 = vrot.lane.b32.xlu0 %v1694, 24
      %v3083 = vpop.permute.xlu0 %3082
      %3084 = vrot.lane.b32.xlu0 %v1695, 24
      %v3085 = vpop.permute.xlu0 %3084
      %3086 = vrot.lane.b32.xlu0 %v1696, 24
      %v3087 = vpop.permute.xlu0 %3086
      %3088 = vrot.lane.b32.xlu0 %v1697, 24
      %v3089 = vpop.permute.xlu0 %3088
      %3090 = vrot.lane.b32.xlu0 %v1698, 24
      %v3091 = vpop.permute.xlu0 %3090
      %3092 = vrot.lane.b32.xlu0 %v1699, 24
      %v3093 = vpop.permute.xlu0 %3092
      %3094 = vrot.lane.b32.xlu0 %v1700, 24
      %v3095 = vpop.permute.xlu0 %3094
      %3096 = vrot.lane.b32.xlu0 %v1701, 24
      %v3097 = vpop.permute.xlu0 %3096
      %3098 = vrot.lane.b32.xlu0 %v1702, 24
      %v3099 = vpop.permute.xlu0 %3098
      %3100 = vrot.lane.b32.xlu0 %v1703, 24
      %v3101 = vpop.permute.xlu0 %3100
      %3102 = vrot.lane.b32.xlu0 %v1704, 24
      %v3103 = vpop.permute.xlu0 %3102
      %3104 = vrot.lane.b32.xlu0 %v1705, 24
      %v3105 = vpop.permute.xlu0 %3104
      %3106 = vrot.lane.b32.xlu0 %v1706, 24
      %v3107 = vpop.permute.xlu0 %3106
      %3108 = vrot.lane.b32.xlu0 %v1707, 24
      %v3109 = vpop.permute.xlu0 %3108
      %3110 = vrot.lane.b32.xlu0 %v1708, 24
      %v3111 = vpop.permute.xlu0 %3110
      %3112 = vrot.lane.b32.xlu0 %v1709, 24
      %v3113 = vpop.permute.xlu0 %3112
      %3114 = vrot.lane.b32.xlu0 %v1710, 24
      %v3115 = vpop.permute.xlu0 %3114
      %3116 = vrot.lane.b32.xlu0 %v1961, 24
      %v3117 = vpop.permute.xlu0 %3116
      %3118 = vrot.lane.b32.xlu0 %v1962, 24
      %v3119 = vpop.permute.xlu0 %3118
      %3120 = vrot.lane.b32.xlu0 %v1963, 24
      %v3121 = vpop.permute.xlu0 %3120
      %3122 = vrot.lane.b32.xlu0 %v1964, 24
      %v3123 = vpop.permute.xlu0 %3122
      %3124 = vrot.lane.b32.xlu0 %v1965, 24
      %v3125 = vpop.permute.xlu0 %3124
      %3181 = vrot.lane.b32.xlu0 %v1716, 28
      %v3182 = vpop.permute.xlu0 %3181
      %3183 = vrot.lane.b32.xlu0 %v1717, 28
      %v3184 = vpop.permute.xlu0 %3183
      %3185 = vrot.lane.b32.xlu0 %v1718, 28
      %v3186 = vpop.permute.xlu0 %3185
      %3187 = vrot.lane.b32.xlu0 %v1719, 28
      %v3188 = vpop.permute.xlu0 %3187
      %3189 = vrot.lane.b32.xlu0 %v1720, 28
      %v3190 = vpop.permute.xlu0 %3189
      %3191 = vrot.lane.b32.xlu0 %v1721, 28
      %v3192 = vpop.permute.xlu0 %3191
      %3193 = vrot.lane.b32.xlu0 %v1722, 28
      %v3194 = vpop.permute.xlu0 %3193
      %3195 = vrot.lane.b32.xlu0 %v1723, 28
      %v3196 = vpop.permute.xlu0 %3195
      %3197 = vrot.lane.b32.xlu0 %v1724, 28
      %v3198 = vpop.permute.xlu0 %3197
      %3199 = vrot.lane.b32.xlu0 %v1725, 28
      %v3200 = vpop.permute.xlu0 %3199
      %3201 = vrot.lane.b32.xlu0 %v1726, 28
      %v3202 = vpop.permute.xlu0 %3201
      %3203 = vrot.lane.b32.xlu0 %v1727, 28
      %v3204 = vpop.permute.xlu0 %3203
      %3205 = vrot.lane.b32.xlu0 %v1728, 28
      %v3206 = vpop.permute.xlu0 %3205
      %3207 = vrot.lane.b32.xlu0 %v1729, 28
      %v3208 = vpop.permute.xlu0 %3207
      %3209 = vrot.lane.b32.xlu0 %v1730, 28
      %v3210 = vpop.permute.xlu0 %3209
      %3211 = vrot.lane.b32.xlu0 %v1731, 28
      %v3212 = vpop.permute.xlu0 %3211
      %3213 = vrot.lane.b32.xlu0 %v1732, 28
      %v3214 = vpop.permute.xlu0 %3213
      %3215 = vrot.lane.b32.xlu0 %v1733, 28
      %v3216 = vpop.permute.xlu0 %3215
      %3217 = vrot.lane.b32.xlu0 %v1734, 28
      %v3218 = vpop.permute.xlu0 %3217
      %3219 = vrot.lane.b32.xlu0 %v1735, 28
      %v3220 = vpop.permute.xlu0 %3219
      %3221 = vrot.lane.b32.xlu0 %v1736, 28
      %v3222 = vpop.permute.xlu0 %3221
      %3223 = vrot.lane.b32.xlu0 %v1737, 28
      %v3224 = vpop.permute.xlu0 %3223
      %3225 = vrot.lane.b32.xlu0 %v1738, 28
      %v3226 = vpop.permute.xlu0 %3225
      %3227 = vrot.lane.b32.xlu0 %v1739, 28
      %v3228 = vpop.permute.xlu0 %3227
      %3229 = vrot.lane.b32.xlu0 %v1740, 28
      %v3230 = vpop.permute.xlu0 %3229
      %3231 = vrot.lane.b32.xlu0 %v1741, 28
      %v3232 = vpop.permute.xlu0 %3231
      %3233 = vrot.lane.b32.xlu0 %v1742, 28
      %v3234 = vpop.permute.xlu0 %3233
      %3235 = vrot.lane.b32.xlu0 %v1743, 28
      %v3236 = vpop.permute.xlu0 %3235
      %3237 = vrot.lane.b32.xlu0 %v1744, 28
      %v3238 = vpop.permute.xlu0 %3237
      %3239 = vrot.lane.b32.xlu0 %v1745, 28
      %v3240 = vpop.permute.xlu0 %3239
      %3241 = vrot.lane.b32.xlu0 %v1746, 28
      %v3242 = vpop.permute.xlu0 %3241
      %3243 = vrot.lane.b32.xlu0 %v1747, 28
      %v3244 = vpop.permute.xlu0 %3243
      %3245 = vrot.lane.b32.xlu0 %v1748, 28
      %v3246 = vpop.permute.xlu0 %3245
      %3247 = vrot.lane.b32.xlu0 %v1749, 28
      %v3248 = vpop.permute.xlu0 %3247
      %3249 = vrot.lane.b32.xlu0 %v1750, 28
      %v3250 = vpop.permute.xlu0 %3249
      %3251 = vrot.lane.b32.xlu0 %v1751, 28
      %v3252 = vpop.permute.xlu0 %3251
      %3253 = vrot.lane.b32.xlu0 %v1752, 28
      %v3254 = vpop.permute.xlu0 %3253
      %3255 = vrot.lane.b32.xlu0 %v1753, 28
      %v3256 = vpop.permute.xlu0 %3255
      %3257 = vrot.lane.b32.xlu0 %v1754, 28
      %v3258 = vpop.permute.xlu0 %3257
      %3259 = vrot.lane.b32.xlu0 %v1755, 28
      %v3260 = vpop.permute.xlu0 %3259
      %3261 = vrot.lane.b32.xlu0 %v1756, 28
      %v3262 = vpop.permute.xlu0 %3261
      %3263 = vrot.lane.b32.xlu0 %v1757, 28
      %v3264 = vpop.permute.xlu0 %3263
      %3265 = vrot.lane.b32.xlu0 %v1758, 28
      %v3266 = vpop.permute.xlu0 %3265
      %3267 = vrot.lane.b32.xlu0 %v1759, 28
      %v3268 = vpop.permute.xlu0 %3267
      %3269 = vrot.lane.b32.xlu0 %v1760, 28
      %v3270 = vpop.permute.xlu0 %3269
      %3271 = vrot.lane.b32.xlu0 %v1966, 28
      %v3272 = vpop.permute.xlu0 %3271
      %3273 = vrot.lane.b32.xlu0 %v1967, 28
      %v3274 = vpop.permute.xlu0 %3273
      %3275 = vrot.lane.b32.xlu0 %v1968, 28
      %v3276 = vpop.permute.xlu0 %3275
      %3277 = vrot.lane.b32.xlu0 %v1969, 28
      %v3278 = vpop.permute.xlu0 %3277
      %3279 = vrot.lane.b32.xlu0 %v1970, 28
      %v3280 = vpop.permute.xlu0 %3279
      %3336 = vrot.lane.b32.xlu0 %v1766, 32
      %v3337 = vpop.permute.xlu0 %3336
      %3338 = vrot.lane.b32.xlu0 %v1767, 32
      %v3339 = vpop.permute.xlu0 %3338
      %3340 = vrot.lane.b32.xlu0 %v1768, 32
      %v3341 = vpop.permute.xlu0 %3340
      %3342 = vrot.lane.b32.xlu0 %v1769, 32
      %v3343 = vpop.permute.xlu0 %3342
      %3344 = vrot.lane.b32.xlu0 %v1770, 32
      %v3345 = vpop.permute.xlu0 %3344
      %3346 = vrot.lane.b32.xlu0 %v1771, 32
      %v3347 = vpop.permute.xlu0 %3346
      %3348 = vrot.lane.b32.xlu0 %v1772, 32
      %v3349 = vpop.permute.xlu0 %3348
      %3350 = vrot.lane.b32.xlu0 %v1773, 32
      %v3351 = vpop.permute.xlu0 %3350
      %3352 = vrot.lane.b32.xlu0 %v1774, 32
      %v3353 = vpop.permute.xlu0 %3352
      %3354 = vrot.lane.b32.xlu0 %v1775, 32
      %v3355 = vpop.permute.xlu0 %3354
      %3356 = vrot.lane.b32.xlu0 %v1776, 32
      %v3357 = vpop.permute.xlu0 %3356
      %3358 = vrot.lane.b32.xlu0 %v1777, 32
      %v3359 = vpop.permute.xlu0 %3358
      %3360 = vrot.lane.b32.xlu0 %v1778, 32
      %v3361 = vpop.permute.xlu0 %3360
      %3362 = vrot.lane.b32.xlu0 %v1779, 32
      %v3363 = vpop.permute.xlu0 %3362
      %3364 = vrot.lane.b32.xlu0 %v1780, 32
      %v3365 = vpop.permute.xlu0 %3364
      %3366 = vrot.lane.b32.xlu0 %v1781, 32
      %v3367 = vpop.permute.xlu0 %3366
      %3368 = vrot.lane.b32.xlu0 %v1782, 32
      %v3369 = vpop.permute.xlu0 %3368
      %3370 = vrot.lane.b32.xlu0 %v1783, 32
      %v3371 = vpop.permute.xlu0 %3370
      %3372 = vrot.lane.b32.xlu0 %v1784, 32
      %v3373 = vpop.permute.xlu0 %3372
      %3374 = vrot.lane.b32.xlu0 %v1785, 32
      %v3375 = vpop.permute.xlu0 %3374
      %3376 = vrot.lane.b32.xlu0 %v1786, 32
      %v3377 = vpop.permute.xlu0 %3376
      %3378 = vrot.lane.b32.xlu0 %v1787, 32
      %v3379 = vpop.permute.xlu0 %3378
      %3380 = vrot.lane.b32.xlu0 %v1788, 32
      %v3381 = vpop.permute.xlu0 %3380
      %3382 = vrot.lane.b32.xlu0 %v1789, 32
      %v3383 = vpop.permute.xlu0 %3382
      %3384 = vrot.lane.b32.xlu0 %v1790, 32
      %v3385 = vpop.permute.xlu0 %3384
      %3386 = vrot.lane.b32.xlu0 %v1791, 32
      %v3387 = vpop.permute.xlu0 %3386
      %3388 = vrot.lane.b32.xlu0 %v1792, 32
      %v3389 = vpop.permute.xlu0 %3388
      %3390 = vrot.lane.b32.xlu0 %v1793, 32
      %v3391 = vpop.permute.xlu0 %3390
      %3392 = vrot.lane.b32.xlu0 %v1794, 32
      %v3393 = vpop.permute.xlu0 %3392
      %3394 = vrot.lane.b32.xlu0 %v1795, 32
      %v3395 = vpop.permute.xlu0 %3394
      %3396 = vrot.lane.b32.xlu0 %v1796, 32
      %v3397 = vpop.permute.xlu0 %3396
      %3398 = vrot.lane.b32.xlu0 %v1797, 32
      %v3399 = vpop.permute.xlu0 %3398
      %3400 = vrot.lane.b32.xlu0 %v1798, 32
      %v3401 = vpop.permute.xlu0 %3400
      %3402 = vrot.lane.b32.xlu0 %v1799, 32
      %v3403 = vpop.permute.xlu0 %3402
      %3404 = vrot.lane.b32.xlu0 %v1800, 32
      %v3405 = vpop.permute.xlu0 %3404
      %3406 = vrot.lane.b32.xlu0 %v1801, 32
      %v3407 = vpop.permute.xlu0 %3406
      %3408 = vrot.lane.b32.xlu0 %v1802, 32
      %v3409 = vpop.permute.xlu0 %3408
      %3410 = vrot.lane.b32.xlu0 %v1803, 32
      %v3411 = vpop.permute.xlu0 %3410
      %3412 = vrot.lane.b32.xlu0 %v1804, 32
      %v3413 = vpop.permute.xlu0 %3412
      %3414 = vrot.lane.b32.xlu0 %v1805, 32
      %v3415 = vpop.permute.xlu0 %3414
      %3416 = vrot.lane.b32.xlu0 %v1806, 32
      %v3417 = vpop.permute.xlu0 %3416
      %3418 = vrot.lane.b32.xlu0 %v1807, 32
      %v3419 = vpop.permute.xlu0 %3418
      %3420 = vrot.lane.b32.xlu0 %v1808, 32
      %v3421 = vpop.permute.xlu0 %3420
      %3422 = vrot.lane.b32.xlu0 %v1809, 32
      %v3423 = vpop.permute.xlu0 %3422
      %3424 = vrot.lane.b32.xlu0 %v1810, 32
      %v3425 = vpop.permute.xlu0 %3424
      %3426 = vrot.lane.b32.xlu0 %v1971, 32
      %v3427 = vpop.permute.xlu0 %3426
      %3428 = vrot.lane.b32.xlu0 %v1972, 32
      %v3429 = vpop.permute.xlu0 %3428
      %3430 = vrot.lane.b32.xlu0 %v1973, 32
      %v3431 = vpop.permute.xlu0 %3430
      %3432 = vrot.lane.b32.xlu0 %v1974, 32
      %v3433 = vpop.permute.xlu0 %3432
      %3434 = vrot.lane.b32.xlu0 %v1975, 32
      %v3435 = vpop.permute.xlu0 %3434
      %v3486 = vsel %vm815, %v1661, %v2027
      %v3487 = vsel %vm815, %v1662, %v2029
      %v3488 = vsel %vm815, %v1663, %v2031
      %v3489 = vsel %vm815, %v1664, %v2033
      %v3490 = vsel %vm815, %v1665, %v2035
      %v3491 = vsel %vm815, %v1666, %v2037
      %v3492 = vsel %vm815, %v1667, %v2039
      %v3493 = vsel %vm815, %v1668, %v2041
      %v3494 = vsel %vm815, %v1669, %v2043
      %v3495 = vsel %vm815, %v1670, %v2045
      %v3496 = vsel %vm815, %v1671, %v2047
      %v3497 = vsel %vm815, %v1672, %v2049
      %v3498 = vsel %vm815, %v1673, %v2051
      %v3499 = vsel %vm815, %v1674, %v2053
      %v3500 = vsel %vm815, %v1675, %v2055
      %v3501 = vsel %vm815, %v1676, %v2057
      %v3502 = vsel %vm815, %v1677, %v2059
      %v3503 = vsel %vm815, %v1678, %v2061
      %v3504 = vsel %vm815, %v1679, %v2063
      %v3505 = vsel %vm815, %v1680, %v2065
      %v3506 = vsel %vm815, %v1681, %v2067
      %v3507 = vsel %vm815, %v1682, %v2069
      %v3508 = vsel %vm815, %v1683, %v2071
      %v3509 = vsel %vm815, %v1684, %v2073
      %v3510 = vsel %vm815, %v1685, %v2075
      %v3511 = vsel %vm815, %v1686, %v2077
      %v3512 = vsel %vm815, %v1687, %v2079
      %v3513 = vsel %vm815, %v1688, %v2081
      %v3514 = vsel %vm815, %v1689, %v2083
      %v3515 = vsel %vm815, %v1690, %v2085
      %v3516 = vsel %vm815, %v1691, %v2087
      %v3517 = vsel %vm815, %v1692, %v2089
      %v3518 = vsel %vm815, %v1693, %v2091
      %v3519 = vsel %vm815, %v1694, %v2093
      %v3520 = vsel %vm815, %v1695, %v2095
      %v3521 = vsel %vm815, %v1696, %v2097
      %v3522 = vsel %vm815, %v1697, %v2099
      %v3523 = vsel %vm815, %v1698, %v2101
      %v3524 = vsel %vm815, %v1699, %v2103
      %v3525 = vsel %vm815, %v1700, %v2105
      %v3526 = vsel %vm815, %v1701, %v2107
      %v3527 = vsel %vm815, %v1702, %v2109
      %v3528 = vsel %vm815, %v1703, %v2111
      %v3529 = vsel %vm815, %v1704, %v2113
      %v3530 = vsel %vm815, %v1705, %v2115
      %v3531 = vsel %vm815, %v1706, %v2117
      %v3532 = vsel %vm815, %v1707, %v2119
      %v3533 = vsel %vm815, %v1708, %v2121
      %v3534 = vsel %vm815, %v1709, %v2123
      %v3535 = vsel %vm815, %v1710, %v2125
      %vm3536 = vcmask 64512
      %v3537 = vsel %vm3536, %v3486, %v2227
      %v3538 = vsel %vm3536, %v3487, %v2229
      %v3539 = vsel %vm3536, %v3488, %v2231
      %v3540 = vsel %vm3536, %v3489, %v2233
      %v3541 = vsel %vm3536, %v3490, %v2235
      %v3542 = vsel %vm3536, %v3491, %v2237
      %v3543 = vsel %vm3536, %v3492, %v2239
      %v3544 = vsel %vm3536, %v3493, %v2241
      %v3545 = vsel %vm3536, %v3494, %v2243
      %v3546 = vsel %vm3536, %v3495, %v2245
      %v3547 = vsel %vm3536, %v3496, %v2247
      %v3548 = vsel %vm3536, %v3497, %v2249
      %v3549 = vsel %vm3536, %v3498, %v2251
      %v3550 = vsel %vm3536, %v3499, %v2253
      %v3551 = vsel %vm3536, %v3500, %v2255
      %v3552 = vsel %vm3536, %v3501, %v2257
      %v3553 = vsel %vm3536, %v3502, %v2259
      %v3554 = vsel %vm3536, %v3503, %v2261
      %v3555 = vsel %vm3536, %v3504, %v2263
      %v3556 = vsel %vm3536, %v3505, %v2265
      %v3557 = vsel %vm3536, %v3506, %v2267
      %v3558 = vsel %vm3536, %v3507, %v2269
      %v3559 = vsel %vm3536, %v3508, %v2271
      %v3560 = vsel %vm3536, %v3509, %v2273
      %v3561 = vsel %vm3536, %v3510, %v2275
      %v3562 = vsel %vm3536, %v3511, %v2277
      %v3563 = vsel %vm3536, %v3512, %v2279
      %v3564 = vsel %vm3536, %v3513, %v2281
      %v3565 = vsel %vm3536, %v3514, %v2283
      %v3566 = vsel %vm3536, %v3515, %v2285
      %v3567 = vsel %vm3536, %v3516, %v2287
      %v3568 = vsel %vm3536, %v3517, %v2289
      %v3569 = vsel %vm3536, %v3518, %v2291
      %v3570 = vsel %vm3536, %v3519, %v2293
      %v3571 = vsel %vm3536, %v3520, %v2295
      %v3572 = vsel %vm3536, %v3521, %v2297
      %v3573 = vsel %vm3536, %v3522, %v2299
      %v3574 = vsel %vm3536, %v3523, %v2301
      %v3575 = vsel %vm3536, %v3524, %v2303
      %v3576 = vsel %vm3536, %v3525, %v2305
      %v3577 = vsel %vm3536, %v3526, %v2307
      %v3578 = vsel %vm3536, %v3527, %v2309
      %v3579 = vsel %vm3536, %v3528, %v2311
      %v3580 = vsel %vm3536, %v3529, %v2313
      %v3581 = vsel %vm3536, %v3530, %v2315
      %v3582 = vsel %vm3536, %v3531, %v2317
      %v3583 = vsel %vm3536, %v3532, %v2319
      %v3584 = vsel %vm3536, %v3533, %v2321
      %v3585 = vsel %vm3536, %v3534, %v2323
      %v3586 = vsel %vm3536, %v3535, %v2325
      %vm3587 = vcmask 97280
      %v3588 = vsel %vm3587, %v3537, %v2427
      %v3589 = vsel %vm3587, %v3538, %v2429
      %v3590 = vsel %vm3587, %v3539, %v2431
      %v3591 = vsel %vm3587, %v3540, %v2433
      %v3592 = vsel %vm3587, %v3541, %v2435
      %v3593 = vsel %vm3587, %v3542, %v2437
      %v3594 = vsel %vm3587, %v3543, %v2439
      %v3595 = vsel %vm3587, %v3544, %v2441
      %v3596 = vsel %vm3587, %v3545, %v2443
      %v3597 = vsel %vm3587, %v3546, %v2445
      %v3598 = vsel %vm3587, %v3547, %v2447
      %v3599 = vsel %vm3587, %v3548, %v2449
      %v3600 = vsel %vm3587, %v3549, %v2451
      %v3601 = vsel %vm3587, %v3550, %v2453
      %v3602 = vsel %vm3587, %v3551, %v2455
      %v3603 = vsel %vm3587, %v3552, %v2457
      %v3604 = vsel %vm3587, %v3553, %v2459
      %v3605 = vsel %vm3587, %v3554, %v2461
      %v3606 = vsel %vm3587, %v3555, %v2463
      %v3607 = vsel %vm3587, %v3556, %v2465
      %v3608 = vsel %vm3587, %v3557, %v2467
      %v3609 = vsel %vm3587, %v3558, %v2469
      %v3610 = vsel %vm3587, %v3559, %v2471
      %v3611 = vsel %vm3587, %v3560, %v2473
      %v3612 = vsel %vm3587, %v3561, %v2475
      %v3613 = vsel %vm3587, %v3562, %v2477
      %v3614 = vsel %vm3587, %v3563, %v2479
      %v3615 = vsel %vm3587, %v3564, %v2481
      %v3616 = vsel %vm3587, %v3565, %v2483
      %v3617 = vsel %vm3587, %v3566, %v2485
      %v3618 = vsel %vm3587, %v3567, %v2487
      %v3619 = vsel %vm3587, %v3568, %v2489
      %v3620 = vsel %vm3587, %v3569, %v2491
      %v3621 = vsel %vm3587, %v3570, %v2493
      %v3622 = vsel %vm3587, %v3571, %v2495
      %v3623 = vsel %vm3587, %v3572, %v2497
      %v3624 = vsel %vm3587, %v3573, %v2499
      %v3625 = vsel %vm3587, %v3574, %v2501
      %v3626 = vsel %vm3587, %v3575, %v2503
      %v3627 = vsel %vm3587, %v3576, %v2505
      %v3628 = vsel %vm3587, %v3577, %v2507
      %v3629 = vsel %vm3587, %v3578, %v2509
      %v3630 = vsel %vm3587, %v3579, %v2511
      %v3631 = vsel %vm3587, %v3580, %v2513
      %v3632 = vsel %vm3587, %v3581, %v2515
      %v3633 = vsel %vm3587, %v3582, %v2517
      %v3634 = vsel %vm3587, %v3583, %v2519
      %v3635 = vsel %vm3587, %v3584, %v2521
      %v3636 = vsel %vm3587, %v3585, %v2523
      %v3637 = vsel %vm3587, %v3586, %v2525
      %vm3638 = vcmask 130048
      %v3639 = vsel %vm3638, %v3588, %v2627
      %v3640 = vsel %vm3638, %v3589, %v2629
      %v3641 = vsel %vm3638, %v3590, %v2631
      %v3642 = vsel %vm3638, %v3591, %v2633
      %v3643 = vsel %vm3638, %v3592, %v2635
      %v3644 = vsel %vm3638, %v3593, %v2637
      %v3645 = vsel %vm3638, %v3594, %v2639
      %v3646 = vsel %vm3638, %v3595, %v2641
      %v3647 = vsel %vm3638, %v3596, %v2643
      %v3648 = vsel %vm3638, %v3597, %v2645
      %v3649 = vsel %vm3638, %v3598, %v2647
      %v3650 = vsel %vm3638, %v3599, %v2649
      %v3651 = vsel %vm3638, %v3600, %v2651
      %v3652 = vsel %vm3638, %v3601, %v2653
      %v3653 = vsel %vm3638, %v3602, %v2655
      %v3654 = vsel %vm3638, %v3603, %v2657
      %v3655 = vsel %vm3638, %v3604, %v2659
      %v3656 = vsel %vm3638, %v3605, %v2661
      %v3657 = vsel %vm3638, %v3606, %v2663
      %v3658 = vsel %vm3638, %v3607, %v2665
      %v3659 = vsel %vm3638, %v3608, %v2667
      %v3660 = vsel %vm3638, %v3609, %v2669
      %v3661 = vsel %vm3638, %v3610, %v2671
      %v3662 = vsel %vm3638, %v3611, %v2673
      %v3663 = vsel %vm3638, %v3612, %v2675
      %v3664 = vsel %vm3638, %v3613, %v2677
      %v3665 = vsel %vm3638, %v3614, %v2679
      %v3666 = vsel %vm3638, %v3615, %v2681
      %v3667 = vsel %vm3638, %v3616, %v2683
      %v3668 = vsel %vm3638, %v3617, %v2685
      %v3669 = vsel %vm3638, %v3618, %v2687
      %v3670 = vsel %vm3638, %v3619, %v2689
      %v3671 = vsel %vm3638, %v3620, %v2691
      %v3672 = vsel %vm3638, %v3621, %v2693
      %v3673 = vsel %vm3638, %v3622, %v2695
      %v3674 = vsel %vm3638, %v3623, %v2697
      %v3675 = vsel %vm3638, %v3624, %v2699
      %v3676 = vsel %vm3638, %v3625, %v2701
      %v3677 = vsel %vm3638, %v3626, %v2703
      %v3678 = vsel %vm3638, %v3627, %v2705
      %v3679 = vsel %vm3638, %v3628, %v2707
      %v3680 = vsel %vm3638, %v3629, %v2709
      %v3681 = vsel %vm3638, %v3630, %v2711
      %v3682 = vsel %vm3638, %v3631, %v2713
      %v3683 = vsel %vm3638, %v3632, %v2715
      %v3684 = vsel %vm3638, %v3633, %v2717
      %v3685 = vsel %vm3638, %v3634, %v2719
      %v3686 = vsel %vm3638, %v3635, %v2721
      %v3687 = vsel %vm3638, %v3636, %v2723
      %v3688 = vsel %vm3638, %v3637, %v2725
      %vm3689 = vcmask 162816
      %v3690 = vsel %vm3689, %v3639, %v2827
      %v3691 = vsel %vm3689, %v3640, %v2829
      %v3692 = vsel %vm3689, %v3641, %v2831
      %v3693 = vsel %vm3689, %v3642, %v2833
      %v3694 = vsel %vm3689, %v3643, %v2835
      %v3695 = vsel %vm3689, %v3644, %v2837
      %v3696 = vsel %vm3689, %v3645, %v2839
      %v3697 = vsel %vm3689, %v3646, %v2841
      %v3698 = vsel %vm3689, %v3647, %v2843
      %v3699 = vsel %vm3689, %v3648, %v2845
      %v3700 = vsel %vm3689, %v3649, %v2847
      %v3701 = vsel %vm3689, %v3650, %v2849
      %v3702 = vsel %vm3689, %v3651, %v2851
      %v3703 = vsel %vm3689, %v3652, %v2853
      %v3704 = vsel %vm3689, %v3653, %v2855
      %v3705 = vsel %vm3689, %v3654, %v2857
      %v3706 = vsel %vm3689, %v3655, %v2859
      %v3707 = vsel %vm3689, %v3656, %v2861
      %v3708 = vsel %vm3689, %v3657, %v2863
      %v3709 = vsel %vm3689, %v3658, %v2865
      %v3710 = vsel %vm3689, %v3659, %v2867
      %v3711 = vsel %vm3689, %v3660, %v2869
      %v3712 = vsel %vm3689, %v3661, %v2871
      %v3713 = vsel %vm3689, %v3662, %v2873
      %v3714 = vsel %vm3689, %v3663, %v2875
      %v3715 = vsel %vm3689, %v3664, %v2877
      %v3716 = vsel %vm3689, %v3665, %v2879
      %v3717 = vsel %vm3689, %v3666, %v2881
      %v3718 = vsel %vm3689, %v3667, %v2883
      %v3719 = vsel %vm3689, %v3668, %v2885
      %v3720 = vsel %vm3689, %v3669, %v2887
      %v3721 = vsel %vm3689, %v3670, %v2889
      %v3722 = vsel %vm3689, %v3671, %v2891
      %v3723 = vsel %vm3689, %v3672, %v2893
      %v3724 = vsel %vm3689, %v3673, %v2895
      %v3725 = vsel %vm3689, %v3674, %v2897
      %v3726 = vsel %vm3689, %v3675, %v2899
      %v3727 = vsel %vm3689, %v3676, %v2901
      %v3728 = vsel %vm3689, %v3677, %v2903
      %v3729 = vsel %vm3689, %v3678, %v2905
      %v3730 = vsel %vm3689, %v3679, %v2907
      %v3731 = vsel %vm3689, %v3680, %v2909
      %v3732 = vsel %vm3689, %v3681, %v2911
      %v3733 = vsel %vm3689, %v3682, %v2913
      %v3734 = vsel %vm3689, %v3683, %v2915
      %v3735 = vsel %vm3689, %v3684, %v2917
      %v3736 = vsel %vm3689, %v3685, %v2919
      %v3737 = vsel %vm3689, %v3686, %v2921
      %v3738 = vsel %vm3689, %v3687, %v2923
      %v3739 = vsel %vm3689, %v3688, %v2925
      %vm3740 = vcmask 195584
      %v3741 = vsel %vm3740, %v3690, %v3027
      %v3742 = vsel %vm3740, %v3691, %v3029
      %v3743 = vsel %vm3740, %v3692, %v3031
      %v3744 = vsel %vm3740, %v3693, %v3033
      %v3745 = vsel %vm3740, %v3694, %v3035
      %v3746 = vsel %vm3740, %v3695, %v3037
      %v3747 = vsel %vm3740, %v3696, %v3039
      %v3748 = vsel %vm3740, %v3697, %v3041
      %v3749 = vsel %vm3740, %v3698, %v3043
      %v3750 = vsel %vm3740, %v3699, %v3045
      %v3751 = vsel %vm3740, %v3700, %v3047
      %v3752 = vsel %vm3740, %v3701, %v3049
      %v3753 = vsel %vm3740, %v3702, %v3051
      %v3754 = vsel %vm3740, %v3703, %v3053
      %v3755 = vsel %vm3740, %v3704, %v3055
      %v3756 = vsel %vm3740, %v3705, %v3057
      %v3757 = vsel %vm3740, %v3706, %v3059
      %v3758 = vsel %vm3740, %v3707, %v3061
      %v3759 = vsel %vm3740, %v3708, %v3063
      %v3760 = vsel %vm3740, %v3709, %v3065
      %v3761 = vsel %vm3740, %v3710, %v3067
      %v3762 = vsel %vm3740, %v3711, %v3069
      %v3763 = vsel %vm3740, %v3712, %v3071
      %v3764 = vsel %vm3740, %v3713, %v3073
      %v3765 = vsel %vm3740, %v3714, %v3075
      %v3766 = vsel %vm3740, %v3715, %v3077
      %v3767 = vsel %vm3740, %v3716, %v3079
      %v3768 = vsel %vm3740, %v3717, %v3081
      %v3769 = vsel %vm3740, %v3718, %v3083
      %v3770 = vsel %vm3740, %v3719, %v3085
      %v3771 = vsel %vm3740, %v3720, %v3087
      %v3772 = vsel %vm3740, %v3721, %v3089
      %v3773 = vsel %vm3740, %v3722, %v3091
      %v3774 = vsel %vm3740, %v3723, %v3093
      %v3775 = vsel %vm3740, %v3724, %v3095
      %v3776 = vsel %vm3740, %v3725, %v3097
      %v3777 = vsel %vm3740, %v3726, %v3099
      %v3778 = vsel %vm3740, %v3727, %v3101
      %v3779 = vsel %vm3740, %v3728, %v3103
      %v3780 = vsel %vm3740, %v3729, %v3105
      %v3781 = vsel %vm3740, %v3730, %v3107
      %v3782 = vsel %vm3740, %v3731, %v3109
      %v3783 = vsel %vm3740, %v3732, %v3111
      %v3784 = vsel %vm3740, %v3733, %v3113
      %v3785 = vsel %vm3740, %v3734, %v3115
      %v3786 = vsel %vm3740, %v3735, %v3117
      %v3787 = vsel %vm3740, %v3736, %v3119
      %v3788 = vsel %vm3740, %v3737, %v3121
      %v3789 = vsel %vm3740, %v3738, %v3123
      %v3790 = vsel %vm3740, %v3739, %v3125
      %vm3791 = vcmask 228352
      %v3792 = vsel %vm3791, %v3741, %v3182
      %v3793 = vsel %vm3791, %v3742, %v3184
      %v3794 = vsel %vm3791, %v3743, %v3186
      %v3795 = vsel %vm3791, %v3744, %v3188
      %v3796 = vsel %vm3791, %v3745, %v3190
      %v3797 = vsel %vm3791, %v3746, %v3192
      %v3798 = vsel %vm3791, %v3747, %v3194
      %v3799 = vsel %vm3791, %v3748, %v3196
      %v3800 = vsel %vm3791, %v3749, %v3198
      %v3801 = vsel %vm3791, %v3750, %v3200
      %v3802 = vsel %vm3791, %v3751, %v3202
      %v3803 = vsel %vm3791, %v3752, %v3204
      %v3804 = vsel %vm3791, %v3753, %v3206
      %v3805 = vsel %vm3791, %v3754, %v3208
      %v3806 = vsel %vm3791, %v3755, %v3210
      %v3807 = vsel %vm3791, %v3756, %v3212
      %v3808 = vsel %vm3791, %v3757, %v3214
      %v3809 = vsel %vm3791, %v3758, %v3216
      %v3810 = vsel %vm3791, %v3759, %v3218
      %v3811 = vsel %vm3791, %v3760, %v3220
      %v3812 = vsel %vm3791, %v3761, %v3222
      %v3813 = vsel %vm3791, %v3762, %v3224
      %v3814 = vsel %vm3791, %v3763, %v3226
      %v3815 = vsel %vm3791, %v3764, %v3228
      %v3816 = vsel %vm3791, %v3765, %v3230
      %v3817 = vsel %vm3791, %v3766, %v3232
      %v3818 = vsel %vm3791, %v3767, %v3234
      %v3819 = vsel %vm3791, %v3768, %v3236
      %v3820 = vsel %vm3791, %v3769, %v3238
      %v3821 = vsel %vm3791, %v3770, %v3240
      %v3822 = vsel %vm3791, %v3771, %v3242
      %v3823 = vsel %vm3791, %v3772, %v3244
      %v3824 = vsel %vm3791, %v3773, %v3246
      %v3825 = vsel %vm3791, %v3774, %v3248
      %v3826 = vsel %vm3791, %v3775, %v3250
      %v3827 = vsel %vm3791, %v3776, %v3252
      %v3828 = vsel %vm3791, %v3777, %v3254
      %v3829 = vsel %vm3791, %v3778, %v3256
      %v3830 = vsel %vm3791, %v3779, %v3258
      %v3831 = vsel %vm3791, %v3780, %v3260
      %v3832 = vsel %vm3791, %v3781, %v3262
      %v3833 = vsel %vm3791, %v3782, %v3264
      %v3834 = vsel %vm3791, %v3783, %v3266
      %v3835 = vsel %vm3791, %v3784, %v3268
      %v3836 = vsel %vm3791, %v3785, %v3270
      %v3837 = vsel %vm3791, %v3786, %v3272
      %v3838 = vsel %vm3791, %v3787, %v3274
      %v3839 = vsel %vm3791, %v3788, %v3276
      %v3840 = vsel %vm3791, %v3789, %v3278
      %v3841 = vsel %vm3791, %v3790, %v3280
      %vm3842 = vcmask 261120
      %v3843 = vsel %vm3842, %v3792, %v3337
      %v3844 = vsel %vm3842, %v3793, %v3339
      %v3845 = vsel %vm3842, %v3794, %v3341
      %v3846 = vsel %vm3842, %v3795, %v3343
      %v3847 = vsel %vm3842, %v3796, %v3345
      %v3848 = vsel %vm3842, %v3797, %v3347
      %v3849 = vsel %vm3842, %v3798, %v3349
      %v3850 = vsel %vm3842, %v3799, %v3351
      %v3851 = vsel %vm3842, %v3800, %v3353
      %v3852 = vsel %vm3842, %v3801, %v3355
      %v3853 = vsel %vm3842, %v3802, %v3357
      %v3854 = vsel %vm3842, %v3803, %v3359
      %v3855 = vsel %vm3842, %v3804, %v3361
      %v3856 = vsel %vm3842, %v3805, %v3363
      %v3857 = vsel %vm3842, %v3806, %v3365
      %v3858 = vsel %vm3842, %v3807, %v3367
      %v3859 = vsel %vm3842, %v3808, %v3369
      %v3860 = vsel %vm3842, %v3809, %v3371
      %v3861 = vsel %vm3842, %v3810, %v3373
      %v3862 = vsel %vm3842, %v3811, %v3375
      %v3863 = vsel %vm3842, %v3812, %v3377
      %v3864 = vsel %vm3842, %v3813, %v3379
      %v3865 = vsel %vm3842, %v3814, %v3381
      %v3866 = vsel %vm3842, %v3815, %v3383
      %v3867 = vsel %vm3842, %v3816, %v3385
      %v3868 = vsel %vm3842, %v3817, %v3387
      %v3869 = vsel %vm3842, %v3818, %v3389
      %v3870 = vsel %vm3842, %v3819, %v3391
      %v3871 = vsel %vm3842, %v3820, %v3393
      %v3872 = vsel %vm3842, %v3821, %v3395
      %v3873 = vsel %vm3842, %v3822, %v3397
      %v3874 = vsel %vm3842, %v3823, %v3399
      %v3875 = vsel %vm3842, %v3824, %v3401
      %v3876 = vsel %vm3842, %v3825, %v3403
      %v3877 = vsel %vm3842, %v3826, %v3405
      %v3878 = vsel %vm3842, %v3827, %v3407
      %v3879 = vsel %vm3842, %v3828, %v3409
      %v3880 = vsel %vm3842, %v3829, %v3411
      %v3881 = vsel %vm3842, %v3830, %v3413
      %v3882 = vsel %vm3842, %v3831, %v3415
      %v3883 = vsel %vm3842, %v3832, %v3417
      %v3884 = vsel %vm3842, %v3833, %v3419
      %v3885 = vsel %vm3842, %v3834, %v3421
      %v3886 = vsel %vm3842, %v3835, %v3423
      %v3887 = vsel %vm3842, %v3836, %v3425
      %v3888 = vsel %vm3842, %v3837, %v3427
      %v3889 = vsel %vm3842, %v3838, %v3429
      %v3890 = vsel %vm3842, %v3839, %v3431
      %v3891 = vsel %vm3842, %v3840, %v3433
      %v3892 = vsel %vm3842, %v3841, %v3435
      %v3893 = vld [vmem:[%s4] sm:$0xff]
      %v3894 = vld [vmem:[%s4 + $0x8] sm:$0xff]
      %v3895 = vld [vmem:[%s4 + $0x10] sm:$0xff]
      %v3896 = vld [vmem:[%s4 + $0x18] sm:$0xff]
      %v3897 = vld [vmem:[%s4 + $0x20] sm:$0xf]
      %v3898 = vld [vmem:[%s5] sm:$0x1]
      %v3900 = vperm.slane %v3898, 0
      %vm3902 = vcmask 293888
      %v3904 = vsel %vm3902, %v3843, 0
      %v3907 = vsel %vm3902, %v3844, 0
      %v3910 = vsel %vm3902, %v3845, 0
      %v3913 = vsel %vm3902, %v3846, 0
      %v3916 = vsel %vm3902, %v3847, 0
      %v3919 = vsel %vm3902, %v3848, 0
      %v3922 = vsel %vm3902, %v3849, 0
      %v3925 = vsel %vm3902, %v3850, 0
      %v3928 = vsel %vm3902, %v3851, 0
      %v3931 = vsel %vm3902, %v3852, 0
      %v3934 = vsel %vm3902, %v3853, 0
      %v3937 = vsel %vm3902, %v3854, 0
      %v3940 = vsel %vm3902, %v3855, 0
      %v3943 = vsel %vm3902, %v3856, 0
      %v3946 = vsel %vm3902, %v3857, 0
      %v3949 = vsel %vm3902, %v3858, 0
      %v3952 = vsel %vm3902, %v3859, 0
      %v3955 = vsel %vm3902, %v3860, 0
      %v3958 = vsel %vm3902, %v3861, 0
      %v3961 = vsel %vm3902, %v3862, 0
      %v3964 = vsel %vm3902, %v3863, 0
      %v3967 = vsel %vm3902, %v3864, 0
      %v3970 = vsel %vm3902, %v3865, 0
      %v3973 = vsel %vm3902, %v3866, 0
      %v3976 = vsel %vm3902, %v3867, 0
      %v3979 = vsel %vm3902, %v3868, 0
      %v3982 = vsel %vm3902, %v3869, 0
      %v3985 = vsel %vm3902, %v3870, 0
      %v3988 = vsel %vm3902, %v3871, 0
      %v3991 = vsel %vm3902, %v3872, 0
      %v3994 = vsel %vm3902, %v3873, 0
      %v3997 = vsel %vm3902, %v3874, 0
      %v4000 = vsel %vm3902, %v3875, 0
      %v4003 = vsel %vm3902, %v3876, 0
      %v4006 = vsel %vm3902, %v3877, 0
      %v4009 = vsel %vm3902, %v3878, 0
      %v4012 = vsel %vm3902, %v3879, 0
      %v4015 = vsel %vm3902, %v3880, 0
      %v4018 = vsel %vm3902, %v3881, 0
      %v4021 = vsel %vm3902, %v3882, 0
      %v4024 = vsel %vm3902, %v3883, 0
      %v4027 = vsel %vm3902, %v3884, 0
      %v4030 = vsel %vm3902, %v3885, 0
      %v4033 = vsel %vm3902, %v3886, 0
      %v4036 = vsel %vm3902, %v3887, 0
      %v4039 = vsel %vm3902, %v3888, 0
      %v4042 = vsel %vm3902, %v3889, 0
      %v4045 = vsel %vm3902, %v3890, 0
      %v4048 = vsel %vm3902, %v3891, 0
      %v4051 = vsel %vm3902, %v3892, 0
      %v4054 = vsel %vm966, %v3897, 0
      %4056 = vmatpush.msra.mxu0 0.0
      %4057 = vmatpush.msra.mxu0 0.0
      %4058 = vmatpush.msra.mxu0 0.0
      %4059 = vmatpush.msra.mxu0 0.0
      %4060 = vmatpush.msra.mxu0 0.0
      %4061 = vmatpush.msra.mxu0 0.0
      %4062 = vmatpush.msra.mxu0 0.0
      %4063 = vmatpush.msra.mxu0 0.0
      %4064 = vmatpush.msra.mxu0 0.0
      %4065 = vmatpush.msra.mxu0 0.0
      %4066 = vmatpush.msra.mxu0 0.0
      %4067 = vmatpush.msra.mxu0 %v4054
      %4068 = vmatpush.msra.mxu0 %v3896
      %4069 = vmatpush.msra.mxu0 %v3895
      %4070 = vmatpush.msra.mxu0 %v3894
      %4071 = vmatpush.msra.mxu0 %v3893
      %4072 = vmatmul.f32.gmra.mxu0 %v3904
      %v4073 = vpop.f32.mrf.mxu0
      %v4074 = vadd.f32 %v3900, %v4073
      %4075 = vmatmul.f32.gmra.mxu0 %v3907
      %v4076 = vpop.f32.mrf.mxu0
      %v4077 = vadd.f32 %v3900, %v4076
      %4078 = vmatmul.f32.gmra.mxu0 %v3910
      %v4079 = vpop.f32.mrf.mxu0
      %v4080 = vadd.f32 %v3900, %v4079
      %4081 = vmatmul.f32.gmra.mxu0 %v3913
      %v4082 = vpop.f32.mrf.mxu0
      %v4083 = vadd.f32 %v3900, %v4082
      %4084 = vmatmul.f32.gmra.mxu0 %v3916
      %v4085 = vpop.f32.mrf.mxu0
      %v4086 = vadd.f32 %v3900, %v4085
      %4087 = vmatmul.f32.gmra.mxu0 %v3919
      %v4088 = vpop.f32.mrf.mxu0
      %v4089 = vadd.f32 %v3900, %v4088
      %4090 = vmatmul.f32.gmra.mxu0 %v3922
      %v4091 = vpop.f32.mrf.mxu0
      %v4092 = vadd.f32 %v3900, %v4091
      %4093 = vmatmul.f32.gmra.mxu0 %v3925
      %v4094 = vpop.f32.mrf.mxu0
      %v4095 = vadd.f32 %v3900, %v4094
      %4096 = vmatmul.f32.gmra.mxu0 %v3928
      %v4097 = vpop.f32.mrf.mxu0
      %v4098 = vadd.f32 %v3900, %v4097
      %4099 = vmatmul.f32.gmra.mxu0 %v3931
      %v4100 = vpop.f32.mrf.mxu0
      %v4101 = vadd.f32 %v3900, %v4100
      %4102 = vmatmul.f32.gmra.mxu0 %v3934
      %v4103 = vpop.f32.mrf.mxu0
      %v4104 = vadd.f32 %v3900, %v4103
      %4105 = vmatmul.f32.gmra.mxu0 %v3937
      %v4106 = vpop.f32.mrf.mxu0
      %v4107 = vadd.f32 %v3900, %v4106
      %4108 = vmatmul.f32.gmra.mxu0 %v3940
      %v4109 = vpop.f32.mrf.mxu0
      %v4110 = vadd.f32 %v3900, %v4109
      %4111 = vmatmul.f32.gmra.mxu0 %v3943
      %v4112 = vpop.f32.mrf.mxu0
      %v4113 = vadd.f32 %v3900, %v4112
      %4114 = vmatmul.f32.gmra.mxu0 %v3946
      %v4115 = vpop.f32.mrf.mxu0
      %v4116 = vadd.f32 %v3900, %v4115
      %4117 = vmatmul.f32.gmra.mxu0 %v3949
      %v4118 = vpop.f32.mrf.mxu0
      %v4119 = vadd.f32 %v3900, %v4118
      %4120 = vmatmul.f32.gmra.mxu0 %v3952
      %v4121 = vpop.f32.mrf.mxu0
      %v4122 = vadd.f32 %v3900, %v4121
      %4123 = vmatmul.f32.gmra.mxu0 %v3955
      %v4124 = vpop.f32.mrf.mxu0
      %v4125 = vadd.f32 %v3900, %v4124
      %4126 = vmatmul.f32.gmra.mxu0 %v3958
      %v4127 = vpop.f32.mrf.mxu0
      %v4128 = vadd.f32 %v3900, %v4127
      %4129 = vmatmul.f32.gmra.mxu0 %v3961
      %v4130 = vpop.f32.mrf.mxu0
      %v4131 = vadd.f32 %v3900, %v4130
      %4132 = vmatmul.f32.gmra.mxu0 %v3964
      %v4133 = vpop.f32.mrf.mxu0
      %v4134 = vadd.f32 %v3900, %v4133
      %4135 = vmatmul.f32.gmra.mxu0 %v3967
      %v4136 = vpop.f32.mrf.mxu0
      %v4137 = vadd.f32 %v3900, %v4136
      %4138 = vmatmul.f32.gmra.mxu0 %v3970
      %v4139 = vpop.f32.mrf.mxu0
      %v4140 = vadd.f32 %v3900, %v4139
      %4141 = vmatmul.f32.gmra.mxu0 %v3973
      %v4142 = vpop.f32.mrf.mxu0
      %v4143 = vadd.f32 %v3900, %v4142
      %4144 = vmatmul.f32.gmra.mxu0 %v3976
      %v4145 = vpop.f32.mrf.mxu0
      %v4146 = vadd.f32 %v3900, %v4145
      %4147 = vmatmul.f32.gmra.mxu0 %v3979
      %v4148 = vpop.f32.mrf.mxu0
      %v4149 = vadd.f32 %v3900, %v4148
      %4150 = vmatmul.f32.gmra.mxu0 %v3982
      %v4151 = vpop.f32.mrf.mxu0
      %v4152 = vadd.f32 %v3900, %v4151
      %4153 = vmatmul.f32.gmra.mxu0 %v3985
      %v4154 = vpop.f32.mrf.mxu0
      %v4155 = vadd.f32 %v3900, %v4154
      %4156 = vmatmul.f32.gmra.mxu0 %v3988
      %v4157 = vpop.f32.mrf.mxu0
      %v4158 = vadd.f32 %v3900, %v4157
      %4159 = vmatmul.f32.gmra.mxu0 %v3991
      %v4160 = vpop.f32.mrf.mxu0
      %v4161 = vadd.f32 %v3900, %v4160
      %4162 = vmatmul.f32.gmra.mxu0 %v3994
      %v4163 = vpop.f32.mrf.mxu0
      %v4164 = vadd.f32 %v3900, %v4163
      %4165 = vmatmul.f32.gmra.mxu0 %v3997
      %v4166 = vpop.f32.mrf.mxu0
      %v4167 = vadd.f32 %v3900, %v4166
      %4168 = vmatmul.f32.gmra.mxu0 %v4000
      %v4169 = vpop.f32.mrf.mxu0
      %v4170 = vadd.f32 %v3900, %v4169
      %4171 = vmatmul.f32.gmra.mxu0 %v4003
      %v4172 = vpop.f32.mrf.mxu0
      %v4173 = vadd.f32 %v3900, %v4172
      %4174 = vmatmul.f32.gmra.mxu0 %v4006
      %v4175 = vpop.f32.mrf.mxu0
      %v4176 = vadd.f32 %v3900, %v4175
      %4177 = vmatmul.f32.gmra.mxu0 %v4009
      %v4178 = vpop.f32.mrf.mxu0
      %v4179 = vadd.f32 %v3900, %v4178
      %4180 = vmatmul.f32.gmra.mxu0 %v4012
      %v4181 = vpop.f32.mrf.mxu0
      %v4182 = vadd.f32 %v3900, %v4181
      %4183 = vmatmul.f32.gmra.mxu0 %v4015
      %v4184 = vpop.f32.mrf.mxu0
      %v4185 = vadd.f32 %v3900, %v4184
      %4186 = vmatmul.f32.gmra.mxu0 %v4018
      %v4187 = vpop.f32.mrf.mxu0
      %v4188 = vadd.f32 %v3900, %v4187
      %4189 = vmatmul.f32.gmra.mxu0 %v4021
      %v4190 = vpop.f32.mrf.mxu0
      %v4191 = vadd.f32 %v3900, %v4190
      %4192 = vmatmul.f32.gmra.mxu0 %v4024
      %v4193 = vpop.f32.mrf.mxu0
      %v4194 = vadd.f32 %v3900, %v4193
      %4195 = vmatmul.f32.gmra.mxu0 %v4027
      %v4196 = vpop.f32.mrf.mxu0
      %v4197 = vadd.f32 %v3900, %v4196
      %4198 = vmatmul.f32.gmra.mxu0 %v4030
      %v4199 = vpop.f32.mrf.mxu0
      %v4200 = vadd.f32 %v3900, %v4199
      %4201 = vmatmul.f32.gmra.mxu0 %v4033
      %v4202 = vpop.f32.mrf.mxu0
      %v4203 = vadd.f32 %v3900, %v4202
      %4204 = vmatmul.f32.gmra.mxu0 %v4036
      %v4205 = vpop.f32.mrf.mxu0
      %v4206 = vadd.f32 %v3900, %v4205
      %4207 = vmatmul.f32.gmra.mxu0 %v4039
      %v4208 = vpop.f32.mrf.mxu0
      %v4209 = vadd.f32 %v3900, %v4208
      %4210 = vmatmul.f32.gmra.mxu0 %v4042
      %v4211 = vpop.f32.mrf.mxu0
      %v4212 = vadd.f32 %v3900, %v4211
      %4213 = vmatmul.f32.gmra.mxu0 %v4045
      %v4214 = vpop.f32.mrf.mxu0
      %v4215 = vadd.f32 %v3900, %v4214
      %4216 = vmatmul.f32.gmra.mxu0 %v4048
      %v4217 = vpop.f32.mrf.mxu0
      %v4218 = vadd.f32 %v3900, %v4217
      %4219 = vmatmul.f32.gmra.mxu0 %v4051
      %v4220 = vpop.f32.mrf.mxu0
      %v4221 = vadd.f32 %v3900, %v4220
      %4222 = vdwg.mxu0
      %v4223 = vld [vmem:[#allocation3 + $0x6] sm:$0xff]
      %v4224 = vld [vmem:[#allocation3 + $0xe] sm:$0xff]
      %v4225 = vld [vmem:[#allocation3 + $0x16] sm:$0xff]
      %v4226 = vld [vmem:[#allocation3 + $0x1e] sm:$0xff]
      %v4227 = vld [vmem:[#allocation3 + $0x26] sm:$0xff]
      %v4228 = vld [vmem:[#allocation3 + $0x2e] sm:$0xff]
      %v4229 = vld [vmem:[#allocation3 + $0x36] sm:$0xff]
      %v4230 = vld [vmem:[#allocation3 + $0x3e] sm:$0xff]
      %v4231 = vld [vmem:[#allocation3 + $0x46] sm:$0xff]
      %v4232 = vld [vmem:[#allocation3 + $0x4e] sm:$0xff]
      %v4233 = vld [vmem:[#allocation3 + $0x56] sm:$0xff]
      %v4234 = vld [vmem:[#allocation3 + $0x5e] sm:$0xff]
      %v4235 = vld [vmem:[#allocation3 + $0x66] sm:$0xff]
      %v4236 = vld [vmem:[#allocation3 + $0x6e] sm:$0xff]
      %v4237 = vld [vmem:[#allocation3 + $0x76] sm:$0xff]
      %v4238 = vld [vmem:[#allocation3 + $0x7e] sm:$0xff]
      %v4239 = vld [vmem:[#allocation3 + $0x86] sm:$0xff]
      %v4240 = vld [vmem:[#allocation3 + $0x8e] sm:$0xff]
      %v4241 = vld [vmem:[#allocation3 + $0x96] sm:$0xff]
      %v4242 = vld [vmem:[#allocation3 + $0x9e] sm:$0xff]
      %v4243 = vld [vmem:[#allocation3 + $0xa6] sm:$0xff]
      %v4244 = vld [vmem:[#allocation3 + $0xae] sm:$0xff]
      %v4245 = vld [vmem:[#allocation3 + $0xb6] sm:$0xff]
      %v4246 = vld [vmem:[#allocation3 + $0xbe] sm:$0xff]
      %v4247 = vld [vmem:[#allocation3 + $0xc6] sm:$0xff]
      %v4248 = vld [vmem:[#allocation3 + $0xce] sm:$0xff]
      %v4249 = vld [vmem:[#allocation3 + $0xd6] sm:$0xff]
      %v4250 = vld [vmem:[#allocation3 + $0xde] sm:$0xff]
      %v4251 = vld [vmem:[#allocation3 + $0xe6] sm:$0xff]
      %v4252 = vld [vmem:[#allocation3 + $0xee] sm:$0xff]
      %v4253 = vld [vmem:[#allocation3 + $0xf6] sm:$0xff]
      %v4254 = vld [vmem:[#allocation3 + $0xfe] sm:$0xff]
      %v4255 = vld [vmem:[#allocation3 + $0x106] sm:$0xff]
      %v4256 = vld [vmem:[#allocation3 + $0x10e] sm:$0xff]
      %v4257 = vld [vmem:[#allocation3 + $0x116] sm:$0xff]
      %v4258 = vld [vmem:[#allocation3 + $0x11e] sm:$0xff]
      %v4259 = vld [vmem:[#allocation3 + $0x126] sm:$0xff]
      %v4260 = vld [vmem:[#allocation3 + $0x12e] sm:$0xff]
      %v4261 = vld [vmem:[#allocation3 + $0x136] sm:$0xff]
      %v4262 = vld [vmem:[#allocation3 + $0x13e] sm:$0xff]
      %v4263 = vld [vmem:[#allocation3 + $0x146] sm:$0xff]
      %v4264 = vld [vmem:[#allocation3 + $0x14e] sm:$0xff]
      %v4265 = vld [vmem:[#allocation3 + $0x156] sm:$0xff]
      %v4266 = vld [vmem:[#allocation3 + $0x15e] sm:$0xff]
      %v4267 = vld [vmem:[#allocation3 + $0x166] sm:$0xff]
      %v4268 = vld [vmem:[#allocation3 + $0x16e] sm:$0xff]
      %v4269 = vld [vmem:[#allocation3 + $0x176] sm:$0xff]
      %v4270 = vld [vmem:[#allocation3 + $0x17e] sm:$0xff]
      %v4271 = vld [vmem:[#allocation3 + $0x186] sm:$0xff]
      %v4272 = vld [vmem:[#allocation3 + $0x18e] sm:$0xff]
      %v4273 = vld [vmem:[#allocation3 + $0x7] sm:$0xff]
      %v4274 = vld [vmem:[#allocation3 + $0xf] sm:$0xff]
      %v4275 = vld [vmem:[#allocation3 + $0x17] sm:$0xff]
      %v4276 = vld [vmem:[#allocation3 + $0x1f] sm:$0xff]
      %v4277 = vld [vmem:[#allocation3 + $0x27] sm:$0xff]
      %v4278 = vld [vmem:[#allocation3 + $0x2f] sm:$0xff]
      %v4279 = vld [vmem:[#allocation3 + $0x37] sm:$0xff]
      %v4280 = vld [vmem:[#allocation3 + $0x3f] sm:$0xff]
      %v4281 = vld [vmem:[#allocation3 + $0x47] sm:$0xff]
      %v4282 = vld [vmem:[#allocation3 + $0x4f] sm:$0xff]
      %v4283 = vld [vmem:[#allocation3 + $0x57] sm:$0xff]
      %v4284 = vld [vmem:[#allocation3 + $0x5f] sm:$0xff]
      %v4285 = vld [vmem:[#allocation3 + $0x67] sm:$0xff]
      %v4286 = vld [vmem:[#allocation3 + $0x6f] sm:$0xff]
      %v4287 = vld [vmem:[#allocation3 + $0x77] sm:$0xff]
      %v4288 = vld [vmem:[#allocation3 + $0x7f] sm:$0xff]
      %v4289 = vld [vmem:[#allocation3 + $0x87] sm:$0xff]
      %v4290 = vld [vmem:[#allocation3 + $0x8f] sm:$0xff]
      %v4291 = vld [vmem:[#allocation3 + $0x97] sm:$0xff]
      %v4292 = vld [vmem:[#allocation3 + $0x9f] sm:$0xff]
      %v4293 = vld [vmem:[#allocation3 + $0xa7] sm:$0xff]
      %v4294 = vld [vmem:[#allocation3 + $0xaf] sm:$0xff]
      %v4295 = vld [vmem:[#allocation3 + $0xb7] sm:$0xff]
      %v4296 = vld [vmem:[#allocation3 + $0xbf] sm:$0xff]
      %v4297 = vld [vmem:[#allocation3 + $0xc7] sm:$0xff]
      %v4298 = vld [vmem:[#allocation3 + $0xcf] sm:$0xff]
      %v4299 = vld [vmem:[#allocation3 + $0xd7] sm:$0xff]
      %v4300 = vld [vmem:[#allocation3 + $0xdf] sm:$0xff]
      %v4301 = vld [vmem:[#allocation3 + $0xe7] sm:$0xff]
      %v4302 = vld [vmem:[#allocation3 + $0xef] sm:$0xff]
      %v4303 = vld [vmem:[#allocation3 + $0xf7] sm:$0xff]
      %v4304 = vld [vmem:[#allocation3 + $0xff] sm:$0xff]
      %v4305 = vld [vmem:[#allocation3 + $0x107] sm:$0xff]
      %v4306 = vld [vmem:[#allocation3 + $0x10f] sm:$0xff]
      %v4307 = vld [vmem:[#allocation3 + $0x117] sm:$0xff]
      %v4308 = vld [vmem:[#allocation3 + $0x11f] sm:$0xff]
      %v4309 = vld [vmem:[#allocation3 + $0x127] sm:$0xff]
      %v4310 = vld [vmem:[#allocation3 + $0x12f] sm:$0xff]
      %v4311 = vld [vmem:[#allocation3 + $0x137] sm:$0xff]
      %v4312 = vld [vmem:[#allocation3 + $0x13f] sm:$0xff]
      %v4313 = vld [vmem:[#allocation3 + $0x147] sm:$0xff]
      %v4314 = vld [vmem:[#allocation3 + $0x14f] sm:$0xff]
      %v4315 = vld [vmem:[#allocation3 + $0x157] sm:$0xff]
      %v4316 = vld [vmem:[#allocation3 + $0x15f] sm:$0xff]
      %v4317 = vld [vmem:[#allocation3 + $0x167] sm:$0xff]
      %v4318 = vld [vmem:[#allocation3 + $0x16f] sm:$0xff]
      %v4319 = vld [vmem:[#allocation3 + $0x177] sm:$0xff]
      %v4320 = vld [vmem:[#allocation3 + $0x17f] sm:$0xff]
      %v4321 = vld [vmem:[#allocation3 + $0x187] sm:$0xff]
      %v4322 = vld [vmem:[#allocation3 + $0x18f] sm:$0xff]
      %v4323 = vld [vmem:[#allocation3 + $0x8] sm:$0xff]
      %v4324 = vld [vmem:[#allocation3 + $0x10] sm:$0xff]
      %v4325 = vld [vmem:[#allocation3 + $0x18] sm:$0xff]
      %v4326 = vld [vmem:[#allocation3 + $0x20] sm:$0xff]
      %v4327 = vld [vmem:[#allocation3 + $0x28] sm:$0xff]
      %v4328 = vld [vmem:[#allocation3 + $0x30] sm:$0xff]
      %v4329 = vld [vmem:[#allocation3 + $0x38] sm:$0xff]
      %v4330 = vld [vmem:[#allocation3 + $0x40] sm:$0xff]
      %v4331 = vld [vmem:[#allocation3 + $0x48] sm:$0xff]
      %v4332 = vld [vmem:[#allocation3 + $0x50] sm:$0xff]
      %v4333 = vld [vmem:[#allocation3 + $0x58] sm:$0xff]
      %v4334 = vld [vmem:[#allocation3 + $0x60] sm:$0xff]
      %v4335 = vld [vmem:[#allocation3 + $0x68] sm:$0xff]
      %v4336 = vld [vmem:[#allocation3 + $0x70] sm:$0xff]
      %v4337 = vld [vmem:[#allocation3 + $0x78] sm:$0xff]
      %v4338 = vld [vmem:[#allocation3 + $0x80] sm:$0xff]
      %v4339 = vld [vmem:[#allocation3 + $0x88] sm:$0xff]
      %v4340 = vld [vmem:[#allocation3 + $0x90] sm:$0xff]
      %v4341 = vld [vmem:[#allocation3 + $0x98] sm:$0xff]
      %v4342 = vld [vmem:[#allocation3 + $0xa0] sm:$0xff]
      %v4343 = vld [vmem:[#allocation3 + $0xa8] sm:$0xff]
      %v4344 = vld [vmem:[#allocation3 + $0xb0] sm:$0xff]
      %v4345 = vld [vmem:[#allocation3 + $0xb8] sm:$0xff]
      %v4346 = vld [vmem:[#allocation3 + $0xc0] sm:$0xff]
      %v4347 = vld [vmem:[#allocation3 + $0xc8] sm:$0xff]
      %v4348 = vld [vmem:[#allocation3 + $0xd0] sm:$0xff]
      %v4349 = vld [vmem:[#allocation3 + $0xd8] sm:$0xff]
      %v4350 = vld [vmem:[#allocation3 + $0xe0] sm:$0xff]
      %v4351 = vld [vmem:[#allocation3 + $0xe8] sm:$0xff]
      %v4352 = vld [vmem:[#allocation3 + $0xf0] sm:$0xff]
      %v4353 = vld [vmem:[#allocation3 + $0xf8] sm:$0xff]
      %v4354 = vld [vmem:[#allocation3 + $0x100] sm:$0xff]
      %v4355 = vld [vmem:[#allocation3 + $0x108] sm:$0xff]
      %v4356 = vld [vmem:[#allocation3 + $0x110] sm:$0xff]
      %v4357 = vld [vmem:[#allocation3 + $0x118] sm:$0xff]
      %v4358 = vld [vmem:[#allocation3 + $0x120] sm:$0xff]
      %v4359 = vld [vmem:[#allocation3 + $0x128] sm:$0xff]
      %v4360 = vld [vmem:[#allocation3 + $0x130] sm:$0xff]
      %v4361 = vld [vmem:[#allocation3 + $0x138] sm:$0xff]
      %v4362 = vld [vmem:[#allocation3 + $0x140] sm:$0xff]
      %v4363 = vld [vmem:[#allocation3 + $0x148] sm:$0xff]
      %v4364 = vld [vmem:[#allocation3 + $0x150] sm:$0xff]
      %v4365 = vld [vmem:[#allocation3 + $0x158] sm:$0xff]
      %v4366 = vld [vmem:[#allocation3 + $0x160] sm:$0xff]
      %v4367 = vld [vmem:[#allocation3 + $0x168] sm:$0xff]
      %v4368 = vld [vmem:[#allocation3 + $0x170] sm:$0xff]
      %v4369 = vld [vmem:[#allocation3 + $0x178] sm:$0xff]
      %v4370 = vld [vmem:[#allocation3 + $0x180] sm:$0xff]
      %v4371 = vld [vmem:[#allocation3 + $0x188] sm:$0xff]
      %v4372 = vld [vmem:[#allocation3 + $0x190] sm:$0xff]
      %v4373 = vld [vmem:[#allocation3 + $0x9] sm:$0xff]
      %v4374 = vld [vmem:[#allocation3 + $0x11] sm:$0xff]
      %v4375 = vld [vmem:[#allocation3 + $0x19] sm:$0xff]
      %v4376 = vld [vmem:[#allocation3 + $0x21] sm:$0xff]
      %v4377 = vld [vmem:[#allocation3 + $0x29] sm:$0xff]
      %v4378 = vld [vmem:[#allocation3 + $0x31] sm:$0xff]
      %v4379 = vld [vmem:[#allocation3 + $0x39] sm:$0xff]
      %v4380 = vld [vmem:[#allocation3 + $0x41] sm:$0xff]
      %v4381 = vld [vmem:[#allocation3 + $0x49] sm:$0xff]
      %v4382 = vld [vmem:[#allocation3 + $0x51] sm:$0xff]
      %v4383 = vld [vmem:[#allocation3 + $0x59] sm:$0xff]
      %v4384 = vld [vmem:[#allocation3 + $0x61] sm:$0xff]
      %v4385 = vld [vmem:[#allocation3 + $0x69] sm:$0xff]
      %v4386 = vld [vmem:[#allocation3 + $0x71] sm:$0xff]
      %v4387 = vld [vmem:[#allocation3 + $0x79] sm:$0xff]
      %v4388 = vld [vmem:[#allocation3 + $0x81] sm:$0xff]
      %v4389 = vld [vmem:[#allocation3 + $0x89] sm:$0xff]
      %v4390 = vld [vmem:[#allocation3 + $0x91] sm:$0xff]
      %v4391 = vld [vmem:[#allocation3 + $0x99] sm:$0xff]
      %v4392 = vld [vmem:[#allocation3 + $0xa1] sm:$0xff]
      %v4393 = vld [vmem:[#allocation3 + $0xa9] sm:$0xff]
      %v4394 = vld [vmem:[#allocation3 + $0xb1] sm:$0xff]
      %v4395 = vld [vmem:[#allocation3 + $0xb9] sm:$0xff]
      %v4396 = vld [vmem:[#allocation3 + $0xc1] sm:$0xff]
      %v4397 = vld [vmem:[#allocation3 + $0xc9] sm:$0xff]
      %v4398 = vld [vmem:[#allocation3 + $0xd1] sm:$0xff]
      %v4399 = vld [vmem:[#allocation3 + $0xd9] sm:$0xff]
      %v4400 = vld [vmem:[#allocation3 + $0xe1] sm:$0xff]
      %v4401 = vld [vmem:[#allocation3 + $0xe9] sm:$0xff]
      %v4402 = vld [vmem:[#allocation3 + $0xf1] sm:$0xff]
      %v4403 = vld [vmem:[#allocation3 + $0xf9] sm:$0xff]
      %v4404 = vld [vmem:[#allocation3 + $0x101] sm:$0xff]
      %v4405 = vld [vmem:[#allocation3 + $0x109] sm:$0xff]
      %v4406 = vld [vmem:[#allocation3 + $0x111] sm:$0xff]
      %v4407 = vld [vmem:[#allocation3 + $0x119] sm:$0xff]
      %v4408 = vld [vmem:[#allocation3 + $0x121] sm:$0xff]
      %v4409 = vld [vmem:[#allocation3 + $0x129] sm:$0xff]
      %v4410 = vld [vmem:[#allocation3 + $0x131] sm:$0xff]
      %v4411 = vld [vmem:[#allocation3 + $0x139] sm:$0xff]
      %v4412 = vld [vmem:[#allocation3 + $0x141] sm:$0xff]
      %v4413 = vld [vmem:[#allocation3 + $0x149] sm:$0xff]
      %v4414 = vld [vmem:[#allocation3 + $0x151] sm:$0xff]
      %v4415 = vld [vmem:[#allocation3 + $0x159] sm:$0xff]
      %v4416 = vld [vmem:[#allocation3 + $0x161] sm:$0xff]
      %v4417 = vld [vmem:[#allocation3 + $0x169] sm:$0xff]
      %v4418 = vld [vmem:[#allocation3 + $0x171] sm:$0xff]
      %v4419 = vld [vmem:[#allocation3 + $0x179] sm:$0xff]
      %v4420 = vld [vmem:[#allocation3 + $0x181] sm:$0xff]
      %v4421 = vld [vmem:[#allocation3 + $0x189] sm:$0xff]
      %v4422 = vld [vmem:[#allocation3 + $0x191] sm:$0xff]
      %v4423 = vld [vmem:[#allocation3 + $0xa] sm:$0xff]
      %v4424 = vld [vmem:[#allocation3 + $0x12] sm:$0xff]
      %v4425 = vld [vmem:[#allocation3 + $0x1a] sm:$0xff]
      %v4426 = vld [vmem:[#allocation3 + $0x22] sm:$0xff]
      %v4427 = vld [vmem:[#allocation3 + $0x2a] sm:$0xff]
      %v4428 = vld [vmem:[#allocation3 + $0x32] sm:$0xff]
      %v4429 = vld [vmem:[#allocation3 + $0x3a] sm:$0xff]
      %v4430 = vld [vmem:[#allocation3 + $0x42] sm:$0xff]
      %v4431 = vld [vmem:[#allocation3 + $0x4a] sm:$0xff]
      %v4432 = vld [vmem:[#allocation3 + $0x52] sm:$0xff]
      %v4433 = vld [vmem:[#allocation3 + $0x5a] sm:$0xff]
      %v4434 = vld [vmem:[#allocation3 + $0x62] sm:$0xff]
      %v4435 = vld [vmem:[#allocation3 + $0x6a] sm:$0xff]
      %v4436 = vld [vmem:[#allocation3 + $0x72] sm:$0xff]
      %v4437 = vld [vmem:[#allocation3 + $0x7a] sm:$0xff]
      %v4438 = vld [vmem:[#allocation3 + $0x82] sm:$0xff]
      %v4439 = vld [vmem:[#allocation3 + $0x8a] sm:$0xff]
      %v4440 = vld [vmem:[#allocation3 + $0x92] sm:$0xff]
      %v4441 = vld [vmem:[#allocation3 + $0x9a] sm:$0xff]
      %v4442 = vld [vmem:[#allocation3 + $0xa2] sm:$0xff]
      %v4443 = vld [vmem:[#allocation3 + $0xaa] sm:$0xff]
      %v4444 = vld [vmem:[#allocation3 + $0xb2] sm:$0xff]
      %v4445 = vld [vmem:[#allocation3 + $0xba] sm:$0xff]
      %v4446 = vld [vmem:[#allocation3 + $0xc2] sm:$0xff]
      %v4447 = vld [vmem:[#allocation3 + $0xca] sm:$0xff]
      %v4448 = vld [vmem:[#allocation3 + $0xd2] sm:$0xff]
      %v4449 = vld [vmem:[#allocation3 + $0xda] sm:$0xff]
      %v4450 = vld [vmem:[#allocation3 + $0xe2] sm:$0xff]
      %v4451 = vld [vmem:[#allocation3 + $0xea] sm:$0xff]
      %v4452 = vld [vmem:[#allocation3 + $0xf2] sm:$0xff]
      %v4453 = vld [vmem:[#allocation3 + $0xfa] sm:$0xff]
      %v4454 = vld [vmem:[#allocation3 + $0x102] sm:$0xff]
      %v4455 = vld [vmem:[#allocation3 + $0x10a] sm:$0xff]
      %v4456 = vld [vmem:[#allocation3 + $0x112] sm:$0xff]
      %v4457 = vld [vmem:[#allocation3 + $0x11a] sm:$0xff]
      %v4458 = vld [vmem:[#allocation3 + $0x122] sm:$0xff]
      %v4459 = vld [vmem:[#allocation3 + $0x12a] sm:$0xff]
      %v4460 = vld [vmem:[#allocation3 + $0x132] sm:$0xff]
      %v4461 = vld [vmem:[#allocation3 + $0x13a] sm:$0xff]
      %v4462 = vld [vmem:[#allocation3 + $0x142] sm:$0xff]
      %v4463 = vld [vmem:[#allocation3 + $0x14a] sm:$0xff]
      %v4464 = vld [vmem:[#allocation3 + $0x152] sm:$0xff]
      %v4465 = vld [vmem:[#allocation3 + $0x15a] sm:$0xff]
      %v4466 = vld [vmem:[#allocation3 + $0x162] sm:$0xff]
      %v4467 = vld [vmem:[#allocation3 + $0x16a] sm:$0xff]
      %v4468 = vld [vmem:[#allocation3 + $0x172] sm:$0xff]
      %v4469 = vld [vmem:[#allocation3 + $0x17a] sm:$0xff]
      %v4470 = vld [vmem:[#allocation3 + $0x182] sm:$0xff]
      %v4471 = vld [vmem:[#allocation3 + $0x18a] sm:$0xff]
      %v4472 = vld [vmem:[#allocation3 + $0x192] sm:$0xff]
      %v4473 = vld [vmem:[#allocation3 + $0x19a] sm:$0xff]
      %v4474 = vld [vmem:[#allocation3 + $0x1a2] sm:$0xff]
      %v4475 = vld [vmem:[#allocation3 + $0x1b] sm:$0xff]
      %v4476 = vld [vmem:[#allocation3 + $0x23] sm:$0xff]
      %v4477 = vld [vmem:[#allocation3 + $0x2b] sm:$0xff]
      %v4478 = vld [vmem:[#allocation3 + $0x33] sm:$0xff]
      %v4479 = vld [vmem:[#allocation3 + $0x3b] sm:$0xff]
      %v4480 = vld [vmem:[#allocation3 + $0x43] sm:$0xff]
      %v4481 = vld [vmem:[#allocation3 + $0x4b] sm:$0xff]
      %v4482 = vld [vmem:[#allocation3 + $0x53] sm:$0xff]
      %v4483 = vld [vmem:[#allocation3 + $0x5b] sm:$0xff]
      %v4484 = vld [vmem:[#allocation3 + $0x63] sm:$0xff]
      %v4485 = vld [vmem:[#allocation3 + $0x6b] sm:$0xff]
      %v4486 = vld [vmem:[#allocation3 + $0x73] sm:$0xff]
      %v4487 = vld [vmem:[#allocation3 + $0x7b] sm:$0xff]
      %v4488 = vld [vmem:[#allocation3 + $0x83] sm:$0xff]
      %v4489 = vld [vmem:[#allocation3 + $0x8b] sm:$0xff]
      %v4490 = vld [vmem:[#allocation3 + $0x93] sm:$0xff]
      %v4491 = vld [vmem:[#allocation3 + $0x9b] sm:$0xff]
      %v4492 = vld [vmem:[#allocation3 + $0xa3] sm:$0xff]
      %v4493 = vld [vmem:[#allocation3 + $0xab] sm:$0xff]
      %v4494 = vld [vmem:[#allocation3 + $0xb3] sm:$0xff]
      %v4495 = vld [vmem:[#allocation3 + $0xbb] sm:$0xff]
      %v4496 = vld [vmem:[#allocation3 + $0xc3] sm:$0xff]
      %v4497 = vld [vmem:[#allocation3 + $0xcb] sm:$0xff]
      %v4498 = vld [vmem:[#allocation3 + $0xd3] sm:$0xff]
      %v4499 = vld [vmem:[#allocation3 + $0xdb] sm:$0xff]
      %v4500 = vld [vmem:[#allocation3 + $0xe3] sm:$0xff]
      %v4501 = vld [vmem:[#allocation3 + $0xeb] sm:$0xff]
      %v4502 = vld [vmem:[#allocation3 + $0xf3] sm:$0xff]
      %v4503 = vld [vmem:[#allocation3 + $0xfb] sm:$0xff]
      %v4504 = vld [vmem:[#allocation3 + $0x103] sm:$0xff]
      %v4505 = vld [vmem:[#allocation3 + $0x10b] sm:$0xff]
      %v4506 = vld [vmem:[#allocation3 + $0x113] sm:$0xff]
      %v4507 = vld [vmem:[#allocation3 + $0x11b] sm:$0xff]
      %v4508 = vld [vmem:[#allocation3 + $0x123] sm:$0xff]
      %v4509 = vld [vmem:[#allocation3 + $0x12b] sm:$0xff]
      %v4510 = vld [vmem:[#allocation3 + $0x133] sm:$0xff]
      %v4511 = vld [vmem:[#allocation3 + $0x13b] sm:$0xff]
      %v4512 = vld [vmem:[#allocation3 + $0x143] sm:$0xff]
      %v4513 = vld [vmem:[#allocation3 + $0x14b] sm:$0xff]
      %v4514 = vld [vmem:[#allocation3 + $0x153] sm:$0xff]
      %v4515 = vld [vmem:[#allocation3 + $0x15b] sm:$0xff]
      %v4516 = vld [vmem:[#allocation3 + $0x163] sm:$0xff]
      %v4517 = vld [vmem:[#allocation3 + $0x16b] sm:$0xff]
      %v4518 = vld [vmem:[#allocation3 + $0x173] sm:$0xff]
      %v4519 = vld [vmem:[#allocation3 + $0x17b] sm:$0xff]
      %v4520 = vld [vmem:[#allocation3 + $0x183] sm:$0xff]
      %v4521 = vld [vmem:[#allocation3 + $0x18b] sm:$0xff]
      %v4522 = vld [vmem:[#allocation3 + $0x193] sm:$0xff]
      %v4523 = vld [vmem:[#allocation3 + $0x19b] sm:$0xff]
      %v4524 = vld [vmem:[#allocation3 + $0x1a3] sm:$0xff]
      %v4525 = vld [vmem:[#allocation3 + $0x1c] sm:$0xff]
      %v4526 = vld [vmem:[#allocation3 + $0x24] sm:$0xff]
      %v4527 = vld [vmem:[#allocation3 + $0x2c] sm:$0xff]
      %v4528 = vld [vmem:[#allocation3 + $0x34] sm:$0xff]
      %v4529 = vld [vmem:[#allocation3 + $0x3c] sm:$0xff]
      %v4530 = vld [vmem:[#allocation3 + $0x44] sm:$0xff]
      %v4531 = vld [vmem:[#allocation3 + $0x4c] sm:$0xff]
      %v4532 = vld [vmem:[#allocation3 + $0x54] sm:$0xff]
      %v4533 = vld [vmem:[#allocation3 + $0x5c] sm:$0xff]
      %v4534 = vld [vmem:[#allocation3 + $0x64] sm:$0xff]
      %v4535 = vld [vmem:[#allocation3 + $0x6c] sm:$0xff]
      %v4536 = vld [vmem:[#allocation3 + $0x74] sm:$0xff]
      %v4537 = vld [vmem:[#allocation3 + $0x7c] sm:$0xff]
      %v4538 = vld [vmem:[#allocation3 + $0x84] sm:$0xff]
      %v4539 = vld [vmem:[#allocation3 + $0x8c] sm:$0xff]
      %v4540 = vld [vmem:[#allocation3 + $0x94] sm:$0xff]
      %v4541 = vld [vmem:[#allocation3 + $0x9c] sm:$0xff]
      %v4542 = vld [vmem:[#allocation3 + $0xa4] sm:$0xff]
      %v4543 = vld [vmem:[#allocation3 + $0xac] sm:$0xff]
      %v4544 = vld [vmem:[#allocation3 + $0xb4] sm:$0xff]
      %v4545 = vld [vmem:[#allocation3 + $0xbc] sm:$0xff]
      %v4546 = vld [vmem:[#allocation3 + $0xc4] sm:$0xff]
      %v4547 = vld [vmem:[#allocation3 + $0xcc] sm:$0xff]
      %v4548 = vld [vmem:[#allocation3 + $0xd4] sm:$0xff]
      %v4549 = vld [vmem:[#allocation3 + $0xdc] sm:$0xff]
      %v4550 = vld [vmem:[#allocation3 + $0xe4] sm:$0xff]
      %v4551 = vld [vmem:[#allocation3 + $0xec] sm:$0xff]
      %v4552 = vld [vmem:[#allocation3 + $0xf4] sm:$0xff]
      %v4553 = vld [vmem:[#allocation3 + $0xfc] sm:$0xff]
      %v4554 = vld [vmem:[#allocation3 + $0x104] sm:$0xff]
      %v4555 = vld [vmem:[#allocation3 + $0x10c] sm:$0xff]
      %v4556 = vld [vmem:[#allocation3 + $0x114] sm:$0xff]
      %v4557 = vld [vmem:[#allocation3 + $0x11c] sm:$0xff]
      %v4558 = vld [vmem:[#allocation3 + $0x124] sm:$0xff]
      %v4559 = vld [vmem:[#allocation3 + $0x12c] sm:$0xff]
      %v4560 = vld [vmem:[#allocation3 + $0x134] sm:$0xff]
      %v4561 = vld [vmem:[#allocation3 + $0x13c] sm:$0xff]
      %v4562 = vld [vmem:[#allocation3 + $0x144] sm:$0xff]
      %v4563 = vld [vmem:[#allocation3 + $0x14c] sm:$0xff]
      %v4564 = vld [vmem:[#allocation3 + $0x154] sm:$0xff]
      %v4565 = vld [vmem:[#allocation3 + $0x15c] sm:$0xff]
      %v4566 = vld [vmem:[#allocation3 + $0x164] sm:$0xff]
      %v4567 = vld [vmem:[#allocation3 + $0x16c] sm:$0xff]
      %v4568 = vld [vmem:[#allocation3 + $0x174] sm:$0xff]
      %v4569 = vld [vmem:[#allocation3 + $0x17c] sm:$0xff]
      %v4570 = vld [vmem:[#allocation3 + $0x184] sm:$0xff]
      %v4571 = vld [vmem:[#allocation3 + $0x18c] sm:$0xff]
      %v4572 = vld [vmem:[#allocation3 + $0x194] sm:$0xff]
      %v4573 = vld [vmem:[#allocation3 + $0x19c] sm:$0xff]
      %v4574 = vld [vmem:[#allocation3 + $0x1a4] sm:$0xff]
      %v4575 = vld [vmem:[#allocation3 + $0x1d] sm:$0xff]
      %v4576 = vld [vmem:[#allocation3 + $0x25] sm:$0xff]
      %v4577 = vld [vmem:[#allocation3 + $0x2d] sm:$0xff]
      %v4578 = vld [vmem:[#allocation3 + $0x35] sm:$0xff]
      %v4579 = vld [vmem:[#allocation3 + $0x3d] sm:$0xff]
      %v4580 = vld [vmem:[#allocation3 + $0x45] sm:$0xff]
      %v4581 = vld [vmem:[#allocation3 + $0x4d] sm:$0xff]
      %v4582 = vld [vmem:[#allocation3 + $0x55] sm:$0xff]
      %v4583 = vld [vmem:[#allocation3 + $0x5d] sm:$0xff]
      %v4584 = vld [vmem:[#allocation3 + $0x65] sm:$0xff]
      %v4585 = vld [vmem:[#allocation3 + $0x6d] sm:$0xff]
      %v4586 = vld [vmem:[#allocation3 + $0x75] sm:$0xff]
      %v4587 = vld [vmem:[#allocation3 + $0x7d] sm:$0xff]
      %v4588 = vld [vmem:[#allocation3 + $0x85] sm:$0xff]
      %v4589 = vld [vmem:[#allocation3 + $0x8d] sm:$0xff]
      %v4590 = vld [vmem:[#allocation3 + $0x95] sm:$0xff]
      %v4591 = vld [vmem:[#allocation3 + $0x9d] sm:$0xff]
      %v4592 = vld [vmem:[#allocation3 + $0xa5] sm:$0xff]
      %v4593 = vld [vmem:[#allocation3 + $0xad] sm:$0xff]
      %v4594 = vld [vmem:[#allocation3 + $0xb5] sm:$0xff]
      %v4595 = vld [vmem:[#allocation3 + $0xbd] sm:$0xff]
      %v4596 = vld [vmem:[#allocation3 + $0xc5] sm:$0xff]
      %v4597 = vld [vmem:[#allocation3 + $0xcd] sm:$0xff]
      %v4598 = vld [vmem:[#allocation3 + $0xd5] sm:$0xff]
      %v4599 = vld [vmem:[#allocation3 + $0xdd] sm:$0xff]
      %v4600 = vld [vmem:[#allocation3 + $0xe5] sm:$0xff]
      %v4601 = vld [vmem:[#allocation3 + $0xed] sm:$0xff]
      %v4602 = vld [vmem:[#allocation3 + $0xf5] sm:$0xff]
      %v4603 = vld [vmem:[#allocation3 + $0xfd] sm:$0xff]
      %v4604 = vld [vmem:[#allocation3 + $0x105] sm:$0xff]
      %v4605 = vld [vmem:[#allocation3 + $0x10d] sm:$0xff]
      %v4606 = vld [vmem:[#allocation3 + $0x115] sm:$0xff]
      %v4607 = vld [vmem:[#allocation3 + $0x11d] sm:$0xff]
      %v4608 = vld [vmem:[#allocation3 + $0x125] sm:$0xff]
      %v4609 = vld [vmem:[#allocation3 + $0x12d] sm:$0xff]
      %v4610 = vld [vmem:[#allocation3 + $0x135] sm:$0xff]
      %v4611 = vld [vmem:[#allocation3 + $0x13d] sm:$0xff]
      %v4612 = vld [vmem:[#allocation3 + $0x145] sm:$0xff]
      %v4613 = vld [vmem:[#allocation3 + $0x14d] sm:$0xff]
      %v4614 = vld [vmem:[#allocation3 + $0x155] sm:$0xff]
      %v4615 = vld [vmem:[#allocation3 + $0x15d] sm:$0xff]
      %v4616 = vld [vmem:[#allocation3 + $0x165] sm:$0xff]
      %v4617 = vld [vmem:[#allocation3 + $0x16d] sm:$0xff]
      %v4618 = vld [vmem:[#allocation3 + $0x175] sm:$0xff]
      %v4619 = vld [vmem:[#allocation3 + $0x17d] sm:$0xff]
      %v4620 = vld [vmem:[#allocation3 + $0x185] sm:$0xff]
      %v4621 = vld [vmem:[#allocation3 + $0x18d] sm:$0xff]
      %v4622 = vld [vmem:[#allocation3 + $0x195] sm:$0xff]
      %v4623 = vld [vmem:[#allocation3 + $0x19d] sm:$0xff]
      %v4624 = vld [vmem:[#allocation3 + $0x1a5] sm:$0xff]
      %v4625 = vld [vmem:[#allocation3 + $0x196] sm:$0xff]
      %v4626 = vld [vmem:[#allocation3 + $0x19e] sm:$0xff]
      %v4627 = vld [vmem:[#allocation3 + $0x1a6] sm:$0xff]
      %v4628 = vld [vmem:[#allocation3 + $0x1ae] sm:$0xff]
      %v4629 = vld [vmem:[#allocation3 + $0x1b6] sm:$0xff]
      %v4630 = vld [vmem:[#allocation3 + $0x197] sm:$0xff]
      %v4631 = vld [vmem:[#allocation3 + $0x19f] sm:$0xff]
      %v4632 = vld [vmem:[#allocation3 + $0x1a7] sm:$0xff]
      %v4633 = vld [vmem:[#allocation3 + $0x1af] sm:$0xff]
      %v4634 = vld [vmem:[#allocation3 + $0x1b7] sm:$0xff]
      %v4635 = vld [vmem:[#allocation3 + $0x198] sm:$0xff]
      %v4636 = vld [vmem:[#allocation3 + $0x1a0] sm:$0xff]
      %v4637 = vld [vmem:[#allocation3 + $0x1a8] sm:$0xff]
      %v4638 = vld [vmem:[#allocation3 + $0x1b0] sm:$0xff]
      %v4639 = vld [vmem:[#allocation3 + $0x1b8] sm:$0xff]
      %v4640 = vld [vmem:[#allocation3 + $0x199] sm:$0xff]
      %v4641 = vld [vmem:[#allocation3 + $0x1a1] sm:$0xff]
      %v4642 = vld [vmem:[#allocation3 + $0x1a9] sm:$0xff]
      %v4643 = vld [vmem:[#allocation3 + $0x1b1] sm:$0xff]
      %v4644 = vld [vmem:[#allocation3 + $0x1b9] sm:$0xff]
      %v4645 = vld [vmem:[#allocation3 + $0x1aa] sm:$0xff]
      %v4646 = vld [vmem:[#allocation3 + $0x1b2] sm:$0xff]
      %v4647 = vld [vmem:[#allocation3 + $0x1ba] sm:$0xff]
      %v4648 = vld [vmem:[#allocation3 + $0x1c2] sm:$0xff]
      %v4649 = vld [vmem:[#allocation3 + $0x1ca] sm:$0xff]
      %v4650 = vld [vmem:[#allocation3 + $0x1ab] sm:$0xff]
      %v4651 = vld [vmem:[#allocation3 + $0x1b3] sm:$0xff]
      %v4652 = vld [vmem:[#allocation3 + $0x1bb] sm:$0xff]
      %v4653 = vld [vmem:[#allocation3 + $0x1c3] sm:$0xff]
      %v4654 = vld [vmem:[#allocation3 + $0x1cb] sm:$0xff]
      %v4655 = vld [vmem:[#allocation3 + $0x1ac] sm:$0xff]
      %v4656 = vld [vmem:[#allocation3 + $0x1b4] sm:$0xff]
      %v4657 = vld [vmem:[#allocation3 + $0x1bc] sm:$0xff]
      %v4658 = vld [vmem:[#allocation3 + $0x1c4] sm:$0xff]
      %v4659 = vld [vmem:[#allocation3 + $0x1cc] sm:$0xff]
      %v4660 = vld [vmem:[#allocation3 + $0x1ad] sm:$0xff]
      %v4661 = vld [vmem:[#allocation3 + $0x1b5] sm:$0xff]
      %v4662 = vld [vmem:[#allocation3 + $0x1bd] sm:$0xff]
      %v4663 = vld [vmem:[#allocation3 + $0x1c5] sm:$0xff]
      %v4664 = vld [vmem:[#allocation3 + $0x1cd] sm:$0xff]
      %v4665 = vld [vmem:[#allocation3 + $0x1be] sm:$0xff]
      %v4666 = vld [vmem:[#allocation3 + $0x1c6] sm:$0xff]
      %v4667 = vld [vmem:[#allocation3 + $0x1ce] sm:$0xff]
      %v4668 = vld [vmem:[#allocation3 + $0x1d6] sm:$0xff]
      %v4669 = vld [vmem:[#allocation3 + $0x1de] sm:$0xff]
      %v4670 = vld [vmem:[#allocation3 + $0x1bf] sm:$0xff]
      %v4671 = vld [vmem:[#allocation3 + $0x1c7] sm:$0xff]
      %v4672 = vld [vmem:[#allocation3 + $0x1cf] sm:$0xff]
      %v4673 = vld [vmem:[#allocation3 + $0x1d7] sm:$0xff]
      %v4674 = vld [vmem:[#allocation3 + $0x1df] sm:$0xff]
      %v4675 = vld [vmem:[#allocation3 + $0x1c0] sm:$0xff]
      %v4676 = vld [vmem:[#allocation3 + $0x1c8] sm:$0xff]
      %v4677 = vld [vmem:[#allocation3 + $0x1d0] sm:$0xff]
      %v4678 = vld [vmem:[#allocation3 + $0x1d8] sm:$0xff]
      %v4679 = vld [vmem:[#allocation3 + $0x1e0] sm:$0xff]
      %v4680 = vld [vmem:[#allocation3 + $0x1c1] sm:$0xff]
      %v4681 = vld [vmem:[#allocation3 + $0x1c9] sm:$0xff]
      %v4682 = vld [vmem:[#allocation3 + $0x1d1] sm:$0xff]
      %v4683 = vld [vmem:[#allocation3 + $0x1d9] sm:$0xff]
      %v4684 = vld [vmem:[#allocation3 + $0x1e1] sm:$0xff]
      %v4685 = vld [vmem:[#allocation3 + $0x1d2] sm:$0xff]
      %v4686 = vld [vmem:[#allocation3 + $0x1da] sm:$0xff]
      %v4687 = vld [vmem:[#allocation3 + $0x1e2] sm:$0xff]
      %4738 = vrot.lane.b32.xlu0 %v4273, 4
      %v4739 = vpop.permute.xlu0 %4738
      %4740 = vrot.lane.b32.xlu0 %v4274, 4
      %v4741 = vpop.permute.xlu0 %4740
      %4742 = vrot.lane.b32.xlu0 %v4275, 4
      %v4743 = vpop.permute.xlu0 %4742
      %4744 = vrot.lane.b32.xlu0 %v4276, 4
      %v4745 = vpop.permute.xlu0 %4744
      %4746 = vrot.lane.b32.xlu0 %v4277, 4
      %v4747 = vpop.permute.xlu0 %4746
      %4748 = vrot.lane.b32.xlu0 %v4278, 4
      %v4749 = vpop.permute.xlu0 %4748
      %4750 = vrot.lane.b32.xlu0 %v4279, 4
      %v4751 = vpop.permute.xlu0 %4750
      %4752 = vrot.lane.b32.xlu0 %v4280, 4
      %v4753 = vpop.permute.xlu0 %4752
      %4754 = vrot.lane.b32.xlu0 %v4281, 4
      %v4755 = vpop.permute.xlu0 %4754
      %4756 = vrot.lane.b32.xlu0 %v4282, 4
      %v4757 = vpop.permute.xlu0 %4756
      %4758 = vrot.lane.b32.xlu0 %v4283, 4
      %v4759 = vpop.permute.xlu0 %4758
      %4760 = vrot.lane.b32.xlu0 %v4284, 4
      %v4761 = vpop.permute.xlu0 %4760
      %4762 = vrot.lane.b32.xlu0 %v4285, 4
      %v4763 = vpop.permute.xlu0 %4762
      %4764 = vrot.lane.b32.xlu0 %v4286, 4
      %v4765 = vpop.permute.xlu0 %4764
      %4766 = vrot.lane.b32.xlu0 %v4287, 4
      %v4767 = vpop.permute.xlu0 %4766
      %4768 = vrot.lane.b32.xlu0 %v4288, 4
      %v4769 = vpop.permute.xlu0 %4768
      %4770 = vrot.lane.b32.xlu0 %v4289, 4
      %v4771 = vpop.permute.xlu0 %4770
      %4772 = vrot.lane.b32.xlu0 %v4290, 4
      %v4773 = vpop.permute.xlu0 %4772
      %4774 = vrot.lane.b32.xlu0 %v4291, 4
      %v4775 = vpop.permute.xlu0 %4774
      %4776 = vrot.lane.b32.xlu0 %v4292, 4
      %v4777 = vpop.permute.xlu0 %4776
      %4778 = vrot.lane.b32.xlu0 %v4293, 4
      %v4779 = vpop.permute.xlu0 %4778
      %4780 = vrot.lane.b32.xlu0 %v4294, 4
      %v4781 = vpop.permute.xlu0 %4780
      %4782 = vrot.lane.b32.xlu0 %v4295, 4
      %v4783 = vpop.permute.xlu0 %4782
      %4784 = vrot.lane.b32.xlu0 %v4296, 4
      %v4785 = vpop.permute.xlu0 %4784
      %4786 = vrot.lane.b32.xlu0 %v4297, 4
      %v4787 = vpop.permute.xlu0 %4786
      %4788 = vrot.lane.b32.xlu0 %v4298, 4
      %v4789 = vpop.permute.xlu0 %4788
      %4790 = vrot.lane.b32.xlu0 %v4299, 4
      %v4791 = vpop.permute.xlu0 %4790
      %4792 = vrot.lane.b32.xlu0 %v4300, 4
      %v4793 = vpop.permute.xlu0 %4792
      %4794 = vrot.lane.b32.xlu0 %v4301, 4
      %v4795 = vpop.permute.xlu0 %4794
      %4796 = vrot.lane.b32.xlu0 %v4302, 4
      %v4797 = vpop.permute.xlu0 %4796
      %4798 = vrot.lane.b32.xlu0 %v4303, 4
      %v4799 = vpop.permute.xlu0 %4798
      %4800 = vrot.lane.b32.xlu0 %v4304, 4
      %v4801 = vpop.permute.xlu0 %4800
      %4802 = vrot.lane.b32.xlu0 %v4305, 4
      %v4803 = vpop.permute.xlu0 %4802
      %4804 = vrot.lane.b32.xlu0 %v4306, 4
      %v4805 = vpop.permute.xlu0 %4804
      %4806 = vrot.lane.b32.xlu0 %v4307, 4
      %v4807 = vpop.permute.xlu0 %4806
      %4808 = vrot.lane.b32.xlu0 %v4308, 4
      %v4809 = vpop.permute.xlu0 %4808
      %4810 = vrot.lane.b32.xlu0 %v4309, 4
      %v4811 = vpop.permute.xlu0 %4810
      %4812 = vrot.lane.b32.xlu0 %v4310, 4
      %v4813 = vpop.permute.xlu0 %4812
      %4814 = vrot.lane.b32.xlu0 %v4311, 4
      %v4815 = vpop.permute.xlu0 %4814
      %4816 = vrot.lane.b32.xlu0 %v4312, 4
      %v4817 = vpop.permute.xlu0 %4816
      %4818 = vrot.lane.b32.xlu0 %v4313, 4
      %v4819 = vpop.permute.xlu0 %4818
      %4820 = vrot.lane.b32.xlu0 %v4314, 4
      %v4821 = vpop.permute.xlu0 %4820
      %4822 = vrot.lane.b32.xlu0 %v4315, 4
      %v4823 = vpop.permute.xlu0 %4822
      %4824 = vrot.lane.b32.xlu0 %v4316, 4
      %v4825 = vpop.permute.xlu0 %4824
      %4826 = vrot.lane.b32.xlu0 %v4317, 4
      %v4827 = vpop.permute.xlu0 %4826
      %4828 = vrot.lane.b32.xlu0 %v4318, 4
      %v4829 = vpop.permute.xlu0 %4828
      %4830 = vrot.lane.b32.xlu0 %v4319, 4
      %v4831 = vpop.permute.xlu0 %4830
      %4832 = vrot.lane.b32.xlu0 %v4320, 4
      %v4833 = vpop.permute.xlu0 %4832
      %4834 = vrot.lane.b32.xlu0 %v4321, 4
      %v4835 = vpop.permute.xlu0 %4834
      %4836 = vrot.lane.b32.xlu0 %v4322, 4
      %v4837 = vpop.permute.xlu0 %4836
      %4938 = vrot.lane.b32.xlu0 %v4323, 8
      %v4939 = vpop.permute.xlu0 %4938
      %4940 = vrot.lane.b32.xlu0 %v4324, 8
      %v4941 = vpop.permute.xlu0 %4940
      %4942 = vrot.lane.b32.xlu0 %v4325, 8
      %v4943 = vpop.permute.xlu0 %4942
      %4944 = vrot.lane.b32.xlu0 %v4326, 8
      %v4945 = vpop.permute.xlu0 %4944
      %4946 = vrot.lane.b32.xlu0 %v4327, 8
      %v4947 = vpop.permute.xlu0 %4946
      %4948 = vrot.lane.b32.xlu0 %v4328, 8
      %v4949 = vpop.permute.xlu0 %4948
      %4950 = vrot.lane.b32.xlu0 %v4329, 8
      %v4951 = vpop.permute.xlu0 %4950
      %4952 = vrot.lane.b32.xlu0 %v4330, 8
      %v4953 = vpop.permute.xlu0 %4952
      %4954 = vrot.lane.b32.xlu0 %v4331, 8
      %v4955 = vpop.permute.xlu0 %4954
      %4956 = vrot.lane.b32.xlu0 %v4332, 8
      %v4957 = vpop.permute.xlu0 %4956
      %4958 = vrot.lane.b32.xlu0 %v4333, 8
      %v4959 = vpop.permute.xlu0 %4958
      %4960 = vrot.lane.b32.xlu0 %v4334, 8
      %v4961 = vpop.permute.xlu0 %4960
      %4962 = vrot.lane.b32.xlu0 %v4335, 8
      %v4963 = vpop.permute.xlu0 %4962
      %4964 = vrot.lane.b32.xlu0 %v4336, 8
      %v4965 = vpop.permute.xlu0 %4964
      %4966 = vrot.lane.b32.xlu0 %v4337, 8
      %v4967 = vpop.permute.xlu0 %4966
      %4968 = vrot.lane.b32.xlu0 %v4338, 8
      %v4969 = vpop.permute.xlu0 %4968
      %4970 = vrot.lane.b32.xlu0 %v4339, 8
      %v4971 = vpop.permute.xlu0 %4970
      %4972 = vrot.lane.b32.xlu0 %v4340, 8
      %v4973 = vpop.permute.xlu0 %4972
      %4974 = vrot.lane.b32.xlu0 %v4341, 8
      %v4975 = vpop.permute.xlu0 %4974
      %4976 = vrot.lane.b32.xlu0 %v4342, 8
      %v4977 = vpop.permute.xlu0 %4976
      %4978 = vrot.lane.b32.xlu0 %v4343, 8
      %v4979 = vpop.permute.xlu0 %4978
      %4980 = vrot.lane.b32.xlu0 %v4344, 8
      %v4981 = vpop.permute.xlu0 %4980
      %4982 = vrot.lane.b32.xlu0 %v4345, 8
      %v4983 = vpop.permute.xlu0 %4982
      %4984 = vrot.lane.b32.xlu0 %v4346, 8
      %v4985 = vpop.permute.xlu0 %4984
      %4986 = vrot.lane.b32.xlu0 %v4347, 8
      %v4987 = vpop.permute.xlu0 %4986
      %4988 = vrot.lane.b32.xlu0 %v4348, 8
      %v4989 = vpop.permute.xlu0 %4988
      %4990 = vrot.lane.b32.xlu0 %v4349, 8
      %v4991 = vpop.permute.xlu0 %4990
      %4992 = vrot.lane.b32.xlu0 %v4350, 8
      %v4993 = vpop.permute.xlu0 %4992
      %4994 = vrot.lane.b32.xlu0 %v4351, 8
      %v4995 = vpop.permute.xlu0 %4994
      %4996 = vrot.lane.b32.xlu0 %v4352, 8
      %v4997 = vpop.permute.xlu0 %4996
      %4998 = vrot.lane.b32.xlu0 %v4353, 8
      %v4999 = vpop.permute.xlu0 %4998
      %5000 = vrot.lane.b32.xlu0 %v4354, 8
      %v5001 = vpop.permute.xlu0 %5000
      %5002 = vrot.lane.b32.xlu0 %v4355, 8
      %v5003 = vpop.permute.xlu0 %5002
      %5004 = vrot.lane.b32.xlu0 %v4356, 8
      %v5005 = vpop.permute.xlu0 %5004
      %5006 = vrot.lane.b32.xlu0 %v4357, 8
      %v5007 = vpop.permute.xlu0 %5006
      %5008 = vrot.lane.b32.xlu0 %v4358, 8
      %v5009 = vpop.permute.xlu0 %5008
      %5010 = vrot.lane.b32.xlu0 %v4359, 8
      %v5011 = vpop.permute.xlu0 %5010
      %5012 = vrot.lane.b32.xlu0 %v4360, 8
      %v5013 = vpop.permute.xlu0 %5012
      %5014 = vrot.lane.b32.xlu0 %v4361, 8
      %v5015 = vpop.permute.xlu0 %5014
      %5016 = vrot.lane.b32.xlu0 %v4362, 8
      %v5017 = vpop.permute.xlu0 %5016
      %5018 = vrot.lane.b32.xlu0 %v4363, 8
      %v5019 = vpop.permute.xlu0 %5018
      %5020 = vrot.lane.b32.xlu0 %v4364, 8
      %v5021 = vpop.permute.xlu0 %5020
      %5022 = vrot.lane.b32.xlu0 %v4365, 8
      %v5023 = vpop.permute.xlu0 %5022
      %5024 = vrot.lane.b32.xlu0 %v4366, 8
      %v5025 = vpop.permute.xlu0 %5024
      %5026 = vrot.lane.b32.xlu0 %v4367, 8
      %v5027 = vpop.permute.xlu0 %5026
      %5028 = vrot.lane.b32.xlu0 %v4368, 8
      %v5029 = vpop.permute.xlu0 %5028
      %5030 = vrot.lane.b32.xlu0 %v4369, 8
      %v5031 = vpop.permute.xlu0 %5030
      %5032 = vrot.lane.b32.xlu0 %v4370, 8
      %v5033 = vpop.permute.xlu0 %5032
      %5034 = vrot.lane.b32.xlu0 %v4371, 8
      %v5035 = vpop.permute.xlu0 %5034
      %5036 = vrot.lane.b32.xlu0 %v4372, 8
      %v5037 = vpop.permute.xlu0 %5036
      %5138 = vrot.lane.b32.xlu0 %v4373, 12
      %v5139 = vpop.permute.xlu0 %5138
      %5140 = vrot.lane.b32.xlu0 %v4374, 12
      %v5141 = vpop.permute.xlu0 %5140
      %5142 = vrot.lane.b32.xlu0 %v4375, 12
      %v5143 = vpop.permute.xlu0 %5142
      %5144 = vrot.lane.b32.xlu0 %v4376, 12
      %v5145 = vpop.permute.xlu0 %5144
      %5146 = vrot.lane.b32.xlu0 %v4377, 12
      %v5147 = vpop.permute.xlu0 %5146
      %5148 = vrot.lane.b32.xlu0 %v4378, 12
      %v5149 = vpop.permute.xlu0 %5148
      %5150 = vrot.lane.b32.xlu0 %v4379, 12
      %v5151 = vpop.permute.xlu0 %5150
      %5152 = vrot.lane.b32.xlu0 %v4380, 12
      %v5153 = vpop.permute.xlu0 %5152
      %5154 = vrot.lane.b32.xlu0 %v4381, 12
      %v5155 = vpop.permute.xlu0 %5154
      %5156 = vrot.lane.b32.xlu0 %v4382, 12
      %v5157 = vpop.permute.xlu0 %5156
      %5158 = vrot.lane.b32.xlu0 %v4383, 12
      %v5159 = vpop.permute.xlu0 %5158
      %5160 = vrot.lane.b32.xlu0 %v4384, 12
      %v5161 = vpop.permute.xlu0 %5160
      %5162 = vrot.lane.b32.xlu0 %v4385, 12
      %v5163 = vpop.permute.xlu0 %5162
      %5164 = vrot.lane.b32.xlu0 %v4386, 12
      %v5165 = vpop.permute.xlu0 %5164
      %5166 = vrot.lane.b32.xlu0 %v4387, 12
      %v5167 = vpop.permute.xlu0 %5166
      %5168 = vrot.lane.b32.xlu0 %v4388, 12
      %v5169 = vpop.permute.xlu0 %5168
      %5170 = vrot.lane.b32.xlu0 %v4389, 12
      %v5171 = vpop.permute.xlu0 %5170
      %5172 = vrot.lane.b32.xlu0 %v4390, 12
      %v5173 = vpop.permute.xlu0 %5172
      %5174 = vrot.lane.b32.xlu0 %v4391, 12
      %v5175 = vpop.permute.xlu0 %5174
      %5176 = vrot.lane.b32.xlu0 %v4392, 12
      %v5177 = vpop.permute.xlu0 %5176
      %5178 = vrot.lane.b32.xlu0 %v4393, 12
      %v5179 = vpop.permute.xlu0 %5178
      %5180 = vrot.lane.b32.xlu0 %v4394, 12
      %v5181 = vpop.permute.xlu0 %5180
      %5182 = vrot.lane.b32.xlu0 %v4395, 12
      %v5183 = vpop.permute.xlu0 %5182
      %5184 = vrot.lane.b32.xlu0 %v4396, 12
      %v5185 = vpop.permute.xlu0 %5184
      %5186 = vrot.lane.b32.xlu0 %v4397, 12
      %v5187 = vpop.permute.xlu0 %5186
      %5188 = vrot.lane.b32.xlu0 %v4398, 12
      %v5189 = vpop.permute.xlu0 %5188
      %5190 = vrot.lane.b32.xlu0 %v4399, 12
      %v5191 = vpop.permute.xlu0 %5190
      %5192 = vrot.lane.b32.xlu0 %v4400, 12
      %v5193 = vpop.permute.xlu0 %5192
      %5194 = vrot.lane.b32.xlu0 %v4401, 12
      %v5195 = vpop.permute.xlu0 %5194
      %5196 = vrot.lane.b32.xlu0 %v4402, 12
      %v5197 = vpop.permute.xlu0 %5196
      %5198 = vrot.lane.b32.xlu0 %v4403, 12
      %v5199 = vpop.permute.xlu0 %5198
      %5200 = vrot.lane.b32.xlu0 %v4404, 12
      %v5201 = vpop.permute.xlu0 %5200
      %5202 = vrot.lane.b32.xlu0 %v4405, 12
      %v5203 = vpop.permute.xlu0 %5202
      %5204 = vrot.lane.b32.xlu0 %v4406, 12
      %v5205 = vpop.permute.xlu0 %5204
      %5206 = vrot.lane.b32.xlu0 %v4407, 12
      %v5207 = vpop.permute.xlu0 %5206
      %5208 = vrot.lane.b32.xlu0 %v4408, 12
      %v5209 = vpop.permute.xlu0 %5208
      %5210 = vrot.lane.b32.xlu0 %v4409, 12
      %v5211 = vpop.permute.xlu0 %5210
      %5212 = vrot.lane.b32.xlu0 %v4410, 12
      %v5213 = vpop.permute.xlu0 %5212
      %5214 = vrot.lane.b32.xlu0 %v4411, 12
      %v5215 = vpop.permute.xlu0 %5214
      %5216 = vrot.lane.b32.xlu0 %v4412, 12
      %v5217 = vpop.permute.xlu0 %5216
      %5218 = vrot.lane.b32.xlu0 %v4413, 12
      %v5219 = vpop.permute.xlu0 %5218
      %5220 = vrot.lane.b32.xlu0 %v4414, 12
      %v5221 = vpop.permute.xlu0 %5220
      %5222 = vrot.lane.b32.xlu0 %v4415, 12
      %v5223 = vpop.permute.xlu0 %5222
      %5224 = vrot.lane.b32.xlu0 %v4416, 12
      %v5225 = vpop.permute.xlu0 %5224
      %5226 = vrot.lane.b32.xlu0 %v4417, 12
      %v5227 = vpop.permute.xlu0 %5226
      %5228 = vrot.lane.b32.xlu0 %v4418, 12
      %v5229 = vpop.permute.xlu0 %5228
      %5230 = vrot.lane.b32.xlu0 %v4419, 12
      %v5231 = vpop.permute.xlu0 %5230
      %5232 = vrot.lane.b32.xlu0 %v4420, 12
      %v5233 = vpop.permute.xlu0 %5232
      %5234 = vrot.lane.b32.xlu0 %v4421, 12
      %v5235 = vpop.permute.xlu0 %5234
      %5236 = vrot.lane.b32.xlu0 %v4422, 12
      %v5237 = vpop.permute.xlu0 %5236
      %5338 = vrot.lane.b32.xlu0 %v4423, 16
      %v5339 = vpop.permute.xlu0 %5338
      %5340 = vrot.lane.b32.xlu0 %v4424, 16
      %v5341 = vpop.permute.xlu0 %5340
      %5342 = vrot.lane.b32.xlu0 %v4425, 16
      %v5343 = vpop.permute.xlu0 %5342
      %5344 = vrot.lane.b32.xlu0 %v4426, 16
      %v5345 = vpop.permute.xlu0 %5344
      %5346 = vrot.lane.b32.xlu0 %v4427, 16
      %v5347 = vpop.permute.xlu0 %5346
      %5348 = vrot.lane.b32.xlu0 %v4428, 16
      %v5349 = vpop.permute.xlu0 %5348
      %5350 = vrot.lane.b32.xlu0 %v4429, 16
      %v5351 = vpop.permute.xlu0 %5350
      %5352 = vrot.lane.b32.xlu0 %v4430, 16
      %v5353 = vpop.permute.xlu0 %5352
      %5354 = vrot.lane.b32.xlu0 %v4431, 16
      %v5355 = vpop.permute.xlu0 %5354
      %5356 = vrot.lane.b32.xlu0 %v4432, 16
      %v5357 = vpop.permute.xlu0 %5356
      %5358 = vrot.lane.b32.xlu0 %v4433, 16
      %v5359 = vpop.permute.xlu0 %5358
      %5360 = vrot.lane.b32.xlu0 %v4434, 16
      %v5361 = vpop.permute.xlu0 %5360
      %5362 = vrot.lane.b32.xlu0 %v4435, 16
      %v5363 = vpop.permute.xlu0 %5362
      %5364 = vrot.lane.b32.xlu0 %v4436, 16
      %v5365 = vpop.permute.xlu0 %5364
      %5366 = vrot.lane.b32.xlu0 %v4437, 16
      %v5367 = vpop.permute.xlu0 %5366
      %5368 = vrot.lane.b32.xlu0 %v4438, 16
      %v5369 = vpop.permute.xlu0 %5368
      %5370 = vrot.lane.b32.xlu0 %v4439, 16
      %v5371 = vpop.permute.xlu0 %5370
      %5372 = vrot.lane.b32.xlu0 %v4440, 16
      %v5373 = vpop.permute.xlu0 %5372
      %5374 = vrot.lane.b32.xlu0 %v4441, 16
      %v5375 = vpop.permute.xlu0 %5374
      %5376 = vrot.lane.b32.xlu0 %v4442, 16
      %v5377 = vpop.permute.xlu0 %5376
      %5378 = vrot.lane.b32.xlu0 %v4443, 16
      %v5379 = vpop.permute.xlu0 %5378
      %5380 = vrot.lane.b32.xlu0 %v4444, 16
      %v5381 = vpop.permute.xlu0 %5380
      %5382 = vrot.lane.b32.xlu0 %v4445, 16
      %v5383 = vpop.permute.xlu0 %5382
      %5384 = vrot.lane.b32.xlu0 %v4446, 16
      %v5385 = vpop.permute.xlu0 %5384
      %5386 = vrot.lane.b32.xlu0 %v4447, 16
      %v5387 = vpop.permute.xlu0 %5386
      %5388 = vrot.lane.b32.xlu0 %v4448, 16
      %v5389 = vpop.permute.xlu0 %5388
      %5390 = vrot.lane.b32.xlu0 %v4449, 16
      %v5391 = vpop.permute.xlu0 %5390
      %5392 = vrot.lane.b32.xlu0 %v4450, 16
      %v5393 = vpop.permute.xlu0 %5392
      %5394 = vrot.lane.b32.xlu0 %v4451, 16
      %v5395 = vpop.permute.xlu0 %5394
      %5396 = vrot.lane.b32.xlu0 %v4452, 16
      %v5397 = vpop.permute.xlu0 %5396
      %5398 = vrot.lane.b32.xlu0 %v4453, 16
      %v5399 = vpop.permute.xlu0 %5398
      %5400 = vrot.lane.b32.xlu0 %v4454, 16
      %v5401 = vpop.permute.xlu0 %5400
      %5402 = vrot.lane.b32.xlu0 %v4455, 16
      %v5403 = vpop.permute.xlu0 %5402
      %5404 = vrot.lane.b32.xlu0 %v4456, 16
      %v5405 = vpop.permute.xlu0 %5404
      %5406 = vrot.lane.b32.xlu0 %v4457, 16
      %v5407 = vpop.permute.xlu0 %5406
      %5408 = vrot.lane.b32.xlu0 %v4458, 16
      %v5409 = vpop.permute.xlu0 %5408
      %5410 = vrot.lane.b32.xlu0 %v4459, 16
      %v5411 = vpop.permute.xlu0 %5410
      %5412 = vrot.lane.b32.xlu0 %v4460, 16
      %v5413 = vpop.permute.xlu0 %5412
      %5414 = vrot.lane.b32.xlu0 %v4461, 16
      %v5415 = vpop.permute.xlu0 %5414
      %5416 = vrot.lane.b32.xlu0 %v4462, 16
      %v5417 = vpop.permute.xlu0 %5416
      %5418 = vrot.lane.b32.xlu0 %v4463, 16
      %v5419 = vpop.permute.xlu0 %5418
      %5420 = vrot.lane.b32.xlu0 %v4464, 16
      %v5421 = vpop.permute.xlu0 %5420
      %5422 = vrot.lane.b32.xlu0 %v4465, 16
      %v5423 = vpop.permute.xlu0 %5422
      %5424 = vrot.lane.b32.xlu0 %v4466, 16
      %v5425 = vpop.permute.xlu0 %5424
      %5426 = vrot.lane.b32.xlu0 %v4467, 16
      %v5427 = vpop.permute.xlu0 %5426
      %5428 = vrot.lane.b32.xlu0 %v4468, 16
      %v5429 = vpop.permute.xlu0 %5428
      %5430 = vrot.lane.b32.xlu0 %v4469, 16
      %v5431 = vpop.permute.xlu0 %5430
      %5432 = vrot.lane.b32.xlu0 %v4470, 16
      %v5433 = vpop.permute.xlu0 %5432
      %5434 = vrot.lane.b32.xlu0 %v4471, 16
      %v5435 = vpop.permute.xlu0 %5434
      %5436 = vrot.lane.b32.xlu0 %v4472, 16
      %v5437 = vpop.permute.xlu0 %5436
      %5490 = vrot.lane.b32.xlu0 %v4425, 20
      %v5491 = vpop.permute.xlu0 %5490
      %5492 = vrot.lane.b32.xlu0 %v4426, 20
      %v5493 = vpop.permute.xlu0 %5492
      %5494 = vrot.lane.b32.xlu0 %v4427, 20
      %v5495 = vpop.permute.xlu0 %5494
      %5496 = vrot.lane.b32.xlu0 %v4428, 20
      %v5497 = vpop.permute.xlu0 %5496
      %5498 = vrot.lane.b32.xlu0 %v4429, 20
      %v5499 = vpop.permute.xlu0 %5498
      %5500 = vrot.lane.b32.xlu0 %v4430, 20
      %v5501 = vpop.permute.xlu0 %5500
      %5502 = vrot.lane.b32.xlu0 %v4431, 20
      %v5503 = vpop.permute.xlu0 %5502
      %5504 = vrot.lane.b32.xlu0 %v4432, 20
      %v5505 = vpop.permute.xlu0 %5504
      %5506 = vrot.lane.b32.xlu0 %v4433, 20
      %v5507 = vpop.permute.xlu0 %5506
      %5508 = vrot.lane.b32.xlu0 %v4434, 20
      %v5509 = vpop.permute.xlu0 %5508
      %5510 = vrot.lane.b32.xlu0 %v4435, 20
      %v5511 = vpop.permute.xlu0 %5510
      %5512 = vrot.lane.b32.xlu0 %v4436, 20
      %v5513 = vpop.permute.xlu0 %5512
      %5514 = vrot.lane.b32.xlu0 %v4437, 20
      %v5515 = vpop.permute.xlu0 %5514
      %5516 = vrot.lane.b32.xlu0 %v4438, 20
      %v5517 = vpop.permute.xlu0 %5516
      %5518 = vrot.lane.b32.xlu0 %v4439, 20
      %v5519 = vpop.permute.xlu0 %5518
      %5520 = vrot.lane.b32.xlu0 %v4440, 20
      %v5521 = vpop.permute.xlu0 %5520
      %5522 = vrot.lane.b32.xlu0 %v4441, 20
      %v5523 = vpop.permute.xlu0 %5522
      %5524 = vrot.lane.b32.xlu0 %v4442, 20
      %v5525 = vpop.permute.xlu0 %5524
      %5526 = vrot.lane.b32.xlu0 %v4443, 20
      %v5527 = vpop.permute.xlu0 %5526
      %5528 = vrot.lane.b32.xlu0 %v4444, 20
      %v5529 = vpop.permute.xlu0 %5528
      %5530 = vrot.lane.b32.xlu0 %v4445, 20
      %v5531 = vpop.permute.xlu0 %5530
      %5532 = vrot.lane.b32.xlu0 %v4446, 20
      %v5533 = vpop.permute.xlu0 %5532
      %5534 = vrot.lane.b32.xlu0 %v4447, 20
      %v5535 = vpop.permute.xlu0 %5534
      %5536 = vrot.lane.b32.xlu0 %v4448, 20
      %v5537 = vpop.permute.xlu0 %5536
      %5538 = vrot.lane.b32.xlu0 %v4449, 20
      %v5539 = vpop.permute.xlu0 %5538
      %5540 = vrot.lane.b32.xlu0 %v4450, 20
      %v5541 = vpop.permute.xlu0 %5540
      %5542 = vrot.lane.b32.xlu0 %v4451, 20
      %v5543 = vpop.permute.xlu0 %5542
      %5544 = vrot.lane.b32.xlu0 %v4452, 20
      %v5545 = vpop.permute.xlu0 %5544
      %5546 = vrot.lane.b32.xlu0 %v4453, 20
      %v5547 = vpop.permute.xlu0 %5546
      %5548 = vrot.lane.b32.xlu0 %v4454, 20
      %v5549 = vpop.permute.xlu0 %5548
      %5550 = vrot.lane.b32.xlu0 %v4455, 20
      %v5551 = vpop.permute.xlu0 %5550
      %5552 = vrot.lane.b32.xlu0 %v4456, 20
      %v5553 = vpop.permute.xlu0 %5552
      %5554 = vrot.lane.b32.xlu0 %v4457, 20
      %v5555 = vpop.permute.xlu0 %5554
      %5556 = vrot.lane.b32.xlu0 %v4458, 20
      %v5557 = vpop.permute.xlu0 %5556
      %5558 = vrot.lane.b32.xlu0 %v4459, 20
      %v5559 = vpop.permute.xlu0 %5558
      %5560 = vrot.lane.b32.xlu0 %v4460, 20
      %v5561 = vpop.permute.xlu0 %5560
      %5562 = vrot.lane.b32.xlu0 %v4461, 20
      %v5563 = vpop.permute.xlu0 %5562
      %5564 = vrot.lane.b32.xlu0 %v4462, 20
      %v5565 = vpop.permute.xlu0 %5564
      %5566 = vrot.lane.b32.xlu0 %v4463, 20
      %v5567 = vpop.permute.xlu0 %5566
      %5568 = vrot.lane.b32.xlu0 %v4464, 20
      %v5569 = vpop.permute.xlu0 %5568
      %5570 = vrot.lane.b32.xlu0 %v4465, 20
      %v5571 = vpop.permute.xlu0 %5570
      %5572 = vrot.lane.b32.xlu0 %v4466, 20
      %v5573 = vpop.permute.xlu0 %5572
      %5574 = vrot.lane.b32.xlu0 %v4467, 20
      %v5575 = vpop.permute.xlu0 %5574
      %5576 = vrot.lane.b32.xlu0 %v4468, 20
      %v5577 = vpop.permute.xlu0 %5576
      %5578 = vrot.lane.b32.xlu0 %v4469, 20
      %v5579 = vpop.permute.xlu0 %5578
      %5580 = vrot.lane.b32.xlu0 %v4470, 20
      %v5581 = vpop.permute.xlu0 %5580
      %5582 = vrot.lane.b32.xlu0 %v4471, 20
      %v5583 = vpop.permute.xlu0 %5582
      %5584 = vrot.lane.b32.xlu0 %v4472, 20
      %v5585 = vpop.permute.xlu0 %5584
      %5586 = vrot.lane.b32.xlu0 %v4473, 20
      %v5587 = vpop.permute.xlu0 %5586
      %5588 = vrot.lane.b32.xlu0 %v4474, 20
      %v5589 = vpop.permute.xlu0 %5588
      %5690 = vrot.lane.b32.xlu0 %v4475, 24
      %v5691 = vpop.permute.xlu0 %5690
      %5692 = vrot.lane.b32.xlu0 %v4476, 24
      %v5693 = vpop.permute.xlu0 %5692
      %5694 = vrot.lane.b32.xlu0 %v4477, 24
      %v5695 = vpop.permute.xlu0 %5694
      %5696 = vrot.lane.b32.xlu0 %v4478, 24
      %v5697 = vpop.permute.xlu0 %5696
      %5698 = vrot.lane.b32.xlu0 %v4479, 24
      %v5699 = vpop.permute.xlu0 %5698
      %5700 = vrot.lane.b32.xlu0 %v4480, 24
      %v5701 = vpop.permute.xlu0 %5700
      %5702 = vrot.lane.b32.xlu0 %v4481, 24
      %v5703 = vpop.permute.xlu0 %5702
      %5704 = vrot.lane.b32.xlu0 %v4482, 24
      %v5705 = vpop.permute.xlu0 %5704
      %5706 = vrot.lane.b32.xlu0 %v4483, 24
      %v5707 = vpop.permute.xlu0 %5706
      %5708 = vrot.lane.b32.xlu0 %v4484, 24
      %v5709 = vpop.permute.xlu0 %5708
      %5710 = vrot.lane.b32.xlu0 %v4485, 24
      %v5711 = vpop.permute.xlu0 %5710
      %5712 = vrot.lane.b32.xlu0 %v4486, 24
      %v5713 = vpop.permute.xlu0 %5712
      %5714 = vrot.lane.b32.xlu0 %v4487, 24
      %v5715 = vpop.permute.xlu0 %5714
      %5716 = vrot.lane.b32.xlu0 %v4488, 24
      %v5717 = vpop.permute.xlu0 %5716
      %5718 = vrot.lane.b32.xlu0 %v4489, 24
      %v5719 = vpop.permute.xlu0 %5718
      %5720 = vrot.lane.b32.xlu0 %v4490, 24
      %v5721 = vpop.permute.xlu0 %5720
      %5722 = vrot.lane.b32.xlu0 %v4491, 24
      %v5723 = vpop.permute.xlu0 %5722
      %5724 = vrot.lane.b32.xlu0 %v4492, 24
      %v5725 = vpop.permute.xlu0 %5724
      %5726 = vrot.lane.b32.xlu0 %v4493, 24
      %v5727 = vpop.permute.xlu0 %5726
      %5728 = vrot.lane.b32.xlu0 %v4494, 24
      %v5729 = vpop.permute.xlu0 %5728
      %5730 = vrot.lane.b32.xlu0 %v4495, 24
      %v5731 = vpop.permute.xlu0 %5730
      %5732 = vrot.lane.b32.xlu0 %v4496, 24
      %v5733 = vpop.permute.xlu0 %5732
      %5734 = vrot.lane.b32.xlu0 %v4497, 24
      %v5735 = vpop.permute.xlu0 %5734
      %5736 = vrot.lane.b32.xlu0 %v4498, 24
      %v5737 = vpop.permute.xlu0 %5736
      %5738 = vrot.lane.b32.xlu0 %v4499, 24
      %v5739 = vpop.permute.xlu0 %5738
      %5740 = vrot.lane.b32.xlu0 %v4500, 24
      %v5741 = vpop.permute.xlu0 %5740
      %5742 = vrot.lane.b32.xlu0 %v4501, 24
      %v5743 = vpop.permute.xlu0 %5742
      %5744 = vrot.lane.b32.xlu0 %v4502, 24
      %v5745 = vpop.permute.xlu0 %5744
      %5746 = vrot.lane.b32.xlu0 %v4503, 24
      %v5747 = vpop.permute.xlu0 %5746
      %5748 = vrot.lane.b32.xlu0 %v4504, 24
      %v5749 = vpop.permute.xlu0 %5748
      %5750 = vrot.lane.b32.xlu0 %v4505, 24
      %v5751 = vpop.permute.xlu0 %5750
      %5752 = vrot.lane.b32.xlu0 %v4506, 24
      %v5753 = vpop.permute.xlu0 %5752
      %5754 = vrot.lane.b32.xlu0 %v4507, 24
      %v5755 = vpop.permute.xlu0 %5754
      %5756 = vrot.lane.b32.xlu0 %v4508, 24
      %v5757 = vpop.permute.xlu0 %5756
      %5758 = vrot.lane.b32.xlu0 %v4509, 24
      %v5759 = vpop.permute.xlu0 %5758
      %5760 = vrot.lane.b32.xlu0 %v4510, 24
      %v5761 = vpop.permute.xlu0 %5760
      %5762 = vrot.lane.b32.xlu0 %v4511, 24
      %v5763 = vpop.permute.xlu0 %5762
      %5764 = vrot.lane.b32.xlu0 %v4512, 24
      %v5765 = vpop.permute.xlu0 %5764
      %5766 = vrot.lane.b32.xlu0 %v4513, 24
      %v5767 = vpop.permute.xlu0 %5766
      %5768 = vrot.lane.b32.xlu0 %v4514, 24
      %v5769 = vpop.permute.xlu0 %5768
      %5770 = vrot.lane.b32.xlu0 %v4515, 24
      %v5771 = vpop.permute.xlu0 %5770
      %5772 = vrot.lane.b32.xlu0 %v4516, 24
      %v5773 = vpop.permute.xlu0 %5772
      %5774 = vrot.lane.b32.xlu0 %v4517, 24
      %v5775 = vpop.permute.xlu0 %5774
      %5776 = vrot.lane.b32.xlu0 %v4518, 24
      %v5777 = vpop.permute.xlu0 %5776
      %5778 = vrot.lane.b32.xlu0 %v4519, 24
      %v5779 = vpop.permute.xlu0 %5778
      %5780 = vrot.lane.b32.xlu0 %v4520, 24
      %v5781 = vpop.permute.xlu0 %5780
      %5782 = vrot.lane.b32.xlu0 %v4521, 24
      %v5783 = vpop.permute.xlu0 %5782
      %5784 = vrot.lane.b32.xlu0 %v4522, 24
      %v5785 = vpop.permute.xlu0 %5784
      %5786 = vrot.lane.b32.xlu0 %v4523, 24
      %v5787 = vpop.permute.xlu0 %5786
      %5788 = vrot.lane.b32.xlu0 %v4524, 24
      %v5789 = vpop.permute.xlu0 %5788
      %5890 = vrot.lane.b32.xlu0 %v4525, 28
      %v5891 = vpop.permute.xlu0 %5890
      %5892 = vrot.lane.b32.xlu0 %v4526, 28
      %v5893 = vpop.permute.xlu0 %5892
      %5894 = vrot.lane.b32.xlu0 %v4527, 28
      %v5895 = vpop.permute.xlu0 %5894
      %5896 = vrot.lane.b32.xlu0 %v4528, 28
      %v5897 = vpop.permute.xlu0 %5896
      %5898 = vrot.lane.b32.xlu0 %v4529, 28
      %v5899 = vpop.permute.xlu0 %5898
      %5900 = vrot.lane.b32.xlu0 %v4530, 28
      %v5901 = vpop.permute.xlu0 %5900
      %5902 = vrot.lane.b32.xlu0 %v4531, 28
      %v5903 = vpop.permute.xlu0 %5902
      %5904 = vrot.lane.b32.xlu0 %v4532, 28
      %v5905 = vpop.permute.xlu0 %5904
      %5906 = vrot.lane.b32.xlu0 %v4533, 28
      %v5907 = vpop.permute.xlu0 %5906
      %5908 = vrot.lane.b32.xlu0 %v4534, 28
      %v5909 = vpop.permute.xlu0 %5908
      %5910 = vrot.lane.b32.xlu0 %v4535, 28
      %v5911 = vpop.permute.xlu0 %5910
      %5912 = vrot.lane.b32.xlu0 %v4536, 28
      %v5913 = vpop.permute.xlu0 %5912
      %5914 = vrot.lane.b32.xlu0 %v4537, 28
      %v5915 = vpop.permute.xlu0 %5914
      %5916 = vrot.lane.b32.xlu0 %v4538, 28
      %v5917 = vpop.permute.xlu0 %5916
      %5918 = vrot.lane.b32.xlu0 %v4539, 28
      %v5919 = vpop.permute.xlu0 %5918
      %5920 = vrot.lane.b32.xlu0 %v4540, 28
      %v5921 = vpop.permute.xlu0 %5920
      %5922 = vrot.lane.b32.xlu0 %v4541, 28
      %v5923 = vpop.permute.xlu0 %5922
      %5924 = vrot.lane.b32.xlu0 %v4542, 28
      %v5925 = vpop.permute.xlu0 %5924
      %5926 = vrot.lane.b32.xlu0 %v4543, 28
      %v5927 = vpop.permute.xlu0 %5926
      %5928 = vrot.lane.b32.xlu0 %v4544, 28
      %v5929 = vpop.permute.xlu0 %5928
      %5930 = vrot.lane.b32.xlu0 %v4545, 28
      %v5931 = vpop.permute.xlu0 %5930
      %5932 = vrot.lane.b32.xlu0 %v4546, 28
      %v5933 = vpop.permute.xlu0 %5932
      %5934 = vrot.lane.b32.xlu0 %v4547, 28
      %v5935 = vpop.permute.xlu0 %5934
      %5936 = vrot.lane.b32.xlu0 %v4548, 28
      %v5937 = vpop.permute.xlu0 %5936
      %5938 = vrot.lane.b32.xlu0 %v4549, 28
      %v5939 = vpop.permute.xlu0 %5938
      %5940 = vrot.lane.b32.xlu0 %v4550, 28
      %v5941 = vpop.permute.xlu0 %5940
      %5942 = vrot.lane.b32.xlu0 %v4551, 28
      %v5943 = vpop.permute.xlu0 %5942
      %5944 = vrot.lane.b32.xlu0 %v4552, 28
      %v5945 = vpop.permute.xlu0 %5944
      %5946 = vrot.lane.b32.xlu0 %v4553, 28
      %v5947 = vpop.permute.xlu0 %5946
      %5948 = vrot.lane.b32.xlu0 %v4554, 28
      %v5949 = vpop.permute.xlu0 %5948
      %5950 = vrot.lane.b32.xlu0 %v4555, 28
      %v5951 = vpop.permute.xlu0 %5950
      %5952 = vrot.lane.b32.xlu0 %v4556, 28
      %v5953 = vpop.permute.xlu0 %5952
      %5954 = vrot.lane.b32.xlu0 %v4557, 28
      %v5955 = vpop.permute.xlu0 %5954
      %5956 = vrot.lane.b32.xlu0 %v4558, 28
      %v5957 = vpop.permute.xlu0 %5956
      %5958 = vrot.lane.b32.xlu0 %v4559, 28
      %v5959 = vpop.permute.xlu0 %5958
      %5960 = vrot.lane.b32.xlu0 %v4560, 28
      %v5961 = vpop.permute.xlu0 %5960
      %5962 = vrot.lane.b32.xlu0 %v4561, 28
      %v5963 = vpop.permute.xlu0 %5962
      %5964 = vrot.lane.b32.xlu0 %v4562, 28
      %v5965 = vpop.permute.xlu0 %5964
      %5966 = vrot.lane.b32.xlu0 %v4563, 28
      %v5967 = vpop.permute.xlu0 %5966
      %5968 = vrot.lane.b32.xlu0 %v4564, 28
      %v5969 = vpop.permute.xlu0 %5968
      %5970 = vrot.lane.b32.xlu0 %v4565, 28
      %v5971 = vpop.permute.xlu0 %5970
      %5972 = vrot.lane.b32.xlu0 %v4566, 28
      %v5973 = vpop.permute.xlu0 %5972
      %5974 = vrot.lane.b32.xlu0 %v4567, 28
      %v5975 = vpop.permute.xlu0 %5974
      %5976 = vrot.lane.b32.xlu0 %v4568, 28
      %v5977 = vpop.permute.xlu0 %5976
      %5978 = vrot.lane.b32.xlu0 %v4569, 28
      %v5979 = vpop.permute.xlu0 %5978
      %5980 = vrot.lane.b32.xlu0 %v4570, 28
      %v5981 = vpop.permute.xlu0 %5980
      %5982 = vrot.lane.b32.xlu0 %v4571, 28
      %v5983 = vpop.permute.xlu0 %5982
      %5984 = vrot.lane.b32.xlu0 %v4572, 28
      %v5985 = vpop.permute.xlu0 %5984
      %5986 = vrot.lane.b32.xlu0 %v4573, 28
      %v5987 = vpop.permute.xlu0 %5986
      %5988 = vrot.lane.b32.xlu0 %v4574, 28
      %v5989 = vpop.permute.xlu0 %5988
      %6090 = vrot.lane.b32.xlu0 %v4575, 32
      %v6091 = vpop.permute.xlu0 %6090
      %6092 = vrot.lane.b32.xlu0 %v4576, 32
      %v6093 = vpop.permute.xlu0 %6092
      %6094 = vrot.lane.b32.xlu0 %v4577, 32
      %v6095 = vpop.permute.xlu0 %6094
      %6096 = vrot.lane.b32.xlu0 %v4578, 32
      %v6097 = vpop.permute.xlu0 %6096
      %6098 = vrot.lane.b32.xlu0 %v4579, 32
      %v6099 = vpop.permute.xlu0 %6098
      %6100 = vrot.lane.b32.xlu0 %v4580, 32
      %v6101 = vpop.permute.xlu0 %6100
      %6102 = vrot.lane.b32.xlu0 %v4581, 32
      %v6103 = vpop.permute.xlu0 %6102
      %6104 = vrot.lane.b32.xlu0 %v4582, 32
      %v6105 = vpop.permute.xlu0 %6104
      %6106 = vrot.lane.b32.xlu0 %v4583, 32
      %v6107 = vpop.permute.xlu0 %6106
      %6108 = vrot.lane.b32.xlu0 %v4584, 32
      %v6109 = vpop.permute.xlu0 %6108
      %6110 = vrot.lane.b32.xlu0 %v4585, 32
      %v6111 = vpop.permute.xlu0 %6110
      %6112 = vrot.lane.b32.xlu0 %v4586, 32
      %v6113 = vpop.permute.xlu0 %6112
      %6114 = vrot.lane.b32.xlu0 %v4587, 32
      %v6115 = vpop.permute.xlu0 %6114
      %6116 = vrot.lane.b32.xlu0 %v4588, 32
      %v6117 = vpop.permute.xlu0 %6116
      %6118 = vrot.lane.b32.xlu0 %v4589, 32
      %v6119 = vpop.permute.xlu0 %6118
      %6120 = vrot.lane.b32.xlu0 %v4590, 32
      %v6121 = vpop.permute.xlu0 %6120
      %6122 = vrot.lane.b32.xlu0 %v4591, 32
      %v6123 = vpop.permute.xlu0 %6122
      %6124 = vrot.lane.b32.xlu0 %v4592, 32
      %v6125 = vpop.permute.xlu0 %6124
      %6126 = vrot.lane.b32.xlu0 %v4593, 32
      %v6127 = vpop.permute.xlu0 %6126
      %6128 = vrot.lane.b32.xlu0 %v4594, 32
      %v6129 = vpop.permute.xlu0 %6128
      %6130 = vrot.lane.b32.xlu0 %v4595, 32
      %v6131 = vpop.permute.xlu0 %6130
      %6132 = vrot.lane.b32.xlu0 %v4596, 32
      %v6133 = vpop.permute.xlu0 %6132
      %6134 = vrot.lane.b32.xlu0 %v4597, 32
      %v6135 = vpop.permute.xlu0 %6134
      %6136 = vrot.lane.b32.xlu0 %v4598, 32
      %v6137 = vpop.permute.xlu0 %6136
      %6138 = vrot.lane.b32.xlu0 %v4599, 32
      %v6139 = vpop.permute.xlu0 %6138
      %6140 = vrot.lane.b32.xlu0 %v4600, 32
      %v6141 = vpop.permute.xlu0 %6140
      %6142 = vrot.lane.b32.xlu0 %v4601, 32
      %v6143 = vpop.permute.xlu0 %6142
      %6144 = vrot.lane.b32.xlu0 %v4602, 32
      %v6145 = vpop.permute.xlu0 %6144
      %6146 = vrot.lane.b32.xlu0 %v4603, 32
      %v6147 = vpop.permute.xlu0 %6146
      %6148 = vrot.lane.b32.xlu0 %v4604, 32
      %v6149 = vpop.permute.xlu0 %6148
      %6150 = vrot.lane.b32.xlu0 %v4605, 32
      %v6151 = vpop.permute.xlu0 %6150
      %6152 = vrot.lane.b32.xlu0 %v4606, 32
      %v6153 = vpop.permute.xlu0 %6152
      %6154 = vrot.lane.b32.xlu0 %v4607, 32
      %v6155 = vpop.permute.xlu0 %6154
      %6156 = vrot.lane.b32.xlu0 %v4608, 32
      %v6157 = vpop.permute.xlu0 %6156
      %6158 = vrot.lane.b32.xlu0 %v4609, 32
      %v6159 = vpop.permute.xlu0 %6158
      %6160 = vrot.lane.b32.xlu0 %v4610, 32
      %v6161 = vpop.permute.xlu0 %6160
      %6162 = vrot.lane.b32.xlu0 %v4611, 32
      %v6163 = vpop.permute.xlu0 %6162
      %6164 = vrot.lane.b32.xlu0 %v4612, 32
      %v6165 = vpop.permute.xlu0 %6164
      %6166 = vrot.lane.b32.xlu0 %v4613, 32
      %v6167 = vpop.permute.xlu0 %6166
      %6168 = vrot.lane.b32.xlu0 %v4614, 32
      %v6169 = vpop.permute.xlu0 %6168
      %6170 = vrot.lane.b32.xlu0 %v4615, 32
      %v6171 = vpop.permute.xlu0 %6170
      %6172 = vrot.lane.b32.xlu0 %v4616, 32
      %v6173 = vpop.permute.xlu0 %6172
      %6174 = vrot.lane.b32.xlu0 %v4617, 32
      %v6175 = vpop.permute.xlu0 %6174
      %6176 = vrot.lane.b32.xlu0 %v4618, 32
      %v6177 = vpop.permute.xlu0 %6176
      %6178 = vrot.lane.b32.xlu0 %v4619, 32
      %v6179 = vpop.permute.xlu0 %6178
      %6180 = vrot.lane.b32.xlu0 %v4620, 32
      %v6181 = vpop.permute.xlu0 %6180
      %6182 = vrot.lane.b32.xlu0 %v4621, 32
      %v6183 = vpop.permute.xlu0 %6182
      %6184 = vrot.lane.b32.xlu0 %v4622, 32
      %v6185 = vpop.permute.xlu0 %6184
      %6186 = vrot.lane.b32.xlu0 %v4623, 32
      %v6187 = vpop.permute.xlu0 %6186
      %6188 = vrot.lane.b32.xlu0 %v4624, 32
      %v6189 = vpop.permute.xlu0 %6188
      %6290 = vrot.lane.b32.xlu0 %v4226, 36
      %v6291 = vpop.permute.xlu0 %6290
      %6292 = vrot.lane.b32.xlu0 %v4227, 36
      %v6293 = vpop.permute.xlu0 %6292
      %6294 = vrot.lane.b32.xlu0 %v4228, 36
      %v6295 = vpop.permute.xlu0 %6294
      %6296 = vrot.lane.b32.xlu0 %v4229, 36
      %v6297 = vpop.permute.xlu0 %6296
      %6298 = vrot.lane.b32.xlu0 %v4230, 36
      %v6299 = vpop.permute.xlu0 %6298
      %6300 = vrot.lane.b32.xlu0 %v4231, 36
      %v6301 = vpop.permute.xlu0 %6300
      %6302 = vrot.lane.b32.xlu0 %v4232, 36
      %v6303 = vpop.permute.xlu0 %6302
      %6304 = vrot.lane.b32.xlu0 %v4233, 36
      %v6305 = vpop.permute.xlu0 %6304
      %6306 = vrot.lane.b32.xlu0 %v4234, 36
      %v6307 = vpop.permute.xlu0 %6306
      %6308 = vrot.lane.b32.xlu0 %v4235, 36
      %v6309 = vpop.permute.xlu0 %6308
      %6310 = vrot.lane.b32.xlu0 %v4236, 36
      %v6311 = vpop.permute.xlu0 %6310
      %6312 = vrot.lane.b32.xlu0 %v4237, 36
      %v6313 = vpop.permute.xlu0 %6312
      %6314 = vrot.lane.b32.xlu0 %v4238, 36
      %v6315 = vpop.permute.xlu0 %6314
      %6316 = vrot.lane.b32.xlu0 %v4239, 36
      %v6317 = vpop.permute.xlu0 %6316
      %6318 = vrot.lane.b32.xlu0 %v4240, 36
      %v6319 = vpop.permute.xlu0 %6318
      %6320 = vrot.lane.b32.xlu0 %v4241, 36
      %v6321 = vpop.permute.xlu0 %6320
      %6322 = vrot.lane.b32.xlu0 %v4242, 36
      %v6323 = vpop.permute.xlu0 %6322
      %6324 = vrot.lane.b32.xlu0 %v4243, 36
      %v6325 = vpop.permute.xlu0 %6324
      %6326 = vrot.lane.b32.xlu0 %v4244, 36
      %v6327 = vpop.permute.xlu0 %6326
      %6328 = vrot.lane.b32.xlu0 %v4245, 36
      %v6329 = vpop.permute.xlu0 %6328
      %6330 = vrot.lane.b32.xlu0 %v4246, 36
      %v6331 = vpop.permute.xlu0 %6330
      %6332 = vrot.lane.b32.xlu0 %v4247, 36
      %v6333 = vpop.permute.xlu0 %6332
      %6334 = vrot.lane.b32.xlu0 %v4248, 36
      %v6335 = vpop.permute.xlu0 %6334
      %6336 = vrot.lane.b32.xlu0 %v4249, 36
      %v6337 = vpop.permute.xlu0 %6336
      %6338 = vrot.lane.b32.xlu0 %v4250, 36
      %v6339 = vpop.permute.xlu0 %6338
      %6340 = vrot.lane.b32.xlu0 %v4251, 36
      %v6341 = vpop.permute.xlu0 %6340
      %6342 = vrot.lane.b32.xlu0 %v4252, 36
      %v6343 = vpop.permute.xlu0 %6342
      %6344 = vrot.lane.b32.xlu0 %v4253, 36
      %v6345 = vpop.permute.xlu0 %6344
      %6346 = vrot.lane.b32.xlu0 %v4254, 36
      %v6347 = vpop.permute.xlu0 %6346
      %6348 = vrot.lane.b32.xlu0 %v4255, 36
      %v6349 = vpop.permute.xlu0 %6348
      %6350 = vrot.lane.b32.xlu0 %v4256, 36
      %v6351 = vpop.permute.xlu0 %6350
      %6352 = vrot.lane.b32.xlu0 %v4257, 36
      %v6353 = vpop.permute.xlu0 %6352
      %6354 = vrot.lane.b32.xlu0 %v4258, 36
      %v6355 = vpop.permute.xlu0 %6354
      %6356 = vrot.lane.b32.xlu0 %v4259, 36
      %v6357 = vpop.permute.xlu0 %6356
      %6358 = vrot.lane.b32.xlu0 %v4260, 36
      %v6359 = vpop.permute.xlu0 %6358
      %6360 = vrot.lane.b32.xlu0 %v4261, 36
      %v6361 = vpop.permute.xlu0 %6360
      %6362 = vrot.lane.b32.xlu0 %v4262, 36
      %v6363 = vpop.permute.xlu0 %6362
      %6364 = vrot.lane.b32.xlu0 %v4263, 36
      %v6365 = vpop.permute.xlu0 %6364
      %6366 = vrot.lane.b32.xlu0 %v4264, 36
      %v6367 = vpop.permute.xlu0 %6366
      %6368 = vrot.lane.b32.xlu0 %v4265, 36
      %v6369 = vpop.permute.xlu0 %6368
      %6370 = vrot.lane.b32.xlu0 %v4266, 36
      %v6371 = vpop.permute.xlu0 %6370
      %6372 = vrot.lane.b32.xlu0 %v4267, 36
      %v6373 = vpop.permute.xlu0 %6372
      %6374 = vrot.lane.b32.xlu0 %v4268, 36
      %v6375 = vpop.permute.xlu0 %6374
      %6376 = vrot.lane.b32.xlu0 %v4269, 36
      %v6377 = vpop.permute.xlu0 %6376
      %6378 = vrot.lane.b32.xlu0 %v4270, 36
      %v6379 = vpop.permute.xlu0 %6378
      %6380 = vrot.lane.b32.xlu0 %v4271, 36
      %v6381 = vpop.permute.xlu0 %6380
      %6382 = vrot.lane.b32.xlu0 %v4272, 36
      %v6383 = vpop.permute.xlu0 %6382
      %6384 = vrot.lane.b32.xlu0 %v4625, 36
      %v6385 = vpop.permute.xlu0 %6384
      %6386 = vrot.lane.b32.xlu0 %v4626, 36
      %v6387 = vpop.permute.xlu0 %6386
      %6388 = vrot.lane.b32.xlu0 %v4627, 36
      %v6389 = vpop.permute.xlu0 %6388
      %6442 = vrot.lane.b32.xlu0 %v4228, 40
      %v6443 = vpop.permute.xlu0 %6442
      %6444 = vrot.lane.b32.xlu0 %v4229, 40
      %v6445 = vpop.permute.xlu0 %6444
      %6446 = vrot.lane.b32.xlu0 %v4230, 40
      %v6447 = vpop.permute.xlu0 %6446
      %6448 = vrot.lane.b32.xlu0 %v4231, 40
      %v6449 = vpop.permute.xlu0 %6448
      %6450 = vrot.lane.b32.xlu0 %v4232, 40
      %v6451 = vpop.permute.xlu0 %6450
      %6452 = vrot.lane.b32.xlu0 %v4233, 40
      %v6453 = vpop.permute.xlu0 %6452
      %6454 = vrot.lane.b32.xlu0 %v4234, 40
      %v6455 = vpop.permute.xlu0 %6454
      %6456 = vrot.lane.b32.xlu0 %v4235, 40
      %v6457 = vpop.permute.xlu0 %6456
      %6458 = vrot.lane.b32.xlu0 %v4236, 40
      %v6459 = vpop.permute.xlu0 %6458
      %6460 = vrot.lane.b32.xlu0 %v4237, 40
      %v6461 = vpop.permute.xlu0 %6460
      %6462 = vrot.lane.b32.xlu0 %v4238, 40
      %v6463 = vpop.permute.xlu0 %6462
      %6464 = vrot.lane.b32.xlu0 %v4239, 40
      %v6465 = vpop.permute.xlu0 %6464
      %6466 = vrot.lane.b32.xlu0 %v4240, 40
      %v6467 = vpop.permute.xlu0 %6466
      %6468 = vrot.lane.b32.xlu0 %v4241, 40
      %v6469 = vpop.permute.xlu0 %6468
      %6470 = vrot.lane.b32.xlu0 %v4242, 40
      %v6471 = vpop.permute.xlu0 %6470
      %6472 = vrot.lane.b32.xlu0 %v4243, 40
      %v6473 = vpop.permute.xlu0 %6472
      %6474 = vrot.lane.b32.xlu0 %v4244, 40
      %v6475 = vpop.permute.xlu0 %6474
      %6476 = vrot.lane.b32.xlu0 %v4245, 40
      %v6477 = vpop.permute.xlu0 %6476
      %6478 = vrot.lane.b32.xlu0 %v4246, 40
      %v6479 = vpop.permute.xlu0 %6478
      %6480 = vrot.lane.b32.xlu0 %v4247, 40
      %v6481 = vpop.permute.xlu0 %6480
      %6482 = vrot.lane.b32.xlu0 %v4248, 40
      %v6483 = vpop.permute.xlu0 %6482
      %6484 = vrot.lane.b32.xlu0 %v4249, 40
      %v6485 = vpop.permute.xlu0 %6484
      %6486 = vrot.lane.b32.xlu0 %v4250, 40
      %v6487 = vpop.permute.xlu0 %6486
      %6488 = vrot.lane.b32.xlu0 %v4251, 40
      %v6489 = vpop.permute.xlu0 %6488
      %6490 = vrot.lane.b32.xlu0 %v4252, 40
      %v6491 = vpop.permute.xlu0 %6490
      %6492 = vrot.lane.b32.xlu0 %v4253, 40
      %v6493 = vpop.permute.xlu0 %6492
      %6494 = vrot.lane.b32.xlu0 %v4254, 40
      %v6495 = vpop.permute.xlu0 %6494
      %6496 = vrot.lane.b32.xlu0 %v4255, 40
      %v6497 = vpop.permute.xlu0 %6496
      %6498 = vrot.lane.b32.xlu0 %v4256, 40
      %v6499 = vpop.permute.xlu0 %6498
      %6500 = vrot.lane.b32.xlu0 %v4257, 40
      %v6501 = vpop.permute.xlu0 %6500
      %6502 = vrot.lane.b32.xlu0 %v4258, 40
      %v6503 = vpop.permute.xlu0 %6502
      %6504 = vrot.lane.b32.xlu0 %v4259, 40
      %v6505 = vpop.permute.xlu0 %6504
      %6506 = vrot.lane.b32.xlu0 %v4260, 40
      %v6507 = vpop.permute.xlu0 %6506
      %6508 = vrot.lane.b32.xlu0 %v4261, 40
      %v6509 = vpop.permute.xlu0 %6508
      %6510 = vrot.lane.b32.xlu0 %v4262, 40
      %v6511 = vpop.permute.xlu0 %6510
      %6512 = vrot.lane.b32.xlu0 %v4263, 40
      %v6513 = vpop.permute.xlu0 %6512
      %6514 = vrot.lane.b32.xlu0 %v4264, 40
      %v6515 = vpop.permute.xlu0 %6514
      %6516 = vrot.lane.b32.xlu0 %v4265, 40
      %v6517 = vpop.permute.xlu0 %6516
      %6518 = vrot.lane.b32.xlu0 %v4266, 40
      %v6519 = vpop.permute.xlu0 %6518
      %6520 = vrot.lane.b32.xlu0 %v4267, 40
      %v6521 = vpop.permute.xlu0 %6520
      %6522 = vrot.lane.b32.xlu0 %v4268, 40
      %v6523 = vpop.permute.xlu0 %6522
      %6524 = vrot.lane.b32.xlu0 %v4269, 40
      %v6525 = vpop.permute.xlu0 %6524
      %6526 = vrot.lane.b32.xlu0 %v4270, 40
      %v6527 = vpop.permute.xlu0 %6526
      %6528 = vrot.lane.b32.xlu0 %v4271, 40
      %v6529 = vpop.permute.xlu0 %6528
      %6530 = vrot.lane.b32.xlu0 %v4272, 40
      %v6531 = vpop.permute.xlu0 %6530
      %6532 = vrot.lane.b32.xlu0 %v4625, 40
      %v6533 = vpop.permute.xlu0 %6532
      %6534 = vrot.lane.b32.xlu0 %v4626, 40
      %v6535 = vpop.permute.xlu0 %6534
      %6536 = vrot.lane.b32.xlu0 %v4627, 40
      %v6537 = vpop.permute.xlu0 %6536
      %6538 = vrot.lane.b32.xlu0 %v4628, 40
      %v6539 = vpop.permute.xlu0 %6538
      %6540 = vrot.lane.b32.xlu0 %v4629, 40
      %v6541 = vpop.permute.xlu0 %6540
      %6597 = vrot.lane.b32.xlu0 %v4278, 44
      %v6598 = vpop.permute.xlu0 %6597
      %6599 = vrot.lane.b32.xlu0 %v4279, 44
      %v6600 = vpop.permute.xlu0 %6599
      %6601 = vrot.lane.b32.xlu0 %v4280, 44
      %v6602 = vpop.permute.xlu0 %6601
      %6603 = vrot.lane.b32.xlu0 %v4281, 44
      %v6604 = vpop.permute.xlu0 %6603
      %6605 = vrot.lane.b32.xlu0 %v4282, 44
      %v6606 = vpop.permute.xlu0 %6605
      %6607 = vrot.lane.b32.xlu0 %v4283, 44
      %v6608 = vpop.permute.xlu0 %6607
      %6609 = vrot.lane.b32.xlu0 %v4284, 44
      %v6610 = vpop.permute.xlu0 %6609
      %6611 = vrot.lane.b32.xlu0 %v4285, 44
      %v6612 = vpop.permute.xlu0 %6611
      %6613 = vrot.lane.b32.xlu0 %v4286, 44
      %v6614 = vpop.permute.xlu0 %6613
      %6615 = vrot.lane.b32.xlu0 %v4287, 44
      %v6616 = vpop.permute.xlu0 %6615
      %6617 = vrot.lane.b32.xlu0 %v4288, 44
      %v6618 = vpop.permute.xlu0 %6617
      %6619 = vrot.lane.b32.xlu0 %v4289, 44
      %v6620 = vpop.permute.xlu0 %6619
      %6621 = vrot.lane.b32.xlu0 %v4290, 44
      %v6622 = vpop.permute.xlu0 %6621
      %6623 = vrot.lane.b32.xlu0 %v4291, 44
      %v6624 = vpop.permute.xlu0 %6623
      %6625 = vrot.lane.b32.xlu0 %v4292, 44
      %v6626 = vpop.permute.xlu0 %6625
      %6627 = vrot.lane.b32.xlu0 %v4293, 44
      %v6628 = vpop.permute.xlu0 %6627
      %6629 = vrot.lane.b32.xlu0 %v4294, 44
      %v6630 = vpop.permute.xlu0 %6629
      %6631 = vrot.lane.b32.xlu0 %v4295, 44
      %v6632 = vpop.permute.xlu0 %6631
      %6633 = vrot.lane.b32.xlu0 %v4296, 44
      %v6634 = vpop.permute.xlu0 %6633
      %6635 = vrot.lane.b32.xlu0 %v4297, 44
      %v6636 = vpop.permute.xlu0 %6635
      %6637 = vrot.lane.b32.xlu0 %v4298, 44
      %v6638 = vpop.permute.xlu0 %6637
      %6639 = vrot.lane.b32.xlu0 %v4299, 44
      %v6640 = vpop.permute.xlu0 %6639
      %6641 = vrot.lane.b32.xlu0 %v4300, 44
      %v6642 = vpop.permute.xlu0 %6641
      %6643 = vrot.lane.b32.xlu0 %v4301, 44
      %v6644 = vpop.permute.xlu0 %6643
      %6645 = vrot.lane.b32.xlu0 %v4302, 44
      %v6646 = vpop.permute.xlu0 %6645
      %6647 = vrot.lane.b32.xlu0 %v4303, 44
      %v6648 = vpop.permute.xlu0 %6647
      %6649 = vrot.lane.b32.xlu0 %v4304, 44
      %v6650 = vpop.permute.xlu0 %6649
      %6651 = vrot.lane.b32.xlu0 %v4305, 44
      %v6652 = vpop.permute.xlu0 %6651
      %6653 = vrot.lane.b32.xlu0 %v4306, 44
      %v6654 = vpop.permute.xlu0 %6653
      %6655 = vrot.lane.b32.xlu0 %v4307, 44
      %v6656 = vpop.permute.xlu0 %6655
      %6657 = vrot.lane.b32.xlu0 %v4308, 44
      %v6658 = vpop.permute.xlu0 %6657
      %6659 = vrot.lane.b32.xlu0 %v4309, 44
      %v6660 = vpop.permute.xlu0 %6659
      %6661 = vrot.lane.b32.xlu0 %v4310, 44
      %v6662 = vpop.permute.xlu0 %6661
      %6663 = vrot.lane.b32.xlu0 %v4311, 44
      %v6664 = vpop.permute.xlu0 %6663
      %6665 = vrot.lane.b32.xlu0 %v4312, 44
      %v6666 = vpop.permute.xlu0 %6665
      %6667 = vrot.lane.b32.xlu0 %v4313, 44
      %v6668 = vpop.permute.xlu0 %6667
      %6669 = vrot.lane.b32.xlu0 %v4314, 44
      %v6670 = vpop.permute.xlu0 %6669
      %6671 = vrot.lane.b32.xlu0 %v4315, 44
      %v6672 = vpop.permute.xlu0 %6671
      %6673 = vrot.lane.b32.xlu0 %v4316, 44
      %v6674 = vpop.permute.xlu0 %6673
      %6675 = vrot.lane.b32.xlu0 %v4317, 44
      %v6676 = vpop.permute.xlu0 %6675
      %6677 = vrot.lane.b32.xlu0 %v4318, 44
      %v6678 = vpop.permute.xlu0 %6677
      %6679 = vrot.lane.b32.xlu0 %v4319, 44
      %v6680 = vpop.permute.xlu0 %6679
      %6681 = vrot.lane.b32.xlu0 %v4320, 44
      %v6682 = vpop.permute.xlu0 %6681
      %6683 = vrot.lane.b32.xlu0 %v4321, 44
      %v6684 = vpop.permute.xlu0 %6683
      %6685 = vrot.lane.b32.xlu0 %v4322, 44
      %v6686 = vpop.permute.xlu0 %6685
      %6687 = vrot.lane.b32.xlu0 %v4630, 44
      %v6688 = vpop.permute.xlu0 %6687
      %6689 = vrot.lane.b32.xlu0 %v4631, 44
      %v6690 = vpop.permute.xlu0 %6689
      %6691 = vrot.lane.b32.xlu0 %v4632, 44
      %v6692 = vpop.permute.xlu0 %6691
      %6693 = vrot.lane.b32.xlu0 %v4633, 44
      %v6694 = vpop.permute.xlu0 %6693
      %6695 = vrot.lane.b32.xlu0 %v4634, 44
      %v6696 = vpop.permute.xlu0 %6695
      %6752 = vrot.lane.b32.xlu0 %v4328, 48
      %v6753 = vpop.permute.xlu0 %6752
      %6754 = vrot.lane.b32.xlu0 %v4329, 48
      %v6755 = vpop.permute.xlu0 %6754
      %6756 = vrot.lane.b32.xlu0 %v4330, 48
      %v6757 = vpop.permute.xlu0 %6756
      %6758 = vrot.lane.b32.xlu0 %v4331, 48
      %v6759 = vpop.permute.xlu0 %6758
      %6760 = vrot.lane.b32.xlu0 %v4332, 48
      %v6761 = vpop.permute.xlu0 %6760
      %6762 = vrot.lane.b32.xlu0 %v4333, 48
      %v6763 = vpop.permute.xlu0 %6762
      %6764 = vrot.lane.b32.xlu0 %v4334, 48
      %v6765 = vpop.permute.xlu0 %6764
      %6766 = vrot.lane.b32.xlu0 %v4335, 48
      %v6767 = vpop.permute.xlu0 %6766
      %6768 = vrot.lane.b32.xlu0 %v4336, 48
      %v6769 = vpop.permute.xlu0 %6768
      %6770 = vrot.lane.b32.xlu0 %v4337, 48
      %v6771 = vpop.permute.xlu0 %6770
      %6772 = vrot.lane.b32.xlu0 %v4338, 48
      %v6773 = vpop.permute.xlu0 %6772
      %6774 = vrot.lane.b32.xlu0 %v4339, 48
      %v6775 = vpop.permute.xlu0 %6774
      %6776 = vrot.lane.b32.xlu0 %v4340, 48
      %v6777 = vpop.permute.xlu0 %6776
      %6778 = vrot.lane.b32.xlu0 %v4341, 48
      %v6779 = vpop.permute.xlu0 %6778
      %6780 = vrot.lane.b32.xlu0 %v4342, 48
      %v6781 = vpop.permute.xlu0 %6780
      %6782 = vrot.lane.b32.xlu0 %v4343, 48
      %v6783 = vpop.permute.xlu0 %6782
      %6784 = vrot.lane.b32.xlu0 %v4344, 48
      %v6785 = vpop.permute.xlu0 %6784
      %6786 = vrot.lane.b32.xlu0 %v4345, 48
      %v6787 = vpop.permute.xlu0 %6786
      %6788 = vrot.lane.b32.xlu0 %v4346, 48
      %v6789 = vpop.permute.xlu0 %6788
      %6790 = vrot.lane.b32.xlu0 %v4347, 48
      %v6791 = vpop.permute.xlu0 %6790
      %6792 = vrot.lane.b32.xlu0 %v4348, 48
      %v6793 = vpop.permute.xlu0 %6792
      %6794 = vrot.lane.b32.xlu0 %v4349, 48
      %v6795 = vpop.permute.xlu0 %6794
      %6796 = vrot.lane.b32.xlu0 %v4350, 48
      %v6797 = vpop.permute.xlu0 %6796
      %6798 = vrot.lane.b32.xlu0 %v4351, 48
      %v6799 = vpop.permute.xlu0 %6798
      %6800 = vrot.lane.b32.xlu0 %v4352, 48
      %v6801 = vpop.permute.xlu0 %6800
      %6802 = vrot.lane.b32.xlu0 %v4353, 48
      %v6803 = vpop.permute.xlu0 %6802
      %6804 = vrot.lane.b32.xlu0 %v4354, 48
      %v6805 = vpop.permute.xlu0 %6804
      %6806 = vrot.lane.b32.xlu0 %v4355, 48
      %v6807 = vpop.permute.xlu0 %6806
      %6808 = vrot.lane.b32.xlu0 %v4356, 48
      %v6809 = vpop.permute.xlu0 %6808
      %6810 = vrot.lane.b32.xlu0 %v4357, 48
      %v6811 = vpop.permute.xlu0 %6810
      %6812 = vrot.lane.b32.xlu0 %v4358, 48
      %v6813 = vpop.permute.xlu0 %6812
      %6814 = vrot.lane.b32.xlu0 %v4359, 48
      %v6815 = vpop.permute.xlu0 %6814
      %6816 = vrot.lane.b32.xlu0 %v4360, 48
      %v6817 = vpop.permute.xlu0 %6816
      %6818 = vrot.lane.b32.xlu0 %v4361, 48
      %v6819 = vpop.permute.xlu0 %6818
      %6820 = vrot.lane.b32.xlu0 %v4362, 48
      %v6821 = vpop.permute.xlu0 %6820
      %6822 = vrot.lane.b32.xlu0 %v4363, 48
      %v6823 = vpop.permute.xlu0 %6822
      %6824 = vrot.lane.b32.xlu0 %v4364, 48
      %v6825 = vpop.permute.xlu0 %6824
      %6826 = vrot.lane.b32.xlu0 %v4365, 48
      %v6827 = vpop.permute.xlu0 %6826
      %6828 = vrot.lane.b32.xlu0 %v4366, 48
      %v6829 = vpop.permute.xlu0 %6828
      %6830 = vrot.lane.b32.xlu0 %v4367, 48
      %v6831 = vpop.permute.xlu0 %6830
      %6832 = vrot.lane.b32.xlu0 %v4368, 48
      %v6833 = vpop.permute.xlu0 %6832
      %6834 = vrot.lane.b32.xlu0 %v4369, 48
      %v6835 = vpop.permute.xlu0 %6834
      %6836 = vrot.lane.b32.xlu0 %v4370, 48
      %v6837 = vpop.permute.xlu0 %6836
      %6838 = vrot.lane.b32.xlu0 %v4371, 48
      %v6839 = vpop.permute.xlu0 %6838
      %6840 = vrot.lane.b32.xlu0 %v4372, 48
      %v6841 = vpop.permute.xlu0 %6840
      %6842 = vrot.lane.b32.xlu0 %v4635, 48
      %v6843 = vpop.permute.xlu0 %6842
      %6844 = vrot.lane.b32.xlu0 %v4636, 48
      %v6845 = vpop.permute.xlu0 %6844
      %6846 = vrot.lane.b32.xlu0 %v4637, 48
      %v6847 = vpop.permute.xlu0 %6846
      %6848 = vrot.lane.b32.xlu0 %v4638, 48
      %v6849 = vpop.permute.xlu0 %6848
      %6850 = vrot.lane.b32.xlu0 %v4639, 48
      %v6851 = vpop.permute.xlu0 %6850
      %6907 = vrot.lane.b32.xlu0 %v4378, 52
      %v6908 = vpop.permute.xlu0 %6907
      %6909 = vrot.lane.b32.xlu0 %v4379, 52
      %v6910 = vpop.permute.xlu0 %6909
      %6911 = vrot.lane.b32.xlu0 %v4380, 52
      %v6912 = vpop.permute.xlu0 %6911
      %6913 = vrot.lane.b32.xlu0 %v4381, 52
      %v6914 = vpop.permute.xlu0 %6913
      %6915 = vrot.lane.b32.xlu0 %v4382, 52
      %v6916 = vpop.permute.xlu0 %6915
      %6917 = vrot.lane.b32.xlu0 %v4383, 52
      %v6918 = vpop.permute.xlu0 %6917
      %6919 = vrot.lane.b32.xlu0 %v4384, 52
      %v6920 = vpop.permute.xlu0 %6919
      %6921 = vrot.lane.b32.xlu0 %v4385, 52
      %v6922 = vpop.permute.xlu0 %6921
      %6923 = vrot.lane.b32.xlu0 %v4386, 52
      %v6924 = vpop.permute.xlu0 %6923
      %6925 = vrot.lane.b32.xlu0 %v4387, 52
      %v6926 = vpop.permute.xlu0 %6925
      %6927 = vrot.lane.b32.xlu0 %v4388, 52
      %v6928 = vpop.permute.xlu0 %6927
      %6929 = vrot.lane.b32.xlu0 %v4389, 52
      %v6930 = vpop.permute.xlu0 %6929
      %6931 = vrot.lane.b32.xlu0 %v4390, 52
      %v6932 = vpop.permute.xlu0 %6931
      %6933 = vrot.lane.b32.xlu0 %v4391, 52
      %v6934 = vpop.permute.xlu0 %6933
      %6935 = vrot.lane.b32.xlu0 %v4392, 52
      %v6936 = vpop.permute.xlu0 %6935
      %6937 = vrot.lane.b32.xlu0 %v4393, 52
      %v6938 = vpop.permute.xlu0 %6937
      %6939 = vrot.lane.b32.xlu0 %v4394, 52
      %v6940 = vpop.permute.xlu0 %6939
      %6941 = vrot.lane.b32.xlu0 %v4395, 52
      %v6942 = vpop.permute.xlu0 %6941
      %6943 = vrot.lane.b32.xlu0 %v4396, 52
      %v6944 = vpop.permute.xlu0 %6943
      %6945 = vrot.lane.b32.xlu0 %v4397, 52
      %v6946 = vpop.permute.xlu0 %6945
      %6947 = vrot.lane.b32.xlu0 %v4398, 52
      %v6948 = vpop.permute.xlu0 %6947
      %6949 = vrot.lane.b32.xlu0 %v4399, 52
      %v6950 = vpop.permute.xlu0 %6949
      %6951 = vrot.lane.b32.xlu0 %v4400, 52
      %v6952 = vpop.permute.xlu0 %6951
      %6953 = vrot.lane.b32.xlu0 %v4401, 52
      %v6954 = vpop.permute.xlu0 %6953
      %6955 = vrot.lane.b32.xlu0 %v4402, 52
      %v6956 = vpop.permute.xlu0 %6955
      %6957 = vrot.lane.b32.xlu0 %v4403, 52
      %v6958 = vpop.permute.xlu0 %6957
      %6959 = vrot.lane.b32.xlu0 %v4404, 52
      %v6960 = vpop.permute.xlu0 %6959
      %6961 = vrot.lane.b32.xlu0 %v4405, 52
      %v6962 = vpop.permute.xlu0 %6961
      %6963 = vrot.lane.b32.xlu0 %v4406, 52
      %v6964 = vpop.permute.xlu0 %6963
      %6965 = vrot.lane.b32.xlu0 %v4407, 52
      %v6966 = vpop.permute.xlu0 %6965
      %6967 = vrot.lane.b32.xlu0 %v4408, 52
      %v6968 = vpop.permute.xlu0 %6967
      %6969 = vrot.lane.b32.xlu0 %v4409, 52
      %v6970 = vpop.permute.xlu0 %6969
      %6971 = vrot.lane.b32.xlu0 %v4410, 52
      %v6972 = vpop.permute.xlu0 %6971
      %6973 = vrot.lane.b32.xlu0 %v4411, 52
      %v6974 = vpop.permute.xlu0 %6973
      %6975 = vrot.lane.b32.xlu0 %v4412, 52
      %v6976 = vpop.permute.xlu0 %6975
      %6977 = vrot.lane.b32.xlu0 %v4413, 52
      %v6978 = vpop.permute.xlu0 %6977
      %6979 = vrot.lane.b32.xlu0 %v4414, 52
      %v6980 = vpop.permute.xlu0 %6979
      %6981 = vrot.lane.b32.xlu0 %v4415, 52
      %v6982 = vpop.permute.xlu0 %6981
      %6983 = vrot.lane.b32.xlu0 %v4416, 52
      %v6984 = vpop.permute.xlu0 %6983
      %6985 = vrot.lane.b32.xlu0 %v4417, 52
      %v6986 = vpop.permute.xlu0 %6985
      %6987 = vrot.lane.b32.xlu0 %v4418, 52
      %v6988 = vpop.permute.xlu0 %6987
      %6989 = vrot.lane.b32.xlu0 %v4419, 52
      %v6990 = vpop.permute.xlu0 %6989
      %6991 = vrot.lane.b32.xlu0 %v4420, 52
      %v6992 = vpop.permute.xlu0 %6991
      %6993 = vrot.lane.b32.xlu0 %v4421, 52
      %v6994 = vpop.permute.xlu0 %6993
      %6995 = vrot.lane.b32.xlu0 %v4422, 52
      %v6996 = vpop.permute.xlu0 %6995
      %6997 = vrot.lane.b32.xlu0 %v4640, 52
      %v6998 = vpop.permute.xlu0 %6997
      %6999 = vrot.lane.b32.xlu0 %v4641, 52
      %v7000 = vpop.permute.xlu0 %6999
      %7001 = vrot.lane.b32.xlu0 %v4642, 52
      %v7002 = vpop.permute.xlu0 %7001
      %7003 = vrot.lane.b32.xlu0 %v4643, 52
      %v7004 = vpop.permute.xlu0 %7003
      %7005 = vrot.lane.b32.xlu0 %v4644, 52
      %v7006 = vpop.permute.xlu0 %7005
      %7060 = vrot.lane.b32.xlu0 %v4428, 56
      %v7061 = vpop.permute.xlu0 %7060
      %7062 = vrot.lane.b32.xlu0 %v4429, 56
      %v7063 = vpop.permute.xlu0 %7062
      %7064 = vrot.lane.b32.xlu0 %v4430, 56
      %v7065 = vpop.permute.xlu0 %7064
      %7066 = vrot.lane.b32.xlu0 %v4431, 56
      %v7067 = vpop.permute.xlu0 %7066
      %7068 = vrot.lane.b32.xlu0 %v4432, 56
      %v7069 = vpop.permute.xlu0 %7068
      %7070 = vrot.lane.b32.xlu0 %v4433, 56
      %v7071 = vpop.permute.xlu0 %7070
      %7072 = vrot.lane.b32.xlu0 %v4434, 56
      %v7073 = vpop.permute.xlu0 %7072
      %7074 = vrot.lane.b32.xlu0 %v4435, 56
      %v7075 = vpop.permute.xlu0 %7074
      %7076 = vrot.lane.b32.xlu0 %v4436, 56
      %v7077 = vpop.permute.xlu0 %7076
      %7078 = vrot.lane.b32.xlu0 %v4437, 56
      %v7079 = vpop.permute.xlu0 %7078
      %7080 = vrot.lane.b32.xlu0 %v4438, 56
      %v7081 = vpop.permute.xlu0 %7080
      %7082 = vrot.lane.b32.xlu0 %v4439, 56
      %v7083 = vpop.permute.xlu0 %7082
      %7084 = vrot.lane.b32.xlu0 %v4440, 56
      %v7085 = vpop.permute.xlu0 %7084
      %7086 = vrot.lane.b32.xlu0 %v4441, 56
      %v7087 = vpop.permute.xlu0 %7086
      %7088 = vrot.lane.b32.xlu0 %v4442, 56
      %v7089 = vpop.permute.xlu0 %7088
      %7090 = vrot.lane.b32.xlu0 %v4443, 56
      %v7091 = vpop.permute.xlu0 %7090
      %7092 = vrot.lane.b32.xlu0 %v4444, 56
      %v7093 = vpop.permute.xlu0 %7092
      %7094 = vrot.lane.b32.xlu0 %v4445, 56
      %v7095 = vpop.permute.xlu0 %7094
      %7096 = vrot.lane.b32.xlu0 %v4446, 56
      %v7097 = vpop.permute.xlu0 %7096
      %7098 = vrot.lane.b32.xlu0 %v4447, 56
      %v7099 = vpop.permute.xlu0 %7098
      %7100 = vrot.lane.b32.xlu0 %v4448, 56
      %v7101 = vpop.permute.xlu0 %7100
      %7102 = vrot.lane.b32.xlu0 %v4449, 56
      %v7103 = vpop.permute.xlu0 %7102
      %7104 = vrot.lane.b32.xlu0 %v4450, 56
      %v7105 = vpop.permute.xlu0 %7104
      %7106 = vrot.lane.b32.xlu0 %v4451, 56
      %v7107 = vpop.permute.xlu0 %7106
      %7108 = vrot.lane.b32.xlu0 %v4452, 56
      %v7109 = vpop.permute.xlu0 %7108
      %7110 = vrot.lane.b32.xlu0 %v4453, 56
      %v7111 = vpop.permute.xlu0 %7110
      %7112 = vrot.lane.b32.xlu0 %v4454, 56
      %v7113 = vpop.permute.xlu0 %7112
      %7114 = vrot.lane.b32.xlu0 %v4455, 56
      %v7115 = vpop.permute.xlu0 %7114
      %7116 = vrot.lane.b32.xlu0 %v4456, 56
      %v7117 = vpop.permute.xlu0 %7116
      %7118 = vrot.lane.b32.xlu0 %v4457, 56
      %v7119 = vpop.permute.xlu0 %7118
      %7120 = vrot.lane.b32.xlu0 %v4458, 56
      %v7121 = vpop.permute.xlu0 %7120
      %7122 = vrot.lane.b32.xlu0 %v4459, 56
      %v7123 = vpop.permute.xlu0 %7122
      %7124 = vrot.lane.b32.xlu0 %v4460, 56
      %v7125 = vpop.permute.xlu0 %7124
      %7126 = vrot.lane.b32.xlu0 %v4461, 56
      %v7127 = vpop.permute.xlu0 %7126
      %7128 = vrot.lane.b32.xlu0 %v4462, 56
      %v7129 = vpop.permute.xlu0 %7128
      %7130 = vrot.lane.b32.xlu0 %v4463, 56
      %v7131 = vpop.permute.xlu0 %7130
      %7132 = vrot.lane.b32.xlu0 %v4464, 56
      %v7133 = vpop.permute.xlu0 %7132
      %7134 = vrot.lane.b32.xlu0 %v4465, 56
      %v7135 = vpop.permute.xlu0 %7134
      %7136 = vrot.lane.b32.xlu0 %v4466, 56
      %v7137 = vpop.permute.xlu0 %7136
      %7138 = vrot.lane.b32.xlu0 %v4467, 56
      %v7139 = vpop.permute.xlu0 %7138
      %7140 = vrot.lane.b32.xlu0 %v4468, 56
      %v7141 = vpop.permute.xlu0 %7140
      %7142 = vrot.lane.b32.xlu0 %v4469, 56
      %v7143 = vpop.permute.xlu0 %7142
      %7144 = vrot.lane.b32.xlu0 %v4470, 56
      %v7145 = vpop.permute.xlu0 %7144
      %7146 = vrot.lane.b32.xlu0 %v4471, 56
      %v7147 = vpop.permute.xlu0 %7146
      %7148 = vrot.lane.b32.xlu0 %v4472, 56
      %v7149 = vpop.permute.xlu0 %7148
      %7150 = vrot.lane.b32.xlu0 %v4473, 56
      %v7151 = vpop.permute.xlu0 %7150
      %7152 = vrot.lane.b32.xlu0 %v4474, 56
      %v7153 = vpop.permute.xlu0 %7152
      %7154 = vrot.lane.b32.xlu0 %v4645, 56
      %v7155 = vpop.permute.xlu0 %7154
      %7156 = vrot.lane.b32.xlu0 %v4646, 56
      %v7157 = vpop.permute.xlu0 %7156
      %7158 = vrot.lane.b32.xlu0 %v4647, 56
      %v7159 = vpop.permute.xlu0 %7158
      %7212 = vrot.lane.b32.xlu0 %v4430, 60
      %v7213 = vpop.permute.xlu0 %7212
      %7214 = vrot.lane.b32.xlu0 %v4431, 60
      %v7215 = vpop.permute.xlu0 %7214
      %7216 = vrot.lane.b32.xlu0 %v4432, 60
      %v7217 = vpop.permute.xlu0 %7216
      %7218 = vrot.lane.b32.xlu0 %v4433, 60
      %v7219 = vpop.permute.xlu0 %7218
      %7220 = vrot.lane.b32.xlu0 %v4434, 60
      %v7221 = vpop.permute.xlu0 %7220
      %7222 = vrot.lane.b32.xlu0 %v4435, 60
      %v7223 = vpop.permute.xlu0 %7222
      %7224 = vrot.lane.b32.xlu0 %v4436, 60
      %v7225 = vpop.permute.xlu0 %7224
      %7226 = vrot.lane.b32.xlu0 %v4437, 60
      %v7227 = vpop.permute.xlu0 %7226
      %7228 = vrot.lane.b32.xlu0 %v4438, 60
      %v7229 = vpop.permute.xlu0 %7228
      %7230 = vrot.lane.b32.xlu0 %v4439, 60
      %v7231 = vpop.permute.xlu0 %7230
      %7232 = vrot.lane.b32.xlu0 %v4440, 60
      %v7233 = vpop.permute.xlu0 %7232
      %7234 = vrot.lane.b32.xlu0 %v4441, 60
      %v7235 = vpop.permute.xlu0 %7234
      %7236 = vrot.lane.b32.xlu0 %v4442, 60
      %v7237 = vpop.permute.xlu0 %7236
      %7238 = vrot.lane.b32.xlu0 %v4443, 60
      %v7239 = vpop.permute.xlu0 %7238
      %7240 = vrot.lane.b32.xlu0 %v4444, 60
      %v7241 = vpop.permute.xlu0 %7240
      %7242 = vrot.lane.b32.xlu0 %v4445, 60
      %v7243 = vpop.permute.xlu0 %7242
      %7244 = vrot.lane.b32.xlu0 %v4446, 60
      %v7245 = vpop.permute.xlu0 %7244
      %7246 = vrot.lane.b32.xlu0 %v4447, 60
      %v7247 = vpop.permute.xlu0 %7246
      %7248 = vrot.lane.b32.xlu0 %v4448, 60
      %v7249 = vpop.permute.xlu0 %7248
      %7250 = vrot.lane.b32.xlu0 %v4449, 60
      %v7251 = vpop.permute.xlu0 %7250
      %7252 = vrot.lane.b32.xlu0 %v4450, 60
      %v7253 = vpop.permute.xlu0 %7252
      %7254 = vrot.lane.b32.xlu0 %v4451, 60
      %v7255 = vpop.permute.xlu0 %7254
      %7256 = vrot.lane.b32.xlu0 %v4452, 60
      %v7257 = vpop.permute.xlu0 %7256
      %7258 = vrot.lane.b32.xlu0 %v4453, 60
      %v7259 = vpop.permute.xlu0 %7258
      %7260 = vrot.lane.b32.xlu0 %v4454, 60
      %v7261 = vpop.permute.xlu0 %7260
      %7262 = vrot.lane.b32.xlu0 %v4455, 60
      %v7263 = vpop.permute.xlu0 %7262
      %7264 = vrot.lane.b32.xlu0 %v4456, 60
      %v7265 = vpop.permute.xlu0 %7264
      %7266 = vrot.lane.b32.xlu0 %v4457, 60
      %v7267 = vpop.permute.xlu0 %7266
      %7268 = vrot.lane.b32.xlu0 %v4458, 60
      %v7269 = vpop.permute.xlu0 %7268
      %7270 = vrot.lane.b32.xlu0 %v4459, 60
      %v7271 = vpop.permute.xlu0 %7270
      %7272 = vrot.lane.b32.xlu0 %v4460, 60
      %v7273 = vpop.permute.xlu0 %7272
      %7274 = vrot.lane.b32.xlu0 %v4461, 60
      %v7275 = vpop.permute.xlu0 %7274
      %7276 = vrot.lane.b32.xlu0 %v4462, 60
      %v7277 = vpop.permute.xlu0 %7276
      %7278 = vrot.lane.b32.xlu0 %v4463, 60
      %v7279 = vpop.permute.xlu0 %7278
      %7280 = vrot.lane.b32.xlu0 %v4464, 60
      %v7281 = vpop.permute.xlu0 %7280
      %7282 = vrot.lane.b32.xlu0 %v4465, 60
      %v7283 = vpop.permute.xlu0 %7282
      %7284 = vrot.lane.b32.xlu0 %v4466, 60
      %v7285 = vpop.permute.xlu0 %7284
      %7286 = vrot.lane.b32.xlu0 %v4467, 60
      %v7287 = vpop.permute.xlu0 %7286
      %7288 = vrot.lane.b32.xlu0 %v4468, 60
      %v7289 = vpop.permute.xlu0 %7288
      %7290 = vrot.lane.b32.xlu0 %v4469, 60
      %v7291 = vpop.permute.xlu0 %7290
      %7292 = vrot.lane.b32.xlu0 %v4470, 60
      %v7293 = vpop.permute.xlu0 %7292
      %7294 = vrot.lane.b32.xlu0 %v4471, 60
      %v7295 = vpop.permute.xlu0 %7294
      %7296 = vrot.lane.b32.xlu0 %v4472, 60
      %v7297 = vpop.permute.xlu0 %7296
      %7298 = vrot.lane.b32.xlu0 %v4473, 60
      %v7299 = vpop.permute.xlu0 %7298
      %7300 = vrot.lane.b32.xlu0 %v4474, 60
      %v7301 = vpop.permute.xlu0 %7300
      %7302 = vrot.lane.b32.xlu0 %v4645, 60
      %v7303 = vpop.permute.xlu0 %7302
      %7304 = vrot.lane.b32.xlu0 %v4646, 60
      %v7305 = vpop.permute.xlu0 %7304
      %7306 = vrot.lane.b32.xlu0 %v4647, 60
      %v7307 = vpop.permute.xlu0 %7306
      %7308 = vrot.lane.b32.xlu0 %v4648, 60
      %v7309 = vpop.permute.xlu0 %7308
      %7310 = vrot.lane.b32.xlu0 %v4649, 60
      %v7311 = vpop.permute.xlu0 %7310
      %v7362 = vsel %vm815, %v4223, %v4739
      %v7363 = vsel %vm815, %v4224, %v4741
      %v7364 = vsel %vm815, %v4225, %v4743
      %v7365 = vsel %vm815, %v4226, %v4745
      %v7366 = vsel %vm815, %v4227, %v4747
      %v7367 = vsel %vm815, %v4228, %v4749
      %v7368 = vsel %vm815, %v4229, %v4751
      %v7369 = vsel %vm815, %v4230, %v4753
      %v7370 = vsel %vm815, %v4231, %v4755
      %v7371 = vsel %vm815, %v4232, %v4757
      %v7372 = vsel %vm815, %v4233, %v4759
      %v7373 = vsel %vm815, %v4234, %v4761
      %v7374 = vsel %vm815, %v4235, %v4763
      %v7375 = vsel %vm815, %v4236, %v4765
      %v7376 = vsel %vm815, %v4237, %v4767
      %v7377 = vsel %vm815, %v4238, %v4769
      %v7378 = vsel %vm815, %v4239, %v4771
      %v7379 = vsel %vm815, %v4240, %v4773
      %v7380 = vsel %vm815, %v4241, %v4775
      %v7381 = vsel %vm815, %v4242, %v4777
      %v7382 = vsel %vm815, %v4243, %v4779
      %v7383 = vsel %vm815, %v4244, %v4781
      %v7384 = vsel %vm815, %v4245, %v4783
      %v7385 = vsel %vm815, %v4246, %v4785
      %v7386 = vsel %vm815, %v4247, %v4787
      %v7387 = vsel %vm815, %v4248, %v4789
      %v7388 = vsel %vm815, %v4249, %v4791
      %v7389 = vsel %vm815, %v4250, %v4793
      %v7390 = vsel %vm815, %v4251, %v4795
      %v7391 = vsel %vm815, %v4252, %v4797
      %v7392 = vsel %vm815, %v4253, %v4799
      %v7393 = vsel %vm815, %v4254, %v4801
      %v7394 = vsel %vm815, %v4255, %v4803
      %v7395 = vsel %vm815, %v4256, %v4805
      %v7396 = vsel %vm815, %v4257, %v4807
      %v7397 = vsel %vm815, %v4258, %v4809
      %v7398 = vsel %vm815, %v4259, %v4811
      %v7399 = vsel %vm815, %v4260, %v4813
      %v7400 = vsel %vm815, %v4261, %v4815
      %v7401 = vsel %vm815, %v4262, %v4817
      %v7402 = vsel %vm815, %v4263, %v4819
      %v7403 = vsel %vm815, %v4264, %v4821
      %v7404 = vsel %vm815, %v4265, %v4823
      %v7405 = vsel %vm815, %v4266, %v4825
      %v7406 = vsel %vm815, %v4267, %v4827
      %v7407 = vsel %vm815, %v4268, %v4829
      %v7408 = vsel %vm815, %v4269, %v4831
      %v7409 = vsel %vm815, %v4270, %v4833
      %v7410 = vsel %vm815, %v4271, %v4835
      %v7411 = vsel %vm815, %v4272, %v4837
      %v7412 = vsel %vm3536, %v7362, %v4939
      %v7413 = vsel %vm3536, %v7363, %v4941
      %v7414 = vsel %vm3536, %v7364, %v4943
      %v7415 = vsel %vm3536, %v7365, %v4945
      %v7416 = vsel %vm3536, %v7366, %v4947
      %v7417 = vsel %vm3536, %v7367, %v4949
      %v7418 = vsel %vm3536, %v7368, %v4951
      %v7419 = vsel %vm3536, %v7369, %v4953
      %v7420 = vsel %vm3536, %v7370, %v4955
      %v7421 = vsel %vm3536, %v7371, %v4957
      %v7422 = vsel %vm3536, %v7372, %v4959
      %v7423 = vsel %vm3536, %v7373, %v4961
      %v7424 = vsel %vm3536, %v7374, %v4963
      %v7425 = vsel %vm3536, %v7375, %v4965
      %v7426 = vsel %vm3536, %v7376, %v4967
      %v7427 = vsel %vm3536, %v7377, %v4969
      %v7428 = vsel %vm3536, %v7378, %v4971
      %v7429 = vsel %vm3536, %v7379, %v4973
      %v7430 = vsel %vm3536, %v7380, %v4975
      %v7431 = vsel %vm3536, %v7381, %v4977
      %v7432 = vsel %vm3536, %v7382, %v4979
      %v7433 = vsel %vm3536, %v7383, %v4981
      %v7434 = vsel %vm3536, %v7384, %v4983
      %v7435 = vsel %vm3536, %v7385, %v4985
      %v7436 = vsel %vm3536, %v7386, %v4987
      %v7437 = vsel %vm3536, %v7387, %v4989
      %v7438 = vsel %vm3536, %v7388, %v4991
      %v7439 = vsel %vm3536, %v7389, %v4993
      %v7440 = vsel %vm3536, %v7390, %v4995
      %v7441 = vsel %vm3536, %v7391, %v4997
      %v7442 = vsel %vm3536, %v7392, %v4999
      %v7443 = vsel %vm3536, %v7393, %v5001
      %v7444 = vsel %vm3536, %v7394, %v5003
      %v7445 = vsel %vm3536, %v7395, %v5005
      %v7446 = vsel %vm3536, %v7396, %v5007
      %v7447 = vsel %vm3536, %v7397, %v5009
      %v7448 = vsel %vm3536, %v7398, %v5011
      %v7449 = vsel %vm3536, %v7399, %v5013
      %v7450 = vsel %vm3536, %v7400, %v5015
      %v7451 = vsel %vm3536, %v7401, %v5017
      %v7452 = vsel %vm3536, %v7402, %v5019
      %v7453 = vsel %vm3536, %v7403, %v5021
      %v7454 = vsel %vm3536, %v7404, %v5023
      %v7455 = vsel %vm3536, %v7405, %v5025
      %v7456 = vsel %vm3536, %v7406, %v5027
      %v7457 = vsel %vm3536, %v7407, %v5029
      %v7458 = vsel %vm3536, %v7408, %v5031
      %v7459 = vsel %vm3536, %v7409, %v5033
      %v7460 = vsel %vm3536, %v7410, %v5035
      %v7461 = vsel %vm3536, %v7411, %v5037
      %v7462 = vsel %vm3587, %v7412, %v5139
      %v7463 = vsel %vm3587, %v7413, %v5141
      %v7464 = vsel %vm3587, %v7414, %v5143
      %v7465 = vsel %vm3587, %v7415, %v5145
      %v7466 = vsel %vm3587, %v7416, %v5147
      %v7467 = vsel %vm3587, %v7417, %v5149
      %v7468 = vsel %vm3587, %v7418, %v5151
      %v7469 = vsel %vm3587, %v7419, %v5153
      %v7470 = vsel %vm3587, %v7420, %v5155
      %v7471 = vsel %vm3587, %v7421, %v5157
      %v7472 = vsel %vm3587, %v7422, %v5159
      %v7473 = vsel %vm3587, %v7423, %v5161
      %v7474 = vsel %vm3587, %v7424, %v5163
      %v7475 = vsel %vm3587, %v7425, %v5165
      %v7476 = vsel %vm3587, %v7426, %v5167
      %v7477 = vsel %vm3587, %v7427, %v5169
      %v7478 = vsel %vm3587, %v7428, %v5171
      %v7479 = vsel %vm3587, %v7429, %v5173
      %v7480 = vsel %vm3587, %v7430, %v5175
      %v7481 = vsel %vm3587, %v7431, %v5177
      %v7482 = vsel %vm3587, %v7432, %v5179
      %v7483 = vsel %vm3587, %v7433, %v5181
      %v7484 = vsel %vm3587, %v7434, %v5183
      %v7485 = vsel %vm3587, %v7435, %v5185
      %v7486 = vsel %vm3587, %v7436, %v5187
      %v7487 = vsel %vm3587, %v7437, %v5189
      %v7488 = vsel %vm3587, %v7438, %v5191
      %v7489 = vsel %vm3587, %v7439, %v5193
      %v7490 = vsel %vm3587, %v7440, %v5195
      %v7491 = vsel %vm3587, %v7441, %v5197
      %v7492 = vsel %vm3587, %v7442, %v5199
      %v7493 = vsel %vm3587, %v7443, %v5201
      %v7494 = vsel %vm3587, %v7444, %v5203
      %v7495 = vsel %vm3587, %v7445, %v5205
      %v7496 = vsel %vm3587, %v7446, %v5207
      %v7497 = vsel %vm3587, %v7447, %v5209
      %v7498 = vsel %vm3587, %v7448, %v5211
      %v7499 = vsel %vm3587, %v7449, %v5213
      %v7500 = vsel %vm3587, %v7450, %v5215
      %v7501 = vsel %vm3587, %v7451, %v5217
      %v7502 = vsel %vm3587, %v7452, %v5219
      %v7503 = vsel %vm3587, %v7453, %v5221
      %v7504 = vsel %vm3587, %v7454, %v5223
      %v7505 = vsel %vm3587, %v7455, %v5225
      %v7506 = vsel %vm3587, %v7456, %v5227
      %v7507 = vsel %vm3587, %v7457, %v5229
      %v7508 = vsel %vm3587, %v7458, %v5231
      %v7509 = vsel %vm3587, %v7459, %v5233
      %v7510 = vsel %vm3587, %v7460, %v5235
      %v7511 = vsel %vm3587, %v7461, %v5237
      %v7512 = vsel %vm3638, %v7462, %v5339
      %v7513 = vsel %vm3638, %v7463, %v5341
      %v7514 = vsel %vm3638, %v7464, %v5343
      %v7515 = vsel %vm3638, %v7465, %v5345
      %v7516 = vsel %vm3638, %v7466, %v5347
      %v7517 = vsel %vm3638, %v7467, %v5349
      %v7518 = vsel %vm3638, %v7468, %v5351
      %v7519 = vsel %vm3638, %v7469, %v5353
      %v7520 = vsel %vm3638, %v7470, %v5355
      %v7521 = vsel %vm3638, %v7471, %v5357
      %v7522 = vsel %vm3638, %v7472, %v5359
      %v7523 = vsel %vm3638, %v7473, %v5361
      %v7524 = vsel %vm3638, %v7474, %v5363
      %v7525 = vsel %vm3638, %v7475, %v5365
      %v7526 = vsel %vm3638, %v7476, %v5367
      %v7527 = vsel %vm3638, %v7477, %v5369
      %v7528 = vsel %vm3638, %v7478, %v5371
      %v7529 = vsel %vm3638, %v7479, %v5373
      %v7530 = vsel %vm3638, %v7480, %v5375
      %v7531 = vsel %vm3638, %v7481, %v5377
      %v7532 = vsel %vm3638, %v7482, %v5379
      %v7533 = vsel %vm3638, %v7483, %v5381
      %v7534 = vsel %vm3638, %v7484, %v5383
      %v7535 = vsel %vm3638, %v7485, %v5385
      %v7536 = vsel %vm3638, %v7486, %v5387
      %v7537 = vsel %vm3638, %v7487, %v5389
      %v7538 = vsel %vm3638, %v7488, %v5391
      %v7539 = vsel %vm3638, %v7489, %v5393
      %v7540 = vsel %vm3638, %v7490, %v5395
      %v7541 = vsel %vm3638, %v7491, %v5397
      %v7542 = vsel %vm3638, %v7492, %v5399
      %v7543 = vsel %vm3638, %v7493, %v5401
      %v7544 = vsel %vm3638, %v7494, %v5403
      %v7545 = vsel %vm3638, %v7495, %v5405
      %v7546 = vsel %vm3638, %v7496, %v5407
      %v7547 = vsel %vm3638, %v7497, %v5409
      %v7548 = vsel %vm3638, %v7498, %v5411
      %v7549 = vsel %vm3638, %v7499, %v5413
      %v7550 = vsel %vm3638, %v7500, %v5415
      %v7551 = vsel %vm3638, %v7501, %v5417
      %v7552 = vsel %vm3638, %v7502, %v5419
      %v7553 = vsel %vm3638, %v7503, %v5421
      %v7554 = vsel %vm3638, %v7504, %v5423
      %v7555 = vsel %vm3638, %v7505, %v5425
      %v7556 = vsel %vm3638, %v7506, %v5427
      %v7557 = vsel %vm3638, %v7507, %v5429
      %v7558 = vsel %vm3638, %v7508, %v5431
      %v7559 = vsel %vm3638, %v7509, %v5433
      %v7560 = vsel %vm3638, %v7510, %v5435
      %v7561 = vsel %vm3638, %v7511, %v5437
      %v7562 = vsel %vm3689, %v7512, %v5491
      %v7563 = vsel %vm3689, %v7513, %v5493
      %v7564 = vsel %vm3689, %v7514, %v5495
      %v7565 = vsel %vm3689, %v7515, %v5497
      %v7566 = vsel %vm3689, %v7516, %v5499
      %v7567 = vsel %vm3689, %v7517, %v5501
      %v7568 = vsel %vm3689, %v7518, %v5503
      %v7569 = vsel %vm3689, %v7519, %v5505
      %v7570 = vsel %vm3689, %v7520, %v5507
      %v7571 = vsel %vm3689, %v7521, %v5509
      %v7572 = vsel %vm3689, %v7522, %v5511
      %v7573 = vsel %vm3689, %v7523, %v5513
      %v7574 = vsel %vm3689, %v7524, %v5515
      %v7575 = vsel %vm3689, %v7525, %v5517
      %v7576 = vsel %vm3689, %v7526, %v5519
      %v7577 = vsel %vm3689, %v7527, %v5521
      %v7578 = vsel %vm3689, %v7528, %v5523
      %v7579 = vsel %vm3689, %v7529, %v5525
      %v7580 = vsel %vm3689, %v7530, %v5527
      %v7581 = vsel %vm3689, %v7531, %v5529
      %v7582 = vsel %vm3689, %v7532, %v5531
      %v7583 = vsel %vm3689, %v7533, %v5533
      %v7584 = vsel %vm3689, %v7534, %v5535
      %v7585 = vsel %vm3689, %v7535, %v5537
      %v7586 = vsel %vm3689, %v7536, %v5539
      %v7587 = vsel %vm3689, %v7537, %v5541
      %v7588 = vsel %vm3689, %v7538, %v5543
      %v7589 = vsel %vm3689, %v7539, %v5545
      %v7590 = vsel %vm3689, %v7540, %v5547
      %v7591 = vsel %vm3689, %v7541, %v5549
      %v7592 = vsel %vm3689, %v7542, %v5551
      %v7593 = vsel %vm3689, %v7543, %v5553
      %v7594 = vsel %vm3689, %v7544, %v5555
      %v7595 = vsel %vm3689, %v7545, %v5557
      %v7596 = vsel %vm3689, %v7546, %v5559
      %v7597 = vsel %vm3689, %v7547, %v5561
      %v7598 = vsel %vm3689, %v7548, %v5563
      %v7599 = vsel %vm3689, %v7549, %v5565
      %v7600 = vsel %vm3689, %v7550, %v5567
      %v7601 = vsel %vm3689, %v7551, %v5569
      %v7602 = vsel %vm3689, %v7552, %v5571
      %v7603 = vsel %vm3689, %v7553, %v5573
      %v7604 = vsel %vm3689, %v7554, %v5575
      %v7605 = vsel %vm3689, %v7555, %v5577
      %v7606 = vsel %vm3689, %v7556, %v5579
      %v7607 = vsel %vm3689, %v7557, %v5581
      %v7608 = vsel %vm3689, %v7558, %v5583
      %v7609 = vsel %vm3689, %v7559, %v5585
      %v7610 = vsel %vm3689, %v7560, %v5587
      %v7611 = vsel %vm3689, %v7561, %v5589
      %v7612 = vsel %vm3740, %v7562, %v5691
      %v7613 = vsel %vm3740, %v7563, %v5693
      %v7614 = vsel %vm3740, %v7564, %v5695
      %v7615 = vsel %vm3740, %v7565, %v5697
      %v7616 = vsel %vm3740, %v7566, %v5699
      %v7617 = vsel %vm3740, %v7567, %v5701
      %v7618 = vsel %vm3740, %v7568, %v5703
      %v7619 = vsel %vm3740, %v7569, %v5705
      %v7620 = vsel %vm3740, %v7570, %v5707
      %v7621 = vsel %vm3740, %v7571, %v5709
      %v7622 = vsel %vm3740, %v7572, %v5711
      %v7623 = vsel %vm3740, %v7573, %v5713
      %v7624 = vsel %vm3740, %v7574, %v5715
      %v7625 = vsel %vm3740, %v7575, %v5717
      %v7626 = vsel %vm3740, %v7576, %v5719
      %v7627 = vsel %vm3740, %v7577, %v5721
      %v7628 = vsel %vm3740, %v7578, %v5723
      %v7629 = vsel %vm3740, %v7579, %v5725
      %v7630 = vsel %vm3740, %v7580, %v5727
      %v7631 = vsel %vm3740, %v7581, %v5729
      %v7632 = vsel %vm3740, %v7582, %v5731
      %v7633 = vsel %vm3740, %v7583, %v5733
      %v7634 = vsel %vm3740, %v7584, %v5735
      %v7635 = vsel %vm3740, %v7585, %v5737
      %v7636 = vsel %vm3740, %v7586, %v5739
      %v7637 = vsel %vm3740, %v7587, %v5741
      %v7638 = vsel %vm3740, %v7588, %v5743
      %v7639 = vsel %vm3740, %v7589, %v5745
      %v7640 = vsel %vm3740, %v7590, %v5747
      %v7641 = vsel %vm3740, %v7591, %v5749
      %v7642 = vsel %vm3740, %v7592, %v5751
      %v7643 = vsel %vm3740, %v7593, %v5753
      %v7644 = vsel %vm3740, %v7594, %v5755
      %v7645 = vsel %vm3740, %v7595, %v5757
      %v7646 = vsel %vm3740, %v7596, %v5759
      %v7647 = vsel %vm3740, %v7597, %v5761
      %v7648 = vsel %vm3740, %v7598, %v5763
      %v7649 = vsel %vm3740, %v7599, %v5765
      %v7650 = vsel %vm3740, %v7600, %v5767
      %v7651 = vsel %vm3740, %v7601, %v5769
      %v7652 = vsel %vm3740, %v7602, %v5771
      %v7653 = vsel %vm3740, %v7603, %v5773
      %v7654 = vsel %vm3740, %v7604, %v5775
      %v7655 = vsel %vm3740, %v7605, %v5777
      %v7656 = vsel %vm3740, %v7606, %v5779
      %v7657 = vsel %vm3740, %v7607, %v5781
      %v7658 = vsel %vm3740, %v7608, %v5783
      %v7659 = vsel %vm3740, %v7609, %v5785
      %v7660 = vsel %vm3740, %v7610, %v5787
      %v7661 = vsel %vm3740, %v7611, %v5789
      %v7662 = vsel %vm3791, %v7612, %v5891
      %v7663 = vsel %vm3791, %v7613, %v5893
      %v7664 = vsel %vm3791, %v7614, %v5895
      %v7665 = vsel %vm3791, %v7615, %v5897
      %v7666 = vsel %vm3791, %v7616, %v5899
      %v7667 = vsel %vm3791, %v7617, %v5901
      %v7668 = vsel %vm3791, %v7618, %v5903
      %v7669 = vsel %vm3791, %v7619, %v5905
      %v7670 = vsel %vm3791, %v7620, %v5907
      %v7671 = vsel %vm3791, %v7621, %v5909
      %v7672 = vsel %vm3791, %v7622, %v5911
      %v7673 = vsel %vm3791, %v7623, %v5913
      %v7674 = vsel %vm3791, %v7624, %v5915
      %v7675 = vsel %vm3791, %v7625, %v5917
      %v7676 = vsel %vm3791, %v7626, %v5919
      %v7677 = vsel %vm3791, %v7627, %v5921
      %v7678 = vsel %vm3791, %v7628, %v5923
      %v7679 = vsel %vm3791, %v7629, %v5925
      %v7680 = vsel %vm3791, %v7630, %v5927
      %v7681 = vsel %vm3791, %v7631, %v5929
      %v7682 = vsel %vm3791, %v7632, %v5931
      %v7683 = vsel %vm3791, %v7633, %v5933
      %v7684 = vsel %vm3791, %v7634, %v5935
      %v7685 = vsel %vm3791, %v7635, %v5937
      %v7686 = vsel %vm3791, %v7636, %v5939
      %v7687 = vsel %vm3791, %v7637, %v5941
      %v7688 = vsel %vm3791, %v7638, %v5943
      %v7689 = vsel %vm3791, %v7639, %v5945
      %v7690 = vsel %vm3791, %v7640, %v5947
      %v7691 = vsel %vm3791, %v7641, %v5949
      %v7692 = vsel %vm3791, %v7642, %v5951
      %v7693 = vsel %vm3791, %v7643, %v5953
      %v7694 = vsel %vm3791, %v7644, %v5955
      %v7695 = vsel %vm3791, %v7645, %v5957
      %v7696 = vsel %vm3791, %v7646, %v5959
      %v7697 = vsel %vm3791, %v7647, %v5961
      %v7698 = vsel %vm3791, %v7648, %v5963
      %v7699 = vsel %vm3791, %v7649, %v5965
      %v7700 = vsel %vm3791, %v7650, %v5967
      %v7701 = vsel %vm3791, %v7651, %v5969
      %v7702 = vsel %vm3791, %v7652, %v5971
      %v7703 = vsel %vm3791, %v7653, %v5973
      %v7704 = vsel %vm3791, %v7654, %v5975
      %v7705 = vsel %vm3791, %v7655, %v5977
      %v7706 = vsel %vm3791, %v7656, %v5979
      %v7707 = vsel %vm3791, %v7657, %v5981
      %v7708 = vsel %vm3791, %v7658, %v5983
      %v7709 = vsel %vm3791, %v7659, %v5985
      %v7710 = vsel %vm3791, %v7660, %v5987
      %v7711 = vsel %vm3791, %v7661, %v5989
      %v7712 = vsel %vm3842, %v7662, %v6091
      %v7713 = vsel %vm3842, %v7663, %v6093
      %v7714 = vsel %vm3842, %v7664, %v6095
      %v7715 = vsel %vm3842, %v7665, %v6097
      %v7716 = vsel %vm3842, %v7666, %v6099
      %v7717 = vsel %vm3842, %v7667, %v6101
      %v7718 = vsel %vm3842, %v7668, %v6103
      %v7719 = vsel %vm3842, %v7669, %v6105
      %v7720 = vsel %vm3842, %v7670, %v6107
      %v7721 = vsel %vm3842, %v7671, %v6109
      %v7722 = vsel %vm3842, %v7672, %v6111
      %v7723 = vsel %vm3842, %v7673, %v6113
      %v7724 = vsel %vm3842, %v7674, %v6115
      %v7725 = vsel %vm3842, %v7675, %v6117
      %v7726 = vsel %vm3842, %v7676, %v6119
      %v7727 = vsel %vm3842, %v7677, %v6121
      %v7728 = vsel %vm3842, %v7678, %v6123
      %v7729 = vsel %vm3842, %v7679, %v6125
      %v7730 = vsel %vm3842, %v7680, %v6127
      %v7731 = vsel %vm3842, %v7681, %v6129
      %v7732 = vsel %vm3842, %v7682, %v6131
      %v7733 = vsel %vm3842, %v7683, %v6133
      %v7734 = vsel %vm3842, %v7684, %v6135
      %v7735 = vsel %vm3842, %v7685, %v6137
      %v7736 = vsel %vm3842, %v7686, %v6139
      %v7737 = vsel %vm3842, %v7687, %v6141
      %v7738 = vsel %vm3842, %v7688, %v6143
      %v7739 = vsel %vm3842, %v7689, %v6145
      %v7740 = vsel %vm3842, %v7690, %v6147
      %v7741 = vsel %vm3842, %v7691, %v6149
      %v7742 = vsel %vm3842, %v7692, %v6151
      %v7743 = vsel %vm3842, %v7693, %v6153
      %v7744 = vsel %vm3842, %v7694, %v6155
      %v7745 = vsel %vm3842, %v7695, %v6157
      %v7746 = vsel %vm3842, %v7696, %v6159
      %v7747 = vsel %vm3842, %v7697, %v6161
      %v7748 = vsel %vm3842, %v7698, %v6163
      %v7749 = vsel %vm3842, %v7699, %v6165
      %v7750 = vsel %vm3842, %v7700, %v6167
      %v7751 = vsel %vm3842, %v7701, %v6169
      %v7752 = vsel %vm3842, %v7702, %v6171
      %v7753 = vsel %vm3842, %v7703, %v6173
      %v7754 = vsel %vm3842, %v7704, %v6175
      %v7755 = vsel %vm3842, %v7705, %v6177
      %v7756 = vsel %vm3842, %v7706, %v6179
      %v7757 = vsel %vm3842, %v7707, %v6181
      %v7758 = vsel %vm3842, %v7708, %v6183
      %v7759 = vsel %vm3842, %v7709, %v6185
      %v7760 = vsel %vm3842, %v7710, %v6187
      %v7761 = vsel %vm3842, %v7711, %v6189
      %v7762 = vsel %vm3902, %v7712, %v6291
      %v7763 = vsel %vm3902, %v7713, %v6293
      %v7764 = vsel %vm3902, %v7714, %v6295
      %v7765 = vsel %vm3902, %v7715, %v6297
      %v7766 = vsel %vm3902, %v7716, %v6299
      %v7767 = vsel %vm3902, %v7717, %v6301
      %v7768 = vsel %vm3902, %v7718, %v6303
      %v7769 = vsel %vm3902, %v7719, %v6305
      %v7770 = vsel %vm3902, %v7720, %v6307
      %v7771 = vsel %vm3902, %v7721, %v6309
      %v7772 = vsel %vm3902, %v7722, %v6311
      %v7773 = vsel %vm3902, %v7723, %v6313
      %v7774 = vsel %vm3902, %v7724, %v6315
      %v7775 = vsel %vm3902, %v7725, %v6317
      %v7776 = vsel %vm3902, %v7726, %v6319
      %v7777 = vsel %vm3902, %v7727, %v6321
      %v7778 = vsel %vm3902, %v7728, %v6323
      %v7779 = vsel %vm3902, %v7729, %v6325
      %v7780 = vsel %vm3902, %v7730, %v6327
      %v7781 = vsel %vm3902, %v7731, %v6329
      %v7782 = vsel %vm3902, %v7732, %v6331
      %v7783 = vsel %vm3902, %v7733, %v6333
      %v7784 = vsel %vm3902, %v7734, %v6335
      %v7785 = vsel %vm3902, %v7735, %v6337
      %v7786 = vsel %vm3902, %v7736, %v6339
      %v7787 = vsel %vm3902, %v7737, %v6341
      %v7788 = vsel %vm3902, %v7738, %v6343
      %v7789 = vsel %vm3902, %v7739, %v6345
      %v7790 = vsel %vm3902, %v7740, %v6347
      %v7791 = vsel %vm3902, %v7741, %v6349
      %v7792 = vsel %vm3902, %v7742, %v6351
      %v7793 = vsel %vm3902, %v7743, %v6353
      %v7794 = vsel %vm3902, %v7744, %v6355
      %v7795 = vsel %vm3902, %v7745, %v6357
      %v7796 = vsel %vm3902, %v7746, %v6359
      %v7797 = vsel %vm3902, %v7747, %v6361
      %v7798 = vsel %vm3902, %v7748, %v6363
      %v7799 = vsel %vm3902, %v7749, %v6365
      %v7800 = vsel %vm3902, %v7750, %v6367
      %v7801 = vsel %vm3902, %v7751, %v6369
      %v7802 = vsel %vm3902, %v7752, %v6371
      %v7803 = vsel %vm3902, %v7753, %v6373
      %v7804 = vsel %vm3902, %v7754, %v6375
      %v7805 = vsel %vm3902, %v7755, %v6377
      %v7806 = vsel %vm3902, %v7756, %v6379
      %v7807 = vsel %vm3902, %v7757, %v6381
      %v7808 = vsel %vm3902, %v7758, %v6383
      %v7809 = vsel %vm3902, %v7759, %v6385
      %v7810 = vsel %vm3902, %v7760, %v6387
      %v7811 = vsel %vm3902, %v7761, %v6389
      %vm7812 = vcmask 326656
      %v7813 = vsel %vm7812, %v7762, %v6443
      %v7814 = vsel %vm7812, %v7763, %v6445
      %v7815 = vsel %vm7812, %v7764, %v6447
      %v7816 = vsel %vm7812, %v7765, %v6449
      %v7817 = vsel %vm7812, %v7766, %v6451
      %v7818 = vsel %vm7812, %v7767, %v6453
      %v7819 = vsel %vm7812, %v7768, %v6455
      %v7820 = vsel %vm7812, %v7769, %v6457
      %v7821 = vsel %vm7812, %v7770, %v6459
      %v7822 = vsel %vm7812, %v7771, %v6461
      %v7823 = vsel %vm7812, %v7772, %v6463
      %v7824 = vsel %vm7812, %v7773, %v6465
      %v7825 = vsel %vm7812, %v7774, %v6467
      %v7826 = vsel %vm7812, %v7775, %v6469
      %v7827 = vsel %vm7812, %v7776, %v6471
      %v7828 = vsel %vm7812, %v7777, %v6473
      %v7829 = vsel %vm7812, %v7778, %v6475
      %v7830 = vsel %vm7812, %v7779, %v6477
      %v7831 = vsel %vm7812, %v7780, %v6479
      %v7832 = vsel %vm7812, %v7781, %v6481
      %v7833 = vsel %vm7812, %v7782, %v6483
      %v7834 = vsel %vm7812, %v7783, %v6485
      %v7835 = vsel %vm7812, %v7784, %v6487
      %v7836 = vsel %vm7812, %v7785, %v6489
      %v7837 = vsel %vm7812, %v7786, %v6491
      %v7838 = vsel %vm7812, %v7787, %v6493
      %v7839 = vsel %vm7812, %v7788, %v6495
      %v7840 = vsel %vm7812, %v7789, %v6497
      %v7841 = vsel %vm7812, %v7790, %v6499
      %v7842 = vsel %vm7812, %v7791, %v6501
      %v7843 = vsel %vm7812, %v7792, %v6503
      %v7844 = vsel %vm7812, %v7793, %v6505
      %v7845 = vsel %vm7812, %v7794, %v6507
      %v7846 = vsel %vm7812, %v7795, %v6509
      %v7847 = vsel %vm7812, %v7796, %v6511
      %v7848 = vsel %vm7812, %v7797, %v6513
      %v7849 = vsel %vm7812, %v7798, %v6515
      %v7850 = vsel %vm7812, %v7799, %v6517
      %v7851 = vsel %vm7812, %v7800, %v6519
      %v7852 = vsel %vm7812, %v7801, %v6521
      %v7853 = vsel %vm7812, %v7802, %v6523
      %v7854 = vsel %vm7812, %v7803, %v6525
      %v7855 = vsel %vm7812, %v7804, %v6527
      %v7856 = vsel %vm7812, %v7805, %v6529
      %v7857 = vsel %vm7812, %v7806, %v6531
      %v7858 = vsel %vm7812, %v7807, %v6533
      %v7859 = vsel %vm7812, %v7808, %v6535
      %v7860 = vsel %vm7812, %v7809, %v6537
      %v7861 = vsel %vm7812, %v7810, %v6539
      %v7862 = vsel %vm7812, %v7811, %v6541
      %vm7863 = vcmask 359424
      %v7864 = vsel %vm7863, %v7813, %v6598
      %v7865 = vsel %vm7863, %v7814, %v6600
      %v7866 = vsel %vm7863, %v7815, %v6602
      %v7867 = vsel %vm7863, %v7816, %v6604
      %v7868 = vsel %vm7863, %v7817, %v6606
      %v7869 = vsel %vm7863, %v7818, %v6608
      %v7870 = vsel %vm7863, %v7819, %v6610
      %v7871 = vsel %vm7863, %v7820, %v6612
      %v7872 = vsel %vm7863, %v7821, %v6614
      %v7873 = vsel %vm7863, %v7822, %v6616
      %v7874 = vsel %vm7863, %v7823, %v6618
      %v7875 = vsel %vm7863, %v7824, %v6620
      %v7876 = vsel %vm7863, %v7825, %v6622
      %v7877 = vsel %vm7863, %v7826, %v6624
      %v7878 = vsel %vm7863, %v7827, %v6626
      %v7879 = vsel %vm7863, %v7828, %v6628
      %v7880 = vsel %vm7863, %v7829, %v6630
      %v7881 = vsel %vm7863, %v7830, %v6632
      %v7882 = vsel %vm7863, %v7831, %v6634
      %v7883 = vsel %vm7863, %v7832, %v6636
      %v7884 = vsel %vm7863, %v7833, %v6638
      %v7885 = vsel %vm7863, %v7834, %v6640
      %v7886 = vsel %vm7863, %v7835, %v6642
      %v7887 = vsel %vm7863, %v7836, %v6644
      %v7888 = vsel %vm7863, %v7837, %v6646
      %v7889 = vsel %vm7863, %v7838, %v6648
      %v7890 = vsel %vm7863, %v7839, %v6650
      %v7891 = vsel %vm7863, %v7840, %v6652
      %v7892 = vsel %vm7863, %v7841, %v6654
      %v7893 = vsel %vm7863, %v7842, %v6656
      %v7894 = vsel %vm7863, %v7843, %v6658
      %v7895 = vsel %vm7863, %v7844, %v6660
      %v7896 = vsel %vm7863, %v7845, %v6662
      %v7897 = vsel %vm7863, %v7846, %v6664
      %v7898 = vsel %vm7863, %v7847, %v6666
      %v7899 = vsel %vm7863, %v7848, %v6668
      %v7900 = vsel %vm7863, %v7849, %v6670
      %v7901 = vsel %vm7863, %v7850, %v6672
      %v7902 = vsel %vm7863, %v7851, %v6674
      %v7903 = vsel %vm7863, %v7852, %v6676
      %v7904 = vsel %vm7863, %v7853, %v6678
      %v7905 = vsel %vm7863, %v7854, %v6680
      %v7906 = vsel %vm7863, %v7855, %v6682
      %v7907 = vsel %vm7863, %v7856, %v6684
      %v7908 = vsel %vm7863, %v7857, %v6686
      %v7909 = vsel %vm7863, %v7858, %v6688
      %v7910 = vsel %vm7863, %v7859, %v6690
      %v7911 = vsel %vm7863, %v7860, %v6692
      %v7912 = vsel %vm7863, %v7861, %v6694
      %v7913 = vsel %vm7863, %v7862, %v6696
      %vm7914 = vcmask 392192
      %v7915 = vsel %vm7914, %v7864, %v6753
      %v7916 = vsel %vm7914, %v7865, %v6755
      %v7917 = vsel %vm7914, %v7866, %v6757
      %v7918 = vsel %vm7914, %v7867, %v6759
      %v7919 = vsel %vm7914, %v7868, %v6761
      %v7920 = vsel %vm7914, %v7869, %v6763
      %v7921 = vsel %vm7914, %v7870, %v6765
      %v7922 = vsel %vm7914, %v7871, %v6767
      %v7923 = vsel %vm7914, %v7872, %v6769
      %v7924 = vsel %vm7914, %v7873, %v6771
      %v7925 = vsel %vm7914, %v7874, %v6773
      %v7926 = vsel %vm7914, %v7875, %v6775
      %v7927 = vsel %vm7914, %v7876, %v6777
      %v7928 = vsel %vm7914, %v7877, %v6779
      %v7929 = vsel %vm7914, %v7878, %v6781
      %v7930 = vsel %vm7914, %v7879, %v6783
      %v7931 = vsel %vm7914, %v7880, %v6785
      %v7932 = vsel %vm7914, %v7881, %v6787
      %v7933 = vsel %vm7914, %v7882, %v6789
      %v7934 = vsel %vm7914, %v7883, %v6791
      %v7935 = vsel %vm7914, %v7884, %v6793
      %v7936 = vsel %vm7914, %v7885, %v6795
      %v7937 = vsel %vm7914, %v7886, %v6797
      %v7938 = vsel %vm7914, %v7887, %v6799
      %v7939 = vsel %vm7914, %v7888, %v6801
      %v7940 = vsel %vm7914, %v7889, %v6803
      %v7941 = vsel %vm7914, %v7890, %v6805
      %v7942 = vsel %vm7914, %v7891, %v6807
      %v7943 = vsel %vm7914, %v7892, %v6809
      %v7944 = vsel %vm7914, %v7893, %v6811
      %v7945 = vsel %vm7914, %v7894, %v6813
      %v7946 = vsel %vm7914, %v7895, %v6815
      %v7947 = vsel %vm7914, %v7896, %v6817
      %v7948 = vsel %vm7914, %v7897, %v6819
      %v7949 = vsel %vm7914, %v7898, %v6821
      %v7950 = vsel %vm7914, %v7899, %v6823
      %v7951 = vsel %vm7914, %v7900, %v6825
      %v7952 = vsel %vm7914, %v7901, %v6827
      %v7953 = vsel %vm7914, %v7902, %v6829
      %v7954 = vsel %vm7914, %v7903, %v6831
      %v7955 = vsel %vm7914, %v7904, %v6833
      %v7956 = vsel %vm7914, %v7905, %v6835
      %v7957 = vsel %vm7914, %v7906, %v6837
      %v7958 = vsel %vm7914, %v7907, %v6839
      %v7959 = vsel %vm7914, %v7908, %v6841
      %v7960 = vsel %vm7914, %v7909, %v6843
      %v7961 = vsel %vm7914, %v7910, %v6845
      %v7962 = vsel %vm7914, %v7911, %v6847
      %v7963 = vsel %vm7914, %v7912, %v6849
      %v7964 = vsel %vm7914, %v7913, %v6851
      %vm7965 = vcmask 424960
      %v7966 = vsel %vm7965, %v7915, %v6908
      %v7967 = vsel %vm7965, %v7916, %v6910
      %v7968 = vsel %vm7965, %v7917, %v6912
      %v7969 = vsel %vm7965, %v7918, %v6914
      %v7970 = vsel %vm7965, %v7919, %v6916
      %v7971 = vsel %vm7965, %v7920, %v6918
      %v7972 = vsel %vm7965, %v7921, %v6920
      %v7973 = vsel %vm7965, %v7922, %v6922
      %v7974 = vsel %vm7965, %v7923, %v6924
      %v7975 = vsel %vm7965, %v7924, %v6926
      %v7976 = vsel %vm7965, %v7925, %v6928
      %v7977 = vsel %vm7965, %v7926, %v6930
      %v7978 = vsel %vm7965, %v7927, %v6932
      %v7979 = vsel %vm7965, %v7928, %v6934
      %v7980 = vsel %vm7965, %v7929, %v6936
      %v7981 = vsel %vm7965, %v7930, %v6938
      %v7982 = vsel %vm7965, %v7931, %v6940
      %v7983 = vsel %vm7965, %v7932, %v6942
      %v7984 = vsel %vm7965, %v7933, %v6944
      %v7985 = vsel %vm7965, %v7934, %v6946
      %v7986 = vsel %vm7965, %v7935, %v6948
      %v7987 = vsel %vm7965, %v7936, %v6950
      %v7988 = vsel %vm7965, %v7937, %v6952
      %v7989 = vsel %vm7965, %v7938, %v6954
      %v7990 = vsel %vm7965, %v7939, %v6956
      %v7991 = vsel %vm7965, %v7940, %v6958
      %v7992 = vsel %vm7965, %v7941, %v6960
      %v7993 = vsel %vm7965, %v7942, %v6962
      %v7994 = vsel %vm7965, %v7943, %v6964
      %v7995 = vsel %vm7965, %v7944, %v6966
      %v7996 = vsel %vm7965, %v7945, %v6968
      %v7997 = vsel %vm7965, %v7946, %v6970
      %v7998 = vsel %vm7965, %v7947, %v6972
      %v7999 = vsel %vm7965, %v7948, %v6974
      %v8000 = vsel %vm7965, %v7949, %v6976
      %v8001 = vsel %vm7965, %v7950, %v6978
      %v8002 = vsel %vm7965, %v7951, %v6980
      %v8003 = vsel %vm7965, %v7952, %v6982
      %v8004 = vsel %vm7965, %v7953, %v6984
      %v8005 = vsel %vm7965, %v7954, %v6986
      %v8006 = vsel %vm7965, %v7955, %v6988
      %v8007 = vsel %vm7965, %v7956, %v6990
      %v8008 = vsel %vm7965, %v7957, %v6992
      %v8009 = vsel %vm7965, %v7958, %v6994
      %v8010 = vsel %vm7965, %v7959, %v6996
      %v8011 = vsel %vm7965, %v7960, %v6998
      %v8012 = vsel %vm7965, %v7961, %v7000
      %v8013 = vsel %vm7965, %v7962, %v7002
      %v8014 = vsel %vm7965, %v7963, %v7004
      %v8015 = vsel %vm7965, %v7964, %v7006
      %vm8016 = vcmask 457728
      %v8017 = vsel %vm8016, %v7966, %v7061
      %v8018 = vsel %vm8016, %v7967, %v7063
      %v8019 = vsel %vm8016, %v7968, %v7065
      %v8020 = vsel %vm8016, %v7969, %v7067
      %v8021 = vsel %vm8016, %v7970, %v7069
      %v8022 = vsel %vm8016, %v7971, %v7071
      %v8023 = vsel %vm8016, %v7972, %v7073
      %v8024 = vsel %vm8016, %v7973, %v7075
      %v8025 = vsel %vm8016, %v7974, %v7077
      %v8026 = vsel %vm8016, %v7975, %v7079
      %v8027 = vsel %vm8016, %v7976, %v7081
      %v8028 = vsel %vm8016, %v7977, %v7083
      %v8029 = vsel %vm8016, %v7978, %v7085
      %v8030 = vsel %vm8016, %v7979, %v7087
      %v8031 = vsel %vm8016, %v7980, %v7089
      %v8032 = vsel %vm8016, %v7981, %v7091
      %v8033 = vsel %vm8016, %v7982, %v7093
      %v8034 = vsel %vm8016, %v7983, %v7095
      %v8035 = vsel %vm8016, %v7984, %v7097
      %v8036 = vsel %vm8016, %v7985, %v7099
      %v8037 = vsel %vm8016, %v7986, %v7101
      %v8038 = vsel %vm8016, %v7987, %v7103
      %v8039 = vsel %vm8016, %v7988, %v7105
      %v8040 = vsel %vm8016, %v7989, %v7107
      %v8041 = vsel %vm8016, %v7990, %v7109
      %v8042 = vsel %vm8016, %v7991, %v7111
      %v8043 = vsel %vm8016, %v7992, %v7113
      %v8044 = vsel %vm8016, %v7993, %v7115
      %v8045 = vsel %vm8016, %v7994, %v7117
      %v8046 = vsel %vm8016, %v7995, %v7119
      %v8047 = vsel %vm8016, %v7996, %v7121
      %v8048 = vsel %vm8016, %v7997, %v7123
      %v8049 = vsel %vm8016, %v7998, %v7125
      %v8050 = vsel %vm8016, %v7999, %v7127
      %v8051 = vsel %vm8016, %v8000, %v7129
      %v8052 = vsel %vm8016, %v8001, %v7131
      %v8053 = vsel %vm8016, %v8002, %v7133
      %v8054 = vsel %vm8016, %v8003, %v7135
      %v8055 = vsel %vm8016, %v8004, %v7137
      %v8056 = vsel %vm8016, %v8005, %v7139
      %v8057 = vsel %vm8016, %v8006, %v7141
      %v8058 = vsel %vm8016, %v8007, %v7143
      %v8059 = vsel %vm8016, %v8008, %v7145
      %v8060 = vsel %vm8016, %v8009, %v7147
      %v8061 = vsel %vm8016, %v8010, %v7149
      %v8062 = vsel %vm8016, %v8011, %v7151
      %v8063 = vsel %vm8016, %v8012, %v7153
      %v8064 = vsel %vm8016, %v8013, %v7155
      %v8065 = vsel %vm8016, %v8014, %v7157
      %v8066 = vsel %vm8016, %v8015, %v7159
      %vm8067 = vcmask 490496
      %v8068 = vsel %vm8067, %v8017, %v7213
      %v8069 = vsel %vm8067, %v8018, %v7215
      %v8070 = vsel %vm8067, %v8019, %v7217
      %v8071 = vsel %vm8067, %v8020, %v7219
      %v8072 = vsel %vm8067, %v8021, %v7221
      %v8073 = vsel %vm8067, %v8022, %v7223
      %v8074 = vsel %vm8067, %v8023, %v7225
      %v8075 = vsel %vm8067, %v8024, %v7227
      %v8076 = vsel %vm8067, %v8025, %v7229
      %v8077 = vsel %vm8067, %v8026, %v7231
      %v8078 = vsel %vm8067, %v8027, %v7233
      %v8079 = vsel %vm8067, %v8028, %v7235
      %v8080 = vsel %vm8067, %v8029, %v7237
      %v8081 = vsel %vm8067, %v8030, %v7239
      %v8082 = vsel %vm8067, %v8031, %v7241
      %v8083 = vsel %vm8067, %v8032, %v7243
      %v8084 = vsel %vm8067, %v8033, %v7245
      %v8085 = vsel %vm8067, %v8034, %v7247
      %v8086 = vsel %vm8067, %v8035, %v7249
      %v8087 = vsel %vm8067, %v8036, %v7251
      %v8088 = vsel %vm8067, %v8037, %v7253
      %v8089 = vsel %vm8067, %v8038, %v7255
      %v8090 = vsel %vm8067, %v8039, %v7257
      %v8091 = vsel %vm8067, %v8040, %v7259
      %v8092 = vsel %vm8067, %v8041, %v7261
      %v8093 = vsel %vm8067, %v8042, %v7263
      %v8094 = vsel %vm8067, %v8043, %v7265
      %v8095 = vsel %vm8067, %v8044, %v7267
      %v8096 = vsel %vm8067, %v8045, %v7269
      %v8097 = vsel %vm8067, %v8046, %v7271
      %v8098 = vsel %vm8067, %v8047, %v7273
      %v8099 = vsel %vm8067, %v8048, %v7275
      %v8100 = vsel %vm8067, %v8049, %v7277
      %v8101 = vsel %vm8067, %v8050, %v7279
      %v8102 = vsel %vm8067, %v8051, %v7281
      %v8103 = vsel %vm8067, %v8052, %v7283
      %v8104 = vsel %vm8067, %v8053, %v7285
      %v8105 = vsel %vm8067, %v8054, %v7287
      %v8106 = vsel %vm8067, %v8055, %v7289
      %v8107 = vsel %vm8067, %v8056, %v7291
      %v8108 = vsel %vm8067, %v8057, %v7293
      %v8109 = vsel %vm8067, %v8058, %v7295
      %v8110 = vsel %vm8067, %v8059, %v7297
      %v8111 = vsel %vm8067, %v8060, %v7299
      %v8112 = vsel %vm8067, %v8061, %v7301
      %v8113 = vsel %vm8067, %v8062, %v7303
      %v8114 = vsel %vm8067, %v8063, %v7305
      %v8115 = vsel %vm8067, %v8064, %v7307
      %v8116 = vsel %vm8067, %v8065, %v7309
      %v8117 = vsel %vm8067, %v8066, %v7311
      %8123 = vrot.lane.b32.xlu0 %v4530, 4
      %v8124 = vpop.permute.xlu0 %8123
      %8125 = vrot.lane.b32.xlu0 %v4531, 4
      %v8126 = vpop.permute.xlu0 %8125
      %8127 = vrot.lane.b32.xlu0 %v4532, 4
      %v8128 = vpop.permute.xlu0 %8127
      %8129 = vrot.lane.b32.xlu0 %v4533, 4
      %v8130 = vpop.permute.xlu0 %8129
      %8131 = vrot.lane.b32.xlu0 %v4534, 4
      %v8132 = vpop.permute.xlu0 %8131
      %8133 = vrot.lane.b32.xlu0 %v4535, 4
      %v8134 = vpop.permute.xlu0 %8133
      %8135 = vrot.lane.b32.xlu0 %v4536, 4
      %v8136 = vpop.permute.xlu0 %8135
      %8137 = vrot.lane.b32.xlu0 %v4537, 4
      %v8138 = vpop.permute.xlu0 %8137
      %8139 = vrot.lane.b32.xlu0 %v4538, 4
      %v8140 = vpop.permute.xlu0 %8139
      %8141 = vrot.lane.b32.xlu0 %v4539, 4
      %v8142 = vpop.permute.xlu0 %8141
      %8143 = vrot.lane.b32.xlu0 %v4540, 4
      %v8144 = vpop.permute.xlu0 %8143
      %8145 = vrot.lane.b32.xlu0 %v4541, 4
      %v8146 = vpop.permute.xlu0 %8145
      %8147 = vrot.lane.b32.xlu0 %v4542, 4
      %v8148 = vpop.permute.xlu0 %8147
      %8149 = vrot.lane.b32.xlu0 %v4543, 4
      %v8150 = vpop.permute.xlu0 %8149
      %8151 = vrot.lane.b32.xlu0 %v4544, 4
      %v8152 = vpop.permute.xlu0 %8151
      %8153 = vrot.lane.b32.xlu0 %v4545, 4
      %v8154 = vpop.permute.xlu0 %8153
      %8155 = vrot.lane.b32.xlu0 %v4546, 4
      %v8156 = vpop.permute.xlu0 %8155
      %8157 = vrot.lane.b32.xlu0 %v4547, 4
      %v8158 = vpop.permute.xlu0 %8157
      %8159 = vrot.lane.b32.xlu0 %v4548, 4
      %v8160 = vpop.permute.xlu0 %8159
      %8161 = vrot.lane.b32.xlu0 %v4549, 4
      %v8162 = vpop.permute.xlu0 %8161
      %8163 = vrot.lane.b32.xlu0 %v4550, 4
      %v8164 = vpop.permute.xlu0 %8163
      %8165 = vrot.lane.b32.xlu0 %v4551, 4
      %v8166 = vpop.permute.xlu0 %8165
      %8167 = vrot.lane.b32.xlu0 %v4552, 4
      %v8168 = vpop.permute.xlu0 %8167
      %8169 = vrot.lane.b32.xlu0 %v4553, 4
      %v8170 = vpop.permute.xlu0 %8169
      %8171 = vrot.lane.b32.xlu0 %v4554, 4
      %v8172 = vpop.permute.xlu0 %8171
      %8173 = vrot.lane.b32.xlu0 %v4555, 4
      %v8174 = vpop.permute.xlu0 %8173
      %8175 = vrot.lane.b32.xlu0 %v4556, 4
      %v8176 = vpop.permute.xlu0 %8175
      %8177 = vrot.lane.b32.xlu0 %v4557, 4
      %v8178 = vpop.permute.xlu0 %8177
      %8179 = vrot.lane.b32.xlu0 %v4558, 4
      %v8180 = vpop.permute.xlu0 %8179
      %8181 = vrot.lane.b32.xlu0 %v4559, 4
      %v8182 = vpop.permute.xlu0 %8181
      %8183 = vrot.lane.b32.xlu0 %v4560, 4
      %v8184 = vpop.permute.xlu0 %8183
      %8185 = vrot.lane.b32.xlu0 %v4561, 4
      %v8186 = vpop.permute.xlu0 %8185
      %8187 = vrot.lane.b32.xlu0 %v4562, 4
      %v8188 = vpop.permute.xlu0 %8187
      %8189 = vrot.lane.b32.xlu0 %v4563, 4
      %v8190 = vpop.permute.xlu0 %8189
      %8191 = vrot.lane.b32.xlu0 %v4564, 4
      %v8192 = vpop.permute.xlu0 %8191
      %8193 = vrot.lane.b32.xlu0 %v4565, 4
      %v8194 = vpop.permute.xlu0 %8193
      %8195 = vrot.lane.b32.xlu0 %v4566, 4
      %v8196 = vpop.permute.xlu0 %8195
      %8197 = vrot.lane.b32.xlu0 %v4567, 4
      %v8198 = vpop.permute.xlu0 %8197
      %8199 = vrot.lane.b32.xlu0 %v4568, 4
      %v8200 = vpop.permute.xlu0 %8199
      %8201 = vrot.lane.b32.xlu0 %v4569, 4
      %v8202 = vpop.permute.xlu0 %8201
      %8203 = vrot.lane.b32.xlu0 %v4570, 4
      %v8204 = vpop.permute.xlu0 %8203
      %8205 = vrot.lane.b32.xlu0 %v4571, 4
      %v8206 = vpop.permute.xlu0 %8205
      %8207 = vrot.lane.b32.xlu0 %v4572, 4
      %v8208 = vpop.permute.xlu0 %8207
      %8209 = vrot.lane.b32.xlu0 %v4573, 4
      %v8210 = vpop.permute.xlu0 %8209
      %8211 = vrot.lane.b32.xlu0 %v4574, 4
      %v8212 = vpop.permute.xlu0 %8211
      %8213 = vrot.lane.b32.xlu0 %v4655, 4
      %v8214 = vpop.permute.xlu0 %8213
      %8215 = vrot.lane.b32.xlu0 %v4656, 4
      %v8216 = vpop.permute.xlu0 %8215
      %8217 = vrot.lane.b32.xlu0 %v4657, 4
      %v8218 = vpop.permute.xlu0 %8217
      %8219 = vrot.lane.b32.xlu0 %v4658, 4
      %v8220 = vpop.permute.xlu0 %8219
      %8221 = vrot.lane.b32.xlu0 %v4659, 4
      %v8222 = vpop.permute.xlu0 %8221
      %8278 = vrot.lane.b32.xlu0 %v4580, 8
      %v8279 = vpop.permute.xlu0 %8278
      %8280 = vrot.lane.b32.xlu0 %v4581, 8
      %v8281 = vpop.permute.xlu0 %8280
      %8282 = vrot.lane.b32.xlu0 %v4582, 8
      %v8283 = vpop.permute.xlu0 %8282
      %8284 = vrot.lane.b32.xlu0 %v4583, 8
      %v8285 = vpop.permute.xlu0 %8284
      %8286 = vrot.lane.b32.xlu0 %v4584, 8
      %v8287 = vpop.permute.xlu0 %8286
      %8288 = vrot.lane.b32.xlu0 %v4585, 8
      %v8289 = vpop.permute.xlu0 %8288
      %8290 = vrot.lane.b32.xlu0 %v4586, 8
      %v8291 = vpop.permute.xlu0 %8290
      %8292 = vrot.lane.b32.xlu0 %v4587, 8
      %v8293 = vpop.permute.xlu0 %8292
      %8294 = vrot.lane.b32.xlu0 %v4588, 8
      %v8295 = vpop.permute.xlu0 %8294
      %8296 = vrot.lane.b32.xlu0 %v4589, 8
      %v8297 = vpop.permute.xlu0 %8296
      %8298 = vrot.lane.b32.xlu0 %v4590, 8
      %v8299 = vpop.permute.xlu0 %8298
      %8300 = vrot.lane.b32.xlu0 %v4591, 8
      %v8301 = vpop.permute.xlu0 %8300
      %8302 = vrot.lane.b32.xlu0 %v4592, 8
      %v8303 = vpop.permute.xlu0 %8302
      %8304 = vrot.lane.b32.xlu0 %v4593, 8
      %v8305 = vpop.permute.xlu0 %8304
      %8306 = vrot.lane.b32.xlu0 %v4594, 8
      %v8307 = vpop.permute.xlu0 %8306
      %8308 = vrot.lane.b32.xlu0 %v4595, 8
      %v8309 = vpop.permute.xlu0 %8308
      %8310 = vrot.lane.b32.xlu0 %v4596, 8
      %v8311 = vpop.permute.xlu0 %8310
      %8312 = vrot.lane.b32.xlu0 %v4597, 8
      %v8313 = vpop.permute.xlu0 %8312
      %8314 = vrot.lane.b32.xlu0 %v4598, 8
      %v8315 = vpop.permute.xlu0 %8314
      %8316 = vrot.lane.b32.xlu0 %v4599, 8
      %v8317 = vpop.permute.xlu0 %8316
      %8318 = vrot.lane.b32.xlu0 %v4600, 8
      %v8319 = vpop.permute.xlu0 %8318
      %8320 = vrot.lane.b32.xlu0 %v4601, 8
      %v8321 = vpop.permute.xlu0 %8320
      %8322 = vrot.lane.b32.xlu0 %v4602, 8
      %v8323 = vpop.permute.xlu0 %8322
      %8324 = vrot.lane.b32.xlu0 %v4603, 8
      %v8325 = vpop.permute.xlu0 %8324
      %8326 = vrot.lane.b32.xlu0 %v4604, 8
      %v8327 = vpop.permute.xlu0 %8326
      %8328 = vrot.lane.b32.xlu0 %v4605, 8
      %v8329 = vpop.permute.xlu0 %8328
      %8330 = vrot.lane.b32.xlu0 %v4606, 8
      %v8331 = vpop.permute.xlu0 %8330
      %8332 = vrot.lane.b32.xlu0 %v4607, 8
      %v8333 = vpop.permute.xlu0 %8332
      %8334 = vrot.lane.b32.xlu0 %v4608, 8
      %v8335 = vpop.permute.xlu0 %8334
      %8336 = vrot.lane.b32.xlu0 %v4609, 8
      %v8337 = vpop.permute.xlu0 %8336
      %8338 = vrot.lane.b32.xlu0 %v4610, 8
      %v8339 = vpop.permute.xlu0 %8338
      %8340 = vrot.lane.b32.xlu0 %v4611, 8
      %v8341 = vpop.permute.xlu0 %8340
      %8342 = vrot.lane.b32.xlu0 %v4612, 8
      %v8343 = vpop.permute.xlu0 %8342
      %8344 = vrot.lane.b32.xlu0 %v4613, 8
      %v8345 = vpop.permute.xlu0 %8344
      %8346 = vrot.lane.b32.xlu0 %v4614, 8
      %v8347 = vpop.permute.xlu0 %8346
      %8348 = vrot.lane.b32.xlu0 %v4615, 8
      %v8349 = vpop.permute.xlu0 %8348
      %8350 = vrot.lane.b32.xlu0 %v4616, 8
      %v8351 = vpop.permute.xlu0 %8350
      %8352 = vrot.lane.b32.xlu0 %v4617, 8
      %v8353 = vpop.permute.xlu0 %8352
      %8354 = vrot.lane.b32.xlu0 %v4618, 8
      %v8355 = vpop.permute.xlu0 %8354
      %8356 = vrot.lane.b32.xlu0 %v4619, 8
      %v8357 = vpop.permute.xlu0 %8356
      %8358 = vrot.lane.b32.xlu0 %v4620, 8
      %v8359 = vpop.permute.xlu0 %8358
      %8360 = vrot.lane.b32.xlu0 %v4621, 8
      %v8361 = vpop.permute.xlu0 %8360
      %8362 = vrot.lane.b32.xlu0 %v4622, 8
      %v8363 = vpop.permute.xlu0 %8362
      %8364 = vrot.lane.b32.xlu0 %v4623, 8
      %v8365 = vpop.permute.xlu0 %8364
      %8366 = vrot.lane.b32.xlu0 %v4624, 8
      %v8367 = vpop.permute.xlu0 %8366
      %8368 = vrot.lane.b32.xlu0 %v4660, 8
      %v8369 = vpop.permute.xlu0 %8368
      %8370 = vrot.lane.b32.xlu0 %v4661, 8
      %v8371 = vpop.permute.xlu0 %8370
      %8372 = vrot.lane.b32.xlu0 %v4662, 8
      %v8373 = vpop.permute.xlu0 %8372
      %8374 = vrot.lane.b32.xlu0 %v4663, 8
      %v8375 = vpop.permute.xlu0 %8374
      %8376 = vrot.lane.b32.xlu0 %v4664, 8
      %v8377 = vpop.permute.xlu0 %8376
      %8431 = vrot.lane.b32.xlu0 %v4231, 12
      %v8432 = vpop.permute.xlu0 %8431
      %8433 = vrot.lane.b32.xlu0 %v4232, 12
      %v8434 = vpop.permute.xlu0 %8433
      %8435 = vrot.lane.b32.xlu0 %v4233, 12
      %v8436 = vpop.permute.xlu0 %8435
      %8437 = vrot.lane.b32.xlu0 %v4234, 12
      %v8438 = vpop.permute.xlu0 %8437
      %8439 = vrot.lane.b32.xlu0 %v4235, 12
      %v8440 = vpop.permute.xlu0 %8439
      %8441 = vrot.lane.b32.xlu0 %v4236, 12
      %v8442 = vpop.permute.xlu0 %8441
      %8443 = vrot.lane.b32.xlu0 %v4237, 12
      %v8444 = vpop.permute.xlu0 %8443
      %8445 = vrot.lane.b32.xlu0 %v4238, 12
      %v8446 = vpop.permute.xlu0 %8445
      %8447 = vrot.lane.b32.xlu0 %v4239, 12
      %v8448 = vpop.permute.xlu0 %8447
      %8449 = vrot.lane.b32.xlu0 %v4240, 12
      %v8450 = vpop.permute.xlu0 %8449
      %8451 = vrot.lane.b32.xlu0 %v4241, 12
      %v8452 = vpop.permute.xlu0 %8451
      %8453 = vrot.lane.b32.xlu0 %v4242, 12
      %v8454 = vpop.permute.xlu0 %8453
      %8455 = vrot.lane.b32.xlu0 %v4243, 12
      %v8456 = vpop.permute.xlu0 %8455
      %8457 = vrot.lane.b32.xlu0 %v4244, 12
      %v8458 = vpop.permute.xlu0 %8457
      %8459 = vrot.lane.b32.xlu0 %v4245, 12
      %v8460 = vpop.permute.xlu0 %8459
      %8461 = vrot.lane.b32.xlu0 %v4246, 12
      %v8462 = vpop.permute.xlu0 %8461
      %8463 = vrot.lane.b32.xlu0 %v4247, 12
      %v8464 = vpop.permute.xlu0 %8463
      %8465 = vrot.lane.b32.xlu0 %v4248, 12
      %v8466 = vpop.permute.xlu0 %8465
      %8467 = vrot.lane.b32.xlu0 %v4249, 12
      %v8468 = vpop.permute.xlu0 %8467
      %8469 = vrot.lane.b32.xlu0 %v4250, 12
      %v8470 = vpop.permute.xlu0 %8469
      %8471 = vrot.lane.b32.xlu0 %v4251, 12
      %v8472 = vpop.permute.xlu0 %8471
      %8473 = vrot.lane.b32.xlu0 %v4252, 12
      %v8474 = vpop.permute.xlu0 %8473
      %8475 = vrot.lane.b32.xlu0 %v4253, 12
      %v8476 = vpop.permute.xlu0 %8475
      %8477 = vrot.lane.b32.xlu0 %v4254, 12
      %v8478 = vpop.permute.xlu0 %8477
      %8479 = vrot.lane.b32.xlu0 %v4255, 12
      %v8480 = vpop.permute.xlu0 %8479
      %8481 = vrot.lane.b32.xlu0 %v4256, 12
      %v8482 = vpop.permute.xlu0 %8481
      %8483 = vrot.lane.b32.xlu0 %v4257, 12
      %v8484 = vpop.permute.xlu0 %8483
      %8485 = vrot.lane.b32.xlu0 %v4258, 12
      %v8486 = vpop.permute.xlu0 %8485
      %8487 = vrot.lane.b32.xlu0 %v4259, 12
      %v8488 = vpop.permute.xlu0 %8487
      %8489 = vrot.lane.b32.xlu0 %v4260, 12
      %v8490 = vpop.permute.xlu0 %8489
      %8491 = vrot.lane.b32.xlu0 %v4261, 12
      %v8492 = vpop.permute.xlu0 %8491
      %8493 = vrot.lane.b32.xlu0 %v4262, 12
      %v8494 = vpop.permute.xlu0 %8493
      %8495 = vrot.lane.b32.xlu0 %v4263, 12
      %v8496 = vpop.permute.xlu0 %8495
      %8497 = vrot.lane.b32.xlu0 %v4264, 12
      %v8498 = vpop.permute.xlu0 %8497
      %8499 = vrot.lane.b32.xlu0 %v4265, 12
      %v8500 = vpop.permute.xlu0 %8499
      %8501 = vrot.lane.b32.xlu0 %v4266, 12
      %v8502 = vpop.permute.xlu0 %8501
      %8503 = vrot.lane.b32.xlu0 %v4267, 12
      %v8504 = vpop.permute.xlu0 %8503
      %8505 = vrot.lane.b32.xlu0 %v4268, 12
      %v8506 = vpop.permute.xlu0 %8505
      %8507 = vrot.lane.b32.xlu0 %v4269, 12
      %v8508 = vpop.permute.xlu0 %8507
      %8509 = vrot.lane.b32.xlu0 %v4270, 12
      %v8510 = vpop.permute.xlu0 %8509
      %8511 = vrot.lane.b32.xlu0 %v4271, 12
      %v8512 = vpop.permute.xlu0 %8511
      %8513 = vrot.lane.b32.xlu0 %v4272, 12
      %v8514 = vpop.permute.xlu0 %8513
      %8515 = vrot.lane.b32.xlu0 %v4625, 12
      %v8516 = vpop.permute.xlu0 %8515
      %8517 = vrot.lane.b32.xlu0 %v4626, 12
      %v8518 = vpop.permute.xlu0 %8517
      %8519 = vrot.lane.b32.xlu0 %v4627, 12
      %v8520 = vpop.permute.xlu0 %8519
      %8521 = vrot.lane.b32.xlu0 %v4628, 12
      %v8522 = vpop.permute.xlu0 %8521
      %8523 = vrot.lane.b32.xlu0 %v4629, 12
      %v8524 = vpop.permute.xlu0 %8523
      %8525 = vrot.lane.b32.xlu0 %v4665, 12
      %v8526 = vpop.permute.xlu0 %8525
      %8527 = vrot.lane.b32.xlu0 %v4666, 12
      %v8528 = vpop.permute.xlu0 %8527
      %8529 = vrot.lane.b32.xlu0 %v4667, 12
      %v8530 = vpop.permute.xlu0 %8529
      %8583 = vrot.lane.b32.xlu0 %v4233, 16
      %v8584 = vpop.permute.xlu0 %8583
      %8585 = vrot.lane.b32.xlu0 %v4234, 16
      %v8586 = vpop.permute.xlu0 %8585
      %8587 = vrot.lane.b32.xlu0 %v4235, 16
      %v8588 = vpop.permute.xlu0 %8587
      %8589 = vrot.lane.b32.xlu0 %v4236, 16
      %v8590 = vpop.permute.xlu0 %8589
      %8591 = vrot.lane.b32.xlu0 %v4237, 16
      %v8592 = vpop.permute.xlu0 %8591
      %8593 = vrot.lane.b32.xlu0 %v4238, 16
      %v8594 = vpop.permute.xlu0 %8593
      %8595 = vrot.lane.b32.xlu0 %v4239, 16
      %v8596 = vpop.permute.xlu0 %8595
      %8597 = vrot.lane.b32.xlu0 %v4240, 16
      %v8598 = vpop.permute.xlu0 %8597
      %8599 = vrot.lane.b32.xlu0 %v4241, 16
      %v8600 = vpop.permute.xlu0 %8599
      %8601 = vrot.lane.b32.xlu0 %v4242, 16
      %v8602 = vpop.permute.xlu0 %8601
      %8603 = vrot.lane.b32.xlu0 %v4243, 16
      %v8604 = vpop.permute.xlu0 %8603
      %8605 = vrot.lane.b32.xlu0 %v4244, 16
      %v8606 = vpop.permute.xlu0 %8605
      %8607 = vrot.lane.b32.xlu0 %v4245, 16
      %v8608 = vpop.permute.xlu0 %8607
      %8609 = vrot.lane.b32.xlu0 %v4246, 16
      %v8610 = vpop.permute.xlu0 %8609
      %8611 = vrot.lane.b32.xlu0 %v4247, 16
      %v8612 = vpop.permute.xlu0 %8611
      %8613 = vrot.lane.b32.xlu0 %v4248, 16
      %v8614 = vpop.permute.xlu0 %8613
      %8615 = vrot.lane.b32.xlu0 %v4249, 16
      %v8616 = vpop.permute.xlu0 %8615
      %8617 = vrot.lane.b32.xlu0 %v4250, 16
      %v8618 = vpop.permute.xlu0 %8617
      %8619 = vrot.lane.b32.xlu0 %v4251, 16
      %v8620 = vpop.permute.xlu0 %8619
      %8621 = vrot.lane.b32.xlu0 %v4252, 16
      %v8622 = vpop.permute.xlu0 %8621
      %8623 = vrot.lane.b32.xlu0 %v4253, 16
      %v8624 = vpop.permute.xlu0 %8623
      %8625 = vrot.lane.b32.xlu0 %v4254, 16
      %v8626 = vpop.permute.xlu0 %8625
      %8627 = vrot.lane.b32.xlu0 %v4255, 16
      %v8628 = vpop.permute.xlu0 %8627
      %8629 = vrot.lane.b32.xlu0 %v4256, 16
      %v8630 = vpop.permute.xlu0 %8629
      %8631 = vrot.lane.b32.xlu0 %v4257, 16
      %v8632 = vpop.permute.xlu0 %8631
      %8633 = vrot.lane.b32.xlu0 %v4258, 16
      %v8634 = vpop.permute.xlu0 %8633
      %8635 = vrot.lane.b32.xlu0 %v4259, 16
      %v8636 = vpop.permute.xlu0 %8635
      %8637 = vrot.lane.b32.xlu0 %v4260, 16
      %v8638 = vpop.permute.xlu0 %8637
      %8639 = vrot.lane.b32.xlu0 %v4261, 16
      %v8640 = vpop.permute.xlu0 %8639
      %8641 = vrot.lane.b32.xlu0 %v4262, 16
      %v8642 = vpop.permute.xlu0 %8641
      %8643 = vrot.lane.b32.xlu0 %v4263, 16
      %v8644 = vpop.permute.xlu0 %8643
      %8645 = vrot.lane.b32.xlu0 %v4264, 16
      %v8646 = vpop.permute.xlu0 %8645
      %8647 = vrot.lane.b32.xlu0 %v4265, 16
      %v8648 = vpop.permute.xlu0 %8647
      %8649 = vrot.lane.b32.xlu0 %v4266, 16
      %v8650 = vpop.permute.xlu0 %8649
      %8651 = vrot.lane.b32.xlu0 %v4267, 16
      %v8652 = vpop.permute.xlu0 %8651
      %8653 = vrot.lane.b32.xlu0 %v4268, 16
      %v8654 = vpop.permute.xlu0 %8653
      %8655 = vrot.lane.b32.xlu0 %v4269, 16
      %v8656 = vpop.permute.xlu0 %8655
      %8657 = vrot.lane.b32.xlu0 %v4270, 16
      %v8658 = vpop.permute.xlu0 %8657
      %8659 = vrot.lane.b32.xlu0 %v4271, 16
      %v8660 = vpop.permute.xlu0 %8659
      %8661 = vrot.lane.b32.xlu0 %v4272, 16
      %v8662 = vpop.permute.xlu0 %8661
      %8663 = vrot.lane.b32.xlu0 %v4625, 16
      %v8664 = vpop.permute.xlu0 %8663
      %8665 = vrot.lane.b32.xlu0 %v4626, 16
      %v8666 = vpop.permute.xlu0 %8665
      %8667 = vrot.lane.b32.xlu0 %v4627, 16
      %v8668 = vpop.permute.xlu0 %8667
      %8669 = vrot.lane.b32.xlu0 %v4628, 16
      %v8670 = vpop.permute.xlu0 %8669
      %8671 = vrot.lane.b32.xlu0 %v4629, 16
      %v8672 = vpop.permute.xlu0 %8671
      %8673 = vrot.lane.b32.xlu0 %v4665, 16
      %v8674 = vpop.permute.xlu0 %8673
      %8675 = vrot.lane.b32.xlu0 %v4666, 16
      %v8676 = vpop.permute.xlu0 %8675
      %8677 = vrot.lane.b32.xlu0 %v4667, 16
      %v8678 = vpop.permute.xlu0 %8677
      %8679 = vrot.lane.b32.xlu0 %v4668, 16
      %v8680 = vpop.permute.xlu0 %8679
      %8681 = vrot.lane.b32.xlu0 %v4669, 16
      %v8682 = vpop.permute.xlu0 %8681
      %8738 = vrot.lane.b32.xlu0 %v4283, 20
      %v8739 = vpop.permute.xlu0 %8738
      %8740 = vrot.lane.b32.xlu0 %v4284, 20
      %v8741 = vpop.permute.xlu0 %8740
      %8742 = vrot.lane.b32.xlu0 %v4285, 20
      %v8743 = vpop.permute.xlu0 %8742
      %8744 = vrot.lane.b32.xlu0 %v4286, 20
      %v8745 = vpop.permute.xlu0 %8744
      %8746 = vrot.lane.b32.xlu0 %v4287, 20
      %v8747 = vpop.permute.xlu0 %8746
      %8748 = vrot.lane.b32.xlu0 %v4288, 20
      %v8749 = vpop.permute.xlu0 %8748
      %8750 = vrot.lane.b32.xlu0 %v4289, 20
      %v8751 = vpop.permute.xlu0 %8750
      %8752 = vrot.lane.b32.xlu0 %v4290, 20
      %v8753 = vpop.permute.xlu0 %8752
      %8754 = vrot.lane.b32.xlu0 %v4291, 20
      %v8755 = vpop.permute.xlu0 %8754
      %8756 = vrot.lane.b32.xlu0 %v4292, 20
      %v8757 = vpop.permute.xlu0 %8756
      %8758 = vrot.lane.b32.xlu0 %v4293, 20
      %v8759 = vpop.permute.xlu0 %8758
      %8760 = vrot.lane.b32.xlu0 %v4294, 20
      %v8761 = vpop.permute.xlu0 %8760
      %8762 = vrot.lane.b32.xlu0 %v4295, 20
      %v8763 = vpop.permute.xlu0 %8762
      %8764 = vrot.lane.b32.xlu0 %v4296, 20
      %v8765 = vpop.permute.xlu0 %8764
      %8766 = vrot.lane.b32.xlu0 %v4297, 20
      %v8767 = vpop.permute.xlu0 %8766
      %8768 = vrot.lane.b32.xlu0 %v4298, 20
      %v8769 = vpop.permute.xlu0 %8768
      %8770 = vrot.lane.b32.xlu0 %v4299, 20
      %v8771 = vpop.permute.xlu0 %8770
      %8772 = vrot.lane.b32.xlu0 %v4300, 20
      %v8773 = vpop.permute.xlu0 %8772
      %8774 = vrot.lane.b32.xlu0 %v4301, 20
      %v8775 = vpop.permute.xlu0 %8774
      %8776 = vrot.lane.b32.xlu0 %v4302, 20
      %v8777 = vpop.permute.xlu0 %8776
      %8778 = vrot.lane.b32.xlu0 %v4303, 20
      %v8779 = vpop.permute.xlu0 %8778
      %8780 = vrot.lane.b32.xlu0 %v4304, 20
      %v8781 = vpop.permute.xlu0 %8780
      %8782 = vrot.lane.b32.xlu0 %v4305, 20
      %v8783 = vpop.permute.xlu0 %8782
      %8784 = vrot.lane.b32.xlu0 %v4306, 20
      %v8785 = vpop.permute.xlu0 %8784
      %8786 = vrot.lane.b32.xlu0 %v4307, 20
      %v8787 = vpop.permute.xlu0 %8786
      %8788 = vrot.lane.b32.xlu0 %v4308, 20
      %v8789 = vpop.permute.xlu0 %8788
      %8790 = vrot.lane.b32.xlu0 %v4309, 20
      %v8791 = vpop.permute.xlu0 %8790
      %8792 = vrot.lane.b32.xlu0 %v4310, 20
      %v8793 = vpop.permute.xlu0 %8792
      %8794 = vrot.lane.b32.xlu0 %v4311, 20
      %v8795 = vpop.permute.xlu0 %8794
      %8796 = vrot.lane.b32.xlu0 %v4312, 20
      %v8797 = vpop.permute.xlu0 %8796
      %8798 = vrot.lane.b32.xlu0 %v4313, 20
      %v8799 = vpop.permute.xlu0 %8798
      %8800 = vrot.lane.b32.xlu0 %v4314, 20
      %v8801 = vpop.permute.xlu0 %8800
      %8802 = vrot.lane.b32.xlu0 %v4315, 20
      %v8803 = vpop.permute.xlu0 %8802
      %8804 = vrot.lane.b32.xlu0 %v4316, 20
      %v8805 = vpop.permute.xlu0 %8804
      %8806 = vrot.lane.b32.xlu0 %v4317, 20
      %v8807 = vpop.permute.xlu0 %8806
      %8808 = vrot.lane.b32.xlu0 %v4318, 20
      %v8809 = vpop.permute.xlu0 %8808
      %8810 = vrot.lane.b32.xlu0 %v4319, 20
      %v8811 = vpop.permute.xlu0 %8810
      %8812 = vrot.lane.b32.xlu0 %v4320, 20
      %v8813 = vpop.permute.xlu0 %8812
      %8814 = vrot.lane.b32.xlu0 %v4321, 20
      %v8815 = vpop.permute.xlu0 %8814
      %8816 = vrot.lane.b32.xlu0 %v4322, 20
      %v8817 = vpop.permute.xlu0 %8816
      %8818 = vrot.lane.b32.xlu0 %v4630, 20
      %v8819 = vpop.permute.xlu0 %8818
      %8820 = vrot.lane.b32.xlu0 %v4631, 20
      %v8821 = vpop.permute.xlu0 %8820
      %8822 = vrot.lane.b32.xlu0 %v4632, 20
      %v8823 = vpop.permute.xlu0 %8822
      %8824 = vrot.lane.b32.xlu0 %v4633, 20
      %v8825 = vpop.permute.xlu0 %8824
      %8826 = vrot.lane.b32.xlu0 %v4634, 20
      %v8827 = vpop.permute.xlu0 %8826
      %8828 = vrot.lane.b32.xlu0 %v4670, 20
      %v8829 = vpop.permute.xlu0 %8828
      %8830 = vrot.lane.b32.xlu0 %v4671, 20
      %v8831 = vpop.permute.xlu0 %8830
      %8832 = vrot.lane.b32.xlu0 %v4672, 20
      %v8833 = vpop.permute.xlu0 %8832
      %8834 = vrot.lane.b32.xlu0 %v4673, 20
      %v8835 = vpop.permute.xlu0 %8834
      %8836 = vrot.lane.b32.xlu0 %v4674, 20
      %v8837 = vpop.permute.xlu0 %8836
      %8893 = vrot.lane.b32.xlu0 %v4333, 24
      %v8894 = vpop.permute.xlu0 %8893
      %8895 = vrot.lane.b32.xlu0 %v4334, 24
      %v8896 = vpop.permute.xlu0 %8895
      %8897 = vrot.lane.b32.xlu0 %v4335, 24
      %v8898 = vpop.permute.xlu0 %8897
      %8899 = vrot.lane.b32.xlu0 %v4336, 24
      %v8900 = vpop.permute.xlu0 %8899
      %8901 = vrot.lane.b32.xlu0 %v4337, 24
      %v8902 = vpop.permute.xlu0 %8901
      %8903 = vrot.lane.b32.xlu0 %v4338, 24
      %v8904 = vpop.permute.xlu0 %8903
      %8905 = vrot.lane.b32.xlu0 %v4339, 24
      %v8906 = vpop.permute.xlu0 %8905
      %8907 = vrot.lane.b32.xlu0 %v4340, 24
      %v8908 = vpop.permute.xlu0 %8907
      %8909 = vrot.lane.b32.xlu0 %v4341, 24
      %v8910 = vpop.permute.xlu0 %8909
      %8911 = vrot.lane.b32.xlu0 %v4342, 24
      %v8912 = vpop.permute.xlu0 %8911
      %8913 = vrot.lane.b32.xlu0 %v4343, 24
      %v8914 = vpop.permute.xlu0 %8913
      %8915 = vrot.lane.b32.xlu0 %v4344, 24
      %v8916 = vpop.permute.xlu0 %8915
      %8917 = vrot.lane.b32.xlu0 %v4345, 24
      %v8918 = vpop.permute.xlu0 %8917
      %8919 = vrot.lane.b32.xlu0 %v4346, 24
      %v8920 = vpop.permute.xlu0 %8919
      %8921 = vrot.lane.b32.xlu0 %v4347, 24
      %v8922 = vpop.permute.xlu0 %8921
      %8923 = vrot.lane.b32.xlu0 %v4348, 24
      %v8924 = vpop.permute.xlu0 %8923
      %8925 = vrot.lane.b32.xlu0 %v4349, 24
      %v8926 = vpop.permute.xlu0 %8925
      %8927 = vrot.lane.b32.xlu0 %v4350, 24
      %v8928 = vpop.permute.xlu0 %8927
      %8929 = vrot.lane.b32.xlu0 %v4351, 24
      %v8930 = vpop.permute.xlu0 %8929
      %8931 = vrot.lane.b32.xlu0 %v4352, 24
      %v8932 = vpop.permute.xlu0 %8931
      %8933 = vrot.lane.b32.xlu0 %v4353, 24
      %v8934 = vpop.permute.xlu0 %8933
      %8935 = vrot.lane.b32.xlu0 %v4354, 24
      %v8936 = vpop.permute.xlu0 %8935
      %8937 = vrot.lane.b32.xlu0 %v4355, 24
      %v8938 = vpop.permute.xlu0 %8937
      %8939 = vrot.lane.b32.xlu0 %v4356, 24
      %v8940 = vpop.permute.xlu0 %8939
      %8941 = vrot.lane.b32.xlu0 %v4357, 24
      %v8942 = vpop.permute.xlu0 %8941
      %8943 = vrot.lane.b32.xlu0 %v4358, 24
      %v8944 = vpop.permute.xlu0 %8943
      %8945 = vrot.lane.b32.xlu0 %v4359, 24
      %v8946 = vpop.permute.xlu0 %8945
      %8947 = vrot.lane.b32.xlu0 %v4360, 24
      %v8948 = vpop.permute.xlu0 %8947
      %8949 = vrot.lane.b32.xlu0 %v4361, 24
      %v8950 = vpop.permute.xlu0 %8949
      %8951 = vrot.lane.b32.xlu0 %v4362, 24
      %v8952 = vpop.permute.xlu0 %8951
      %8953 = vrot.lane.b32.xlu0 %v4363, 24
      %v8954 = vpop.permute.xlu0 %8953
      %8955 = vrot.lane.b32.xlu0 %v4364, 24
      %v8956 = vpop.permute.xlu0 %8955
      %8957 = vrot.lane.b32.xlu0 %v4365, 24
      %v8958 = vpop.permute.xlu0 %8957
      %8959 = vrot.lane.b32.xlu0 %v4366, 24
      %v8960 = vpop.permute.xlu0 %8959
      %8961 = vrot.lane.b32.xlu0 %v4367, 24
      %v8962 = vpop.permute.xlu0 %8961
      %8963 = vrot.lane.b32.xlu0 %v4368, 24
      %v8964 = vpop.permute.xlu0 %8963
      %8965 = vrot.lane.b32.xlu0 %v4369, 24
      %v8966 = vpop.permute.xlu0 %8965
      %8967 = vrot.lane.b32.xlu0 %v4370, 24
      %v8968 = vpop.permute.xlu0 %8967
      %8969 = vrot.lane.b32.xlu0 %v4371, 24
      %v8970 = vpop.permute.xlu0 %8969
      %8971 = vrot.lane.b32.xlu0 %v4372, 24
      %v8972 = vpop.permute.xlu0 %8971
      %8973 = vrot.lane.b32.xlu0 %v4635, 24
      %v8974 = vpop.permute.xlu0 %8973
      %8975 = vrot.lane.b32.xlu0 %v4636, 24
      %v8976 = vpop.permute.xlu0 %8975
      %8977 = vrot.lane.b32.xlu0 %v4637, 24
      %v8978 = vpop.permute.xlu0 %8977
      %8979 = vrot.lane.b32.xlu0 %v4638, 24
      %v8980 = vpop.permute.xlu0 %8979
      %8981 = vrot.lane.b32.xlu0 %v4639, 24
      %v8982 = vpop.permute.xlu0 %8981
      %8983 = vrot.lane.b32.xlu0 %v4675, 24
      %v8984 = vpop.permute.xlu0 %8983
      %8985 = vrot.lane.b32.xlu0 %v4676, 24
      %v8986 = vpop.permute.xlu0 %8985
      %8987 = vrot.lane.b32.xlu0 %v4677, 24
      %v8988 = vpop.permute.xlu0 %8987
      %8989 = vrot.lane.b32.xlu0 %v4678, 24
      %v8990 = vpop.permute.xlu0 %8989
      %8991 = vrot.lane.b32.xlu0 %v4679, 24
      %v8992 = vpop.permute.xlu0 %8991
      %9048 = vrot.lane.b32.xlu0 %v4383, 28
      %v9049 = vpop.permute.xlu0 %9048
      %9050 = vrot.lane.b32.xlu0 %v4384, 28
      %v9051 = vpop.permute.xlu0 %9050
      %9052 = vrot.lane.b32.xlu0 %v4385, 28
      %v9053 = vpop.permute.xlu0 %9052
      %9054 = vrot.lane.b32.xlu0 %v4386, 28
      %v9055 = vpop.permute.xlu0 %9054
      %9056 = vrot.lane.b32.xlu0 %v4387, 28
      %v9057 = vpop.permute.xlu0 %9056
      %9058 = vrot.lane.b32.xlu0 %v4388, 28
      %v9059 = vpop.permute.xlu0 %9058
      %9060 = vrot.lane.b32.xlu0 %v4389, 28
      %v9061 = vpop.permute.xlu0 %9060
      %9062 = vrot.lane.b32.xlu0 %v4390, 28
      %v9063 = vpop.permute.xlu0 %9062
      %9064 = vrot.lane.b32.xlu0 %v4391, 28
      %v9065 = vpop.permute.xlu0 %9064
      %9066 = vrot.lane.b32.xlu0 %v4392, 28
      %v9067 = vpop.permute.xlu0 %9066
      %9068 = vrot.lane.b32.xlu0 %v4393, 28
      %v9069 = vpop.permute.xlu0 %9068
      %9070 = vrot.lane.b32.xlu0 %v4394, 28
      %v9071 = vpop.permute.xlu0 %9070
      %9072 = vrot.lane.b32.xlu0 %v4395, 28
      %v9073 = vpop.permute.xlu0 %9072
      %9074 = vrot.lane.b32.xlu0 %v4396, 28
      %v9075 = vpop.permute.xlu0 %9074
      %9076 = vrot.lane.b32.xlu0 %v4397, 28
      %v9077 = vpop.permute.xlu0 %9076
      %9078 = vrot.lane.b32.xlu0 %v4398, 28
      %v9079 = vpop.permute.xlu0 %9078
      %9080 = vrot.lane.b32.xlu0 %v4399, 28
      %v9081 = vpop.permute.xlu0 %9080
      %9082 = vrot.lane.b32.xlu0 %v4400, 28
      %v9083 = vpop.permute.xlu0 %9082
      %9084 = vrot.lane.b32.xlu0 %v4401, 28
      %v9085 = vpop.permute.xlu0 %9084
      %9086 = vrot.lane.b32.xlu0 %v4402, 28
      %v9087 = vpop.permute.xlu0 %9086
      %9088 = vrot.lane.b32.xlu0 %v4403, 28
      %v9089 = vpop.permute.xlu0 %9088
      %9090 = vrot.lane.b32.xlu0 %v4404, 28
      %v9091 = vpop.permute.xlu0 %9090
      %9092 = vrot.lane.b32.xlu0 %v4405, 28
      %v9093 = vpop.permute.xlu0 %9092
      %9094 = vrot.lane.b32.xlu0 %v4406, 28
      %v9095 = vpop.permute.xlu0 %9094
      %9096 = vrot.lane.b32.xlu0 %v4407, 28
      %v9097 = vpop.permute.xlu0 %9096
      %9098 = vrot.lane.b32.xlu0 %v4408, 28
      %v9099 = vpop.permute.xlu0 %9098
      %9100 = vrot.lane.b32.xlu0 %v4409, 28
      %v9101 = vpop.permute.xlu0 %9100
      %9102 = vrot.lane.b32.xlu0 %v4410, 28
      %v9103 = vpop.permute.xlu0 %9102
      %9104 = vrot.lane.b32.xlu0 %v4411, 28
      %v9105 = vpop.permute.xlu0 %9104
      %9106 = vrot.lane.b32.xlu0 %v4412, 28
      %v9107 = vpop.permute.xlu0 %9106
      %9108 = vrot.lane.b32.xlu0 %v4413, 28
      %v9109 = vpop.permute.xlu0 %9108
      %9110 = vrot.lane.b32.xlu0 %v4414, 28
      %v9111 = vpop.permute.xlu0 %9110
      %9112 = vrot.lane.b32.xlu0 %v4415, 28
      %v9113 = vpop.permute.xlu0 %9112
      %9114 = vrot.lane.b32.xlu0 %v4416, 28
      %v9115 = vpop.permute.xlu0 %9114
      %9116 = vrot.lane.b32.xlu0 %v4417, 28
      %v9117 = vpop.permute.xlu0 %9116
      %9118 = vrot.lane.b32.xlu0 %v4418, 28
      %v9119 = vpop.permute.xlu0 %9118
      %9120 = vrot.lane.b32.xlu0 %v4419, 28
      %v9121 = vpop.permute.xlu0 %9120
      %9122 = vrot.lane.b32.xlu0 %v4420, 28
      %v9123 = vpop.permute.xlu0 %9122
      %9124 = vrot.lane.b32.xlu0 %v4421, 28
      %v9125 = vpop.permute.xlu0 %9124
      %9126 = vrot.lane.b32.xlu0 %v4422, 28
      %v9127 = vpop.permute.xlu0 %9126
      %9128 = vrot.lane.b32.xlu0 %v4640, 28
      %v9129 = vpop.permute.xlu0 %9128
      %9130 = vrot.lane.b32.xlu0 %v4641, 28
      %v9131 = vpop.permute.xlu0 %9130
      %9132 = vrot.lane.b32.xlu0 %v4642, 28
      %v9133 = vpop.permute.xlu0 %9132
      %9134 = vrot.lane.b32.xlu0 %v4643, 28
      %v9135 = vpop.permute.xlu0 %9134
      %9136 = vrot.lane.b32.xlu0 %v4644, 28
      %v9137 = vpop.permute.xlu0 %9136
      %9138 = vrot.lane.b32.xlu0 %v4680, 28
      %v9139 = vpop.permute.xlu0 %9138
      %9140 = vrot.lane.b32.xlu0 %v4681, 28
      %v9141 = vpop.permute.xlu0 %9140
      %9142 = vrot.lane.b32.xlu0 %v4682, 28
      %v9143 = vpop.permute.xlu0 %9142
      %9144 = vrot.lane.b32.xlu0 %v4683, 28
      %v9145 = vpop.permute.xlu0 %9144
      %9146 = vrot.lane.b32.xlu0 %v4684, 28
      %v9147 = vpop.permute.xlu0 %9146
      %9201 = vrot.lane.b32.xlu0 %v4433, 32
      %v9202 = vpop.permute.xlu0 %9201
      %9203 = vrot.lane.b32.xlu0 %v4434, 32
      %v9204 = vpop.permute.xlu0 %9203
      %9205 = vrot.lane.b32.xlu0 %v4435, 32
      %v9206 = vpop.permute.xlu0 %9205
      %9207 = vrot.lane.b32.xlu0 %v4436, 32
      %v9208 = vpop.permute.xlu0 %9207
      %9209 = vrot.lane.b32.xlu0 %v4437, 32
      %v9210 = vpop.permute.xlu0 %9209
      %9211 = vrot.lane.b32.xlu0 %v4438, 32
      %v9212 = vpop.permute.xlu0 %9211
      %9213 = vrot.lane.b32.xlu0 %v4439, 32
      %v9214 = vpop.permute.xlu0 %9213
      %9215 = vrot.lane.b32.xlu0 %v4440, 32
      %v9216 = vpop.permute.xlu0 %9215
      %9217 = vrot.lane.b32.xlu0 %v4441, 32
      %v9218 = vpop.permute.xlu0 %9217
      %9219 = vrot.lane.b32.xlu0 %v4442, 32
      %v9220 = vpop.permute.xlu0 %9219
      %9221 = vrot.lane.b32.xlu0 %v4443, 32
      %v9222 = vpop.permute.xlu0 %9221
      %9223 = vrot.lane.b32.xlu0 %v4444, 32
      %v9224 = vpop.permute.xlu0 %9223
      %9225 = vrot.lane.b32.xlu0 %v4445, 32
      %v9226 = vpop.permute.xlu0 %9225
      %9227 = vrot.lane.b32.xlu0 %v4446, 32
      %v9228 = vpop.permute.xlu0 %9227
      %9229 = vrot.lane.b32.xlu0 %v4447, 32
      %v9230 = vpop.permute.xlu0 %9229
      %9231 = vrot.lane.b32.xlu0 %v4448, 32
      %v9232 = vpop.permute.xlu0 %9231
      %9233 = vrot.lane.b32.xlu0 %v4449, 32
      %v9234 = vpop.permute.xlu0 %9233
      %9235 = vrot.lane.b32.xlu0 %v4450, 32
      %v9236 = vpop.permute.xlu0 %9235
      %9237 = vrot.lane.b32.xlu0 %v4451, 32
      %v9238 = vpop.permute.xlu0 %9237
      %9239 = vrot.lane.b32.xlu0 %v4452, 32
      %v9240 = vpop.permute.xlu0 %9239
      %9241 = vrot.lane.b32.xlu0 %v4453, 32
      %v9242 = vpop.permute.xlu0 %9241
      %9243 = vrot.lane.b32.xlu0 %v4454, 32
      %v9244 = vpop.permute.xlu0 %9243
      %9245 = vrot.lane.b32.xlu0 %v4455, 32
      %v9246 = vpop.permute.xlu0 %9245
      %9247 = vrot.lane.b32.xlu0 %v4456, 32
      %v9248 = vpop.permute.xlu0 %9247
      %9249 = vrot.lane.b32.xlu0 %v4457, 32
      %v9250 = vpop.permute.xlu0 %9249
      %9251 = vrot.lane.b32.xlu0 %v4458, 32
      %v9252 = vpop.permute.xlu0 %9251
      %9253 = vrot.lane.b32.xlu0 %v4459, 32
      %v9254 = vpop.permute.xlu0 %9253
      %9255 = vrot.lane.b32.xlu0 %v4460, 32
      %v9256 = vpop.permute.xlu0 %9255
      %9257 = vrot.lane.b32.xlu0 %v4461, 32
      %v9258 = vpop.permute.xlu0 %9257
      %9259 = vrot.lane.b32.xlu0 %v4462, 32
      %v9260 = vpop.permute.xlu0 %9259
      %9261 = vrot.lane.b32.xlu0 %v4463, 32
      %v9262 = vpop.permute.xlu0 %9261
      %9263 = vrot.lane.b32.xlu0 %v4464, 32
      %v9264 = vpop.permute.xlu0 %9263
      %9265 = vrot.lane.b32.xlu0 %v4465, 32
      %v9266 = vpop.permute.xlu0 %9265
      %9267 = vrot.lane.b32.xlu0 %v4466, 32
      %v9268 = vpop.permute.xlu0 %9267
      %9269 = vrot.lane.b32.xlu0 %v4467, 32
      %v9270 = vpop.permute.xlu0 %9269
      %9271 = vrot.lane.b32.xlu0 %v4468, 32
      %v9272 = vpop.permute.xlu0 %9271
      %9273 = vrot.lane.b32.xlu0 %v4469, 32
      %v9274 = vpop.permute.xlu0 %9273
      %9275 = vrot.lane.b32.xlu0 %v4470, 32
      %v9276 = vpop.permute.xlu0 %9275
      %9277 = vrot.lane.b32.xlu0 %v4471, 32
      %v9278 = vpop.permute.xlu0 %9277
      %9279 = vrot.lane.b32.xlu0 %v4472, 32
      %v9280 = vpop.permute.xlu0 %9279
      %9281 = vrot.lane.b32.xlu0 %v4473, 32
      %v9282 = vpop.permute.xlu0 %9281
      %9283 = vrot.lane.b32.xlu0 %v4474, 32
      %v9284 = vpop.permute.xlu0 %9283
      %9285 = vrot.lane.b32.xlu0 %v4645, 32
      %v9286 = vpop.permute.xlu0 %9285
      %9287 = vrot.lane.b32.xlu0 %v4646, 32
      %v9288 = vpop.permute.xlu0 %9287
      %9289 = vrot.lane.b32.xlu0 %v4647, 32
      %v9290 = vpop.permute.xlu0 %9289
      %9291 = vrot.lane.b32.xlu0 %v4648, 32
      %v9292 = vpop.permute.xlu0 %9291
      %9293 = vrot.lane.b32.xlu0 %v4649, 32
      %v9294 = vpop.permute.xlu0 %9293
      %9295 = vrot.lane.b32.xlu0 %v4685, 32
      %v9296 = vpop.permute.xlu0 %9295
      %9297 = vrot.lane.b32.xlu0 %v4686, 32
      %v9298 = vpop.permute.xlu0 %9297
      %9299 = vrot.lane.b32.xlu0 %v4687, 32
      %v9300 = vpop.permute.xlu0 %9299
      %v9351 = vsel %vm815, %v4480, %v8124
      %v9352 = vsel %vm815, %v4481, %v8126
      %v9353 = vsel %vm815, %v4482, %v8128
      %v9354 = vsel %vm815, %v4483, %v8130
      %v9355 = vsel %vm815, %v4484, %v8132
      %v9356 = vsel %vm815, %v4485, %v8134
      %v9357 = vsel %vm815, %v4486, %v8136
      %v9358 = vsel %vm815, %v4487, %v8138
      %v9359 = vsel %vm815, %v4488, %v8140
      %v9360 = vsel %vm815, %v4489, %v8142
      %v9361 = vsel %vm815, %v4490, %v8144
      %v9362 = vsel %vm815, %v4491, %v8146
      %v9363 = vsel %vm815, %v4492, %v8148
      %v9364 = vsel %vm815, %v4493, %v8150
      %v9365 = vsel %vm815, %v4494, %v8152
      %v9366 = vsel %vm815, %v4495, %v8154
      %v9367 = vsel %vm815, %v4496, %v8156
      %v9368 = vsel %vm815, %v4497, %v8158
      %v9369 = vsel %vm815, %v4498, %v8160
      %v9370 = vsel %vm815, %v4499, %v8162
      %v9371 = vsel %vm815, %v4500, %v8164
      %v9372 = vsel %vm815, %v4501, %v8166
      %v9373 = vsel %vm815, %v4502, %v8168
      %v9374 = vsel %vm815, %v4503, %v8170
      %v9375 = vsel %vm815, %v4504, %v8172
      %v9376 = vsel %vm815, %v4505, %v8174
      %v9377 = vsel %vm815, %v4506, %v8176
      %v9378 = vsel %vm815, %v4507, %v8178
      %v9379 = vsel %vm815, %v4508, %v8180
      %v9380 = vsel %vm815, %v4509, %v8182
      %v9381 = vsel %vm815, %v4510, %v8184
      %v9382 = vsel %vm815, %v4511, %v8186
      %v9383 = vsel %vm815, %v4512, %v8188
      %v9384 = vsel %vm815, %v4513, %v8190
      %v9385 = vsel %vm815, %v4514, %v8192
      %v9386 = vsel %vm815, %v4515, %v8194
      %v9387 = vsel %vm815, %v4516, %v8196
      %v9388 = vsel %vm815, %v4517, %v8198
      %v9389 = vsel %vm815, %v4518, %v8200
      %v9390 = vsel %vm815, %v4519, %v8202
      %v9391 = vsel %vm815, %v4520, %v8204
      %v9392 = vsel %vm815, %v4521, %v8206
      %v9393 = vsel %vm815, %v4522, %v8208
      %v9394 = vsel %vm815, %v4523, %v8210
      %v9395 = vsel %vm815, %v4524, %v8212
      %v9396 = vsel %vm815, %v4650, %v8214
      %v9397 = vsel %vm815, %v4651, %v8216
      %v9398 = vsel %vm815, %v4652, %v8218
      %v9399 = vsel %vm815, %v4653, %v8220
      %v9400 = vsel %vm815, %v4654, %v8222
      %v9401 = vsel %vm3536, %v9351, %v8279
      %v9402 = vsel %vm3536, %v9352, %v8281
      %v9403 = vsel %vm3536, %v9353, %v8283
      %v9404 = vsel %vm3536, %v9354, %v8285
      %v9405 = vsel %vm3536, %v9355, %v8287
      %v9406 = vsel %vm3536, %v9356, %v8289
      %v9407 = vsel %vm3536, %v9357, %v8291
      %v9408 = vsel %vm3536, %v9358, %v8293
      %v9409 = vsel %vm3536, %v9359, %v8295
      %v9410 = vsel %vm3536, %v9360, %v8297
      %v9411 = vsel %vm3536, %v9361, %v8299
      %v9412 = vsel %vm3536, %v9362, %v8301
      %v9413 = vsel %vm3536, %v9363, %v8303
      %v9414 = vsel %vm3536, %v9364, %v8305
      %v9415 = vsel %vm3536, %v9365, %v8307
      %v9416 = vsel %vm3536, %v9366, %v8309
      %v9417 = vsel %vm3536, %v9367, %v8311
      %v9418 = vsel %vm3536, %v9368, %v8313
      %v9419 = vsel %vm3536, %v9369, %v8315
      %v9420 = vsel %vm3536, %v9370, %v8317
      %v9421 = vsel %vm3536, %v9371, %v8319
      %v9422 = vsel %vm3536, %v9372, %v8321
      %v9423 = vsel %vm3536, %v9373, %v8323
      %v9424 = vsel %vm3536, %v9374, %v8325
      %v9425 = vsel %vm3536, %v9375, %v8327
      %v9426 = vsel %vm3536, %v9376, %v8329
      %v9427 = vsel %vm3536, %v9377, %v8331
      %v9428 = vsel %vm3536, %v9378, %v8333
      %v9429 = vsel %vm3536, %v9379, %v8335
      %v9430 = vsel %vm3536, %v9380, %v8337
      %v9431 = vsel %vm3536, %v9381, %v8339
      %v9432 = vsel %vm3536, %v9382, %v8341
      %v9433 = vsel %vm3536, %v9383, %v8343
      %v9434 = vsel %vm3536, %v9384, %v8345
      %v9435 = vsel %vm3536, %v9385, %v8347
      %v9436 = vsel %vm3536, %v9386, %v8349
      %v9437 = vsel %vm3536, %v9387, %v8351
      %v9438 = vsel %vm3536, %v9388, %v8353
      %v9439 = vsel %vm3536, %v9389, %v8355
      %v9440 = vsel %vm3536, %v9390, %v8357
      %v9441 = vsel %vm3536, %v9391, %v8359
      %v9442 = vsel %vm3536, %v9392, %v8361
      %v9443 = vsel %vm3536, %v9393, %v8363
      %v9444 = vsel %vm3536, %v9394, %v8365
      %v9445 = vsel %vm3536, %v9395, %v8367
      %v9446 = vsel %vm3536, %v9396, %v8369
      %v9447 = vsel %vm3536, %v9397, %v8371
      %v9448 = vsel %vm3536, %v9398, %v8373
      %v9449 = vsel %vm3536, %v9399, %v8375
      %v9450 = vsel %vm3536, %v9400, %v8377
      %v9451 = vsel %vm3587, %v9401, %v8432
      %v9452 = vsel %vm3587, %v9402, %v8434
      %v9453 = vsel %vm3587, %v9403, %v8436
      %v9454 = vsel %vm3587, %v9404, %v8438
      %v9455 = vsel %vm3587, %v9405, %v8440
      %v9456 = vsel %vm3587, %v9406, %v8442
      %v9457 = vsel %vm3587, %v9407, %v8444
      %v9458 = vsel %vm3587, %v9408, %v8446
      %v9459 = vsel %vm3587, %v9409, %v8448
      %v9460 = vsel %vm3587, %v9410, %v8450
      %v9461 = vsel %vm3587, %v9411, %v8452
      %v9462 = vsel %vm3587, %v9412, %v8454
      %v9463 = vsel %vm3587, %v9413, %v8456
      %v9464 = vsel %vm3587, %v9414, %v8458
      %v9465 = vsel %vm3587, %v9415, %v8460
      %v9466 = vsel %vm3587, %v9416, %v8462
      %v9467 = vsel %vm3587, %v9417, %v8464
      %v9468 = vsel %vm3587, %v9418, %v8466
      %v9469 = vsel %vm3587, %v9419, %v8468
      %v9470 = vsel %vm3587, %v9420, %v8470
      %v9471 = vsel %vm3587, %v9421, %v8472
      %v9472 = vsel %vm3587, %v9422, %v8474
      %v9473 = vsel %vm3587, %v9423, %v8476
      %v9474 = vsel %vm3587, %v9424, %v8478
      %v9475 = vsel %vm3587, %v9425, %v8480
      %v9476 = vsel %vm3587, %v9426, %v8482
      %v9477 = vsel %vm3587, %v9427, %v8484
      %v9478 = vsel %vm3587, %v9428, %v8486
      %v9479 = vsel %vm3587, %v9429, %v8488
      %v9480 = vsel %vm3587, %v9430, %v8490
      %v9481 = vsel %vm3587, %v9431, %v8492
      %v9482 = vsel %vm3587, %v9432, %v8494
      %v9483 = vsel %vm3587, %v9433, %v8496
      %v9484 = vsel %vm3587, %v9434, %v8498
      %v9485 = vsel %vm3587, %v9435, %v8500
      %v9486 = vsel %vm3587, %v9436, %v8502
      %v9487 = vsel %vm3587, %v9437, %v8504
      %v9488 = vsel %vm3587, %v9438, %v8506
      %v9489 = vsel %vm3587, %v9439, %v8508
      %v9490 = vsel %vm3587, %v9440, %v8510
      %v9491 = vsel %vm3587, %v9441, %v8512
      %v9492 = vsel %vm3587, %v9442, %v8514
      %v9493 = vsel %vm3587, %v9443, %v8516
      %v9494 = vsel %vm3587, %v9444, %v8518
      %v9495 = vsel %vm3587, %v9445, %v8520
      %v9496 = vsel %vm3587, %v9446, %v8522
      %v9497 = vsel %vm3587, %v9447, %v8524
      %v9498 = vsel %vm3587, %v9448, %v8526
      %v9499 = vsel %vm3587, %v9449, %v8528
      %v9500 = vsel %vm3587, %v9450, %v8530
      %v9501 = vsel %vm3638, %v9451, %v8584
      %v9502 = vsel %vm3638, %v9452, %v8586
      %v9503 = vsel %vm3638, %v9453, %v8588
      %v9504 = vsel %vm3638, %v9454, %v8590
      %v9505 = vsel %vm3638, %v9455, %v8592
      %v9506 = vsel %vm3638, %v9456, %v8594
      %v9507 = vsel %vm3638, %v9457, %v8596
      %v9508 = vsel %vm3638, %v9458, %v8598
      %v9509 = vsel %vm3638, %v9459, %v8600
      %v9510 = vsel %vm3638, %v9460, %v8602
      %v9511 = vsel %vm3638, %v9461, %v8604
      %v9512 = vsel %vm3638, %v9462, %v8606
      %v9513 = vsel %vm3638, %v9463, %v8608
      %v9514 = vsel %vm3638, %v9464, %v8610
      %v9515 = vsel %vm3638, %v9465, %v8612
      %v9516 = vsel %vm3638, %v9466, %v8614
      %v9517 = vsel %vm3638, %v9467, %v8616
      %v9518 = vsel %vm3638, %v9468, %v8618
      %v9519 = vsel %vm3638, %v9469, %v8620
      %v9520 = vsel %vm3638, %v9470, %v8622
      %v9521 = vsel %vm3638, %v9471, %v8624
      %v9522 = vsel %vm3638, %v9472, %v8626
      %v9523 = vsel %vm3638, %v9473, %v8628
      %v9524 = vsel %vm3638, %v9474, %v8630
      %v9525 = vsel %vm3638, %v9475, %v8632
      %v9526 = vsel %vm3638, %v9476, %v8634
      %v9527 = vsel %vm3638, %v9477, %v8636
      %v9528 = vsel %vm3638, %v9478, %v8638
      %v9529 = vsel %vm3638, %v9479, %v8640
      %v9530 = vsel %vm3638, %v9480, %v8642
      %v9531 = vsel %vm3638, %v9481, %v8644
      %v9532 = vsel %vm3638, %v9482, %v8646
      %v9533 = vsel %vm3638, %v9483, %v8648
      %v9534 = vsel %vm3638, %v9484, %v8650
      %v9535 = vsel %vm3638, %v9485, %v8652
      %v9536 = vsel %vm3638, %v9486, %v8654
      %v9537 = vsel %vm3638, %v9487, %v8656
      %v9538 = vsel %vm3638, %v9488, %v8658
      %v9539 = vsel %vm3638, %v9489, %v8660
      %v9540 = vsel %vm3638, %v9490, %v8662
      %v9541 = vsel %vm3638, %v9491, %v8664
      %v9542 = vsel %vm3638, %v9492, %v8666
      %v9543 = vsel %vm3638, %v9493, %v8668
      %v9544 = vsel %vm3638, %v9494, %v8670
      %v9545 = vsel %vm3638, %v9495, %v8672
      %v9546 = vsel %vm3638, %v9496, %v8674
      %v9547 = vsel %vm3638, %v9497, %v8676
      %v9548 = vsel %vm3638, %v9498, %v8678
      %v9549 = vsel %vm3638, %v9499, %v8680
      %v9550 = vsel %vm3638, %v9500, %v8682
      %v9551 = vsel %vm3689, %v9501, %v8739
      %v9552 = vsel %vm3689, %v9502, %v8741
      %v9553 = vsel %vm3689, %v9503, %v8743
      %v9554 = vsel %vm3689, %v9504, %v8745
      %v9555 = vsel %vm3689, %v9505, %v8747
      %v9556 = vsel %vm3689, %v9506, %v8749
      %v9557 = vsel %vm3689, %v9507, %v8751
      %v9558 = vsel %vm3689, %v9508, %v8753
      %v9559 = vsel %vm3689, %v9509, %v8755
      %v9560 = vsel %vm3689, %v9510, %v8757
      %v9561 = vsel %vm3689, %v9511, %v8759
      %v9562 = vsel %vm3689, %v9512, %v8761
      %v9563 = vsel %vm3689, %v9513, %v8763
      %v9564 = vsel %vm3689, %v9514, %v8765
      %v9565 = vsel %vm3689, %v9515, %v8767
      %v9566 = vsel %vm3689, %v9516, %v8769
      %v9567 = vsel %vm3689, %v9517, %v8771
      %v9568 = vsel %vm3689, %v9518, %v8773
      %v9569 = vsel %vm3689, %v9519, %v8775
      %v9570 = vsel %vm3689, %v9520, %v8777
      %v9571 = vsel %vm3689, %v9521, %v8779
      %v9572 = vsel %vm3689, %v9522, %v8781
      %v9573 = vsel %vm3689, %v9523, %v8783
      %v9574 = vsel %vm3689, %v9524, %v8785
      %v9575 = vsel %vm3689, %v9525, %v8787
      %v9576 = vsel %vm3689, %v9526, %v8789
      %v9577 = vsel %vm3689, %v9527, %v8791
      %v9578 = vsel %vm3689, %v9528, %v8793
      %v9579 = vsel %vm3689, %v9529, %v8795
      %v9580 = vsel %vm3689, %v9530, %v8797
      %v9581 = vsel %vm3689, %v9531, %v8799
      %v9582 = vsel %vm3689, %v9532, %v8801
      %v9583 = vsel %vm3689, %v9533, %v8803
      %v9584 = vsel %vm3689, %v9534, %v8805
      %v9585 = vsel %vm3689, %v9535, %v8807
      %v9586 = vsel %vm3689, %v9536, %v8809
      %v9587 = vsel %vm3689, %v9537, %v8811
      %v9588 = vsel %vm3689, %v9538, %v8813
      %v9589 = vsel %vm3689, %v9539, %v8815
      %v9590 = vsel %vm3689, %v9540, %v8817
      %v9591 = vsel %vm3689, %v9541, %v8819
      %v9592 = vsel %vm3689, %v9542, %v8821
      %v9593 = vsel %vm3689, %v9543, %v8823
      %v9594 = vsel %vm3689, %v9544, %v8825
      %v9595 = vsel %vm3689, %v9545, %v8827
      %v9596 = vsel %vm3689, %v9546, %v8829
      %v9597 = vsel %vm3689, %v9547, %v8831
      %v9598 = vsel %vm3689, %v9548, %v8833
      %v9599 = vsel %vm3689, %v9549, %v8835
      %v9600 = vsel %vm3689, %v9550, %v8837
      %v9601 = vsel %vm3740, %v9551, %v8894
      %v9602 = vsel %vm3740, %v9552, %v8896
      %v9603 = vsel %vm3740, %v9553, %v8898
      %v9604 = vsel %vm3740, %v9554, %v8900
      %v9605 = vsel %vm3740, %v9555, %v8902
      %v9606 = vsel %vm3740, %v9556, %v8904
      %v9607 = vsel %vm3740, %v9557, %v8906
      %v9608 = vsel %vm3740, %v9558, %v8908
      %v9609 = vsel %vm3740, %v9559, %v8910
      %v9610 = vsel %vm3740, %v9560, %v8912
      %v9611 = vsel %vm3740, %v9561, %v8914
      %v9612 = vsel %vm3740, %v9562, %v8916
      %v9613 = vsel %vm3740, %v9563, %v8918
      %v9614 = vsel %vm3740, %v9564, %v8920
      %v9615 = vsel %vm3740, %v9565, %v8922
      %v9616 = vsel %vm3740, %v9566, %v8924
      %v9617 = vsel %vm3740, %v9567, %v8926
      %v9618 = vsel %vm3740, %v9568, %v8928
      %v9619 = vsel %vm3740, %v9569, %v8930
      %v9620 = vsel %vm3740, %v9570, %v8932
      %v9621 = vsel %vm3740, %v9571, %v8934
      %v9622 = vsel %vm3740, %v9572, %v8936
      %v9623 = vsel %vm3740, %v9573, %v8938
      %v9624 = vsel %vm3740, %v9574, %v8940
      %v9625 = vsel %vm3740, %v9575, %v8942
      %v9626 = vsel %vm3740, %v9576, %v8944
      %v9627 = vsel %vm3740, %v9577, %v8946
      %v9628 = vsel %vm3740, %v9578, %v8948
      %v9629 = vsel %vm3740, %v9579, %v8950
      %v9630 = vsel %vm3740, %v9580, %v8952
      %v9631 = vsel %vm3740, %v9581, %v8954
      %v9632 = vsel %vm3740, %v9582, %v8956
      %v9633 = vsel %vm3740, %v9583, %v8958
      %v9634 = vsel %vm3740, %v9584, %v8960
      %v9635 = vsel %vm3740, %v9585, %v8962
      %v9636 = vsel %vm3740, %v9586, %v8964
      %v9637 = vsel %vm3740, %v9587, %v8966
      %v9638 = vsel %vm3740, %v9588, %v8968
      %v9639 = vsel %vm3740, %v9589, %v8970
      %v9640 = vsel %vm3740, %v9590, %v8972
      %v9641 = vsel %vm3740, %v9591, %v8974
      %v9642 = vsel %vm3740, %v9592, %v8976
      %v9643 = vsel %vm3740, %v9593, %v8978
      %v9644 = vsel %vm3740, %v9594, %v8980
      %v9645 = vsel %vm3740, %v9595, %v8982
      %v9646 = vsel %vm3740, %v9596, %v8984
      %v9647 = vsel %vm3740, %v9597, %v8986
      %v9648 = vsel %vm3740, %v9598, %v8988
      %v9649 = vsel %vm3740, %v9599, %v8990
      %v9650 = vsel %vm3740, %v9600, %v8992
      %v9651 = vsel %vm3791, %v9601, %v9049
      %v9652 = vsel %vm3791, %v9602, %v9051
      %v9653 = vsel %vm3791, %v9603, %v9053
      %v9654 = vsel %vm3791, %v9604, %v9055
      %v9655 = vsel %vm3791, %v9605, %v9057
      %v9656 = vsel %vm3791, %v9606, %v9059
      %v9657 = vsel %vm3791, %v9607, %v9061
      %v9658 = vsel %vm3791, %v9608, %v9063
      %v9659 = vsel %vm3791, %v9609, %v9065
      %v9660 = vsel %vm3791, %v9610, %v9067
      %v9661 = vsel %vm3791, %v9611, %v9069
      %v9662 = vsel %vm3791, %v9612, %v9071
      %v9663 = vsel %vm3791, %v9613, %v9073
      %v9664 = vsel %vm3791, %v9614, %v9075
      %v9665 = vsel %vm3791, %v9615, %v9077
      %v9666 = vsel %vm3791, %v9616, %v9079
      %v9667 = vsel %vm3791, %v9617, %v9081
      %v9668 = vsel %vm3791, %v9618, %v9083
      %v9669 = vsel %vm3791, %v9619, %v9085
      %v9670 = vsel %vm3791, %v9620, %v9087
      %v9671 = vsel %vm3791, %v9621, %v9089
      %v9672 = vsel %vm3791, %v9622, %v9091
      %v9673 = vsel %vm3791, %v9623, %v9093
      %v9674 = vsel %vm3791, %v9624, %v9095
      %v9675 = vsel %vm3791, %v9625, %v9097
      %v9676 = vsel %vm3791, %v9626, %v9099
      %v9677 = vsel %vm3791, %v9627, %v9101
      %v9678 = vsel %vm3791, %v9628, %v9103
      %v9679 = vsel %vm3791, %v9629, %v9105
      %v9680 = vsel %vm3791, %v9630, %v9107
      %v9681 = vsel %vm3791, %v9631, %v9109
      %v9682 = vsel %vm3791, %v9632, %v9111
      %v9683 = vsel %vm3791, %v9633, %v9113
      %v9684 = vsel %vm3791, %v9634, %v9115
      %v9685 = vsel %vm3791, %v9635, %v9117
      %v9686 = vsel %vm3791, %v9636, %v9119
      %v9687 = vsel %vm3791, %v9637, %v9121
      %v9688 = vsel %vm3791, %v9638, %v9123
      %v9689 = vsel %vm3791, %v9639, %v9125
      %v9690 = vsel %vm3791, %v9640, %v9127
      %v9691 = vsel %vm3791, %v9641, %v9129
      %v9692 = vsel %vm3791, %v9642, %v9131
      %v9693 = vsel %vm3791, %v9643, %v9133
      %v9694 = vsel %vm3791, %v9644, %v9135
      %v9695 = vsel %vm3791, %v9645, %v9137
      %v9696 = vsel %vm3791, %v9646, %v9139
      %v9697 = vsel %vm3791, %v9647, %v9141
      %v9698 = vsel %vm3791, %v9648, %v9143
      %v9699 = vsel %vm3791, %v9649, %v9145
      %v9700 = vsel %vm3791, %v9650, %v9147
      %v9701 = vsel %vm3842, %v9651, %v9202
      %v9702 = vsel %vm3842, %v9652, %v9204
      %v9703 = vsel %vm3842, %v9653, %v9206
      %v9704 = vsel %vm3842, %v9654, %v9208
      %v9705 = vsel %vm3842, %v9655, %v9210
      %v9706 = vsel %vm3842, %v9656, %v9212
      %v9707 = vsel %vm3842, %v9657, %v9214
      %v9708 = vsel %vm3842, %v9658, %v9216
      %v9709 = vsel %vm3842, %v9659, %v9218
      %v9710 = vsel %vm3842, %v9660, %v9220
      %v9711 = vsel %vm3842, %v9661, %v9222
      %v9712 = vsel %vm3842, %v9662, %v9224
      %v9713 = vsel %vm3842, %v9663, %v9226
      %v9714 = vsel %vm3842, %v9664, %v9228
      %v9715 = vsel %vm3842, %v9665, %v9230
      %v9716 = vsel %vm3842, %v9666, %v9232
      %v9717 = vsel %vm3842, %v9667, %v9234
      %v9718 = vsel %vm3842, %v9668, %v9236
      %v9719 = vsel %vm3842, %v9669, %v9238
      %v9720 = vsel %vm3842, %v9670, %v9240
      %v9721 = vsel %vm3842, %v9671, %v9242
      %v9722 = vsel %vm3842, %v9672, %v9244
      %v9723 = vsel %vm3842, %v9673, %v9246
      %v9724 = vsel %vm3842, %v9674, %v9248
      %v9725 = vsel %vm3842, %v9675, %v9250
      %v9726 = vsel %vm3842, %v9676, %v9252
      %v9727 = vsel %vm3842, %v9677, %v9254
      %v9728 = vsel %vm3842, %v9678, %v9256
      %v9729 = vsel %vm3842, %v9679, %v9258
      %v9730 = vsel %vm3842, %v9680, %v9260
      %v9731 = vsel %vm3842, %v9681, %v9262
      %v9732 = vsel %vm3842, %v9682, %v9264
      %v9733 = vsel %vm3842, %v9683, %v9266
      %v9734 = vsel %vm3842, %v9684, %v9268
      %v9735 = vsel %vm3842, %v9685, %v9270
      %v9736 = vsel %vm3842, %v9686, %v9272
      %v9737 = vsel %vm3842, %v9687, %v9274
      %v9738 = vsel %vm3842, %v9688, %v9276
      %v9739 = vsel %vm3842, %v9689, %v9278
      %v9740 = vsel %vm3842, %v9690, %v9280
      %v9741 = vsel %vm3842, %v9691, %v9282
      %v9742 = vsel %vm3842, %v9692, %v9284
      %v9743 = vsel %vm3842, %v9693, %v9286
      %v9744 = vsel %vm3842, %v9694, %v9288
      %v9745 = vsel %vm3842, %v9695, %v9290
      %v9746 = vsel %vm3842, %v9696, %v9292
      %v9747 = vsel %vm3842, %v9697, %v9294
      %v9748 = vsel %vm3842, %v9698, %v9296
      %v9749 = vsel %vm3842, %v9699, %v9298
      %v9750 = vsel %vm3842, %v9700, %v9300
      %9801 = vrot.lane.b32.xlu0 %v9701, 64
      %v9802 = vpop.permute.xlu0 %9801
      %9803 = vrot.lane.b32.xlu0 %v9702, 64
      %v9804 = vpop.permute.xlu0 %9803
      %9805 = vrot.lane.b32.xlu0 %v9703, 64
      %v9806 = vpop.permute.xlu0 %9805
      %9807 = vrot.lane.b32.xlu0 %v9704, 64
      %v9808 = vpop.permute.xlu0 %9807
      %9809 = vrot.lane.b32.xlu0 %v9705, 64
      %v9810 = vpop.permute.xlu0 %9809
      %9811 = vrot.lane.b32.xlu0 %v9706, 64
      %v9812 = vpop.permute.xlu0 %9811
      %9813 = vrot.lane.b32.xlu0 %v9707, 64
      %v9814 = vpop.permute.xlu0 %9813
      %9815 = vrot.lane.b32.xlu0 %v9708, 64
      %v9816 = vpop.permute.xlu0 %9815
      %9817 = vrot.lane.b32.xlu0 %v9709, 64
      %v9818 = vpop.permute.xlu0 %9817
      %9819 = vrot.lane.b32.xlu0 %v9710, 64
      %v9820 = vpop.permute.xlu0 %9819
      %9821 = vrot.lane.b32.xlu0 %v9711, 64
      %v9822 = vpop.permute.xlu0 %9821
      %9823 = vrot.lane.b32.xlu0 %v9712, 64
      %v9824 = vpop.permute.xlu0 %9823
      %9825 = vrot.lane.b32.xlu0 %v9713, 64
      %v9826 = vpop.permute.xlu0 %9825
      %9827 = vrot.lane.b32.xlu0 %v9714, 64
      %v9828 = vpop.permute.xlu0 %9827
      %9829 = vrot.lane.b32.xlu0 %v9715, 64
      %v9830 = vpop.permute.xlu0 %9829
      %9831 = vrot.lane.b32.xlu0 %v9716, 64
      %v9832 = vpop.permute.xlu0 %9831
      %9833 = vrot.lane.b32.xlu0 %v9717, 64
      %v9834 = vpop.permute.xlu0 %9833
      %9835 = vrot.lane.b32.xlu0 %v9718, 64
      %v9836 = vpop.permute.xlu0 %9835
      %9837 = vrot.lane.b32.xlu0 %v9719, 64
      %v9838 = vpop.permute.xlu0 %9837
      %9839 = vrot.lane.b32.xlu0 %v9720, 64
      %v9840 = vpop.permute.xlu0 %9839
      %9841 = vrot.lane.b32.xlu0 %v9721, 64
      %v9842 = vpop.permute.xlu0 %9841
      %9843 = vrot.lane.b32.xlu0 %v9722, 64
      %v9844 = vpop.permute.xlu0 %9843
      %9845 = vrot.lane.b32.xlu0 %v9723, 64
      %v9846 = vpop.permute.xlu0 %9845
      %9847 = vrot.lane.b32.xlu0 %v9724, 64
      %v9848 = vpop.permute.xlu0 %9847
      %9849 = vrot.lane.b32.xlu0 %v9725, 64
      %v9850 = vpop.permute.xlu0 %9849
      %9851 = vrot.lane.b32.xlu0 %v9726, 64
      %v9852 = vpop.permute.xlu0 %9851
      %9853 = vrot.lane.b32.xlu0 %v9727, 64
      %v9854 = vpop.permute.xlu0 %9853
      %9855 = vrot.lane.b32.xlu0 %v9728, 64
      %v9856 = vpop.permute.xlu0 %9855
      %9857 = vrot.lane.b32.xlu0 %v9729, 64
      %v9858 = vpop.permute.xlu0 %9857
      %9859 = vrot.lane.b32.xlu0 %v9730, 64
      %v9860 = vpop.permute.xlu0 %9859
      %9861 = vrot.lane.b32.xlu0 %v9731, 64
      %v9862 = vpop.permute.xlu0 %9861
      %9863 = vrot.lane.b32.xlu0 %v9732, 64
      %v9864 = vpop.permute.xlu0 %9863
      %9865 = vrot.lane.b32.xlu0 %v9733, 64
      %v9866 = vpop.permute.xlu0 %9865
      %9867 = vrot.lane.b32.xlu0 %v9734, 64
      %v9868 = vpop.permute.xlu0 %9867
      %9869 = vrot.lane.b32.xlu0 %v9735, 64
      %v9870 = vpop.permute.xlu0 %9869
      %9871 = vrot.lane.b32.xlu0 %v9736, 64
      %v9872 = vpop.permute.xlu0 %9871
      %9873 = vrot.lane.b32.xlu0 %v9737, 64
      %v9874 = vpop.permute.xlu0 %9873
      %9875 = vrot.lane.b32.xlu0 %v9738, 64
      %v9876 = vpop.permute.xlu0 %9875
      %9877 = vrot.lane.b32.xlu0 %v9739, 64
      %v9878 = vpop.permute.xlu0 %9877
      %9879 = vrot.lane.b32.xlu0 %v9740, 64
      %v9880 = vpop.permute.xlu0 %9879
      %9881 = vrot.lane.b32.xlu0 %v9741, 64
      %v9882 = vpop.permute.xlu0 %9881
      %9883 = vrot.lane.b32.xlu0 %v9742, 64
      %v9884 = vpop.permute.xlu0 %9883
      %9885 = vrot.lane.b32.xlu0 %v9743, 64
      %v9886 = vpop.permute.xlu0 %9885
      %9887 = vrot.lane.b32.xlu0 %v9744, 64
      %v9888 = vpop.permute.xlu0 %9887
      %9889 = vrot.lane.b32.xlu0 %v9745, 64
      %v9890 = vpop.permute.xlu0 %9889
      %9891 = vrot.lane.b32.xlu0 %v9746, 64
      %v9892 = vpop.permute.xlu0 %9891
      %9893 = vrot.lane.b32.xlu0 %v9747, 64
      %v9894 = vpop.permute.xlu0 %9893
      %9895 = vrot.lane.b32.xlu0 %v9748, 64
      %v9896 = vpop.permute.xlu0 %9895
      %9897 = vrot.lane.b32.xlu0 %v9749, 64
      %v9898 = vpop.permute.xlu0 %9897
      %9899 = vrot.lane.b32.xlu0 %v9750, 64
      %v9900 = vpop.permute.xlu0 %9899
      %vm9951 = vcmask 523264
      %v9952 = vsel %vm9951, %v8068, %v9802
      %v9953 = vsel %vm9951, %v8069, %v9804
      %v9954 = vsel %vm9951, %v8070, %v9806
      %v9955 = vsel %vm9951, %v8071, %v9808
      %v9956 = vsel %vm9951, %v8072, %v9810
      %v9957 = vsel %vm9951, %v8073, %v9812
      %v9958 = vsel %vm9951, %v8074, %v9814
      %v9959 = vsel %vm9951, %v8075, %v9816
      %v9960 = vsel %vm9951, %v8076, %v9818
      %v9961 = vsel %vm9951, %v8077, %v9820
      %v9962 = vsel %vm9951, %v8078, %v9822
      %v9963 = vsel %vm9951, %v8079, %v9824
      %v9964 = vsel %vm9951, %v8080, %v9826
      %v9965 = vsel %vm9951, %v8081, %v9828
      %v9966 = vsel %vm9951, %v8082, %v9830
      %v9967 = vsel %vm9951, %v8083, %v9832
      %v9968 = vsel %vm9951, %v8084, %v9834
      %v9969 = vsel %vm9951, %v8085, %v9836
      %v9970 = vsel %vm9951, %v8086, %v9838
      %v9971 = vsel %vm9951, %v8087, %v9840
      %v9972 = vsel %vm9951, %v8088, %v9842
      %v9973 = vsel %vm9951, %v8089, %v9844
      %v9974 = vsel %vm9951, %v8090, %v9846
      %v9975 = vsel %vm9951, %v8091, %v9848
      %v9976 = vsel %vm9951, %v8092, %v9850
      %v9977 = vsel %vm9951, %v8093, %v9852
      %v9978 = vsel %vm9951, %v8094, %v9854
      %v9979 = vsel %vm9951, %v8095, %v9856
      %v9980 = vsel %vm9951, %v8096, %v9858
      %v9981 = vsel %vm9951, %v8097, %v9860
      %v9982 = vsel %vm9951, %v8098, %v9862
      %v9983 = vsel %vm9951, %v8099, %v9864
      %v9984 = vsel %vm9951, %v8100, %v9866
      %v9985 = vsel %vm9951, %v8101, %v9868
      %v9986 = vsel %vm9951, %v8102, %v9870
      %v9987 = vsel %vm9951, %v8103, %v9872
      %v9988 = vsel %vm9951, %v8104, %v9874
      %v9989 = vsel %vm9951, %v8105, %v9876
      %v9990 = vsel %vm9951, %v8106, %v9878
      %v9991 = vsel %vm9951, %v8107, %v9880
      %v9992 = vsel %vm9951, %v8108, %v9882
      %v9993 = vsel %vm9951, %v8109, %v9884
      %v9994 = vsel %vm9951, %v8110, %v9886
      %v9995 = vsel %vm9951, %v8111, %v9888
      %v9996 = vsel %vm9951, %v8112, %v9890
      %v9997 = vsel %vm9951, %v8113, %v9892
      %v9998 = vsel %vm9951, %v8114, %v9894
      %v9999 = vsel %vm9951, %v8115, %v9896
      %v10000 = vsel %vm9951, %v8116, %v9898
      %v10001 = vsel %vm9951, %v8117, %v9900
      %v10002 = vld [vmem:[%s6] sm:$0xff]
      %v10003 = vld [vmem:[%s6 + $0x8] sm:$0xff]
      %v10004 = vld [vmem:[%s6 + $0x10] sm:$0xff]
      %v10005 = vld [vmem:[%s6 + $0x18] sm:$0xff]
      %v10006 = vld [vmem:[%s6 + $0x20] sm:$0xff]
      %v10007 = vld [vmem:[%s6 + $0x28] sm:$0xff]
      %v10008 = vld [vmem:[%s6 + $0x30] sm:$0xff]
      %v10009 = vld [vmem:[%s6 + $0x38] sm:$0xff]
      %v10010 = vld [vmem:[%s6 + $0x40] sm:$0xff]
      %v10011 = vld [vmem:[%s6 + $0x48] sm:$0xff]
      %v10012 = vld [vmem:[%s6 + $0x50] sm:$0xff]
      %v10013 = vld [vmem:[%s6 + $0x58] sm:$0xff]
      %v10014 = vld [vmem:[%s6 + $0x60] sm:$0xf]
      %v10015 = vld [vmem:[%s7] sm:$0x1]
      %v10017 = vperm.slane %v10015, 0
      %vm10019 = vcmask 818176
      %v10021 = vsel %vm10019, %v9952, 0
      %v10024 = vsel %vm10019, %v9953, 0
      %v10027 = vsel %vm10019, %v9954, 0
      %v10030 = vsel %vm10019, %v9955, 0
      %v10033 = vsel %vm10019, %v9956, 0
      %v10036 = vsel %vm10019, %v9957, 0
      %v10039 = vsel %vm10019, %v9958, 0
      %v10042 = vsel %vm10019, %v9959, 0
      %v10045 = vsel %vm10019, %v9960, 0
      %v10048 = vsel %vm10019, %v9961, 0
      %v10051 = vsel %vm10019, %v9962, 0
      %v10054 = vsel %vm10019, %v9963, 0
      %v10057 = vsel %vm10019, %v9964, 0
      %v10060 = vsel %vm10019, %v9965, 0
      %v10063 = vsel %vm10019, %v9966, 0
      %v10066 = vsel %vm10019, %v9967, 0
      %v10069 = vsel %vm10019, %v9968, 0
      %v10072 = vsel %vm10019, %v9969, 0
      %v10075 = vsel %vm10019, %v9970, 0
      %v10078 = vsel %vm10019, %v9971, 0
      %v10081 = vsel %vm10019, %v9972, 0
      %v10084 = vsel %vm10019, %v9973, 0
      %v10087 = vsel %vm10019, %v9974, 0
      %v10090 = vsel %vm10019, %v9975, 0
      %v10093 = vsel %vm10019, %v9976, 0
      %v10096 = vsel %vm10019, %v9977, 0
      %v10099 = vsel %vm10019, %v9978, 0
      %v10102 = vsel %vm10019, %v9979, 0
      %v10105 = vsel %vm10019, %v9980, 0
      %v10108 = vsel %vm10019, %v9981, 0
      %v10111 = vsel %vm10019, %v9982, 0
      %v10114 = vsel %vm10019, %v9983, 0
      %v10117 = vsel %vm10019, %v9984, 0
      %v10120 = vsel %vm10019, %v9985, 0
      %v10123 = vsel %vm10019, %v9986, 0
      %v10126 = vsel %vm10019, %v9987, 0
      %v10129 = vsel %vm10019, %v9988, 0
      %v10132 = vsel %vm10019, %v9989, 0
      %v10135 = vsel %vm10019, %v9990, 0
      %v10138 = vsel %vm10019, %v9991, 0
      %v10141 = vsel %vm10019, %v9992, 0
      %v10144 = vsel %vm10019, %v9993, 0
      %v10147 = vsel %vm10019, %v9994, 0
      %v10150 = vsel %vm10019, %v9995, 0
      %v10153 = vsel %vm10019, %v9996, 0
      %v10156 = vsel %vm10019, %v9997, 0
      %v10159 = vsel %vm10019, %v9998, 0
      %v10162 = vsel %vm10019, %v9999, 0
      %v10165 = vsel %vm10019, %v10000, 0
      %v10168 = vsel %vm10019, %v10001, 0
      %v10171 = vsel %vm966, %v10014, 0
      %10173 = vmatpush.msra.mxu0 0.0
      %10174 = vmatpush.msra.mxu0 0.0
      %10175 = vmatpush.msra.mxu0 0.0
      %10176 = vmatpush.msra.mxu0 %v10171
      %10177 = vmatpush.msra.mxu0 %v10013
      %10178 = vmatpush.msra.mxu0 %v10012
      %10179 = vmatpush.msra.mxu0 %v10011
      %10180 = vmatpush.msra.mxu0 %v10010
      %10181 = vmatpush.msra.mxu0 %v10009
      %10182 = vmatpush.msra.mxu0 %v10008
      %10183 = vmatpush.msra.mxu0 %v10007
      %10184 = vmatpush.msra.mxu0 %v10006
      %10185 = vmatpush.msra.mxu0 %v10005
      %10186 = vmatpush.msra.mxu0 %v10004
      %10187 = vmatpush.msra.mxu0 %v10003
      %10188 = vmatpush.msra.mxu0 %v10002
      %10189 = vmatmul.f32.gmra.mxu0 %v10021
      %v10190 = vpop.f32.mrf.mxu0
      %v10191 = vadd.f32 %v10017, %v10190
      %10192 = vmatmul.f32.gmra.mxu0 %v10024
      %v10193 = vpop.f32.mrf.mxu0
      %v10194 = vadd.f32 %v10017, %v10193
      %10195 = vmatmul.f32.gmra.mxu0 %v10027
      %v10196 = vpop.f32.mrf.mxu0
      %v10197 = vadd.f32 %v10017, %v10196
      %10198 = vmatmul.f32.gmra.mxu0 %v10030
      %v10199 = vpop.f32.mrf.mxu0
      %v10200 = vadd.f32 %v10017, %v10199
      %10201 = vmatmul.f32.gmra.mxu0 %v10033
      %v10202 = vpop.f32.mrf.mxu0
      %v10203 = vadd.f32 %v10017, %v10202
      %10204 = vmatmul.f32.gmra.mxu0 %v10036
      %v10205 = vpop.f32.mrf.mxu0
      %v10206 = vadd.f32 %v10017, %v10205
      %10207 = vmatmul.f32.gmra.mxu0 %v10039
      %v10208 = vpop.f32.mrf.mxu0
      %v10209 = vadd.f32 %v10017, %v10208
      %10210 = vmatmul.f32.gmra.mxu0 %v10042
      %v10211 = vpop.f32.mrf.mxu0
      %v10212 = vadd.f32 %v10017, %v10211
      %10213 = vmatmul.f32.gmra.mxu0 %v10045
      %v10214 = vpop.f32.mrf.mxu0
      %v10215 = vadd.f32 %v10017, %v10214
      %10216 = vmatmul.f32.gmra.mxu0 %v10048
      %v10217 = vpop.f32.mrf.mxu0
      %v10218 = vadd.f32 %v10017, %v10217
      %10219 = vmatmul.f32.gmra.mxu0 %v10051
      %v10220 = vpop.f32.mrf.mxu0
      %v10221 = vadd.f32 %v10017, %v10220
      %10222 = vmatmul.f32.gmra.mxu0 %v10054
      %v10223 = vpop.f32.mrf.mxu0
      %v10224 = vadd.f32 %v10017, %v10223
      %10225 = vmatmul.f32.gmra.mxu0 %v10057
      %v10226 = vpop.f32.mrf.mxu0
      %v10227 = vadd.f32 %v10017, %v10226
      %10228 = vmatmul.f32.gmra.mxu0 %v10060
      %v10229 = vpop.f32.mrf.mxu0
      %v10230 = vadd.f32 %v10017, %v10229
      %10231 = vmatmul.f32.gmra.mxu0 %v10063
      %v10232 = vpop.f32.mrf.mxu0
      %v10233 = vadd.f32 %v10017, %v10232
      %10234 = vmatmul.f32.gmra.mxu0 %v10066
      %v10235 = vpop.f32.mrf.mxu0
      %v10236 = vadd.f32 %v10017, %v10235
      %10237 = vmatmul.f32.gmra.mxu0 %v10069
      %v10238 = vpop.f32.mrf.mxu0
      %v10239 = vadd.f32 %v10017, %v10238
      %10240 = vmatmul.f32.gmra.mxu0 %v10072
      %v10241 = vpop.f32.mrf.mxu0
      %v10242 = vadd.f32 %v10017, %v10241
      %10243 = vmatmul.f32.gmra.mxu0 %v10075
      %v10244 = vpop.f32.mrf.mxu0
      %v10245 = vadd.f32 %v10017, %v10244
      %10246 = vmatmul.f32.gmra.mxu0 %v10078
      %v10247 = vpop.f32.mrf.mxu0
      %v10248 = vadd.f32 %v10017, %v10247
      %10249 = vmatmul.f32.gmra.mxu0 %v10081
      %v10250 = vpop.f32.mrf.mxu0
      %v10251 = vadd.f32 %v10017, %v10250
      %10252 = vmatmul.f32.gmra.mxu0 %v10084
      %v10253 = vpop.f32.mrf.mxu0
      %v10254 = vadd.f32 %v10017, %v10253
      %10255 = vmatmul.f32.gmra.mxu0 %v10087
      %v10256 = vpop.f32.mrf.mxu0
      %v10257 = vadd.f32 %v10017, %v10256
      %10258 = vmatmul.f32.gmra.mxu0 %v10090
      %v10259 = vpop.f32.mrf.mxu0
      %v10260 = vadd.f32 %v10017, %v10259
      %10261 = vmatmul.f32.gmra.mxu0 %v10093
      %v10262 = vpop.f32.mrf.mxu0
      %v10263 = vadd.f32 %v10017, %v10262
      %10264 = vmatmul.f32.gmra.mxu0 %v10096
      %v10265 = vpop.f32.mrf.mxu0
      %v10266 = vadd.f32 %v10017, %v10265
      %10267 = vmatmul.f32.gmra.mxu0 %v10099
      %v10268 = vpop.f32.mrf.mxu0
      %v10269 = vadd.f32 %v10017, %v10268
      %10270 = vmatmul.f32.gmra.mxu0 %v10102
      %v10271 = vpop.f32.mrf.mxu0
      %v10272 = vadd.f32 %v10017, %v10271
      %10273 = vmatmul.f32.gmra.mxu0 %v10105
      %v10274 = vpop.f32.mrf.mxu0
      %v10275 = vadd.f32 %v10017, %v10274
      %10276 = vmatmul.f32.gmra.mxu0 %v10108
      %v10277 = vpop.f32.mrf.mxu0
      %v10278 = vadd.f32 %v10017, %v10277
      %10279 = vmatmul.f32.gmra.mxu0 %v10111
      %v10280 = vpop.f32.mrf.mxu0
      %v10281 = vadd.f32 %v10017, %v10280
      %10282 = vmatmul.f32.gmra.mxu0 %v10114
      %v10283 = vpop.f32.mrf.mxu0
      %v10284 = vadd.f32 %v10017, %v10283
      %10285 = vmatmul.f32.gmra.mxu0 %v10117
      %v10286 = vpop.f32.mrf.mxu0
      %v10287 = vadd.f32 %v10017, %v10286
      %10288 = vmatmul.f32.gmra.mxu0 %v10120
      %v10289 = vpop.f32.mrf.mxu0
      %v10290 = vadd.f32 %v10017, %v10289
      %10291 = vmatmul.f32.gmra.mxu0 %v10123
      %v10292 = vpop.f32.mrf.mxu0
      %v10293 = vadd.f32 %v10017, %v10292
      %10294 = vmatmul.f32.gmra.mxu0 %v10126
      %v10295 = vpop.f32.mrf.mxu0
      %v10296 = vadd.f32 %v10017, %v10295
      %10297 = vmatmul.f32.gmra.mxu0 %v10129
      %v10298 = vpop.f32.mrf.mxu0
      %v10299 = vadd.f32 %v10017, %v10298
      %10300 = vmatmul.f32.gmra.mxu0 %v10132
      %v10301 = vpop.f32.mrf.mxu0
      %v10302 = vadd.f32 %v10017, %v10301
      %10303 = vmatmul.f32.gmra.mxu0 %v10135
      %v10304 = vpop.f32.mrf.mxu0
      %v10305 = vadd.f32 %v10017, %v10304
      %10306 = vmatmul.f32.gmra.mxu0 %v10138
      %v10307 = vpop.f32.mrf.mxu0
      %v10308 = vadd.f32 %v10017, %v10307
      %10309 = vmatmul.f32.gmra.mxu0 %v10141
      %v10310 = vpop.f32.mrf.mxu0
      %v10311 = vadd.f32 %v10017, %v10310
      %10312 = vmatmul.f32.gmra.mxu0 %v10144
      %v10313 = vpop.f32.mrf.mxu0
      %v10314 = vadd.f32 %v10017, %v10313
      %10315 = vmatmul.f32.gmra.mxu0 %v10147
      %v10316 = vpop.f32.mrf.mxu0
      %v10317 = vadd.f32 %v10017, %v10316
      %10318 = vmatmul.f32.gmra.mxu0 %v10150
      %v10319 = vpop.f32.mrf.mxu0
      %v10320 = vadd.f32 %v10017, %v10319
      %10321 = vmatmul.f32.gmra.mxu0 %v10153
      %v10322 = vpop.f32.mrf.mxu0
      %v10323 = vadd.f32 %v10017, %v10322
      %10324 = vmatmul.f32.gmra.mxu0 %v10156
      %v10325 = vpop.f32.mrf.mxu0
      %v10326 = vadd.f32 %v10017, %v10325
      %10327 = vmatmul.f32.gmra.mxu0 %v10159
      %v10328 = vpop.f32.mrf.mxu0
      %v10329 = vadd.f32 %v10017, %v10328
      %10330 = vmatmul.f32.gmra.mxu0 %v10162
      %v10331 = vpop.f32.mrf.mxu0
      %v10332 = vadd.f32 %v10017, %v10331
      %10333 = vmatmul.f32.gmra.mxu0 %v10165
      %v10334 = vpop.f32.mrf.mxu0
      %v10335 = vadd.f32 %v10017, %v10334
      %10336 = vmatmul.f32.gmra.mxu0 %v10168
      %v10337 = vpop.f32.mrf.mxu0
      %v10338 = vadd.f32 %v10017, %v10337
      %10339 = vdwg.mxu0
      %v10340 = vld [vmem:[%s354 + $0x3] sm:$0xff]
      %v10341 = vld [vmem:[%s354 + $0xb] sm:$0xff]
      %v10342 = vld [vmem:[%s354 + $0x13] sm:$0xff]
      %v10343 = vld [vmem:[%s354 + $0x1b] sm:$0xff]
      %v10344 = vld [vmem:[%s354 + $0x23] sm:$0xff]
      %v10345 = vld [vmem:[%s354 + $0x2b] sm:$0xff]
      %v10346 = vld [vmem:[%s354 + $0x33] sm:$0xff]
      %v10347 = vld [vmem:[%s354 + $0x3b] sm:$0xff]
      %v10348 = vld [vmem:[%s354 + $0x43] sm:$0xff]
      %v10349 = vld [vmem:[%s354 + $0x4b] sm:$0xff]
      %v10350 = vld [vmem:[%s354 + $0x53] sm:$0xff]
      %v10351 = vld [vmem:[%s354 + $0x5b] sm:$0xff]
      %v10352 = vld [vmem:[%s354 + $0x63] sm:$0xff]
      %v10353 = vld [vmem:[%s354 + $0x6b] sm:$0xff]
      %v10354 = vld [vmem:[%s354 + $0x73] sm:$0xff]
      %v10355 = vld [vmem:[%s354 + $0x7b] sm:$0xff]
      %v10356 = vld [vmem:[%s354 + $0x83] sm:$0xff]
      %v10357 = vld [vmem:[%s354 + $0x8b] sm:$0xff]
      %v10358 = vld [vmem:[%s354 + $0x93] sm:$0xff]
      %v10359 = vld [vmem:[%s354 + $0x9b] sm:$0xff]
      %v10360 = vld [vmem:[%s354 + $0xa3] sm:$0xff]
      %v10361 = vld [vmem:[%s354 + $0xab] sm:$0xff]
      %v10362 = vld [vmem:[%s354 + $0xb3] sm:$0xff]
      %v10363 = vld [vmem:[%s354 + $0xbb] sm:$0xff]
      %v10364 = vld [vmem:[%s354 + $0xc3] sm:$0xff]
      %v10365 = vld [vmem:[%s354 + $0xcb] sm:$0xff]
      %v10366 = vld [vmem:[%s354 + $0xd3] sm:$0xff]
      %v10367 = vld [vmem:[%s354 + $0xdb] sm:$0xff]
      %v10368 = vld [vmem:[%s354 + $0xe3] sm:$0xff]
      %v10369 = vld [vmem:[%s354 + $0xeb] sm:$0xff]
      %v10370 = vld [vmem:[%s354 + $0xf3] sm:$0xff]
      %v10371 = vld [vmem:[%s354 + $0xfb] sm:$0xff]
      %v10372 = vld [vmem:[%s354 + $0x103] sm:$0xff]
      %v10373 = vld [vmem:[%s354 + $0x10b] sm:$0xff]
      %v10374 = vld [vmem:[%s354 + $0x113] sm:$0xff]
      %v10375 = vld [vmem:[%s354 + $0x11b] sm:$0xff]
      %v10376 = vld [vmem:[%s354 + $0x123] sm:$0xff]
      %v10377 = vld [vmem:[%s354 + $0x12b] sm:$0xff]
      %v10378 = vld [vmem:[%s354 + $0x133] sm:$0xff]
      %v10379 = vld [vmem:[%s354 + $0x13b] sm:$0xff]
      %v10380 = vld [vmem:[%s354 + $0x143] sm:$0xff]
      %v10381 = vld [vmem:[%s354 + $0x14b] sm:$0xff]
      %v10382 = vld [vmem:[%s354 + $0x153] sm:$0xff]
      %v10383 = vld [vmem:[%s354 + $0x15b] sm:$0xff]
      %v10384 = vld [vmem:[%s354 + $0x163] sm:$0xff]
      %v10385 = vld [vmem:[%s354 + $0x16b] sm:$0xff]
      %v10386 = vld [vmem:[%s354 + $0x173] sm:$0xff]
      %v10387 = vld [vmem:[%s354 + $0x17b] sm:$0xff]
      %v10388 = vld [vmem:[%s354 + $0x183] sm:$0xff]
      %v10389 = vld [vmem:[%s354 + $0x18b] sm:$0xff]
      %v10390 = vld [vmem:[%s354 + $0x4] sm:$0xff]
      %v10391 = vld [vmem:[%s354 + $0xc] sm:$0xff]
      %v10392 = vld [vmem:[%s354 + $0x14] sm:$0xff]
      %v10393 = vld [vmem:[%s354 + $0x1c] sm:$0xff]
      %v10394 = vld [vmem:[%s354 + $0x24] sm:$0xff]
      %v10395 = vld [vmem:[%s354 + $0x2c] sm:$0xff]
      %v10396 = vld [vmem:[%s354 + $0x34] sm:$0xff]
      %v10397 = vld [vmem:[%s354 + $0x3c] sm:$0xff]
      %v10398 = vld [vmem:[%s354 + $0x44] sm:$0xff]
      %v10399 = vld [vmem:[%s354 + $0x4c] sm:$0xff]
      %v10400 = vld [vmem:[%s354 + $0x54] sm:$0xff]
      %v10401 = vld [vmem:[%s354 + $0x5c] sm:$0xff]
      %v10402 = vld [vmem:[%s354 + $0x64] sm:$0xff]
      %v10403 = vld [vmem:[%s354 + $0x6c] sm:$0xff]
      %v10404 = vld [vmem:[%s354 + $0x74] sm:$0xff]
      %v10405 = vld [vmem:[%s354 + $0x7c] sm:$0xff]
      %v10406 = vld [vmem:[%s354 + $0x84] sm:$0xff]
      %v10407 = vld [vmem:[%s354 + $0x8c] sm:$0xff]
      %v10408 = vld [vmem:[%s354 + $0x94] sm:$0xff]
      %v10409 = vld [vmem:[%s354 + $0x9c] sm:$0xff]
      %v10410 = vld [vmem:[%s354 + $0xa4] sm:$0xff]
      %v10411 = vld [vmem:[%s354 + $0xac] sm:$0xff]
      %v10412 = vld [vmem:[%s354 + $0xb4] sm:$0xff]
      %v10413 = vld [vmem:[%s354 + $0xbc] sm:$0xff]
      %v10414 = vld [vmem:[%s354 + $0xc4] sm:$0xff]
      %v10415 = vld [vmem:[%s354 + $0xcc] sm:$0xff]
      %v10416 = vld [vmem:[%s354 + $0xd4] sm:$0xff]
      %v10417 = vld [vmem:[%s354 + $0xdc] sm:$0xff]
      %v10418 = vld [vmem:[%s354 + $0xe4] sm:$0xff]
      %v10419 = vld [vmem:[%s354 + $0xec] sm:$0xff]
      %v10420 = vld [vmem:[%s354 + $0xf4] sm:$0xff]
      %v10421 = vld [vmem:[%s354 + $0xfc] sm:$0xff]
      %v10422 = vld [vmem:[%s354 + $0x104] sm:$0xff]
      %v10423 = vld [vmem:[%s354 + $0x10c] sm:$0xff]
      %v10424 = vld [vmem:[%s354 + $0x114] sm:$0xff]
      %v10425 = vld [vmem:[%s354 + $0x11c] sm:$0xff]
      %v10426 = vld [vmem:[%s354 + $0x124] sm:$0xff]
      %v10427 = vld [vmem:[%s354 + $0x12c] sm:$0xff]
      %v10428 = vld [vmem:[%s354 + $0x134] sm:$0xff]
      %v10429 = vld [vmem:[%s354 + $0x13c] sm:$0xff]
      %v10430 = vld [vmem:[%s354 + $0x144] sm:$0xff]
      %v10431 = vld [vmem:[%s354 + $0x14c] sm:$0xff]
      %v10432 = vld [vmem:[%s354 + $0x154] sm:$0xff]
      %v10433 = vld [vmem:[%s354 + $0x15c] sm:$0xff]
      %v10434 = vld [vmem:[%s354 + $0x164] sm:$0xff]
      %v10435 = vld [vmem:[%s354 + $0x16c] sm:$0xff]
      %v10436 = vld [vmem:[%s354 + $0x174] sm:$0xff]
      %v10437 = vld [vmem:[%s354 + $0x17c] sm:$0xff]
      %v10438 = vld [vmem:[%s354 + $0x184] sm:$0xff]
      %v10439 = vld [vmem:[%s354 + $0x18c] sm:$0xff]
      %v10440 = vld [vmem:[%s354 + $0x5] sm:$0xff]
      %v10441 = vld [vmem:[%s354 + $0xd] sm:$0xff]
      %v10442 = vld [vmem:[%s354 + $0x15] sm:$0xff]
      %v10443 = vld [vmem:[%s354 + $0x1d] sm:$0xff]
      %v10444 = vld [vmem:[%s354 + $0x25] sm:$0xff]
      %v10445 = vld [vmem:[%s354 + $0x2d] sm:$0xff]
      %v10446 = vld [vmem:[%s354 + $0x35] sm:$0xff]
      %v10447 = vld [vmem:[%s354 + $0x3d] sm:$0xff]
      %v10448 = vld [vmem:[%s354 + $0x45] sm:$0xff]
      %v10449 = vld [vmem:[%s354 + $0x4d] sm:$0xff]
      %v10450 = vld [vmem:[%s354 + $0x55] sm:$0xff]
      %v10451 = vld [vmem:[%s354 + $0x5d] sm:$0xff]
      %v10452 = vld [vmem:[%s354 + $0x65] sm:$0xff]
      %v10453 = vld [vmem:[%s354 + $0x6d] sm:$0xff]
      %v10454 = vld [vmem:[%s354 + $0x75] sm:$0xff]
      %v10455 = vld [vmem:[%s354 + $0x7d] sm:$0xff]
      %v10456 = vld [vmem:[%s354 + $0x85] sm:$0xff]
      %v10457 = vld [vmem:[%s354 + $0x8d] sm:$0xff]
      %v10458 = vld [vmem:[%s354 + $0x95] sm:$0xff]
      %v10459 = vld [vmem:[%s354 + $0x9d] sm:$0xff]
      %v10460 = vld [vmem:[%s354 + $0xa5] sm:$0xff]
      %v10461 = vld [vmem:[%s354 + $0xad] sm:$0xff]
      %v10462 = vld [vmem:[%s354 + $0xb5] sm:$0xff]
      %v10463 = vld [vmem:[%s354 + $0xbd] sm:$0xff]
      %v10464 = vld [vmem:[%s354 + $0xc5] sm:$0xff]
      %v10465 = vld [vmem:[%s354 + $0xcd] sm:$0xff]
      %v10466 = vld [vmem:[%s354 + $0xd5] sm:$0xff]
      %v10467 = vld [vmem:[%s354 + $0xdd] sm:$0xff]
      %v10468 = vld [vmem:[%s354 + $0xe5] sm:$0xff]
      %v10469 = vld [vmem:[%s354 + $0xed] sm:$0xff]
      %v10470 = vld [vmem:[%s354 + $0xf5] sm:$0xff]
      %v10471 = vld [vmem:[%s354 + $0xfd] sm:$0xff]
      %v10472 = vld [vmem:[%s354 + $0x105] sm:$0xff]
      %v10473 = vld [vmem:[%s354 + $0x10d] sm:$0xff]
      %v10474 = vld [vmem:[%s354 + $0x115] sm:$0xff]
      %v10475 = vld [vmem:[%s354 + $0x11d] sm:$0xff]
      %v10476 = vld [vmem:[%s354 + $0x125] sm:$0xff]
      %v10477 = vld [vmem:[%s354 + $0x12d] sm:$0xff]
      %v10478 = vld [vmem:[%s354 + $0x135] sm:$0xff]
      %v10479 = vld [vmem:[%s354 + $0x13d] sm:$0xff]
      %v10480 = vld [vmem:[%s354 + $0x145] sm:$0xff]
      %v10481 = vld [vmem:[%s354 + $0x14d] sm:$0xff]
      %v10482 = vld [vmem:[%s354 + $0x155] sm:$0xff]
      %v10483 = vld [vmem:[%s354 + $0x15d] sm:$0xff]
      %v10484 = vld [vmem:[%s354 + $0x165] sm:$0xff]
      %v10485 = vld [vmem:[%s354 + $0x16d] sm:$0xff]
      %v10486 = vld [vmem:[%s354 + $0x175] sm:$0xff]
      %v10487 = vld [vmem:[%s354 + $0x17d] sm:$0xff]
      %v10488 = vld [vmem:[%s354 + $0x185] sm:$0xff]
      %v10489 = vld [vmem:[%s354 + $0x18d] sm:$0xff]
      %v10490 = vld [vmem:[%s354 + $0x17] sm:$0xff]
      %v10491 = vld [vmem:[%s354 + $0x1f] sm:$0xff]
      %v10492 = vld [vmem:[%s354 + $0x27] sm:$0xff]
      %v10493 = vld [vmem:[%s354 + $0x2f] sm:$0xff]
      %v10494 = vld [vmem:[%s354 + $0x37] sm:$0xff]
      %v10495 = vld [vmem:[%s354 + $0x3f] sm:$0xff]
      %v10496 = vld [vmem:[%s354 + $0x47] sm:$0xff]
      %v10497 = vld [vmem:[%s354 + $0x4f] sm:$0xff]
      %v10498 = vld [vmem:[%s354 + $0x57] sm:$0xff]
      %v10499 = vld [vmem:[%s354 + $0x5f] sm:$0xff]
      %v10500 = vld [vmem:[%s354 + $0x67] sm:$0xff]
      %v10501 = vld [vmem:[%s354 + $0x6f] sm:$0xff]
      %v10502 = vld [vmem:[%s354 + $0x77] sm:$0xff]
      %v10503 = vld [vmem:[%s354 + $0x7f] sm:$0xff]
      %v10504 = vld [vmem:[%s354 + $0x87] sm:$0xff]
      %v10505 = vld [vmem:[%s354 + $0x8f] sm:$0xff]
      %v10506 = vld [vmem:[%s354 + $0x97] sm:$0xff]
      %v10507 = vld [vmem:[%s354 + $0x9f] sm:$0xff]
      %v10508 = vld [vmem:[%s354 + $0xa7] sm:$0xff]
      %v10509 = vld [vmem:[%s354 + $0xaf] sm:$0xff]
      %v10510 = vld [vmem:[%s354 + $0xb7] sm:$0xff]
      %v10511 = vld [vmem:[%s354 + $0xbf] sm:$0xff]
      %v10512 = vld [vmem:[%s354 + $0xc7] sm:$0xff]
      %v10513 = vld [vmem:[%s354 + $0xcf] sm:$0xff]
      %v10514 = vld [vmem:[%s354 + $0xd7] sm:$0xff]
      %v10515 = vld [vmem:[%s354 + $0xdf] sm:$0xff]
      %v10516 = vld [vmem:[%s354 + $0xe7] sm:$0xff]
      %v10517 = vld [vmem:[%s354 + $0xef] sm:$0xff]
      %v10518 = vld [vmem:[%s354 + $0xf7] sm:$0xff]
      %v10519 = vld [vmem:[%s354 + $0xff] sm:$0xff]
      %v10520 = vld [vmem:[%s354 + $0x107] sm:$0xff]
      %v10521 = vld [vmem:[%s354 + $0x10f] sm:$0xff]
      %v10522 = vld [vmem:[%s354 + $0x117] sm:$0xff]
      %v10523 = vld [vmem:[%s354 + $0x11f] sm:$0xff]
      %v10524 = vld [vmem:[%s354 + $0x127] sm:$0xff]
      %v10525 = vld [vmem:[%s354 + $0x12f] sm:$0xff]
      %v10526 = vld [vmem:[%s354 + $0x137] sm:$0xff]
      %v10527 = vld [vmem:[%s354 + $0x13f] sm:$0xff]
      %v10528 = vld [vmem:[%s354 + $0x147] sm:$0xff]
      %v10529 = vld [vmem:[%s354 + $0x14f] sm:$0xff]
      %v10530 = vld [vmem:[%s354 + $0x157] sm:$0xff]
      %v10531 = vld [vmem:[%s354 + $0x15f] sm:$0xff]
      %v10532 = vld [vmem:[%s354 + $0x167] sm:$0xff]
      %v10533 = vld [vmem:[%s354 + $0x16f] sm:$0xff]
      %v10534 = vld [vmem:[%s354 + $0x177] sm:$0xff]
      %v10535 = vld [vmem:[%s354 + $0x17f] sm:$0xff]
      %v10536 = vld [vmem:[%s354 + $0x187] sm:$0xff]
      %v10537 = vld [vmem:[%s354 + $0x18f] sm:$0xff]
      %v10538 = vld [vmem:[%s354 + $0x197] sm:$0xff]
      %v10539 = vld [vmem:[%s354 + $0x19f] sm:$0xff]
      %v10540 = vld [vmem:[%s354 + $0x18] sm:$0xff]
      %v10541 = vld [vmem:[%s354 + $0x20] sm:$0xff]
      %v10542 = vld [vmem:[%s354 + $0x28] sm:$0xff]
      %v10543 = vld [vmem:[%s354 + $0x30] sm:$0xff]
      %v10544 = vld [vmem:[%s354 + $0x38] sm:$0xff]
      %v10545 = vld [vmem:[%s354 + $0x40] sm:$0xff]
      %v10546 = vld [vmem:[%s354 + $0x48] sm:$0xff]
      %v10547 = vld [vmem:[%s354 + $0x50] sm:$0xff]
      %v10548 = vld [vmem:[%s354 + $0x58] sm:$0xff]
      %v10549 = vld [vmem:[%s354 + $0x60] sm:$0xff]
      %v10550 = vld [vmem:[%s354 + $0x68] sm:$0xff]
      %v10551 = vld [vmem:[%s354 + $0x70] sm:$0xff]
      %v10552 = vld [vmem:[%s354 + $0x78] sm:$0xff]
      %v10553 = vld [vmem:[%s354 + $0x80] sm:$0xff]
      %v10554 = vld [vmem:[%s354 + $0x88] sm:$0xff]
      %v10555 = vld [vmem:[%s354 + $0x90] sm:$0xff]
      %v10556 = vld [vmem:[%s354 + $0x98] sm:$0xff]
      %v10557 = vld [vmem:[%s354 + $0xa0] sm:$0xff]
      %v10558 = vld [vmem:[%s354 + $0xa8] sm:$0xff]
      %v10559 = vld [vmem:[%s354 + $0xb0] sm:$0xff]
      %v10560 = vld [vmem:[%s354 + $0xb8] sm:$0xff]
      %v10561 = vld [vmem:[%s354 + $0xc0] sm:$0xff]
      %v10562 = vld [vmem:[%s354 + $0xc8] sm:$0xff]
      %v10563 = vld [vmem:[%s354 + $0xd0] sm:$0xff]
      %v10564 = vld [vmem:[%s354 + $0xd8] sm:$0xff]
      %v10565 = vld [vmem:[%s354 + $0xe0] sm:$0xff]
      %v10566 = vld [vmem:[%s354 + $0xe8] sm:$0xff]
      %v10567 = vld [vmem:[%s354 + $0xf0] sm:$0xff]
      %v10568 = vld [vmem:[%s354 + $0xf8] sm:$0xff]
      %v10569 = vld [vmem:[%s354 + $0x100] sm:$0xff]
      %v10570 = vld [vmem:[%s354 + $0x108] sm:$0xff]
      %v10571 = vld [vmem:[%s354 + $0x110] sm:$0xff]
      %v10572 = vld [vmem:[%s354 + $0x118] sm:$0xff]
      %v10573 = vld [vmem:[%s354 + $0x120] sm:$0xff]
      %v10574 = vld [vmem:[%s354 + $0x128] sm:$0xff]
      %v10575 = vld [vmem:[%s354 + $0x130] sm:$0xff]
      %v10576 = vld [vmem:[%s354 + $0x138] sm:$0xff]
      %v10577 = vld [vmem:[%s354 + $0x140] sm:$0xff]
      %v10578 = vld [vmem:[%s354 + $0x148] sm:$0xff]
      %v10579 = vld [vmem:[%s354 + $0x150] sm:$0xff]
      %v10580 = vld [vmem:[%s354 + $0x158] sm:$0xff]
      %v10581 = vld [vmem:[%s354 + $0x160] sm:$0xff]
      %v10582 = vld [vmem:[%s354 + $0x168] sm:$0xff]
      %v10583 = vld [vmem:[%s354 + $0x170] sm:$0xff]
      %v10584 = vld [vmem:[%s354 + $0x178] sm:$0xff]
      %v10585 = vld [vmem:[%s354 + $0x180] sm:$0xff]
      %v10586 = vld [vmem:[%s354 + $0x188] sm:$0xff]
      %v10587 = vld [vmem:[%s354 + $0x190] sm:$0xff]
      %v10588 = vld [vmem:[%s354 + $0x198] sm:$0xff]
      %v10589 = vld [vmem:[%s354 + $0x1a0] sm:$0xff]
      %v10590 = vld [vmem:[%s354 + $0x19] sm:$0xff]
      %v10591 = vld [vmem:[%s354 + $0x21] sm:$0xff]
      %v10592 = vld [vmem:[%s354 + $0x29] sm:$0xff]
      %v10593 = vld [vmem:[%s354 + $0x31] sm:$0xff]
      %v10594 = vld [vmem:[%s354 + $0x39] sm:$0xff]
      %v10595 = vld [vmem:[%s354 + $0x41] sm:$0xff]
      %v10596 = vld [vmem:[%s354 + $0x49] sm:$0xff]
      %v10597 = vld [vmem:[%s354 + $0x51] sm:$0xff]
      %v10598 = vld [vmem:[%s354 + $0x59] sm:$0xff]
      %v10599 = vld [vmem:[%s354 + $0x61] sm:$0xff]
      %v10600 = vld [vmem:[%s354 + $0x69] sm:$0xff]
      %v10601 = vld [vmem:[%s354 + $0x71] sm:$0xff]
      %v10602 = vld [vmem:[%s354 + $0x79] sm:$0xff]
      %v10603 = vld [vmem:[%s354 + $0x81] sm:$0xff]
      %v10604 = vld [vmem:[%s354 + $0x89] sm:$0xff]
      %v10605 = vld [vmem:[%s354 + $0x91] sm:$0xff]
      %v10606 = vld [vmem:[%s354 + $0x99] sm:$0xff]
      %v10607 = vld [vmem:[%s354 + $0xa1] sm:$0xff]
      %v10608 = vld [vmem:[%s354 + $0xa9] sm:$0xff]
      %v10609 = vld [vmem:[%s354 + $0xb1] sm:$0xff]
      %v10610 = vld [vmem:[%s354 + $0xb9] sm:$0xff]
      %v10611 = vld [vmem:[%s354 + $0xc1] sm:$0xff]
      %v10612 = vld [vmem:[%s354 + $0xc9] sm:$0xff]
      %v10613 = vld [vmem:[%s354 + $0xd1] sm:$0xff]
      %v10614 = vld [vmem:[%s354 + $0xd9] sm:$0xff]
      %v10615 = vld [vmem:[%s354 + $0xe1] sm:$0xff]
      %v10616 = vld [vmem:[%s354 + $0xe9] sm:$0xff]
      %v10617 = vld [vmem:[%s354 + $0xf1] sm:$0xff]
      %v10618 = vld [vmem:[%s354 + $0xf9] sm:$0xff]
      %v10619 = vld [vmem:[%s354 + $0x101] sm:$0xff]
      %v10620 = vld [vmem:[%s354 + $0x109] sm:$0xff]
      %v10621 = vld [vmem:[%s354 + $0x111] sm:$0xff]
      %v10622 = vld [vmem:[%s354 + $0x119] sm:$0xff]
      %v10623 = vld [vmem:[%s354 + $0x121] sm:$0xff]
      %v10624 = vld [vmem:[%s354 + $0x129] sm:$0xff]
      %v10625 = vld [vmem:[%s354 + $0x131] sm:$0xff]
      %v10626 = vld [vmem:[%s354 + $0x139] sm:$0xff]
      %v10627 = vld [vmem:[%s354 + $0x141] sm:$0xff]
      %v10628 = vld [vmem:[%s354 + $0x149] sm:$0xff]
      %v10629 = vld [vmem:[%s354 + $0x151] sm:$0xff]
      %v10630 = vld [vmem:[%s354 + $0x159] sm:$0xff]
      %v10631 = vld [vmem:[%s354 + $0x161] sm:$0xff]
      %v10632 = vld [vmem:[%s354 + $0x169] sm:$0xff]
      %v10633 = vld [vmem:[%s354 + $0x171] sm:$0xff]
      %v10634 = vld [vmem:[%s354 + $0x179] sm:$0xff]
      %v10635 = vld [vmem:[%s354 + $0x181] sm:$0xff]
      %v10636 = vld [vmem:[%s354 + $0x189] sm:$0xff]
      %v10637 = vld [vmem:[%s354 + $0x191] sm:$0xff]
      %v10638 = vld [vmem:[%s354 + $0x199] sm:$0xff]
      %v10639 = vld [vmem:[%s354 + $0x1a1] sm:$0xff]
      %v10640 = vld [vmem:[%s354 + $0x193] sm:$0xff]
      %v10641 = vld [vmem:[%s354 + $0x19b] sm:$0xff]
      %v10642 = vld [vmem:[%s354 + $0x1a3] sm:$0xff]
      %v10643 = vld [vmem:[%s354 + $0x1ab] sm:$0xff]
      %v10644 = vld [vmem:[%s354 + $0x1b3] sm:$0xff]
      %v10645 = vld [vmem:[%s354 + $0x194] sm:$0xff]
      %v10646 = vld [vmem:[%s354 + $0x19c] sm:$0xff]
      %v10647 = vld [vmem:[%s354 + $0x1a4] sm:$0xff]
      %v10648 = vld [vmem:[%s354 + $0x1ac] sm:$0xff]
      %v10649 = vld [vmem:[%s354 + $0x1b4] sm:$0xff]
      %v10650 = vld [vmem:[%s354 + $0x195] sm:$0xff]
      %v10651 = vld [vmem:[%s354 + $0x19d] sm:$0xff]
      %v10652 = vld [vmem:[%s354 + $0x1a5] sm:$0xff]
      %v10653 = vld [vmem:[%s354 + $0x1ad] sm:$0xff]
      %v10654 = vld [vmem:[%s354 + $0x1b5] sm:$0xff]
      %v10655 = vmax.f32 %v10340, %v10390
      %v10656 = vmax.f32 %v10341, %v10391
      %v10657 = vmax.f32 %v10342, %v10392
      %v10658 = vmax.f32 %v10343, %v10393
      %v10659 = vmax.f32 %v10344, %v10394
      %v10660 = vmax.f32 %v10345, %v10395
      %v10661 = vmax.f32 %v10346, %v10396
      %v10662 = vmax.f32 %v10347, %v10397
      %v10663 = vmax.f32 %v10348, %v10398
      %v10664 = vmax.f32 %v10349, %v10399
      %v10665 = vmax.f32 %v10350, %v10400
      %v10666 = vmax.f32 %v10351, %v10401
      %v10667 = vmax.f32 %v10352, %v10402
      %v10668 = vmax.f32 %v10353, %v10403
      %v10669 = vmax.f32 %v10354, %v10404
      %v10670 = vmax.f32 %v10355, %v10405
      %v10671 = vmax.f32 %v10356, %v10406
      %v10672 = vmax.f32 %v10357, %v10407
      %v10673 = vmax.f32 %v10358, %v10408
      %v10674 = vmax.f32 %v10359, %v10409
      %v10675 = vmax.f32 %v10360, %v10410
      %v10676 = vmax.f32 %v10361, %v10411
      %v10677 = vmax.f32 %v10362, %v10412
      %v10678 = vmax.f32 %v10363, %v10413
      %v10679 = vmax.f32 %v10364, %v10414
      %v10680 = vmax.f32 %v10365, %v10415
      %v10681 = vmax.f32 %v10366, %v10416
      %v10682 = vmax.f32 %v10367, %v10417
      %v10683 = vmax.f32 %v10368, %v10418
      %v10684 = vmax.f32 %v10369, %v10419
      %v10685 = vmax.f32 %v10370, %v10420
      %v10686 = vmax.f32 %v10371, %v10421
      %v10687 = vmax.f32 %v10372, %v10422
      %v10688 = vmax.f32 %v10373, %v10423
      %v10689 = vmax.f32 %v10374, %v10424
      %v10690 = vmax.f32 %v10375, %v10425
      %v10691 = vmax.f32 %v10376, %v10426
      %v10692 = vmax.f32 %v10377, %v10427
      %v10693 = vmax.f32 %v10378, %v10428
      %v10694 = vmax.f32 %v10379, %v10429
      %v10695 = vmax.f32 %v10380, %v10430
      %v10696 = vmax.f32 %v10381, %v10431
      %v10697 = vmax.f32 %v10382, %v10432
      %v10698 = vmax.f32 %v10383, %v10433
      %v10699 = vmax.f32 %v10384, %v10434
      %v10700 = vmax.f32 %v10385, %v10435
      %v10701 = vmax.f32 %v10386, %v10436
      %v10702 = vmax.f32 %v10387, %v10437
      %v10703 = vmax.f32 %v10388, %v10438
      %v10704 = vmax.f32 %v10389, %v10439
      %v10705 = vmax.f32 %v10440, %v10490
      %v10706 = vmax.f32 %v10441, %v10491
      %v10707 = vmax.f32 %v10442, %v10492
      %v10708 = vmax.f32 %v10443, %v10493
      %v10709 = vmax.f32 %v10444, %v10494
      %v10710 = vmax.f32 %v10445, %v10495
      %v10711 = vmax.f32 %v10446, %v10496
      %v10712 = vmax.f32 %v10447, %v10497
      %v10713 = vmax.f32 %v10448, %v10498
      %v10714 = vmax.f32 %v10449, %v10499
      %v10715 = vmax.f32 %v10450, %v10500
      %v10716 = vmax.f32 %v10451, %v10501
      %v10717 = vmax.f32 %v10452, %v10502
      %v10718 = vmax.f32 %v10453, %v10503
      %v10719 = vmax.f32 %v10454, %v10504
      %v10720 = vmax.f32 %v10455, %v10505
      %v10721 = vmax.f32 %v10456, %v10506
      %v10722 = vmax.f32 %v10457, %v10507
      %v10723 = vmax.f32 %v10458, %v10508
      %v10724 = vmax.f32 %v10459, %v10509
      %v10725 = vmax.f32 %v10460, %v10510
      %v10726 = vmax.f32 %v10461, %v10511
      %v10727 = vmax.f32 %v10462, %v10512
      %v10728 = vmax.f32 %v10463, %v10513
      %v10729 = vmax.f32 %v10464, %v10514
      %v10730 = vmax.f32 %v10465, %v10515
      %v10731 = vmax.f32 %v10466, %v10516
      %v10732 = vmax.f32 %v10467, %v10517
      %v10733 = vmax.f32 %v10468, %v10518
      %v10734 = vmax.f32 %v10469, %v10519
      %v10735 = vmax.f32 %v10470, %v10520
      %v10736 = vmax.f32 %v10471, %v10521
      %v10737 = vmax.f32 %v10472, %v10522
      %v10738 = vmax.f32 %v10473, %v10523
      %v10739 = vmax.f32 %v10474, %v10524
      %v10740 = vmax.f32 %v10475, %v10525
      %v10741 = vmax.f32 %v10476, %v10526
      %v10742 = vmax.f32 %v10477, %v10527
      %v10743 = vmax.f32 %v10478, %v10528
      %v10744 = vmax.f32 %v10479, %v10529
      %v10745 = vmax.f32 %v10480, %v10530
      %v10746 = vmax.f32 %v10481, %v10531
      %v10747 = vmax.f32 %v10482, %v10532
      %v10748 = vmax.f32 %v10483, %v10533
      %v10749 = vmax.f32 %v10484, %v10534
      %v10750 = vmax.f32 %v10485, %v10535
      %v10751 = vmax.f32 %v10486, %v10536
      %v10752 = vmax.f32 %v10487, %v10537
      %v10753 = vmax.f32 %v10488, %v10538
      %v10754 = vmax.f32 %v10489, %v10539
      %v10755 = vmax.f32 %v10540, %v10590
      %v10756 = vmax.f32 %v10541, %v10591
      %v10757 = vmax.f32 %v10542, %v10592
      %v10758 = vmax.f32 %v10543, %v10593
      %v10759 = vmax.f32 %v10544, %v10594
      %v10760 = vmax.f32 %v10545, %v10595
      %v10761 = vmax.f32 %v10546, %v10596
      %v10762 = vmax.f32 %v10547, %v10597
      %v10763 = vmax.f32 %v10548, %v10598
      %v10764 = vmax.f32 %v10549, %v10599
      %v10765 = vmax.f32 %v10550, %v10600
      %v10766 = vmax.f32 %v10551, %v10601
      %v10767 = vmax.f32 %v10552, %v10602
      %v10768 = vmax.f32 %v10553, %v10603
      %v10769 = vmax.f32 %v10554, %v10604
      %v10770 = vmax.f32 %v10555, %v10605
      %v10771 = vmax.f32 %v10556, %v10606
      %v10772 = vmax.f32 %v10557, %v10607
      %v10773 = vmax.f32 %v10558, %v10608
      %v10774 = vmax.f32 %v10559, %v10609
      %v10775 = vmax.f32 %v10560, %v10610
      %v10776 = vmax.f32 %v10561, %v10611
      %v10777 = vmax.f32 %v10562, %v10612
      %v10778 = vmax.f32 %v10563, %v10613
      %v10779 = vmax.f32 %v10564, %v10614
      %v10780 = vmax.f32 %v10565, %v10615
      %v10781 = vmax.f32 %v10566, %v10616
      %v10782 = vmax.f32 %v10567, %v10617
      %v10783 = vmax.f32 %v10568, %v10618
      %v10784 = vmax.f32 %v10569, %v10619
      %v10785 = vmax.f32 %v10570, %v10620
      %v10786 = vmax.f32 %v10571, %v10621
      %v10787 = vmax.f32 %v10572, %v10622
      %v10788 = vmax.f32 %v10573, %v10623
      %v10789 = vmax.f32 %v10574, %v10624
      %v10790 = vmax.f32 %v10575, %v10625
      %v10791 = vmax.f32 %v10576, %v10626
      %v10792 = vmax.f32 %v10577, %v10627
      %v10793 = vmax.f32 %v10578, %v10628
      %v10794 = vmax.f32 %v10579, %v10629
      %v10795 = vmax.f32 %v10580, %v10630
      %v10796 = vmax.f32 %v10581, %v10631
      %v10797 = vmax.f32 %v10582, %v10632
      %v10798 = vmax.f32 %v10583, %v10633
      %v10799 = vmax.f32 %v10584, %v10634
      %v10800 = vmax.f32 %v10585, %v10635
      %v10801 = vmax.f32 %v10586, %v10636
      %v10802 = vmax.f32 %v10587, %v10637
      %v10803 = vmax.f32 %v10588, %v10638
      %v10804 = vmax.f32 %v10589, %v10639
      %v10805 = vmax.f32 %v10640, %v10645
      %v10806 = vmax.f32 %v10641, %v10646
      %v10807 = vmax.f32 %v10642, %v10647
      %v10808 = vmax.f32 %v10643, %v10648
      %v10809 = vmax.f32 %v10644, %v10649
      %v10810 = vmax.f32 %v10655, %v10705
      %v10811 = vmax.f32 %v10656, %v10706
      %v10812 = vmax.f32 %v10657, %v10707
      %v10813 = vmax.f32 %v10658, %v10708
      %v10814 = vmax.f32 %v10659, %v10709
      %v10815 = vmax.f32 %v10660, %v10710
      %v10816 = vmax.f32 %v10661, %v10711
      %v10817 = vmax.f32 %v10662, %v10712
      %v10818 = vmax.f32 %v10663, %v10713
      %v10819 = vmax.f32 %v10664, %v10714
      %v10820 = vmax.f32 %v10665, %v10715
      %v10821 = vmax.f32 %v10666, %v10716
      %v10822 = vmax.f32 %v10667, %v10717
      %v10823 = vmax.f32 %v10668, %v10718
      %v10824 = vmax.f32 %v10669, %v10719
      %v10825 = vmax.f32 %v10670, %v10720
      %v10826 = vmax.f32 %v10671, %v10721
      %v10827 = vmax.f32 %v10672, %v10722
      %v10828 = vmax.f32 %v10673, %v10723
      %v10829 = vmax.f32 %v10674, %v10724
      %v10830 = vmax.f32 %v10675, %v10725
      %v10831 = vmax.f32 %v10676, %v10726
      %v10832 = vmax.f32 %v10677, %v10727
      %v10833 = vmax.f32 %v10678, %v10728
      %v10834 = vmax.f32 %v10679, %v10729
      %v10835 = vmax.f32 %v10680, %v10730
      %v10836 = vmax.f32 %v10681, %v10731
      %v10837 = vmax.f32 %v10682, %v10732
      %v10838 = vmax.f32 %v10683, %v10733
      %v10839 = vmax.f32 %v10684, %v10734
      %v10840 = vmax.f32 %v10685, %v10735
      %v10841 = vmax.f32 %v10686, %v10736
      %v10842 = vmax.f32 %v10687, %v10737
      %v10843 = vmax.f32 %v10688, %v10738
      %v10844 = vmax.f32 %v10689, %v10739
      %v10845 = vmax.f32 %v10690, %v10740
      %v10846 = vmax.f32 %v10691, %v10741
      %v10847 = vmax.f32 %v10692, %v10742
      %v10848 = vmax.f32 %v10693, %v10743
      %v10849 = vmax.f32 %v10694, %v10744
      %v10850 = vmax.f32 %v10695, %v10745
      %v10851 = vmax.f32 %v10696, %v10746
      %v10852 = vmax.f32 %v10697, %v10747
      %v10853 = vmax.f32 %v10698, %v10748
      %v10854 = vmax.f32 %v10699, %v10749
      %v10855 = vmax.f32 %v10700, %v10750
      %v10856 = vmax.f32 %v10701, %v10751
      %v10857 = vmax.f32 %v10702, %v10752
      %v10858 = vmax.f32 %v10703, %v10753
      %v10859 = vmax.f32 %v10704, %v10754
      %v10860 = vmax.f32 %v10755, %v10660
      %v10861 = vmax.f32 %v10756, %v10661
      %v10862 = vmax.f32 %v10757, %v10662
      %v10863 = vmax.f32 %v10758, %v10663
      %v10864 = vmax.f32 %v10759, %v10664
      %v10865 = vmax.f32 %v10760, %v10665
      %v10866 = vmax.f32 %v10761, %v10666
      %v10867 = vmax.f32 %v10762, %v10667
      %v10868 = vmax.f32 %v10763, %v10668
      %v10869 = vmax.f32 %v10764, %v10669
      %v10870 = vmax.f32 %v10765, %v10670
      %v10871 = vmax.f32 %v10766, %v10671
      %v10872 = vmax.f32 %v10767, %v10672
      %v10873 = vmax.f32 %v10768, %v10673
      %v10874 = vmax.f32 %v10769, %v10674
      %v10875 = vmax.f32 %v10770, %v10675
      %v10876 = vmax.f32 %v10771, %v10676
      %v10877 = vmax.f32 %v10772, %v10677
      %v10878 = vmax.f32 %v10773, %v10678
      %v10879 = vmax.f32 %v10774, %v10679
      %v10880 = vmax.f32 %v10775, %v10680
      %v10881 = vmax.f32 %v10776, %v10681
      %v10882 = vmax.f32 %v10777, %v10682
      %v10883 = vmax.f32 %v10778, %v10683
      %v10884 = vmax.f32 %v10779, %v10684
      %v10885 = vmax.f32 %v10780, %v10685
      %v10886 = vmax.f32 %v10781, %v10686
      %v10887 = vmax.f32 %v10782, %v10687
      %v10888 = vmax.f32 %v10783, %v10688
      %v10889 = vmax.f32 %v10784, %v10689
      %v10890 = vmax.f32 %v10785, %v10690
      %v10891 = vmax.f32 %v10786, %v10691
      %v10892 = vmax.f32 %v10787, %v10692
      %v10893 = vmax.f32 %v10788, %v10693
      %v10894 = vmax.f32 %v10789, %v10694
      %v10895 = vmax.f32 %v10790, %v10695
      %v10896 = vmax.f32 %v10791, %v10696
      %v10897 = vmax.f32 %v10792, %v10697
      %v10898 = vmax.f32 %v10793, %v10698
      %v10899 = vmax.f32 %v10794, %v10699
      %v10900 = vmax.f32 %v10795, %v10700
      %v10901 = vmax.f32 %v10796, %v10701
      %v10902 = vmax.f32 %v10797, %v10702
      %v10903 = vmax.f32 %v10798, %v10703
      %v10904 = vmax.f32 %v10799, %v10704
      %v10905 = vmax.f32 %v10800, %v10805
      %v10906 = vmax.f32 %v10801, %v10806
      %v10907 = vmax.f32 %v10802, %v10807
      %v10908 = vmax.f32 %v10803, %v10808
      %v10909 = vmax.f32 %v10804, %v10809
      %v10910 = vmax.f32 %v10810, %v10860
      %v10911 = vmax.f32 %v10811, %v10861
      %v10912 = vmax.f32 %v10812, %v10862
      %v10913 = vmax.f32 %v10813, %v10863
      %v10914 = vmax.f32 %v10814, %v10864
      %v10915 = vmax.f32 %v10815, %v10865
      %v10916 = vmax.f32 %v10816, %v10866
      %v10917 = vmax.f32 %v10817, %v10867
      %v10918 = vmax.f32 %v10818, %v10868
      %v10919 = vmax.f32 %v10819, %v10869
      %v10920 = vmax.f32 %v10820, %v10870
      %v10921 = vmax.f32 %v10821, %v10871
      %v10922 = vmax.f32 %v10822, %v10872
      %v10923 = vmax.f32 %v10823, %v10873
      %v10924 = vmax.f32 %v10824, %v10874
      %v10925 = vmax.f32 %v10825, %v10875
      %v10926 = vmax.f32 %v10826, %v10876
      %v10927 = vmax.f32 %v10827, %v10877
      %v10928 = vmax.f32 %v10828, %v10878
      %v10929 = vmax.f32 %v10829, %v10879
      %v10930 = vmax.f32 %v10830, %v10880
      %v10931 = vmax.f32 %v10831, %v10881
      %v10932 = vmax.f32 %v10832, %v10882
      %v10933 = vmax.f32 %v10833, %v10883
      %v10934 = vmax.f32 %v10834, %v10884
      %v10935 = vmax.f32 %v10835, %v10885
      %v10936 = vmax.f32 %v10836, %v10886
      %v10937 = vmax.f32 %v10837, %v10887
      %v10938 = vmax.f32 %v10838, %v10888
      %v10939 = vmax.f32 %v10839, %v10889
      %v10940 = vmax.f32 %v10840, %v10890
      %v10941 = vmax.f32 %v10841, %v10891
      %v10942 = vmax.f32 %v10842, %v10892
      %v10943 = vmax.f32 %v10843, %v10893
      %v10944 = vmax.f32 %v10844, %v10894
      %v10945 = vmax.f32 %v10845, %v10895
      %v10946 = vmax.f32 %v10846, %v10896
      %v10947 = vmax.f32 %v10847, %v10897
      %v10948 = vmax.f32 %v10848, %v10898
      %v10949 = vmax.f32 %v10849, %v10899
      %v10950 = vmax.f32 %v10850, %v10900
      %v10951 = vmax.f32 %v10851, %v10901
      %v10952 = vmax.f32 %v10852, %v10902
      %v10953 = vmax.f32 %v10853, %v10903
      %v10954 = vmax.f32 %v10854, %v10904
      %v10955 = vmax.f32 %v10855, %v10905
      %v10956 = vmax.f32 %v10856, %v10906
      %v10957 = vmax.f32 %v10857, %v10907
      %v10958 = vmax.f32 %v10858, %v10908
      %v10959 = vmax.f32 %v10859, %v10909
      %v10960 = vmax.f32 %v10910, %v10445
      %v10961 = vmax.f32 %v10911, %v10446
      %v10962 = vmax.f32 %v10912, %v10447
      %v10963 = vmax.f32 %v10913, %v10448
      %v10964 = vmax.f32 %v10914, %v10449
      %v10965 = vmax.f32 %v10915, %v10450
      %v10966 = vmax.f32 %v10916, %v10451
      %v10967 = vmax.f32 %v10917, %v10452
      %v10968 = vmax.f32 %v10918, %v10453
      %v10969 = vmax.f32 %v10919, %v10454
      %v10970 = vmax.f32 %v10920, %v10455
      %v10971 = vmax.f32 %v10921, %v10456
      %v10972 = vmax.f32 %v10922, %v10457
      %v10973 = vmax.f32 %v10923, %v10458
      %v10974 = vmax.f32 %v10924, %v10459
      %v10975 = vmax.f32 %v10925, %v10460
      %v10976 = vmax.f32 %v10926, %v10461
      %v10977 = vmax.f32 %v10927, %v10462
      %v10978 = vmax.f32 %v10928, %v10463
      %v10979 = vmax.f32 %v10929, %v10464
      %v10980 = vmax.f32 %v10930, %v10465
      %v10981 = vmax.f32 %v10931, %v10466
      %v10982 = vmax.f32 %v10932, %v10467
      %v10983 = vmax.f32 %v10933, %v10468
      %v10984 = vmax.f32 %v10934, %v10469
      %v10985 = vmax.f32 %v10935, %v10470
      %v10986 = vmax.f32 %v10936, %v10471
      %v10987 = vmax.f32 %v10937, %v10472
      %v10988 = vmax.f32 %v10938, %v10473
      %v10989 = vmax.f32 %v10939, %v10474
      %v10990 = vmax.f32 %v10940, %v10475
      %v10991 = vmax.f32 %v10941, %v10476
      %v10992 = vmax.f32 %v10942, %v10477
      %v10993 = vmax.f32 %v10943, %v10478
      %v10994 = vmax.f32 %v10944, %v10479
      %v10995 = vmax.f32 %v10945, %v10480
      %v10996 = vmax.f32 %v10946, %v10481
      %v10997 = vmax.f32 %v10947, %v10482
      %v10998 = vmax.f32 %v10948, %v10483
      %v10999 = vmax.f32 %v10949, %v10484
      %v11000 = vmax.f32 %v10950, %v10485
      %v11001 = vmax.f32 %v10951, %v10486
      %v11002 = vmax.f32 %v10952, %v10487
      %v11003 = vmax.f32 %v10953, %v10488
      %v11004 = vmax.f32 %v10954, %v10489
      %v11005 = vmax.f32 %v10955, %v10650
      %v11006 = vmax.f32 %v10956, %v10651
      %v11007 = vmax.f32 %v10957, %v10652
      %v11008 = vmax.f32 %v10958, %v10653
      %v11009 = vmax.f32 %v10959, %v10654
      %v11010 = vld [vmem:[%s8] sm:$0xf]
      %v11011 = vld [vmem:[%s9] sm:$0x1]
      %v11013 = vperm.slane %v11011, 0
      %v11016 = vsel %vm815, %v10960, 0
      %v11019 = vsel %vm815, %v10961, 0
      %v11022 = vsel %vm815, %v10962, 0
      %v11025 = vsel %vm815, %v10963, 0
      %v11028 = vsel %vm815, %v10964, 0
      %v11031 = vsel %vm815, %v10965, 0
      %v11034 = vsel %vm815, %v10966, 0
      %v11037 = vsel %vm815, %v10967, 0
      %v11040 = vsel %vm815, %v10968, 0
      %v11043 = vsel %vm815, %v10969, 0
      %v11046 = vsel %vm815, %v10970, 0
      %v11049 = vsel %vm815, %v10971, 0
      %v11052 = vsel %vm815, %v10972, 0
      %v11055 = vsel %vm815, %v10973, 0
      %v11058 = vsel %vm815, %v10974, 0
      %v11061 = vsel %vm815, %v10975, 0
      %v11064 = vsel %vm815, %v10976, 0
      %v11067 = vsel %vm815, %v10977, 0
      %v11070 = vsel %vm815, %v10978, 0
      %v11073 = vsel %vm815, %v10979, 0
      %v11076 = vsel %vm815, %v10980, 0
      %v11079 = vsel %vm815, %v10981, 0
      %v11082 = vsel %vm815, %v10982, 0
      %v11085 = vsel %vm815, %v10983, 0
      %v11088 = vsel %vm815, %v10984, 0
      %v11091 = vsel %vm815, %v10985, 0
      %v11094 = vsel %vm815, %v10986, 0
      %v11097 = vsel %vm815, %v10987, 0
      %v11100 = vsel %vm815, %v10988, 0
      %v11103 = vsel %vm815, %v10989, 0
      %v11106 = vsel %vm815, %v10990, 0
      %v11109 = vsel %vm815, %v10991, 0
      %v11112 = vsel %vm815, %v10992, 0
      %v11115 = vsel %vm815, %v10993, 0
      %v11118 = vsel %vm815, %v10994, 0
      %v11121 = vsel %vm815, %v10995, 0
      %v11124 = vsel %vm815, %v10996, 0
      %v11127 = vsel %vm815, %v10997, 0
      %v11130 = vsel %vm815, %v10998, 0
      %v11133 = vsel %vm815, %v10999, 0
      %v11136 = vsel %vm815, %v11000, 0
      %v11139 = vsel %vm815, %v11001, 0
      %v11142 = vsel %vm815, %v11002, 0
      %v11145 = vsel %vm815, %v11003, 0
      %v11148 = vsel %vm815, %v11004, 0
      %v11151 = vsel %vm815, %v11005, 0
      %v11154 = vsel %vm815, %v11006, 0
      %v11157 = vsel %vm815, %v11007, 0
      %v11160 = vsel %vm815, %v11008, 0
      %v11163 = vsel %vm815, %v11009, 0
      %v11166 = vsel %vm966, %v11010, 0
      %11168 = vmatpush.msra.mxu0 0.0
      %11169 = vmatpush.msra.mxu0 0.0
      %11170 = vmatpush.msra.mxu0 0.0
      %11171 = vmatpush.msra.mxu0 0.0
      %11172 = vmatpush.msra.mxu0 0.0
      %11173 = vmatpush.msra.mxu0 0.0
      %11174 = vmatpush.msra.mxu0 0.0
      %11175 = vmatpush.msra.mxu0 0.0
      %11176 = vmatpush.msra.mxu0 0.0
      %11177 = vmatpush.msra.mxu0 0.0
      %11178 = vmatpush.msra.mxu0 0.0
      %11179 = vmatpush.msra.mxu0 0.0
      %11180 = vmatpush.msra.mxu0 0.0
      %11181 = vmatpush.msra.mxu0 0.0
      %11182 = vmatpush.msra.mxu0 0.0
      %11183 = vmatpush.msra.mxu0 %v11166
      %11184 = vmatmul.f32.gmra.mxu0 %v11016
      %v11185 = vpop.f32.mrf.mxu0
      %v11186 = vadd.f32 %v11013, %v11185
      %11187 = vmatmul.f32.gmra.mxu0 %v11019
      %v11188 = vpop.f32.mrf.mxu0
      %v11189 = vadd.f32 %v11013, %v11188
      %11190 = vmatmul.f32.gmra.mxu0 %v11022
      %v11191 = vpop.f32.mrf.mxu0
      %v11192 = vadd.f32 %v11013, %v11191
      %11193 = vmatmul.f32.gmra.mxu0 %v11025
      %v11194 = vpop.f32.mrf.mxu0
      %v11195 = vadd.f32 %v11013, %v11194
      %11196 = vmatmul.f32.gmra.mxu0 %v11028
      %v11197 = vpop.f32.mrf.mxu0
      %v11198 = vadd.f32 %v11013, %v11197
      %11199 = vmatmul.f32.gmra.mxu0 %v11031
      %v11200 = vpop.f32.mrf.mxu0
      %v11201 = vadd.f32 %v11013, %v11200
      %11202 = vmatmul.f32.gmra.mxu0 %v11034
      %v11203 = vpop.f32.mrf.mxu0
      %v11204 = vadd.f32 %v11013, %v11203
      %11205 = vmatmul.f32.gmra.mxu0 %v11037
      %v11206 = vpop.f32.mrf.mxu0
      %v11207 = vadd.f32 %v11013, %v11206
      %11208 = vmatmul.f32.gmra.mxu0 %v11040
      %v11209 = vpop.f32.mrf.mxu0
      %v11210 = vadd.f32 %v11013, %v11209
      %11211 = vmatmul.f32.gmra.mxu0 %v11043
      %v11212 = vpop.f32.mrf.mxu0
      %v11213 = vadd.f32 %v11013, %v11212
      %11214 = vmatmul.f32.gmra.mxu0 %v11046
      %v11215 = vpop.f32.mrf.mxu0
      %v11216 = vadd.f32 %v11013, %v11215
      %11217 = vmatmul.f32.gmra.mxu0 %v11049
      %v11218 = vpop.f32.mrf.mxu0
      %v11219 = vadd.f32 %v11013, %v11218
      %11220 = vmatmul.f32.gmra.mxu0 %v11052
      %v11221 = vpop.f32.mrf.mxu0
      %v11222 = vadd.f32 %v11013, %v11221
      %11223 = vmatmul.f32.gmra.mxu0 %v11055
      %v11224 = vpop.f32.mrf.mxu0
      %v11225 = vadd.f32 %v11013, %v11224
      %11226 = vmatmul.f32.gmra.mxu0 %v11058
      %v11227 = vpop.f32.mrf.mxu0
      %v11228 = vadd.f32 %v11013, %v11227
      %11229 = vmatmul.f32.gmra.mxu0 %v11061
      %v11230 = vpop.f32.mrf.mxu0
      %v11231 = vadd.f32 %v11013, %v11230
      %11232 = vmatmul.f32.gmra.mxu0 %v11064
      %v11233 = vpop.f32.mrf.mxu0
      %v11234 = vadd.f32 %v11013, %v11233
      %11235 = vmatmul.f32.gmra.mxu0 %v11067
      %v11236 = vpop.f32.mrf.mxu0
      %v11237 = vadd.f32 %v11013, %v11236
      %11238 = vmatmul.f32.gmra.mxu0 %v11070
      %v11239 = vpop.f32.mrf.mxu0
      %v11240 = vadd.f32 %v11013, %v11239
      %11241 = vmatmul.f32.gmra.mxu0 %v11073
      %v11242 = vpop.f32.mrf.mxu0
      %v11243 = vadd.f32 %v11013, %v11242
      %11244 = vmatmul.f32.gmra.mxu0 %v11076
      %v11245 = vpop.f32.mrf.mxu0
      %v11246 = vadd.f32 %v11013, %v11245
      %11247 = vmatmul.f32.gmra.mxu0 %v11079
      %v11248 = vpop.f32.mrf.mxu0
      %v11249 = vadd.f32 %v11013, %v11248
      %11250 = vmatmul.f32.gmra.mxu0 %v11082
      %v11251 = vpop.f32.mrf.mxu0
      %v11252 = vadd.f32 %v11013, %v11251
      %11253 = vmatmul.f32.gmra.mxu0 %v11085
      %v11254 = vpop.f32.mrf.mxu0
      %v11255 = vadd.f32 %v11013, %v11254
      %11256 = vmatmul.f32.gmra.mxu0 %v11088
      %v11257 = vpop.f32.mrf.mxu0
      %v11258 = vadd.f32 %v11013, %v11257
      %11259 = vmatmul.f32.gmra.mxu0 %v11091
      %v11260 = vpop.f32.mrf.mxu0
      %v11261 = vadd.f32 %v11013, %v11260
      %11262 = vmatmul.f32.gmra.mxu0 %v11094
      %v11263 = vpop.f32.mrf.mxu0
      %v11264 = vadd.f32 %v11013, %v11263
      %11265 = vmatmul.f32.gmra.mxu0 %v11097
      %v11266 = vpop.f32.mrf.mxu0
      %v11267 = vadd.f32 %v11013, %v11266
      %11268 = vmatmul.f32.gmra.mxu0 %v11100
      %v11269 = vpop.f32.mrf.mxu0
      %v11270 = vadd.f32 %v11013, %v11269
      %11271 = vmatmul.f32.gmra.mxu0 %v11103
      %v11272 = vpop.f32.mrf.mxu0
      %v11273 = vadd.f32 %v11013, %v11272
      %11274 = vmatmul.f32.gmra.mxu0 %v11106
      %v11275 = vpop.f32.mrf.mxu0
      %v11276 = vadd.f32 %v11013, %v11275
      %11277 = vmatmul.f32.gmra.mxu0 %v11109
      %v11278 = vpop.f32.mrf.mxu0
      %v11279 = vadd.f32 %v11013, %v11278
      %11280 = vmatmul.f32.gmra.mxu0 %v11112
      %v11281 = vpop.f32.mrf.mxu0
      %v11282 = vadd.f32 %v11013, %v11281
      %11283 = vmatmul.f32.gmra.mxu0 %v11115
      %v11284 = vpop.f32.mrf.mxu0
      %v11285 = vadd.f32 %v11013, %v11284
      %11286 = vmatmul.f32.gmra.mxu0 %v11118
      %v11287 = vpop.f32.mrf.mxu0
      %v11288 = vadd.f32 %v11013, %v11287
      %11289 = vmatmul.f32.gmra.mxu0 %v11121
      %v11290 = vpop.f32.mrf.mxu0
      %v11291 = vadd.f32 %v11013, %v11290
      %11292 = vmatmul.f32.gmra.mxu0 %v11124
      %v11293 = vpop.f32.mrf.mxu0
      %v11294 = vadd.f32 %v11013, %v11293
      %11295 = vmatmul.f32.gmra.mxu0 %v11127
      %v11296 = vpop.f32.mrf.mxu0
      %v11297 = vadd.f32 %v11013, %v11296
      %11298 = vmatmul.f32.gmra.mxu0 %v11130
      %v11299 = vpop.f32.mrf.mxu0
      %v11300 = vadd.f32 %v11013, %v11299
      %11301 = vmatmul.f32.gmra.mxu0 %v11133
      %v11302 = vpop.f32.mrf.mxu0
      %v11303 = vadd.f32 %v11013, %v11302
      %11304 = vmatmul.f32.gmra.mxu0 %v11136
      %v11305 = vpop.f32.mrf.mxu0
      %v11306 = vadd.f32 %v11013, %v11305
      %11307 = vmatmul.f32.gmra.mxu0 %v11139
      %v11308 = vpop.f32.mrf.mxu0
      %v11309 = vadd.f32 %v11013, %v11308
      %11310 = vmatmul.f32.gmra.mxu0 %v11142
      %v11311 = vpop.f32.mrf.mxu0
      %v11312 = vadd.f32 %v11013, %v11311
      %11313 = vmatmul.f32.gmra.mxu0 %v11145
      %v11314 = vpop.f32.mrf.mxu0
      %v11315 = vadd.f32 %v11013, %v11314
      %11316 = vmatmul.f32.gmra.mxu0 %v11148
      %v11317 = vpop.f32.mrf.mxu0
      %v11318 = vadd.f32 %v11013, %v11317
      %11319 = vmatmul.f32.gmra.mxu0 %v11151
      %v11320 = vpop.f32.mrf.mxu0
      %v11321 = vadd.f32 %v11013, %v11320
      %11322 = vmatmul.f32.gmra.mxu0 %v11154
      %v11323 = vpop.f32.mrf.mxu0
      %v11324 = vadd.f32 %v11013, %v11323
      %11325 = vmatmul.f32.gmra.mxu0 %v11157
      %v11326 = vpop.f32.mrf.mxu0
      %v11327 = vadd.f32 %v11013, %v11326
      %11328 = vmatmul.f32.gmra.mxu0 %v11160
      %v11329 = vpop.f32.mrf.mxu0
      %v11330 = vadd.f32 %v11013, %v11329
      %11331 = vmatmul.f32.gmra.mxu0 %v11163
      %v11332 = vpop.f32.mrf.mxu0
      %v11333 = vadd.f32 %v11013, %v11332
      %11334 = vdwg.mxu0
      %11385 = vrot.lane.b32.xlu0 %v4074, 8
      %v11386 = vpop.permute.xlu0 %11385
      %11387 = vrot.lane.b32.xlu0 %v4077, 8
      %v11388 = vpop.permute.xlu0 %11387
      %11389 = vrot.lane.b32.xlu0 %v4080, 8
      %v11390 = vpop.permute.xlu0 %11389
      %11391 = vrot.lane.b32.xlu0 %v4083, 8
      %v11392 = vpop.permute.xlu0 %11391
      %11393 = vrot.lane.b32.xlu0 %v4086, 8
      %v11394 = vpop.permute.xlu0 %11393
      %11395 = vrot.lane.b32.xlu0 %v4089, 8
      %v11396 = vpop.permute.xlu0 %11395
      %11397 = vrot.lane.b32.xlu0 %v4092, 8
      %v11398 = vpop.permute.xlu0 %11397
      %11399 = vrot.lane.b32.xlu0 %v4095, 8
      %v11400 = vpop.permute.xlu0 %11399
      %11401 = vrot.lane.b32.xlu0 %v4098, 8
      %v11402 = vpop.permute.xlu0 %11401
      %11403 = vrot.lane.b32.xlu0 %v4101, 8
      %v11404 = vpop.permute.xlu0 %11403
      %11405 = vrot.lane.b32.xlu0 %v4104, 8
      %v11406 = vpop.permute.xlu0 %11405
      %11407 = vrot.lane.b32.xlu0 %v4107, 8
      %v11408 = vpop.permute.xlu0 %11407
      %11409 = vrot.lane.b32.xlu0 %v4110, 8
      %v11410 = vpop.permute.xlu0 %11409
      %11411 = vrot.lane.b32.xlu0 %v4113, 8
      %v11412 = vpop.permute.xlu0 %11411
      %11413 = vrot.lane.b32.xlu0 %v4116, 8
      %v11414 = vpop.permute.xlu0 %11413
      %11415 = vrot.lane.b32.xlu0 %v4119, 8
      %v11416 = vpop.permute.xlu0 %11415
      %11417 = vrot.lane.b32.xlu0 %v4122, 8
      %v11418 = vpop.permute.xlu0 %11417
      %11419 = vrot.lane.b32.xlu0 %v4125, 8
      %v11420 = vpop.permute.xlu0 %11419
      %11421 = vrot.lane.b32.xlu0 %v4128, 8
      %v11422 = vpop.permute.xlu0 %11421
      %11423 = vrot.lane.b32.xlu0 %v4131, 8
      %v11424 = vpop.permute.xlu0 %11423
      %11425 = vrot.lane.b32.xlu0 %v4134, 8
      %v11426 = vpop.permute.xlu0 %11425
      %11427 = vrot.lane.b32.xlu0 %v4137, 8
      %v11428 = vpop.permute.xlu0 %11427
      %11429 = vrot.lane.b32.xlu0 %v4140, 8
      %v11430 = vpop.permute.xlu0 %11429
      %11431 = vrot.lane.b32.xlu0 %v4143, 8
      %v11432 = vpop.permute.xlu0 %11431
      %11433 = vrot.lane.b32.xlu0 %v4146, 8
      %v11434 = vpop.permute.xlu0 %11433
      %11435 = vrot.lane.b32.xlu0 %v4149, 8
      %v11436 = vpop.permute.xlu0 %11435
      %11437 = vrot.lane.b32.xlu0 %v4152, 8
      %v11438 = vpop.permute.xlu0 %11437
      %11439 = vrot.lane.b32.xlu0 %v4155, 8
      %v11440 = vpop.permute.xlu0 %11439
      %11441 = vrot.lane.b32.xlu0 %v4158, 8
      %v11442 = vpop.permute.xlu0 %11441
      %11443 = vrot.lane.b32.xlu0 %v4161, 8
      %v11444 = vpop.permute.xlu0 %11443
      %11445 = vrot.lane.b32.xlu0 %v4164, 8
      %v11446 = vpop.permute.xlu0 %11445
      %11447 = vrot.lane.b32.xlu0 %v4167, 8
      %v11448 = vpop.permute.xlu0 %11447
      %11449 = vrot.lane.b32.xlu0 %v4170, 8
      %v11450 = vpop.permute.xlu0 %11449
      %11451 = vrot.lane.b32.xlu0 %v4173, 8
      %v11452 = vpop.permute.xlu0 %11451
      %11453 = vrot.lane.b32.xlu0 %v4176, 8
      %v11454 = vpop.permute.xlu0 %11453
      %11455 = vrot.lane.b32.xlu0 %v4179, 8
      %v11456 = vpop.permute.xlu0 %11455
      %11457 = vrot.lane.b32.xlu0 %v4182, 8
      %v11458 = vpop.permute.xlu0 %11457
      %11459 = vrot.lane.b32.xlu0 %v4185, 8
      %v11460 = vpop.permute.xlu0 %11459
      %11461 = vrot.lane.b32.xlu0 %v4188, 8
      %v11462 = vpop.permute.xlu0 %11461
      %11463 = vrot.lane.b32.xlu0 %v4191, 8
      %v11464 = vpop.permute.xlu0 %11463
      %11465 = vrot.lane.b32.xlu0 %v4194, 8
      %v11466 = vpop.permute.xlu0 %11465
      %11467 = vrot.lane.b32.xlu0 %v4197, 8
      %v11468 = vpop.permute.xlu0 %11467
      %11469 = vrot.lane.b32.xlu0 %v4200, 8
      %v11470 = vpop.permute.xlu0 %11469
      %11471 = vrot.lane.b32.xlu0 %v4203, 8
      %v11472 = vpop.permute.xlu0 %11471
      %11473 = vrot.lane.b32.xlu0 %v4206, 8
      %v11474 = vpop.permute.xlu0 %11473
      %11475 = vrot.lane.b32.xlu0 %v4209, 8
      %v11476 = vpop.permute.xlu0 %11475
      %11477 = vrot.lane.b32.xlu0 %v4212, 8
      %v11478 = vpop.permute.xlu0 %11477
      %11479 = vrot.lane.b32.xlu0 %v4215, 8
      %v11480 = vpop.permute.xlu0 %11479
      %11481 = vrot.lane.b32.xlu0 %v4218, 8
      %v11482 = vpop.permute.xlu0 %11481
      %11483 = vrot.lane.b32.xlu0 %v4221, 8
      %v11484 = vpop.permute.xlu0 %11483
      %11585 = vrot.lane.b32.xlu0 %v10191, 16
      %v11586 = vpop.permute.xlu0 %11585
      %11587 = vrot.lane.b32.xlu0 %v10194, 16
      %v11588 = vpop.permute.xlu0 %11587
      %11589 = vrot.lane.b32.xlu0 %v10197, 16
      %v11590 = vpop.permute.xlu0 %11589
      %11591 = vrot.lane.b32.xlu0 %v10200, 16
      %v11592 = vpop.permute.xlu0 %11591
      %11593 = vrot.lane.b32.xlu0 %v10203, 16
      %v11594 = vpop.permute.xlu0 %11593
      %11595 = vrot.lane.b32.xlu0 %v10206, 16
      %v11596 = vpop.permute.xlu0 %11595
      %11597 = vrot.lane.b32.xlu0 %v10209, 16
      %v11598 = vpop.permute.xlu0 %11597
      %11599 = vrot.lane.b32.xlu0 %v10212, 16
      %v11600 = vpop.permute.xlu0 %11599
      %11601 = vrot.lane.b32.xlu0 %v10215, 16
      %v11602 = vpop.permute.xlu0 %11601
      %11603 = vrot.lane.b32.xlu0 %v10218, 16
      %v11604 = vpop.permute.xlu0 %11603
      %11605 = vrot.lane.b32.xlu0 %v10221, 16
      %v11606 = vpop.permute.xlu0 %11605
      %11607 = vrot.lane.b32.xlu0 %v10224, 16
      %v11608 = vpop.permute.xlu0 %11607
      %11609 = vrot.lane.b32.xlu0 %v10227, 16
      %v11610 = vpop.permute.xlu0 %11609
      %11611 = vrot.lane.b32.xlu0 %v10230, 16
      %v11612 = vpop.permute.xlu0 %11611
      %11613 = vrot.lane.b32.xlu0 %v10233, 16
      %v11614 = vpop.permute.xlu0 %11613
      %11615 = vrot.lane.b32.xlu0 %v10236, 16
      %v11616 = vpop.permute.xlu0 %11615
      %11617 = vrot.lane.b32.xlu0 %v10239, 16
      %v11618 = vpop.permute.xlu0 %11617
      %11619 = vrot.lane.b32.xlu0 %v10242, 16
      %v11620 = vpop.permute.xlu0 %11619
      %11621 = vrot.lane.b32.xlu0 %v10245, 16
      %v11622 = vpop.permute.xlu0 %11621
      %11623 = vrot.lane.b32.xlu0 %v10248, 16
      %v11624 = vpop.permute.xlu0 %11623
      %11625 = vrot.lane.b32.xlu0 %v10251, 16
      %v11626 = vpop.permute.xlu0 %11625
      %11627 = vrot.lane.b32.xlu0 %v10254, 16
      %v11628 = vpop.permute.xlu0 %11627
      %11629 = vrot.lane.b32.xlu0 %v10257, 16
      %v11630 = vpop.permute.xlu0 %11629
      %11631 = vrot.lane.b32.xlu0 %v10260, 16
      %v11632 = vpop.permute.xlu0 %11631
      %11633 = vrot.lane.b32.xlu0 %v10263, 16
      %v11634 = vpop.permute.xlu0 %11633
      %11635 = vrot.lane.b32.xlu0 %v10266, 16
      %v11636 = vpop.permute.xlu0 %11635
      %11637 = vrot.lane.b32.xlu0 %v10269, 16
      %v11638 = vpop.permute.xlu0 %11637
      %11639 = vrot.lane.b32.xlu0 %v10272, 16
      %v11640 = vpop.permute.xlu0 %11639
      %11641 = vrot.lane.b32.xlu0 %v10275, 16
      %v11642 = vpop.permute.xlu0 %11641
      %11643 = vrot.lane.b32.xlu0 %v10278, 16
      %v11644 = vpop.permute.xlu0 %11643
      %11645 = vrot.lane.b32.xlu0 %v10281, 16
      %v11646 = vpop.permute.xlu0 %11645
      %11647 = vrot.lane.b32.xlu0 %v10284, 16
      %v11648 = vpop.permute.xlu0 %11647
      %11649 = vrot.lane.b32.xlu0 %v10287, 16
      %v11650 = vpop.permute.xlu0 %11649
      %11651 = vrot.lane.b32.xlu0 %v10290, 16
      %v11652 = vpop.permute.xlu0 %11651
      %11653 = vrot.lane.b32.xlu0 %v10293, 16
      %v11654 = vpop.permute.xlu0 %11653
      %11655 = vrot.lane.b32.xlu0 %v10296, 16
      %v11656 = vpop.permute.xlu0 %11655
      %11657 = vrot.lane.b32.xlu0 %v10299, 16
      %v11658 = vpop.permute.xlu0 %11657
      %11659 = vrot.lane.b32.xlu0 %v10302, 16
      %v11660 = vpop.permute.xlu0 %11659
      %11661 = vrot.lane.b32.xlu0 %v10305, 16
      %v11662 = vpop.permute.xlu0 %11661
      %11663 = vrot.lane.b32.xlu0 %v10308, 16
      %v11664 = vpop.permute.xlu0 %11663
      %11665 = vrot.lane.b32.xlu0 %v10311, 16
      %v11666 = vpop.permute.xlu0 %11665
      %11667 = vrot.lane.b32.xlu0 %v10314, 16
      %v11668 = vpop.permute.xlu0 %11667
      %11669 = vrot.lane.b32.xlu0 %v10317, 16
      %v11670 = vpop.permute.xlu0 %11669
      %11671 = vrot.lane.b32.xlu0 %v10320, 16
      %v11672 = vpop.permute.xlu0 %11671
      %11673 = vrot.lane.b32.xlu0 %v10323, 16
      %v11674 = vpop.permute.xlu0 %11673
      %11675 = vrot.lane.b32.xlu0 %v10326, 16
      %v11676 = vpop.permute.xlu0 %11675
      %11677 = vrot.lane.b32.xlu0 %v10329, 16
      %v11678 = vpop.permute.xlu0 %11677
      %11679 = vrot.lane.b32.xlu0 %v10332, 16
      %v11680 = vpop.permute.xlu0 %11679
      %11681 = vrot.lane.b32.xlu0 %v10335, 16
      %v11682 = vpop.permute.xlu0 %11681
      %11683 = vrot.lane.b32.xlu0 %v10338, 16
      %v11684 = vpop.permute.xlu0 %11683
      %11785 = vrot.lane.b32.xlu0 %v11186, 24
      %v11786 = vpop.permute.xlu0 %11785
      %11787 = vrot.lane.b32.xlu0 %v11189, 24
      %v11788 = vpop.permute.xlu0 %11787
      %11789 = vrot.lane.b32.xlu0 %v11192, 24
      %v11790 = vpop.permute.xlu0 %11789
      %11791 = vrot.lane.b32.xlu0 %v11195, 24
      %v11792 = vpop.permute.xlu0 %11791
      %11793 = vrot.lane.b32.xlu0 %v11198, 24
      %v11794 = vpop.permute.xlu0 %11793
      %11795 = vrot.lane.b32.xlu0 %v11201, 24
      %v11796 = vpop.permute.xlu0 %11795
      %11797 = vrot.lane.b32.xlu0 %v11204, 24
      %v11798 = vpop.permute.xlu0 %11797
      %11799 = vrot.lane.b32.xlu0 %v11207, 24
      %v11800 = vpop.permute.xlu0 %11799
      %11801 = vrot.lane.b32.xlu0 %v11210, 24
      %v11802 = vpop.permute.xlu0 %11801
      %11803 = vrot.lane.b32.xlu0 %v11213, 24
      %v11804 = vpop.permute.xlu0 %11803
      %11805 = vrot.lane.b32.xlu0 %v11216, 24
      %v11806 = vpop.permute.xlu0 %11805
      %11807 = vrot.lane.b32.xlu0 %v11219, 24
      %v11808 = vpop.permute.xlu0 %11807
      %11809 = vrot.lane.b32.xlu0 %v11222, 24
      %v11810 = vpop.permute.xlu0 %11809
      %11811 = vrot.lane.b32.xlu0 %v11225, 24
      %v11812 = vpop.permute.xlu0 %11811
      %11813 = vrot.lane.b32.xlu0 %v11228, 24
      %v11814 = vpop.permute.xlu0 %11813
      %11815 = vrot.lane.b32.xlu0 %v11231, 24
      %v11816 = vpop.permute.xlu0 %11815
      %11817 = vrot.lane.b32.xlu0 %v11234, 24
      %v11818 = vpop.permute.xlu0 %11817
      %11819 = vrot.lane.b32.xlu0 %v11237, 24
      %v11820 = vpop.permute.xlu0 %11819
      %11821 = vrot.lane.b32.xlu0 %v11240, 24
      %v11822 = vpop.permute.xlu0 %11821
      %11823 = vrot.lane.b32.xlu0 %v11243, 24
      %v11824 = vpop.permute.xlu0 %11823
      %11825 = vrot.lane.b32.xlu0 %v11246, 24
      %v11826 = vpop.permute.xlu0 %11825
      %11827 = vrot.lane.b32.xlu0 %v11249, 24
      %v11828 = vpop.permute.xlu0 %11827
      %11829 = vrot.lane.b32.xlu0 %v11252, 24
      %v11830 = vpop.permute.xlu0 %11829
      %11831 = vrot.lane.b32.xlu0 %v11255, 24
      %v11832 = vpop.permute.xlu0 %11831
      %11833 = vrot.lane.b32.xlu0 %v11258, 24
      %v11834 = vpop.permute.xlu0 %11833
      %11835 = vrot.lane.b32.xlu0 %v11261, 24
      %v11836 = vpop.permute.xlu0 %11835
      %11837 = vrot.lane.b32.xlu0 %v11264, 24
      %v11838 = vpop.permute.xlu0 %11837
      %11839 = vrot.lane.b32.xlu0 %v11267, 24
      %v11840 = vpop.permute.xlu0 %11839
      %11841 = vrot.lane.b32.xlu0 %v11270, 24
      %v11842 = vpop.permute.xlu0 %11841
      %11843 = vrot.lane.b32.xlu0 %v11273, 24
      %v11844 = vpop.permute.xlu0 %11843
      %11845 = vrot.lane.b32.xlu0 %v11276, 24
      %v11846 = vpop.permute.xlu0 %11845
      %11847 = vrot.lane.b32.xlu0 %v11279, 24
      %v11848 = vpop.permute.xlu0 %11847
      %11849 = vrot.lane.b32.xlu0 %v11282, 24
      %v11850 = vpop.permute.xlu0 %11849
      %11851 = vrot.lane.b32.xlu0 %v11285, 24
      %v11852 = vpop.permute.xlu0 %11851
      %11853 = vrot.lane.b32.xlu0 %v11288, 24
      %v11854 = vpop.permute.xlu0 %11853
      %11855 = vrot.lane.b32.xlu0 %v11291, 24
      %v11856 = vpop.permute.xlu0 %11855
      %11857 = vrot.lane.b32.xlu0 %v11294, 24
      %v11858 = vpop.permute.xlu0 %11857
      %11859 = vrot.lane.b32.xlu0 %v11297, 24
      %v11860 = vpop.permute.xlu0 %11859
      %11861 = vrot.lane.b32.xlu0 %v11300, 24
      %v11862 = vpop.permute.xlu0 %11861
      %11863 = vrot.lane.b32.xlu0 %v11303, 24
      %v11864 = vpop.permute.xlu0 %11863
      %11865 = vrot.lane.b32.xlu0 %v11306, 24
      %v11866 = vpop.permute.xlu0 %11865
      %11867 = vrot.lane.b32.xlu0 %v11309, 24
      %v11868 = vpop.permute.xlu0 %11867
      %11869 = vrot.lane.b32.xlu0 %v11312, 24
      %v11870 = vpop.permute.xlu0 %11869
      %11871 = vrot.lane.b32.xlu0 %v11315, 24
      %v11872 = vpop.permute.xlu0 %11871
      %11873 = vrot.lane.b32.xlu0 %v11318, 24
      %v11874 = vpop.permute.xlu0 %11873
      %11875 = vrot.lane.b32.xlu0 %v11321, 24
      %v11876 = vpop.permute.xlu0 %11875
      %11877 = vrot.lane.b32.xlu0 %v11324, 24
      %v11878 = vpop.permute.xlu0 %11877
      %11879 = vrot.lane.b32.xlu0 %v11327, 24
      %v11880 = vpop.permute.xlu0 %11879
      %11881 = vrot.lane.b32.xlu0 %v11330, 24
      %v11882 = vpop.permute.xlu0 %11881
      %11883 = vrot.lane.b32.xlu0 %v11333, 24
      %v11884 = vpop.permute.xlu0 %11883
      %v11935 = vsel %vm3536, %v988, %v11386
      %v11936 = vsel %vm3536, %v991, %v11388
      %v11937 = vsel %vm3536, %v994, %v11390
      %v11938 = vsel %vm3536, %v997, %v11392
      %v11939 = vsel %vm3536, %v1000, %v11394
      %v11940 = vsel %vm3536, %v1003, %v11396
      %v11941 = vsel %vm3536, %v1006, %v11398
      %v11942 = vsel %vm3536, %v1009, %v11400
      %v11943 = vsel %vm3536, %v1012, %v11402
      %v11944 = vsel %vm3536, %v1015, %v11404
      %v11945 = vsel %vm3536, %v1018, %v11406
      %v11946 = vsel %vm3536, %v1021, %v11408
      %v11947 = vsel %vm3536, %v1024, %v11410
      %v11948 = vsel %vm3536, %v1027, %v11412
      %v11949 = vsel %vm3536, %v1030, %v11414
      %v11950 = vsel %vm3536, %v1033, %v11416
      %v11951 = vsel %vm3536, %v1036, %v11418
      %v11952 = vsel %vm3536, %v1039, %v11420
      %v11953 = vsel %vm3536, %v1042, %v11422
      %v11954 = vsel %vm3536, %v1045, %v11424
      %v11955 = vsel %vm3536, %v1048, %v11426
      %v11956 = vsel %vm3536, %v1051, %v11428
      %v11957 = vsel %vm3536, %v1054, %v11430
      %v11958 = vsel %vm3536, %v1057, %v11432
      %v11959 = vsel %vm3536, %v1060, %v11434
      %v11960 = vsel %vm3536, %v1063, %v11436
      %v11961 = vsel %vm3536, %v1066, %v11438
      %v11962 = vsel %vm3536, %v1069, %v11440
      %v11963 = vsel %vm3536, %v1072, %v11442
      %v11964 = vsel %vm3536, %v1075, %v11444
      %v11965 = vsel %vm3536, %v1078, %v11446
      %v11966 = vsel %vm3536, %v1081, %v11448
      %v11967 = vsel %vm3536, %v1084, %v11450
      %v11968 = vsel %vm3536, %v1087, %v11452
      %v11969 = vsel %vm3536, %v1090, %v11454
      %v11970 = vsel %vm3536, %v1093, %v11456
      %v11971 = vsel %vm3536, %v1096, %v11458
      %v11972 = vsel %vm3536, %v1099, %v11460
      %v11973 = vsel %vm3536, %v1102, %v11462
      %v11974 = vsel %vm3536, %v1105, %v11464
      %v11975 = vsel %vm3536, %v1108, %v11466
      %v11976 = vsel %vm3536, %v1111, %v11468
      %v11977 = vsel %vm3536, %v1114, %v11470
      %v11978 = vsel %vm3536, %v1117, %v11472
      %v11979 = vsel %vm3536, %v1120, %v11474
      %v11980 = vsel %vm3536, %v1123, %v11476
      %v11981 = vsel %vm3536, %v1126, %v11478
      %v11982 = vsel %vm3536, %v1129, %v11480
      %v11983 = vsel %vm3536, %v1132, %v11482
      %v11984 = vsel %vm3536, %v1135, %v11484
      %v11985 = vsel %vm3638, %v11935, %v11586
      %v11986 = vsel %vm3638, %v11936, %v11588
      %v11987 = vsel %vm3638, %v11937, %v11590
      %v11988 = vsel %vm3638, %v11938, %v11592
      %v11989 = vsel %vm3638, %v11939, %v11594
      %v11990 = vsel %vm3638, %v11940, %v11596
      %v11991 = vsel %vm3638, %v11941, %v11598
      %v11992 = vsel %vm3638, %v11942, %v11600
      %v11993 = vsel %vm3638, %v11943, %v11602
      %v11994 = vsel %vm3638, %v11944, %v11604
      %v11995 = vsel %vm3638, %v11945, %v11606
      %v11996 = vsel %vm3638, %v11946, %v11608
      %v11997 = vsel %vm3638, %v11947, %v11610
      %v11998 = vsel %vm3638, %v11948, %v11612
      %v11999 = vsel %vm3638, %v11949, %v11614
      %v12000 = vsel %vm3638, %v11950, %v11616
      %v12001 = vsel %vm3638, %v11951, %v11618
      %v12002 = vsel %vm3638, %v11952, %v11620
      %v12003 = vsel %vm3638, %v11953, %v11622
      %v12004 = vsel %vm3638, %v11954, %v11624
      %v12005 = vsel %vm3638, %v11955, %v11626
      %v12006 = vsel %vm3638, %v11956, %v11628
      %v12007 = vsel %vm3638, %v11957, %v11630
      %v12008 = vsel %vm3638, %v11958, %v11632
      %v12009 = vsel %vm3638, %v11959, %v11634
      %v12010 = vsel %vm3638, %v11960, %v11636
      %v12011 = vsel %vm3638, %v11961, %v11638
      %v12012 = vsel %vm3638, %v11962, %v11640
      %v12013 = vsel %vm3638, %v11963, %v11642
      %v12014 = vsel %vm3638, %v11964, %v11644
      %v12015 = vsel %vm3638, %v11965, %v11646
      %v12016 = vsel %vm3638, %v11966, %v11648
      %v12017 = vsel %vm3638, %v11967, %v11650
      %v12018 = vsel %vm3638, %v11968, %v11652
      %v12019 = vsel %vm3638, %v11969, %v11654
      %v12020 = vsel %vm3638, %v11970, %v11656
      %v12021 = vsel %vm3638, %v11971, %v11658
      %v12022 = vsel %vm3638, %v11972, %v11660
      %v12023 = vsel %vm3638, %v11973, %v11662
      %v12024 = vsel %vm3638, %v11974, %v11664
      %v12025 = vsel %vm3638, %v11975, %v11666
      %v12026 = vsel %vm3638, %v11976, %v11668
      %v12027 = vsel %vm3638, %v11977, %v11670
      %v12028 = vsel %vm3638, %v11978, %v11672
      %v12029 = vsel %vm3638, %v11979, %v11674
      %v12030 = vsel %vm3638, %v11980, %v11676
      %v12031 = vsel %vm3638, %v11981, %v11678
      %v12032 = vsel %vm3638, %v11982, %v11680
      %v12033 = vsel %vm3638, %v11983, %v11682
      %v12034 = vsel %vm3638, %v11984, %v11684
      %v12035 = vsel %vm3740, %v11985, %v11786
      %v12036 = vsel %vm3740, %v11986, %v11788
      %v12037 = vsel %vm3740, %v11987, %v11790
      %v12038 = vsel %vm3740, %v11988, %v11792
      %v12039 = vsel %vm3740, %v11989, %v11794
      %v12040 = vsel %vm3740, %v11990, %v11796
      %v12041 = vsel %vm3740, %v11991, %v11798
      %v12042 = vsel %vm3740, %v11992, %v11800
      %v12043 = vsel %vm3740, %v11993, %v11802
      %v12044 = vsel %vm3740, %v11994, %v11804
      %v12045 = vsel %vm3740, %v11995, %v11806
      %v12046 = vsel %vm3740, %v11996, %v11808
      %v12047 = vsel %vm3740, %v11997, %v11810
      %v12048 = vsel %vm3740, %v11998, %v11812
      %v12049 = vsel %vm3740, %v11999, %v11814
      %v12050 = vsel %vm3740, %v12000, %v11816
      %v12051 = vsel %vm3740, %v12001, %v11818
      %v12052 = vsel %vm3740, %v12002, %v11820
      %v12053 = vsel %vm3740, %v12003, %v11822
      %v12054 = vsel %vm3740, %v12004, %v11824
      %v12055 = vsel %vm3740, %v12005, %v11826
      %v12056 = vsel %vm3740, %v12006, %v11828
      %v12057 = vsel %vm3740, %v12007, %v11830
      %v12058 = vsel %vm3740, %v12008, %v11832
      %v12059 = vsel %vm3740, %v12009, %v11834
      %v12060 = vsel %vm3740, %v12010, %v11836
      %v12061 = vsel %vm3740, %v12011, %v11838
      %v12062 = vsel %vm3740, %v12012, %v11840
      %v12063 = vsel %vm3740, %v12013, %v11842
      %v12064 = vsel %vm3740, %v12014, %v11844
      %v12065 = vsel %vm3740, %v12015, %v11846
      %v12066 = vsel %vm3740, %v12016, %v11848
      %v12067 = vsel %vm3740, %v12017, %v11850
      %v12068 = vsel %vm3740, %v12018, %v11852
      %v12069 = vsel %vm3740, %v12019, %v11854
      %v12070 = vsel %vm3740, %v12020, %v11856
      %v12071 = vsel %vm3740, %v12021, %v11858
      %v12072 = vsel %vm3740, %v12022, %v11860
      %v12073 = vsel %vm3740, %v12023, %v11862
      %v12074 = vsel %vm3740, %v12024, %v11864
      %v12075 = vsel %vm3740, %v12025, %v11866
      %v12076 = vsel %vm3740, %v12026, %v11868
      %v12077 = vsel %vm3740, %v12027, %v11870
      %v12078 = vsel %vm3740, %v12028, %v11872
      %v12079 = vsel %vm3740, %v12029, %v11874
      %v12080 = vsel %vm3740, %v12030, %v11876
      %v12081 = vsel %vm3740, %v12031, %v11878
      %v12082 = vsel %vm3740, %v12032, %v11880
      %v12083 = vsel %vm3740, %v12033, %v11882
      %v12084 = vsel %vm3740, %v12034, %v11884
      %12085 = vst.msk [vmem:[%s359] sm:$0xff] %vm3842, %v12035
      %12086 = vst.msk [vmem:[%s359 + $0x8] sm:$0xff] %vm3842, %v12036
      %12087 = vst.msk [vmem:[%s359 + $0x10] sm:$0xff] %vm3842, %v12037
      %12088 = vst.msk [vmem:[%s359 + $0x18] sm:$0xff] %vm3842, %v12038
      %12089 = vst.msk [vmem:[%s359 + $0x20] sm:$0xff] %vm3842, %v12039
      %12090 = vst.msk [vmem:[%s359 + $0x28] sm:$0xff] %vm3842, %v12040
      %12091 = vst.msk [vmem:[%s359 + $0x30] sm:$0xff] %vm3842, %v12041
      %12092 = vst.msk [vmem:[%s359 + $0x38] sm:$0xff] %vm3842, %v12042
      %12093 = vst.msk [vmem:[%s359 + $0x40] sm:$0xff] %vm3842, %v12043
      %12094 = vst.msk [vmem:[%s359 + $0x48] sm:$0xff] %vm3842, %v12044
      %12095 = vst.msk [vmem:[%s359 + $0x50] sm:$0xff] %vm3842, %v12045
      %12096 = vst.msk [vmem:[%s359 + $0x58] sm:$0xff] %vm3842, %v12046
      %12097 = vst.msk [vmem:[%s359 + $0x60] sm:$0xff] %vm3842, %v12047
      %12098 = vst.msk [vmem:[%s359 + $0x68] sm:$0xff] %vm3842, %v12048
      %12099 = vst.msk [vmem:[%s359 + $0x70] sm:$0xff] %vm3842, %v12049
      %12100 = vst.msk [vmem:[%s359 + $0x78] sm:$0xff] %vm3842, %v12050
      %12101 = vst.msk [vmem:[%s359 + $0x80] sm:$0xff] %vm3842, %v12051
      %12102 = vst.msk [vmem:[%s359 + $0x88] sm:$0xff] %vm3842, %v12052
      %12103 = vst.msk [vmem:[%s359 + $0x90] sm:$0xff] %vm3842, %v12053
      %12104 = vst.msk [vmem:[%s359 + $0x98] sm:$0xff] %vm3842, %v12054
      %12105 = vst.msk [vmem:[%s359 + $0xa0] sm:$0xff] %vm3842, %v12055
      %12106 = vst.msk [vmem:[%s359 + $0xa8] sm:$0xff] %vm3842, %v12056
      %12107 = vst.msk [vmem:[%s359 + $0xb0] sm:$0xff] %vm3842, %v12057
      %12108 = vst.msk [vmem:[%s359 + $0xb8] sm:$0xff] %vm3842, %v12058
      %12109 = vst.msk [vmem:[%s359 + $0xc0] sm:$0xff] %vm3842, %v12059
      %12110 = vst.msk [vmem:[%s359 + $0xc8] sm:$0xff] %vm3842, %v12060
      %12111 = vst.msk [vmem:[%s359 + $0xd0] sm:$0xff] %vm3842, %v12061
      %12112 = vst.msk [vmem:[%s359 + $0xd8] sm:$0xff] %vm3842, %v12062
      %12113 = vst.msk [vmem:[%s359 + $0xe0] sm:$0xff] %vm3842, %v12063
      %12114 = vst.msk [vmem:[%s359 + $0xe8] sm:$0xff] %vm3842, %v12064
      %12115 = vst.msk [vmem:[%s359 + $0xf0] sm:$0xff] %vm3842, %v12065
      %12116 = vst.msk [vmem:[%s359 + $0xf8] sm:$0xff] %vm3842, %v12066
      %12117 = vst.msk [vmem:[%s359 + $0x100] sm:$0xff] %vm3842, %v12067
      %12118 = vst.msk [vmem:[%s359 + $0x108] sm:$0xff] %vm3842, %v12068
      %12119 = vst.msk [vmem:[%s359 + $0x110] sm:$0xff] %vm3842, %v12069
      %12120 = vst.msk [vmem:[%s359 + $0x118] sm:$0xff] %vm3842, %v12070
      %12121 = vst.msk [vmem:[%s359 + $0x120] sm:$0xff] %vm3842, %v12071
      %12122 = vst.msk [vmem:[%s359 + $0x128] sm:$0xff] %vm3842, %v12072
      %12123 = vst.msk [vmem:[%s359 + $0x130] sm:$0xff] %vm3842, %v12073
      %12124 = vst.msk [vmem:[%s359 + $0x138] sm:$0xff] %vm3842, %v12074
      %12125 = vst.msk [vmem:[%s359 + $0x140] sm:$0xff] %vm3842, %v12075
      %12126 = vst.msk [vmem:[%s359 + $0x148] sm:$0xff] %vm3842, %v12076
      %12127 = vst.msk [vmem:[%s359 + $0x150] sm:$0xff] %vm3842, %v12077
      %12128 = vst.msk [vmem:[%s359 + $0x158] sm:$0xff] %vm3842, %v12078
      %12129 = vst.msk [vmem:[%s359 + $0x160] sm:$0xff] %vm3842, %v12079
      %12130 = vst.msk [vmem:[%s359 + $0x168] sm:$0xff] %vm3842, %v12080
      %12131 = vst.msk [vmem:[%s359 + $0x170] sm:$0xff] %vm3842, %v12081
      %12132 = vst.msk [vmem:[%s359 + $0x178] sm:$0xff] %vm3842, %v12082
      %12133 = vst.msk [vmem:[%s359 + $0x180] sm:$0xff] %vm3842, %v12083
      %12134 = vst.msk [vmem:[%s359 + $0x188] sm:$0xff] %vm3842, %v12084
      %p12135 = scmp.lt.s32.totalorder %s21, 1
      %s12136 = scalar_select %p12135, %s21, 1
      %s12137 = smul.addr %s12136, 50
      %s12138 = smul.addr %s12137, 8
      %s12139 = scalar_lea.vmem %s10, %s12138
      // Predicated region
      $region61: #{inception_block.1} parent=59 // pred_check
        %p12140 = pneg %p254
      $region62: #{inception_block.1} parent=59 // pred_check_branch
        %12142 = sbr.rel (%p12140) target = $region64
      $region63: #{inception_block.1} parent=59 // pred_region
        _
      $region64: #{inception_block.1} parent=59 // pred_fallthru
        _
    $region60: #{inception_block.1} parent=5 // pred_fallthru
      _
    %p12143 = scmp.le.s32.totalorder 2, %s16
    // Predicated region
    $region65: #{inception_block.1} parent=5 // pred_check
      %p12144 = pneg %p12143
    $region66: #{inception_block.1} parent=5 // pred_check_branch
      %12146 = sbr.rel (%p12144) target = $region68
    $region67: #{inception_block.1} parent=5 // pred_region
      %s12147 = ssub.s32 %s16, 2
      // Predicated region
      $region69: #{inception_block.1} parent=67 // pred_check
        %p12148 = pneg %p260
      $region70: #{inception_block.1} parent=67 // pred_check_branch
        %12150 = sbr.rel (%p12148) target = $region72
      $region71: #{inception_block.1} parent=67 // pred_region
        %p12151 = scmp.lt.s32.totalorder %s22, 1
        %s12152 = scalar_select %p12151, %s22, 1
        %s12153 = smul.addr %s12152, 50
        %s12154 = smul.addr %s12153, 8
        %s12155 = scalar_lea.vmem %s10, %s12154
      $region72: #{inception_block.1} parent=67 // pred_fallthru
        _
    $region68: #{inception_block.1} parent=5 // pred_fallthru
      _
  $region6: #{inception_block.1} parent=0 // loop_footer
    %s20 = sadd.s32 1, %s16
  $region7: #{inception_block.1} parent=0 // loop_footer_branch
    %15 = sbr.rel target = $region3
  $region8: #{inception_block.1} parent=0 // loop_exit
    _

</llo_original>
